<compile_context>
chip_gen: v7x
topology: tpu7x:2x2x1
jax: 0.10.0
libtpu: 0.0.40
codegen_flags: <defaults>
</compile_context>

<pallas_src>
import jax
import jax.numpy as jnp
from jax.experimental import pallas as pl
from jax.experimental.pallas import tpu as pltpu
import numpy as np


def _leaky(v, slope):
    return jnp.where(v > 0, v, slope * v)


def _make_kernel(H, W, Cin, gc, Cout):
    HW = H * W
    TOP = ((W + 1 + 7) // 8) * 8          # zero-halo rows above the interior (sublane aligned)
    BOT = ((W + 1 + 7) // 8) * 8          # zero-halo rows below the interior
    PAD = TOP + HW + BOT                  # padded-flat scratch rows
    Cmax = max(Cin, gc)

    def kernel(x_ref,
               w1a, b1a, w1c2, b1c2,
               w2a, b2a, w2c2, b2c2,
               w3,
               o_ref, pad_ref):
        # Zero only the halo rows; the interior is fully overwritten below.
        # (Done every step so grid iterations stay independent under "parallel".)
        pad_ref[pl.ds(0, TOP), :] = jnp.zeros((TOP, Cmax), jnp.float32)
        pad_ref[pl.ds(TOP + HW, BOT), :] = jnp.zeros((BOT, Cmax), jnp.float32)

        # Left/right-edge masks for the flat layout (row wrap-around), computed
        # in-kernel from an iota instead of lane-padded (HW,1) HBM inputs.
        col = jax.lax.broadcasted_iota(jnp.int32, (HW, 1), 0) % W
        m_left = (col >= 1).astype(jnp.float32)        # a left  neighbour exists
        m_right = (col <= W - 2).astype(jnp.float32)   # a right neighbour exists

        def mm(a_bf, w_ref):
            # bf16 x bf16 products, f32 accumulation (single MXU pass).
            return jnp.dot(a_bf, w_ref[...], preferred_element_type=jnp.float32)

        def patch3x3(C):
            # im2col: fold the 9 shifted taps into the contraction dim so a 3x3
            # "same" conv becomes a single MXU matmul with K = 9*C.
            taps = []
            for dy in range(3):
                for dx in range(3):
                    start = TOP + (dy - 1) * W + (dx - 1)
                    t = pad_ref[pl.ds(start, HW), :C]
                    if dx == 0:
                        t = t * m_left
                    elif dx == 2:
                        t = t * m_right
                    taps.append(t)
            return jnp.concatenate(taps, axis=-1).astype(jnp.bfloat16)   # (HW, 9*C)

        def unet_block(inp, C, wa, ba, wc2, bc2):
            # UNetConvBlock.forward (its InstanceNorm2d is declared but never used).
            # wa folds conv_1 AND the 1x1 identity conv (on the centre-tap rows)
            # into one (9*C, 2*gc) weight -> one matmul produces [conv_1 | identity].
            pad_ref[pl.ds(TOP, HW), :C] = inp
            both = mm(patch3x3(C), wa) + ba[...]             # (HW, 2*gc), f32
            h = _leaky(both[:, :gc], 0.1)                    # relu_1(conv_1(x))
            pad_ref[pl.ds(TOP, HW), :gc] = h
            h = _leaky(mm(patch3x3(gc), wc2) + bc2[...], 0.1)  # relu_2(conv_2(.))
            return h + both[:, gc:]                          # + identity(x) (bias folded)

        x2d = x_ref[0]                                       # (HW, Cin) f32
        x1 = _leaky(unet_block(x2d, Cin, w1a, b1a, w1c2, b1c2), 0.2)
        x2 = _leaky(unet_block(x1, gc, w2a, b2a, w2c2, b2c2), 0.2)
        # conv3: 1x1 conv (bias=False) on concat([x, x1, x2]) == one K=Cin+2*gc matmul.
        cat = jnp.concatenate([x2d, x1, x2], axis=-1).astype(jnp.bfloat16)
        o_ref[0] = _leaky(mm(cat, w3), 0.2)

    return kernel, PAD, Cmax


def dense_block_pallas(x_nchw, params):
    N, Cin, H, W = x_nchw.shape
    gc = params["b1"]["wc1"].shape[-1]
    Cout = params["w3"].shape[-1]
    HW = H * W

    kernel, PAD, Cmax = _make_kernel(H, W, Cin, gc, Cout)

    x_flat = jnp.transpose(x_nchw, (0, 2, 3, 1)).reshape(N, HW, Cin)

    def fuse_conv1_identity(p, cin):
        # (9, cin, gc) -> (9*cin, gc); identity weights go on the centre-tap rows
        # (k = 4, i.e. dy = dx = 1) of a zero block, then concat on the output axis.
        wc1 = p["wc1"].reshape(9 * cin, gc)
        wid = jnp.zeros((9 * cin, gc), jnp.float32).at[4 * cin:5 * cin, :].set(p["wid"])
        wa = jnp.concatenate([wc1, wid], axis=-1).astype(jnp.bfloat16)   # (9*cin, 2*gc)
        ba = jnp.concatenate([p["bc1"], p["bid"]], axis=-1)              # (1, 2*gc)
        return wa, ba

    def conv_w(w9):               # (9, Ci, Co) -> (9*Ci, Co), bf16 for the MXU
        return w9.reshape(-1, w9.shape[-1]).astype(jnp.bfloat16)

    p1, p2 = params["b1"], params["b2"]
    w1a, b1a = fuse_conv1_identity(p1, Cin)
    w2a, b2a = fuse_conv1_identity(p2, gc)
    args = [x_flat,
            w1a, b1a, conv_w(p1["wc2"]), p1["bc2"],
            w2a, b2a, conv_w(p2["wc2"]), p2["bc2"],
            params["w3"].astype(jnp.bfloat16)]

    def full_spec(a):
        nd = a.ndim
        return pl.BlockSpec(a.shape, lambda n, _nd=nd: (0,) * _nd)

    in_specs = ([pl.BlockSpec((1, HW, Cin), lambda n: (n, 0, 0))]
                + [full_spec(a) for a in args[1:]])

    out = pl.pallas_call(
        kernel,
        out_shape=jax.ShapeDtypeStruct((N, HW, Cout), jnp.float32),
        grid_spec=pltpu.PrefetchScalarGridSpec(
            num_scalar_prefetch=0,
            grid=(N,),                               # one batch element per step
            in_specs=in_specs,
            out_specs=pl.BlockSpec((1, HW, Cout), lambda n: (n, 0, 0)),
            scratch_shapes=[pltpu.VMEM((PAD, Cmax), jnp.float32)]),
        compiler_params=pltpu.CompilerParams(
            dimension_semantics=("parallel",),
            vmem_limit_bytes=32 * 1024 * 1024),
    )(*args)

    return jnp.transpose(out.reshape(N, H, W, Cout), (0, 3, 1, 2))


# ----------------------- pure-JAX reference (same math) -----------------------
def dense_block_ref(x_nchw, params):
    # Mirrors the kernel's compute precision: every contraction uses bf16
    # products with f32 accumulation; biases, activations, residuals stay f32.
    x = jnp.transpose(x_nchw, (0, 2, 3, 1))     # NHWC

    def bf(t):
        return t.astype(jnp.bfloat16)

    def conv3x3(inp, w9, b):
        n, h, w, c = inp.shape
        xp = jnp.pad(bf(inp), ((0, 0), (1, 1), (1, 1), (0, 0)))
        out = jnp.zeros((n, h, w, w9.shape[-1]), jnp.float32)
        for dy in range(3):
            for dx in range(3):
                out = out + jnp.einsum("nhwc,co->nhwo",
                                       xp[:, dy:dy + h, dx:dx + w, :],
                                       bf(w9[dy * 3 + dx]),
                                       preferred_element_type=jnp.float32)
        return out + b

    def conv1x1(inp, w):
        return jnp.einsum("nhwc,co->nhwo", bf(inp), bf(w),
                          preferred_element_type=jnp.float32)

    def block(inp, p):
        out = _leaky(conv3x3(inp, p["wc1"], p["bc1"]), 0.1)
        out = _leaky(conv3x3(out, p["wc2"], p["bc2"]), 0.1)
        return out + conv1x1(inp, p["wid"]) + p["bid"]

    x1 = _leaky(block(x, params["b1"]), 0.2)
    x2 = _leaky(block(x1, params["b2"]), 0.2)
    x3 = _leaky(conv1x1(jnp.concatenate([x, x1, x2], axis=-1), params["w3"]), 0.2)
    return jnp.transpose(x3, (0, 3, 1, 2))


# ----------------------------- parameter init --------------------------------
def _xavier(key, shape, fan_in, fan_out, scale=0.1):
    std = (2.0 / (fan_in + fan_out)) ** 0.5
    return scale * std * jax.random.normal(key, shape, dtype=jnp.float32)


def make_params(key, channel_in, channel_out, gc=16):
    # Weight layout: 3x3 conv weights stored as (9, Cin, Cout) with k = dy*3+dx
    # equal to torch weight[:, :, dy, dx].T ; 1x1 convs as (Cin, Cout).
    # PyTorch init zeroes the biases; small nonzero biases are used here so the
    # bias-add path is numerically exercised (init values are synthetic).
    ks = jax.random.split(key, 13)

    def unet(keys, cin, cout):
        return dict(
            wc1=_xavier(keys[0], (9, cin, cout), cin * 9, cout * 9),
            bc1=0.01 * jax.random.normal(keys[1], (1, cout), dtype=jnp.float32),
            wc2=_xavier(keys[2], (9, cout, cout), cout * 9, cout * 9),
            bc2=0.01 * jax.random.normal(keys[3], (1, cout), dtype=jnp.float32),
            wid=_xavier(keys[4], (cin, cout), cin, cout),
            bid=0.01 * jax.random.normal(keys[5], (1, cout), dtype=jnp.float32),
        )

    return dict(
        b1=unet(ks[0:6], channel_in, gc),
        b2=unet(ks[6:12], gc, gc),
        w3=_xavier(ks[12], (channel_in + 2 * gc, channel_out),
                   channel_in + 2 * gc, channel_out),
    )


if __name__ == "__main__":
    key = jax.random.PRNGKey(0)
    k_x, k_p = jax.random.split(key)
    N, Cin, H, W = 2, 4, 16, 16
    Cout, gc = 8, 16

    x = jax.random.normal(k_x, (N, Cin, H, W), dtype=jnp.float32)
    params = make_params(k_p, Cin, Cout, gc)

    out = jax.block_until_ready(jax.jit(dense_block_pallas)(x, params))
    ref = jax.block_until_ready(jax.jit(dense_block_ref)(x, params))

    assert out.shape == (N, Cout, H, W), out.shape
    out_np, ref_np = np.asarray(out), np.asarray(ref)
    err = float(np.max(np.abs(out_np - ref_np)))
    # Kernel and reference use identical bf16 products with f32 accumulation;
    # residual differences are f32 summation order plus rare 1-ulp bf16 ties.
    if not np.allclose(out_np, ref_np, atol=2e-4, rtol=1e-3):
        raise AssertionError(f"Pallas kernel mismatch vs reference, max abs err = {err}")
    print("KERNEL_OK")
</pallas_src>

<mosaic_0001>
module attributes {stable_mosaic.version = 11 : i64} {
  func.func @kernel(%arg0: i32, %arg1: memref<1x256x4xf32, #tpu.memory_space<vmem>>, %arg2: memref<36x32xbf16, #tpu.memory_space<vmem>>, %arg3: memref<1x32xf32, #tpu.memory_space<vmem>>, %arg4: memref<144x16xbf16, #tpu.memory_space<vmem>>, %arg5: memref<1x16xf32, #tpu.memory_space<vmem>>, %arg6: memref<144x32xbf16, #tpu.memory_space<vmem>>, %arg7: memref<1x32xf32, #tpu.memory_space<vmem>>, %arg8: memref<144x16xbf16, #tpu.memory_space<vmem>>, %arg9: memref<1x16xf32, #tpu.memory_space<vmem>>, %arg10: memref<36x8xbf16, #tpu.memory_space<vmem>>, %arg11: memref<1x256x8xf32, #tpu.memory_space<vmem>>, %arg12: memref<304x16xf32, #tpu.memory_space<vmem>>) attributes {dimension_semantics = [#tpu.dimension_semantics<parallel>], iteration_bounds = array<i64: 2>, scalar_prefetch = 0 : i64, scratch_operands = 1 : i64, tpu.core_type = #tpu.core_type<tc>, window_params = [{transform_indices = @transform_0, window_bounds = array<i64: 1, 256, 4>}, {pipeline_mode = #tpu.pipeline_mode<synchronous>, transform_indices = @transform_1, window_bounds = array<i64: 36, 32>}, {pipeline_mode = #tpu.pipeline_mode<synchronous>, transform_indices = @transform_2, window_bounds = array<i64: 1, 32>}, {pipeline_mode = #tpu.pipeline_mode<synchronous>, transform_indices = @transform_3, window_bounds = array<i64: 144, 16>}, {pipeline_mode = #tpu.pipeline_mode<synchronous>, transform_indices = @transform_4, window_bounds = array<i64: 1, 16>}, {pipeline_mode = #tpu.pipeline_mode<synchronous>, transform_indices = @transform_5, window_bounds = array<i64: 144, 32>}, {pipeline_mode = #tpu.pipeline_mode<synchronous>, transform_indices = @transform_6, window_bounds = array<i64: 1, 32>}, {pipeline_mode = #tpu.pipeline_mode<synchronous>, transform_indices = @transform_7, window_bounds = array<i64: 144, 16>}, {pipeline_mode = #tpu.pipeline_mode<synchronous>, transform_indices = @transform_8, window_bounds = array<i64: 1, 16>}, {pipeline_mode = #tpu.pipeline_mode<synchronous>, transform_indices = @transform_9, window_bounds = array<i64: 36, 8>}, {transform_indices = @transform_10, window_bounds = array<i64: 1, 256, 8>}]} {
    %cst = arith.constant 0.000000e+00 : f32
    %0 = vector.broadcast %cst : f32 to vector<24x16xf32>
    %c0 = arith.constant 0 : index
    %c0_0 = arith.constant 0 : index
    %1 = vector.load %arg12[%c0, %c0_0] : memref<304x16xf32, #tpu.memory_space<vmem>>, vector<24x16xf32>
    tpu.vector_store %arg12[%c0, %c0_0], %0 {strides = array<i32>} : memref<304x16xf32, #tpu.memory_space<vmem>>, vector<24x16xf32>,
    %cst_1 = arith.constant 0.000000e+00 : f32
    %2 = vector.broadcast %cst_1 : f32 to vector<24x16xf32>
    %c280 = arith.constant 280 : index
    %c0_2 = arith.constant 0 : index
    %3 = vector.load %arg12[%c280, %c0_2] : memref<304x16xf32, #tpu.memory_space<vmem>>, vector<24x16xf32>
    tpu.vector_store %arg12[%c280, %c0_2], %2 {strides = array<i32>} : memref<304x16xf32, #tpu.memory_space<vmem>>, vector<24x16xf32>,
    %4 = tpu.iota {dimensions = array<i32: 0>} : vector<256x1xi32>
    %c16_i32 = arith.constant 16 : i32
    %c0_i32 = arith.constant 0 : i32
    %5 = arith.cmpi eq, %c16_i32, %c0_i32 : i32
    %c1_i32 = arith.constant 1 : i32
    %6 = arith.select %5, %c1_i32, %c16_i32 : i32
    %7 = vector.broadcast %6 : i32 to vector<256x1xi32>
    %8 = arith.remsi %4, %7 : vector<256x1xi32>
    %c0_i32_3 = arith.constant 0 : i32
    %9 = vector.broadcast %c0_i32_3 : i32 to vector<256x1xi32>
    %10 = arith.cmpi ne, %8, %9 : vector<256x1xi32>
    %c0_i32_4 = arith.constant 0 : i32
    %11 = vector.broadcast %c0_i32_4 : i32 to vector<256x1xi32>
    %12 = arith.cmpi slt, %8, %11 : vector<256x1xi32>
    %c0_i32_5 = arith.constant 0 : i32
    %13 = arith.cmpi slt, %6, %c0_i32_5 : i32
    %14 = vector.broadcast %13 : i1 to vector<256x1xi1>
    %15 = vector.broadcast %14 : vector<256x1xi1> to vector<256x1xi1>
    %16 = arith.xori %12, %15 : vector<256x1xi1>
    %17 = arith.andi %16, %10 : vector<256x1xi1>
    %18 = vector.broadcast %6 : i32 to vector<256x1xi32>
    %19 = arith.addi %8, %18 : vector<256x1xi32>
    %20 = arith.select %17, %19, %8 : vector<256x1xi1>, vector<256x1xi32>
    %c1_i32_6 = arith.constant 1 : i32
    %21 = vector.broadcast %c1_i32_6 : i32 to vector<256x1xi32>
    %22 = arith.cmpi sge, %20, %21 : vector<256x1xi32>
    %23 = arith.extui %22 : vector<256x1xi1> to vector<256x1xi32>
    %24 = arith.sitofp %23 : vector<256x1xi32> to vector<256x1xf32>
    %c14_i32 = arith.constant 14 : i32
    %25 = vector.broadcast %c14_i32 : i32 to vector<256x1xi32>
    %26 = arith.cmpi sle, %20, %25 : vector<256x1xi32>
    %27 = arith.extui %26 : vector<256x1xi1> to vector<256x1xi32>
    %28 = arith.sitofp %27 : vector<256x1xi32> to vector<256x1xf32>
    %c0_7 = arith.constant 0 : index
    %c0_8 = arith.constant 0 : index
    %c0_9 = arith.constant 0 : index
    %29 = vector.load %arg1[%c0_7, %c0_8, %c0_9] : memref<1x256x4xf32, #tpu.memory_space<vmem>>, vector<1x256x4xf32>
    %30 = vector.shape_cast %29 : vector<1x256x4xf32> to vector<256x4xf32>
    %c24 = arith.constant 24 : index
    %c0_10 = arith.constant 0 : index
    %31 = vector.load %arg12[%c24, %c0_10] : memref<304x16xf32, #tpu.memory_space<vmem>>, vector<256x4xf32>
    tpu.vector_store %arg12[%c24, %c0_10], %30 {strides = array<i32>} : memref<304x16xf32, #tpu.memory_space<vmem>>, vector<256x4xf32>,
    %c7 = arith.constant 7 : index
    %c0_11 = arith.constant 0 : index
    %32 = vector.load %arg12[%c7, %c0_11] : memref<304x16xf32, #tpu.memory_space<vmem>>, vector<256x4xf32>
    %33 = vector.broadcast %24 : vector<256x1xf32> to vector<256x4xf32>
    %34 = arith.mulf %32, %33 : vector<256x4xf32>
    %c8 = arith.constant 8 : index
    %c0_12 = arith.constant 0 : index
    %35 = vector.load %arg12[%c8, %c0_12] : memref<304x16xf32, #tpu.memory_space<vmem>>, vector<256x4xf32>
    %c9 = arith.constant 9 : index
    %c0_13 = arith.constant 0 : index
    %36 = vector.load %arg12[%c9, %c0_13] : memref<304x16xf32, #tpu.memory_space<vmem>>, vector<256x4xf32>
    %37 = vector.broadcast %28 : vector<256x1xf32> to vector<256x4xf32>
    %38 = arith.mulf %36, %37 : vector<256x4xf32>
    %c23 = arith.constant 23 : index
    %c0_14 = arith.constant 0 : index
    %39 = vector.load %arg12[%c23, %c0_14] : memref<304x16xf32, #tpu.memory_space<vmem>>, vector<256x4xf32>
    %40 = vector.broadcast %24 : vector<256x1xf32> to vector<256x4xf32>
    %41 = arith.mulf %39, %40 : vector<256x4xf32>
    %c24_15 = arith.constant 24 : index
    %c0_16 = arith.constant 0 : index
    %42 = vector.load %arg12[%c24_15, %c0_16] : memref<304x16xf32, #tpu.memory_space<vmem>>, vector<256x4xf32>
    %c25 = arith.constant 25 : index
    %c0_17 = arith.constant 0 : index
    %43 = vector.load %arg12[%c25, %c0_17] : memref<304x16xf32, #tpu.memory_space<vmem>>, vector<256x4xf32>
    %44 = vector.broadcast %28 : vector<256x1xf32> to vector<256x4xf32>
    %45 = arith.mulf %43, %44 : vector<256x4xf32>
    %c39 = arith.constant 39 : index
    %c0_18 = arith.constant 0 : index
    %46 = vector.load %arg12[%c39, %c0_18] : memref<304x16xf32, #tpu.memory_space<vmem>>, vector<256x4xf32>
    %47 = vector.broadcast %24 : vector<256x1xf32> to vector<256x4xf32>
    %48 = arith.mulf %46, %47 : vector<256x4xf32>
    %c40 = arith.constant 40 : index
    %c0_19 = arith.constant 0 : index
    %49 = vector.load %arg12[%c40, %c0_19] : memref<304x16xf32, #tpu.memory_space<vmem>>, vector<256x4xf32>
    %c41 = arith.constant 41 : index
    %c0_20 = arith.constant 0 : index
    %50 = vector.load %arg12[%c41, %c0_20] : memref<304x16xf32, #tpu.memory_space<vmem>>, vector<256x4xf32>
    %51 = vector.broadcast %28 : vector<256x1xf32> to vector<256x4xf32>
    %52 = arith.mulf %50, %51 : vector<256x4xf32>
    %53 = tpu.concatenate %34, %35, %38, %41, %42, %45, %48, %49, %52 in 1 : vector<256x4xf32>, vector<256x4xf32>, vector<256x4xf32>, vector<256x4xf32>, vector<256x4xf32>, vector<256x4xf32>, vector<256x4xf32>, vector<256x4xf32>, vector<256x4xf32> -> vector<256x36xf32>
    %54 = arith.truncf %53 : vector<256x36xf32> to vector<256x36xbf16>
    %c0_21 = arith.constant 0 : index
    %c0_22 = arith.constant 0 : index
    %55 = vector.load %arg2[%c0_21, %c0_22] : memref<36x32xbf16, #tpu.memory_space<vmem>>, vector<36x32xbf16>
    %cst_23 = arith.constant dense<0.000000e+00> : vector<256x32xf32>
    %56 = tpu.matmul %54, %55, %cst_23 {dimension_numbers = #tpu.dot_dimension_numbers<[1], [0], [0], [1], [0, 0, 1, 1], [], []>} : vector<256x36xbf16>, vector<36x32xbf16>, vector<256x32xf32> -> vector<256x32xf32>
    %c0_24 = arith.constant 0 : index
    %c0_25 = arith.constant 0 : index
    %57 = vector.load %arg3[%c0_24, %c0_25] : memref<1x32xf32, #tpu.memory_space<vmem>>, vector<1x32xf32>
    %58 = vector.broadcast %57 : vector<1x32xf32> to vector<256x32xf32>
    %59 = arith.addf %56, %58 : vector<256x32xf32>
    %60 = vector.extract_strided_slice %59 {offsets = [0, 0], sizes = [256, 16], strides = [1, 1]} : vector<256x32xf32> to vector<256x16xf32>
    %cst_26 = arith.constant 0.000000e+00 : f32
    %61 = vector.broadcast %cst_26 : f32 to vector<256x16xf32>
    %62 = arith.cmpf ogt, %60, %61 : vector<256x16xf32>
    %cst_27 = arith.constant 1.000000e-01 : f32
    %63 = vector.broadcast %cst_27 : f32 to vector<256x16xf32>
    %64 = arith.mulf %63, %60 : vector<256x16xf32>
    %65 = arith.select %62, %60, %64 : vector<256x16xi1>, vector<256x16xf32>
    %c24_28 = arith.constant 24 : index
    %c0_29 = arith.constant 0 : index
    %66 = vector.load %arg12[%c24_28, %c0_29] : memref<304x16xf32, #tpu.memory_space<vmem>>, vector<256x16xf32>
    tpu.vector_store %arg12[%c24_28, %c0_29], %65 {strides = array<i32>} : memref<304x16xf32, #tpu.memory_space<vmem>>, vector<256x16xf32>,
    %c7_30 = arith.constant 7 : index
    %c0_31 = arith.constant 0 : index
    %67 = vector.load %arg12[%c7_30, %c0_31] : memref<304x16xf32, #tpu.memory_space<vmem>>, vector<256x16xf32>
    %68 = vector.broadcast %24 : vector<256x1xf32> to vector<256x16xf32>
    %69 = arith.mulf %67, %68 : vector<256x16xf32>
    %c8_32 = arith.constant 8 : index
    %c0_33 = arith.constant 0 : index
    %70 = vector.load %arg12[%c8_32, %c0_33] : memref<304x16xf32, #tpu.memory_space<vmem>>, vector<256x16xf32>
    %c9_34 = arith.constant 9 : index
    %c0_35 = arith.constant 0 : index
    %71 = vector.load %arg12[%c9_34, %c0_35] : memref<304x16xf32, #tpu.memory_space<vmem>>, vector<256x16xf32>
    %72 = vector.broadcast %28 : vector<256x1xf32> to vector<256x16xf32>
    %73 = arith.mulf %71, %72 : vector<256x16xf32>
    %c23_36 = arith.constant 23 : index
    %c0_37 = arith.constant 0 : index
    %74 = vector.load %arg12[%c23_36, %c0_37] : memref<304x16xf32, #tpu.memory_space<vmem>>, vector<256x16xf32>
    %75 = vector.broadcast %24 : vector<256x1xf32> to vector<256x16xf32>
    %76 = arith.mulf %74, %75 : vector<256x16xf32>
    %c24_38 = arith.constant 24 : index
    %c0_39 = arith.constant 0 : index
    %77 = vector.load %arg12[%c24_38, %c0_39] : memref<304x16xf32, #tpu.memory_space<vmem>>, vector<256x16xf32>
    %c25_40 = arith.constant 25 : index
    %c0_41 = arith.constant 0 : index
    %78 = vector.load %arg12[%c25_40, %c0_41] : memref<304x16xf32, #tpu.memory_space<vmem>>, vector<256x16xf32>
    %79 = vector.broadcast %28 : vector<256x1xf32> to vector<256x16xf32>
    %80 = arith.mulf %78, %79 : vector<256x16xf32>
    %c39_42 = arith.constant 39 : index
    %c0_43 = arith.constant 0 : index
    %81 = vector.load %arg12[%c39_42, %c0_43] : memref<304x16xf32, #tpu.memory_space<vmem>>, vector<256x16xf32>
    %82 = vector.broadcast %24 : vector<256x1xf32> to vector<256x16xf32>
    %83 = arith.mulf %81, %82 : vector<256x16xf32>
    %c40_44 = arith.constant 40 : index
    %c0_45 = arith.constant 0 : index
    %84 = vector.load %arg12[%c40_44, %c0_45] : memref<304x16xf32, #tpu.memory_space<vmem>>, vector<256x16xf32>
    %c41_46 = arith.constant 41 : index
    %c0_47 = arith.constant 0 : index
    %85 = vector.load %arg12[%c41_46, %c0_47] : memref<304x16xf32, #tpu.memory_space<vmem>>, vector<256x16xf32>
    %86 = vector.broadcast %28 : vector<256x1xf32> to vector<256x16xf32>
    %87 = arith.mulf %85, %86 : vector<256x16xf32>
    %88 = tpu.concatenate %69, %70, %73, %76, %77, %80, %83, %84, %87 in 1 : vector<256x16xf32>, vector<256x16xf32>, vector<256x16xf32>, vector<256x16xf32>, vector<256x16xf32>, vector<256x16xf32>, vector<256x16xf32>, vector<256x16xf32>, vector<256x16xf32> -> vector<256x144xf32>
    %89 = arith.truncf %88 : vector<256x144xf32> to vector<256x144xbf16>
    %c0_48 = arith.constant 0 : index
    %c0_49 = arith.constant 0 : index
    %90 = vector.load %arg4[%c0_48, %c0_49] : memref<144x16xbf16, #tpu.memory_space<vmem>>, vector<144x16xbf16>
    %cst_50 = arith.constant dense<0.000000e+00> : vector<256x16xf32>
    %91 = tpu.matmul %89, %90, %cst_50 {dimension_numbers = #tpu.dot_dimension_numbers<[1], [0], [0], [1], [0, 0, 1, 1], [], []>} : vector<256x144xbf16>, vector<144x16xbf16>, vector<256x16xf32> -> vector<256x16xf32>
    %c0_51 = arith.constant 0 : index
    %c0_52 = arith.constant 0 : index
    %92 = vector.load %arg5[%c0_51, %c0_52] : memref<1x16xf32, #tpu.memory_space<vmem>>, vector<1x16xf32>
    %93 = vector.broadcast %92 : vector<1x16xf32> to vector<256x16xf32>
    %94 = arith.addf %91, %93 : vector<256x16xf32>
    %cst_53 = arith.constant 0.000000e+00 : f32
    %95 = vector.broadcast %cst_53 : f32 to vector<256x16xf32>
    %96 = arith.cmpf ogt, %94, %95 : vector<256x16xf32>
    %cst_54 = arith.constant 1.000000e-01 : f32
    %97 = vector.broadcast %cst_54 : f32 to vector<256x16xf32>
    %98 = arith.mulf %97, %94 : vector<256x16xf32>
    %99 = arith.select %96, %94, %98 : vector<256x16xi1>, vector<256x16xf32>
    %100 = vector.extract_strided_slice %59 {offsets = [0, 16], sizes = [256, 16], strides = [1, 1]} : vector<256x32xf32> to vector<256x16xf32>
    %101 = arith.addf %99, %100 : vector<256x16xf32>
    %cst_55 = arith.constant 0.000000e+00 : f32
    %102 = vector.broadcast %cst_55 : f32 to vector<256x16xf32>
    %103 = arith.cmpf ogt, %101, %102 : vector<256x16xf32>
    %cst_56 = arith.constant 2.000000e-01 : f32
    %104 = vector.broadcast %cst_56 : f32 to vector<256x16xf32>
    %105 = arith.mulf %104, %101 : vector<256x16xf32>
    %106 = arith.select %103, %101, %105 : vector<256x16xi1>, vector<256x16xf32>
    %c24_57 = arith.constant 24 : index
    %c0_58 = arith.constant 0 : index
    %107 = vector.load %arg12[%c24_57, %c0_58] : memref<304x16xf32, #tpu.memory_space<vmem>>, vector<256x16xf32>
    tpu.vector_store %arg12[%c24_57, %c0_58], %106 {strides = array<i32>} : memref<304x16xf32, #tpu.memory_space<vmem>>, vector<256x16xf32>,
    %c7_59 = arith.constant 7 : index
    %c0_60 = arith.constant 0 : index
    %108 = vector.load %arg12[%c7_59, %c0_60] : memref<304x16xf32, #tpu.memory_space<vmem>>, vector<256x16xf32>
    %109 = vector.broadcast %24 : vector<256x1xf32> to vector<256x16xf32>
    %110 = arith.mulf %108, %109 : vector<256x16xf32>
    %c8_61 = arith.constant 8 : index
    %c0_62 = arith.constant 0 : index
    %111 = vector.load %arg12[%c8_61, %c0_62] : memref<304x16xf32, #tpu.memory_space<vmem>>, vector<256x16xf32>
    %c9_63 = arith.constant 9 : index
    %c0_64 = arith.constant 0 : index
    %112 = vector.load %arg12[%c9_63, %c0_64] : memref<304x16xf32, #tpu.memory_space<vmem>>, vector<256x16xf32>
    %113 = vector.broadcast %28 : vector<256x1xf32> to vector<256x16xf32>
    %114 = arith.mulf %112, %113 : vector<256x16xf32>
    %c23_65 = arith.constant 23 : index
    %c0_66 = arith.constant 0 : index
    %115 = vector.load %arg12[%c23_65, %c0_66] : memref<304x16xf32, #tpu.memory_space<vmem>>, vector<256x16xf32>
    %116 = vector.broadcast %24 : vector<256x1xf32> to vector<256x16xf32>
    %117 = arith.mulf %115, %116 : vector<256x16xf32>
    %c24_67 = arith.constant 24 : index
    %c0_68 = arith.constant 0 : index
    %118 = vector.load %arg12[%c24_67, %c0_68] : memref<304x16xf32, #tpu.memory_space<vmem>>, vector<256x16xf32>
    %c25_69 = arith.constant 25 : index
    %c0_70 = arith.constant 0 : index
    %119 = vector.load %arg12[%c25_69, %c0_70] : memref<304x16xf32, #tpu.memory_space<vmem>>, vector<256x16xf32>
    %120 = vector.broadcast %28 : vector<256x1xf32> to vector<256x16xf32>
    %121 = arith.mulf %119, %120 : vector<256x16xf32>
    %c39_71 = arith.constant 39 : index
    %c0_72 = arith.constant 0 : index
    %122 = vector.load %arg12[%c39_71, %c0_72] : memref<304x16xf32, #tpu.memory_space<vmem>>, vector<256x16xf32>
    %123 = vector.broadcast %24 : vector<256x1xf32> to vector<256x16xf32>
    %124 = arith.mulf %122, %123 : vector<256x16xf32>
    %c40_73 = arith.constant 40 : index
    %c0_74 = arith.constant 0 : index
    %125 = vector.load %arg12[%c40_73, %c0_74] : memref<304x16xf32, #tpu.memory_space<vmem>>, vector<256x16xf32>
    %c41_75 = arith.constant 41 : index
    %c0_76 = arith.constant 0 : index
    %126 = vector.load %arg12[%c41_75, %c0_76] : memref<304x16xf32, #tpu.memory_space<vmem>>, vector<256x16xf32>
    %127 = vector.broadcast %28 : vector<256x1xf32> to vector<256x16xf32>
    %128 = arith.mulf %126, %127 : vector<256x16xf32>
    %129 = tpu.concatenate %110, %111, %114, %117, %118, %121, %124, %125, %128 in 1 : vector<256x16xf32>, vector<256x16xf32>, vector<256x16xf32>, vector<256x16xf32>, vector<256x16xf32>, vector<256x16xf32>, vector<256x16xf32>, vector<256x16xf32>, vector<256x16xf32> -> vector<256x144xf32>
    %130 = arith.truncf %129 : vector<256x144xf32> to vector<256x144xbf16>
    %c0_77 = arith.constant 0 : index
    %c0_78 = arith.constant 0 : index
    %131 = vector.load %arg6[%c0_77, %c0_78] : memref<144x32xbf16, #tpu.memory_space<vmem>>, vector<144x32xbf16>
    %cst_79 = arith.constant dense<0.000000e+00> : vector<256x32xf32>
    %132 = tpu.matmul %130, %131, %cst_79 {dimension_numbers = #tpu.dot_dimension_numbers<[1], [0], [0], [1], [0, 0, 1, 1], [], []>} : vector<256x144xbf16>, vector<144x32xbf16>, vector<256x32xf32> -> vector<256x32xf32>
    %c0_80 = arith.constant 0 : index
    %c0_81 = arith.constant 0 : index
    %133 = vector.load %arg7[%c0_80, %c0_81] : memref<1x32xf32, #tpu.memory_space<vmem>>, vector<1x32xf32>
    %134 = vector.broadcast %133 : vector<1x32xf32> to vector<256x32xf32>
    %135 = arith.addf %132, %134 : vector<256x32xf32>
    %136 = vector.extract_strided_slice %135 {offsets = [0, 0], sizes = [256, 16], strides = [1, 1]} : vector<256x32xf32> to vector<256x16xf32>
    %cst_82 = arith.constant 0.000000e+00 : f32
    %137 = vector.broadcast %cst_82 : f32 to vector<256x16xf32>
    %138 = arith.cmpf ogt, %136, %137 : vector<256x16xf32>
    %cst_83 = arith.constant 1.000000e-01 : f32
    %139 = vector.broadcast %cst_83 : f32 to vector<256x16xf32>
    %140 = arith.mulf %139, %136 : vector<256x16xf32>
    %141 = arith.select %138, %136, %140 : vector<256x16xi1>, vector<256x16xf32>
    %c24_84 = arith.constant 24 : index
    %c0_85 = arith.constant 0 : index
    %142 = vector.load %arg12[%c24_84, %c0_85] : memref<304x16xf32, #tpu.memory_space<vmem>>, vector<256x16xf32>
    tpu.vector_store %arg12[%c24_84, %c0_85], %141 {strides = array<i32>} : memref<304x16xf32, #tpu.memory_space<vmem>>, vector<256x16xf32>,
    %c7_86 = arith.constant 7 : index
    %c0_87 = arith.constant 0 : index
    %143 = vector.load %arg12[%c7_86, %c0_87] : memref<304x16xf32, #tpu.memory_space<vmem>>, vector<256x16xf32>
    %144 = vector.broadcast %24 : vector<256x1xf32> to vector<256x16xf32>
    %145 = arith.mulf %143, %144 : vector<256x16xf32>
    %c8_88 = arith.constant 8 : index
    %c0_89 = arith.constant 0 : index
    %146 = vector.load %arg12[%c8_88, %c0_89] : memref<304x16xf32, #tpu.memory_space<vmem>>, vector<256x16xf32>
    %c9_90 = arith.constant 9 : index
    %c0_91 = arith.constant 0 : index
    %147 = vector.load %arg12[%c9_90, %c0_91] : memref<304x16xf32, #tpu.memory_space<vmem>>, vector<256x16xf32>
    %148 = vector.broadcast %28 : vector<256x1xf32> to vector<256x16xf32>
    %149 = arith.mulf %147, %148 : vector<256x16xf32>
    %c23_92 = arith.constant 23 : index
    %c0_93 = arith.constant 0 : index
    %150 = vector.load %arg12[%c23_92, %c0_93] : memref<304x16xf32, #tpu.memory_space<vmem>>, vector<256x16xf32>
    %151 = vector.broadcast %24 : vector<256x1xf32> to vector<256x16xf32>
    %152 = arith.mulf %150, %151 : vector<256x16xf32>
    %c24_94 = arith.constant 24 : index
    %c0_95 = arith.constant 0 : index
    %153 = vector.load %arg12[%c24_94, %c0_95] : memref<304x16xf32, #tpu.memory_space<vmem>>, vector<256x16xf32>
    %c25_96 = arith.constant 25 : index
    %c0_97 = arith.constant 0 : index
    %154 = vector.load %arg12[%c25_96, %c0_97] : memref<304x16xf32, #tpu.memory_space<vmem>>, vector<256x16xf32>
    %155 = vector.broadcast %28 : vector<256x1xf32> to vector<256x16xf32>
    %156 = arith.mulf %154, %155 : vector<256x16xf32>
    %c39_98 = arith.constant 39 : index
    %c0_99 = arith.constant 0 : index
    %157 = vector.load %arg12[%c39_98, %c0_99] : memref<304x16xf32, #tpu.memory_space<vmem>>, vector<256x16xf32>
    %158 = vector.broadcast %24 : vector<256x1xf32> to vector<256x16xf32>
    %159 = arith.mulf %157, %158 : vector<256x16xf32>
    %c40_100 = arith.constant 40 : index
    %c0_101 = arith.constant 0 : index
    %160 = vector.load %arg12[%c40_100, %c0_101] : memref<304x16xf32, #tpu.memory_space<vmem>>, vector<256x16xf32>
    %c41_102 = arith.constant 41 : index
    %c0_103 = arith.constant 0 : index
    %161 = vector.load %arg12[%c41_102, %c0_103] : memref<304x16xf32, #tpu.memory_space<vmem>>, vector<256x16xf32>
    %162 = vector.broadcast %28 : vector<256x1xf32> to vector<256x16xf32>
    %163 = arith.mulf %161, %162 : vector<256x16xf32>
    %164 = tpu.concatenate %145, %146, %149, %152, %153, %156, %159, %160, %163 in 1 : vector<256x16xf32>, vector<256x16xf32>, vector<256x16xf32>, vector<256x16xf32>, vector<256x16xf32>, vector<256x16xf32>, vector<256x16xf32>, vector<256x16xf32>, vector<256x16xf32> -> vector<256x144xf32>
    %165 = arith.truncf %164 : vector<256x144xf32> to vector<256x144xbf16>
    %c0_104 = arith.constant 0 : index
    %c0_105 = arith.constant 0 : index
    %166 = vector.load %arg8[%c0_104, %c0_105] : memref<144x16xbf16, #tpu.memory_space<vmem>>, vector<144x16xbf16>
    %cst_106 = arith.constant dense<0.000000e+00> : vector<256x16xf32>
    %167 = tpu.matmul %165, %166, %cst_106 {dimension_numbers = #tpu.dot_dimension_numbers<[1], [0], [0], [1], [0, 0, 1, 1], [], []>} : vector<256x144xbf16>, vector<144x16xbf16>, vector<256x16xf32> -> vector<256x16xf32>
    %c0_107 = arith.constant 0 : index
    %c0_108 = arith.constant 0 : index
    %168 = vector.load %arg9[%c0_107, %c0_108] : memref<1x16xf32, #tpu.memory_space<vmem>>, vector<1x16xf32>
    %169 = vector.broadcast %168 : vector<1x16xf32> to vector<256x16xf32>
    %170 = arith.addf %167, %169 : vector<256x16xf32>
    %cst_109 = arith.constant 0.000000e+00 : f32
    %171 = vector.broadcast %cst_109 : f32 to vector<256x16xf32>
    %172 = arith.cmpf ogt, %170, %171 : vector<256x16xf32>
    %cst_110 = arith.constant 1.000000e-01 : f32
    %173 = vector.broadcast %cst_110 : f32 to vector<256x16xf32>
    %174 = arith.mulf %173, %170 : vector<256x16xf32>
    %175 = arith.select %172, %170, %174 : vector<256x16xi1>, vector<256x16xf32>
    %176 = vector.extract_strided_slice %135 {offsets = [0, 16], sizes = [256, 16], strides = [1, 1]} : vector<256x32xf32> to vector<256x16xf32>
    %177 = arith.addf %175, %176 : vector<256x16xf32>
    %cst_111 = arith.constant 0.000000e+00 : f32
    %178 = vector.broadcast %cst_111 : f32 to vector<256x16xf32>
    %179 = arith.cmpf ogt, %177, %178 : vector<256x16xf32>
    %cst_112 = arith.constant 2.000000e-01 : f32
    %180 = vector.broadcast %cst_112 : f32 to vector<256x16xf32>
    %181 = arith.mulf %180, %177 : vector<256x16xf32>
    %182 = arith.select %179, %177, %181 : vector<256x16xi1>, vector<256x16xf32>
    %183 = tpu.concatenate %30, %106, %182 in 1 : vector<256x4xf32>, vector<256x16xf32>, vector<256x16xf32> -> vector<256x36xf32>
    %184 = arith.truncf %183 : vector<256x36xf32> to vector<256x36xbf16>
    %c0_113 = arith.constant 0 : index
    %c0_114 = arith.constant 0 : index
    %185 = vector.load %arg10[%c0_113, %c0_114] : memref<36x8xbf16, #tpu.memory_space<vmem>>, vector<36x8xbf16>
    %cst_115 = arith.constant dense<0.000000e+00> : vector<256x8xf32>
    %186 = tpu.matmul %184, %185, %cst_115 {dimension_numbers = #tpu.dot_dimension_numbers<[1], [0], [0], [1], [0, 0, 1, 1], [], []>} : vector<256x36xbf16>, vector<36x8xbf16>, vector<256x8xf32> -> vector<256x8xf32>
    %cst_116 = arith.constant 0.000000e+00 : f32
    %187 = vector.broadcast %cst_116 : f32 to vector<256x8xf32>
    %188 = arith.cmpf ogt, %186, %187 : vector<256x8xf32>
    %cst_117 = arith.constant 2.000000e-01 : f32
    %189 = vector.broadcast %cst_117 : f32 to vector<256x8xf32>
    %190 = arith.mulf %189, %186 : vector<256x8xf32>
    %191 = arith.select %188, %186, %190 : vector<256x8xi1>, vector<256x8xf32>
    %c0_118 = arith.constant 0 : index
    %c0_119 = arith.constant 0 : index
    %c0_120 = arith.constant 0 : index
    %192 = vector.load %arg11[%c0_118, %c0_119, %c0_120] : memref<1x256x8xf32, #tpu.memory_space<vmem>>, vector<1x256x8xf32>
    %193 = vector.shape_cast %192 : vector<1x256x8xf32> to vector<256x8xf32>
    %194 = vector.shape_cast %191 : vector<256x8xf32> to vector<1x256x8xf32>
    tpu.vector_store %arg11[%c0_118, %c0_119, %c0_120], %194 {strides = array<i32>} : memref<1x256x8xf32, #tpu.memory_space<vmem>>, vector<1x256x8xf32>,
    return
  }
  func.func @transform_0(%arg0: i32) -> (i32, i32, i32) {
    %c0_i32 = arith.constant 0 : i32
    %c0_i32_0 = arith.constant 0 : i32
    %c0_i32_1 = arith.constant 0 : i32
    return %arg0, %c0_i32, %c0_i32_0 : i32, i32, i32
  }
  func.func @transform_1(%arg0: i32) -> (i32, i32) {
    %c0_i32 = arith.constant 0 : i32
    %c0_i32_0 = arith.constant 0 : i32
    %c0_i32_1 = arith.constant 0 : i32
    return %c0_i32, %c0_i32_0 : i32, i32
  }
  func.func @transform_2(%arg0: i32) -> (i32, i32) {
    %c0_i32 = arith.constant 0 : i32
    %c0_i32_0 = arith.constant 0 : i32
    %c0_i32_1 = arith.constant 0 : i32
    return %c0_i32, %c0_i32_0 : i32, i32
  }
  func.func @transform_3(%arg0: i32) -> (i32, i32) {
    %c0_i32 = arith.constant 0 : i32
    %c0_i32_0 = arith.constant 0 : i32
    %c0_i32_1 = arith.constant 0 : i32
    return %c0_i32, %c0_i32_0 : i32, i32
  }
  func.func @transform_4(%arg0: i32) -> (i32, i32) {
    %c0_i32 = arith.constant 0 : i32
    %c0_i32_0 = arith.constant 0 : i32
    %c0_i32_1 = arith.constant 0 : i32
    return %c0_i32, %c0_i32_0 : i32, i32
  }
  func.func @transform_5(%arg0: i32) -> (i32, i32) {
    %c0_i32 = arith.constant 0 : i32
    %c0_i32_0 = arith.constant 0 : i32
    %c0_i32_1 = arith.constant 0 : i32
    return %c0_i32, %c0_i32_0 : i32, i32
  }
  func.func @transform_6(%arg0: i32) -> (i32, i32) {
    %c0_i32 = arith.constant 0 : i32
    %c0_i32_0 = arith.constant 0 : i32
    %c0_i32_1 = arith.constant 0 : i32
    return %c0_i32, %c0_i32_0 : i32, i32
  }
  func.func @transform_7(%arg0: i32) -> (i32, i32) {
    %c0_i32 = arith.constant 0 : i32
    %c0_i32_0 = arith.constant 0 : i32
    %c0_i32_1 = arith.constant 0 : i32
    return %c0_i32, %c0_i32_0 : i32, i32
  }
  func.func @transform_8(%arg0: i32) -> (i32, i32) {
    %c0_i32 = arith.constant 0 : i32
    %c0_i32_0 = arith.constant 0 : i32
    %c0_i32_1 = arith.constant 0 : i32
    return %c0_i32, %c0_i32_0 : i32, i32
  }
  func.func @transform_9(%arg0: i32) -> (i32, i32) {
    %c0_i32 = arith.constant 0 : i32
    %c0_i32_0 = arith.constant 0 : i32
    %c0_i32_1 = arith.constant 0 : i32
    return %c0_i32, %c0_i32_0 : i32, i32
  }
  func.func @transform_10(%arg0: i32) -> (i32, i32, i32) {
    %c0_i32 = arith.constant 0 : i32
    %c0_i32_0 = arith.constant 0 : i32
    %c0_i32_1 = arith.constant 0 : i32
    return %arg0, %c0_i32, %c0_i32_0 : i32, i32, i32
  }
}

</mosaic_0001>

<llo_original>
// kernel: dense_block_pallas.1
$region0: #{dense_block_pallas.1}
  #allocation0 [shape = 'u32[]', space=smem, size = 0x4, offset = 0x4, fixed_abs, tag = 'smem constant byte address 0x4 - core index']
  #allocation1 [shape = 'u32[144,128]{1,0:T(1,128)}', space=vmem, size = 0x12000, scoped, tag = 'internal scratch']
  #allocation2 [shape = 'f32[304,16]{1,0:T(8,128)}', space=vmem, size = 0x26000, scoped, tag = 'scratch operand']
  %s0 = inlined_call_operand.vmem [shape: f32[2,256,4], index: 0, kind: input, shape index: {}]
  %s1 = inlined_call_operand.vmem [shape: bf16[36,32], index: 1, kind: input, shape index: {}]
  %s2 = inlined_call_operand.vmem [shape: f32[1,32], index: 2, kind: input, shape index: {}]
  %s3 = inlined_call_operand.vmem [shape: bf16[144,16], index: 3, kind: input, shape index: {}]
  %s4 = inlined_call_operand.vmem [shape: f32[1,16], index: 4, kind: input, shape index: {}]
  %s5 = inlined_call_operand.vmem [shape: bf16[144,32], index: 5, kind: input, shape index: {}]
  %s6 = inlined_call_operand.vmem [shape: f32[1,32], index: 6, kind: input, shape index: {}]
  %s7 = inlined_call_operand.vmem [shape: bf16[144,16], index: 7, kind: input, shape index: {}]
  %s8 = inlined_call_operand.vmem [shape: f32[1,16], index: 8, kind: input, shape index: {}]
  %s9 = inlined_call_operand.vmem [shape: bf16[36,8], index: 9, kind: input, shape index: {}]
  %s10 = inlined_call_operand.vmem [shape: f32[2,256,8], index: 10, kind: output, shape index: {}]
  %s11 = sld [smem:[#allocation0]]
  $region73: #{dense_block_pallas.1} parent=0
    _
  %s13 = ssub.s32 1, %s11
  %s14 = scalar_select 0, %s13, %s11
  loop: start=0, step=1, limit=4
  $region2: #{dense_block_pallas.1} parent=0 // loop_pre_header
    _
  $region3: #{dense_block_pallas.1} parent=0 // loop_header
    %s16 = sphi 0, %s20
    %p17 = scmp.ge.s32.totalorder %s16, 4
    %s26 = sphi 0, %s28
    %s29 = sphi 0, %s26
    %s30 = sphi 0, %s29
    %s46 = sphi 0, %s30
    %s50 = sphi 0, %s50
    %s52 = sphi 0, %s50
    %s53 = sphi 0, %s52
    %s67 = sphi 0, %s53
    %s71 = sphi 0, %s71
    %s73 = sphi 0, %s71
    %s74 = sphi 0, %s73
    %s88 = sphi 0, %s74
    %s92 = sphi 0, %s92
    %s94 = sphi 0, %s92
    %s95 = sphi 0, %s94
    %s109 = sphi 0, %s95
    %s113 = sphi 0, %s113
    %s115 = sphi 0, %s113
    %s116 = sphi 0, %s115
    %s130 = sphi 0, %s116
    %s134 = sphi 0, %s134
    %s136 = sphi 0, %s134
    %s137 = sphi 0, %s136
    %s151 = sphi 0, %s137
    %s155 = sphi 0, %s155
    %s157 = sphi 0, %s155
    %s158 = sphi 0, %s157
    %s172 = sphi 0, %s158
    %s176 = sphi 0, %s176
    %s178 = sphi 0, %s176
    %s179 = sphi 0, %s178
    %s193 = sphi 0, %s179
    %s197 = sphi 0, %s197
    %s199 = sphi 0, %s197
    %s200 = sphi 0, %s199
    %s214 = sphi 0, %s200
    %s218 = sphi 0, %s218
    %s220 = sphi 0, %s218
    %s221 = sphi 0, %s220
    %s235 = sphi 0, %s221
    %s241 = sphi 0, %s243
    %s244 = sphi 0, %s241
    %s245 = sphi 0, %s244
    %s261 = sphi 0, %s245
  $region4: #{dense_block_pallas.1} parent=0 // loop_header_branch
    %19 = sbr.rel (%p17) target = $region8
  $region5: #{dense_block_pallas.1} parent=0 // loop_body
    %s21 = ssub.s32 %s16, 1
    %s22 = ssub.s32 %s16, 2
    %s23 = sadd.s32 %s16, 1
    %s24 = ssub.s32 %s16, %s23
    %p25 = scmp.eq.s32.totalorder %s24, 0
    %s27 = sadd.s32 %s26, 1
    %s28 = scalar_select %p25, %s26, %s27
    %p31 = pneg %p25
    %p32 = scmp.eq.s32.totalorder %s16, 1
    %p33 = por %p31, %p32
    %p34 = scmp.ne.s32.totalorder %s26, %s29
    %p35 = scmp.eq.s32.totalorder %s16, 0
    %p36 = por %p34, %p35
    %p37 = scmp.ne.s32.totalorder %s26, %s29
    %p38 = scmp.eq.s32.totalorder %s21, 1
    %p39 = por %p37, %p38
    %p40 = scmp.ne.s32.totalorder %s29, %s30
    %p41 = scmp.eq.s32.totalorder %s21, 0
    %p42 = por %p40, %p41
    %p43 = scmp.ne.s32.totalorder %s29, %s30
    %p44 = scmp.eq.s32.totalorder %s22, 1
    %p45 = por %p43, %p44
    %p47 = scmp.ne.s32.totalorder %s30, %s46
    %p48 = scmp.eq.s32.totalorder %s22, 0
    %p49 = por %p47, %p48
    %s51 = sadd.s32 %s50, 1
    %p54 = scmp.eq.s32.totalorder %s16, 1
    %p55 = scmp.ne.s32.totalorder %s50, %s52
    %p56 = scmp.eq.s32.totalorder %s16, 0
    %p57 = por %p55, %p56
    %p58 = scmp.ne.s32.totalorder %s50, %s52
    %p59 = scmp.eq.s32.totalorder %s21, 1
    %p60 = por %p58, %p59
    %p61 = scmp.ne.s32.totalorder %s52, %s53
    %p62 = scmp.eq.s32.totalorder %s21, 0
    %p63 = por %p61, %p62
    %p64 = scmp.ne.s32.totalorder %s52, %s53
    %p65 = scmp.eq.s32.totalorder %s22, 1
    %p66 = por %p64, %p65
    %p68 = scmp.ne.s32.totalorder %s53, %s67
    %p69 = scmp.eq.s32.totalorder %s22, 0
    %p70 = por %p68, %p69
    %s72 = sadd.s32 %s71, 1
    %p75 = scmp.eq.s32.totalorder %s16, 1
    %p76 = scmp.ne.s32.totalorder %s71, %s73
    %p77 = scmp.eq.s32.totalorder %s16, 0
    %p78 = por %p76, %p77
    %p79 = scmp.ne.s32.totalorder %s71, %s73
    %p80 = scmp.eq.s32.totalorder %s21, 1
    %p81 = por %p79, %p80
    %p82 = scmp.ne.s32.totalorder %s73, %s74
    %p83 = scmp.eq.s32.totalorder %s21, 0
    %p84 = por %p82, %p83
    %p85 = scmp.ne.s32.totalorder %s73, %s74
    %p86 = scmp.eq.s32.totalorder %s22, 1
    %p87 = por %p85, %p86
    %p89 = scmp.ne.s32.totalorder %s74, %s88
    %p90 = scmp.eq.s32.totalorder %s22, 0
    %p91 = por %p89, %p90
    %s93 = sadd.s32 %s92, 1
    %p96 = scmp.eq.s32.totalorder %s16, 1
    %p97 = scmp.ne.s32.totalorder %s92, %s94
    %p98 = scmp.eq.s32.totalorder %s16, 0
    %p99 = por %p97, %p98
    %p100 = scmp.ne.s32.totalorder %s92, %s94
    %p101 = scmp.eq.s32.totalorder %s21, 1
    %p102 = por %p100, %p101
    %p103 = scmp.ne.s32.totalorder %s94, %s95
    %p104 = scmp.eq.s32.totalorder %s21, 0
    %p105 = por %p103, %p104
    %p106 = scmp.ne.s32.totalorder %s94, %s95
    %p107 = scmp.eq.s32.totalorder %s22, 1
    %p108 = por %p106, %p107
    %p110 = scmp.ne.s32.totalorder %s95, %s109
    %p111 = scmp.eq.s32.totalorder %s22, 0
    %p112 = por %p110, %p111
    %s114 = sadd.s32 %s113, 1
    %p117 = scmp.eq.s32.totalorder %s16, 1
    %p118 = scmp.ne.s32.totalorder %s113, %s115
    %p119 = scmp.eq.s32.totalorder %s16, 0
    %p120 = por %p118, %p119
    %p121 = scmp.ne.s32.totalorder %s113, %s115
    %p122 = scmp.eq.s32.totalorder %s21, 1
    %p123 = por %p121, %p122
    %p124 = scmp.ne.s32.totalorder %s115, %s116
    %p125 = scmp.eq.s32.totalorder %s21, 0
    %p126 = por %p124, %p125
    %p127 = scmp.ne.s32.totalorder %s115, %s116
    %p128 = scmp.eq.s32.totalorder %s22, 1
    %p129 = por %p127, %p128
    %p131 = scmp.ne.s32.totalorder %s116, %s130
    %p132 = scmp.eq.s32.totalorder %s22, 0
    %p133 = por %p131, %p132
    %s135 = sadd.s32 %s134, 1
    %p138 = scmp.eq.s32.totalorder %s16, 1
    %p139 = scmp.ne.s32.totalorder %s134, %s136
    %p140 = scmp.eq.s32.totalorder %s16, 0
    %p141 = por %p139, %p140
    %p142 = scmp.ne.s32.totalorder %s134, %s136
    %p143 = scmp.eq.s32.totalorder %s21, 1
    %p144 = por %p142, %p143
    %p145 = scmp.ne.s32.totalorder %s136, %s137
    %p146 = scmp.eq.s32.totalorder %s21, 0
    %p147 = por %p145, %p146
    %p148 = scmp.ne.s32.totalorder %s136, %s137
    %p149 = scmp.eq.s32.totalorder %s22, 1
    %p150 = por %p148, %p149
    %p152 = scmp.ne.s32.totalorder %s137, %s151
    %p153 = scmp.eq.s32.totalorder %s22, 0
    %p154 = por %p152, %p153
    %s156 = sadd.s32 %s155, 1
    %p159 = scmp.eq.s32.totalorder %s16, 1
    %p160 = scmp.ne.s32.totalorder %s155, %s157
    %p161 = scmp.eq.s32.totalorder %s16, 0
    %p162 = por %p160, %p161
    %p163 = scmp.ne.s32.totalorder %s155, %s157
    %p164 = scmp.eq.s32.totalorder %s21, 1
    %p165 = por %p163, %p164
    %p166 = scmp.ne.s32.totalorder %s157, %s158
    %p167 = scmp.eq.s32.totalorder %s21, 0
    %p168 = por %p166, %p167
    %p169 = scmp.ne.s32.totalorder %s157, %s158
    %p170 = scmp.eq.s32.totalorder %s22, 1
    %p171 = por %p169, %p170
    %p173 = scmp.ne.s32.totalorder %s158, %s172
    %p174 = scmp.eq.s32.totalorder %s22, 0
    %p175 = por %p173, %p174
    %s177 = sadd.s32 %s176, 1
    %p180 = scmp.eq.s32.totalorder %s16, 1
    %p181 = scmp.ne.s32.totalorder %s176, %s178
    %p182 = scmp.eq.s32.totalorder %s16, 0
    %p183 = por %p181, %p182
    %p184 = scmp.ne.s32.totalorder %s176, %s178
    %p185 = scmp.eq.s32.totalorder %s21, 1
    %p186 = por %p184, %p185
    %p187 = scmp.ne.s32.totalorder %s178, %s179
    %p188 = scmp.eq.s32.totalorder %s21, 0
    %p189 = por %p187, %p188
    %p190 = scmp.ne.s32.totalorder %s178, %s179
    %p191 = scmp.eq.s32.totalorder %s22, 1
    %p192 = por %p190, %p191
    %p194 = scmp.ne.s32.totalorder %s179, %s193
    %p195 = scmp.eq.s32.totalorder %s22, 0
    %p196 = por %p194, %p195
    %s198 = sadd.s32 %s197, 1
    %p201 = scmp.eq.s32.totalorder %s16, 1
    %p202 = scmp.ne.s32.totalorder %s197, %s199
    %p203 = scmp.eq.s32.totalorder %s16, 0
    %p204 = por %p202, %p203
    %p205 = scmp.ne.s32.totalorder %s197, %s199
    %p206 = scmp.eq.s32.totalorder %s21, 1
    %p207 = por %p205, %p206
    %p208 = scmp.ne.s32.totalorder %s199, %s200
    %p209 = scmp.eq.s32.totalorder %s21, 0
    %p210 = por %p208, %p209
    %p211 = scmp.ne.s32.totalorder %s199, %s200
    %p212 = scmp.eq.s32.totalorder %s22, 1
    %p213 = por %p211, %p212
    %p215 = scmp.ne.s32.totalorder %s200, %s214
    %p216 = scmp.eq.s32.totalorder %s22, 0
    %p217 = por %p215, %p216
    %s219 = sadd.s32 %s218, 1
    %p222 = scmp.eq.s32.totalorder %s16, 1
    %p223 = scmp.ne.s32.totalorder %s218, %s220
    %p224 = scmp.eq.s32.totalorder %s16, 0
    %p225 = por %p223, %p224
    %p226 = scmp.ne.s32.totalorder %s218, %s220
    %p227 = scmp.eq.s32.totalorder %s21, 1
    %p228 = por %p226, %p227
    %p229 = scmp.ne.s32.totalorder %s220, %s221
    %p230 = scmp.eq.s32.totalorder %s21, 0
    %p231 = por %p229, %p230
    %p232 = scmp.ne.s32.totalorder %s220, %s221
    %p233 = scmp.eq.s32.totalorder %s22, 1
    %p234 = por %p232, %p233
    %p236 = scmp.ne.s32.totalorder %s221, %s235
    %p237 = scmp.eq.s32.totalorder %s22, 0
    %p238 = por %p236, %p237
    %s239 = ssub.s32 %s16, %s23
    %p240 = scmp.eq.s32.totalorder %s239, 0
    %s242 = sadd.s32 %s241, 1
    %s243 = scalar_select %p240, %s241, %s242
    %p246 = pneg %p240
    %p247 = scmp.eq.s32.totalorder %s16, 1
    %p248 = por %p246, %p247
    %p249 = scmp.ne.s32.totalorder %s241, %s244
    %p250 = scmp.eq.s32.totalorder %s16, 0
    %p251 = por %p249, %p250
    %p252 = scmp.ne.s32.totalorder %s241, %s244
    %p253 = scmp.eq.s32.totalorder %s21, 1
    %p254 = por %p252, %p253
    %p255 = scmp.ne.s32.totalorder %s244, %s245
    %p256 = scmp.eq.s32.totalorder %s21, 0
    %p257 = por %p255, %p256
    %p258 = scmp.ne.s32.totalorder %s244, %s245
    %p259 = scmp.eq.s32.totalorder %s22, 1
    %p260 = por %p258, %p259
    %p262 = scmp.ne.s32.totalorder %s245, %s261
    %p263 = scmp.eq.s32.totalorder %s22, 0
    %p264 = por %p262, %p263
    %p265 = scmp.le.s32.totalorder 1, %s16
    %p266 = scmp.lt.s32.totalorder %s16, 3
    %p267 = pnand %p265, %p266
    %p268 = pneg %p267
    // Predicated region
    $region9: #{dense_block_pallas.1} parent=5 // pred_check
      _
    $region10: #{dense_block_pallas.1} parent=5 // pred_check_branch
      %270 = sbr.rel (%p267) target = $region12
    $region11: #{dense_block_pallas.1} parent=5 // pred_region
      %s271 = ssub.s32 %s16, 1
      // Predicated region
      $region13: #{dense_block_pallas.1} parent=11 // pred_check
        %p272 = pneg %p63
      $region14: #{dense_block_pallas.1} parent=11 // pred_check_branch
        %274 = sbr.rel (%p272) target = $region16
      $region15: #{dense_block_pallas.1} parent=11 // pred_region
        _
      $region16: #{dense_block_pallas.1} parent=11 // pred_fallthru
        _
      // Predicated region
      $region17: #{dense_block_pallas.1} parent=11 // pred_check
        %p275 = pneg %p84
      $region18: #{dense_block_pallas.1} parent=11 // pred_check_branch
        %277 = sbr.rel (%p275) target = $region20
      $region19: #{dense_block_pallas.1} parent=11 // pred_region
        _
      $region20: #{dense_block_pallas.1} parent=11 // pred_fallthru
        _
      // Predicated region
      $region21: #{dense_block_pallas.1} parent=11 // pred_check
        %p278 = pneg %p105
      $region22: #{dense_block_pallas.1} parent=11 // pred_check_branch
        %280 = sbr.rel (%p278) target = $region24
      $region23: #{dense_block_pallas.1} parent=11 // pred_region
        _
      $region24: #{dense_block_pallas.1} parent=11 // pred_fallthru
        _
      // Predicated region
      $region25: #{dense_block_pallas.1} parent=11 // pred_check
        %p281 = pneg %p126
      $region26: #{dense_block_pallas.1} parent=11 // pred_check_branch
        %283 = sbr.rel (%p281) target = $region28
      $region27: #{dense_block_pallas.1} parent=11 // pred_region
        _
      $region28: #{dense_block_pallas.1} parent=11 // pred_fallthru
        _
      // Predicated region
      $region29: #{dense_block_pallas.1} parent=11 // pred_check
        %p284 = pneg %p147
      $region30: #{dense_block_pallas.1} parent=11 // pred_check_branch
        %286 = sbr.rel (%p284) target = $region32
      $region31: #{dense_block_pallas.1} parent=11 // pred_region
        _
      $region32: #{dense_block_pallas.1} parent=11 // pred_fallthru
        _
      // Predicated region
      $region33: #{dense_block_pallas.1} parent=11 // pred_check
        %p287 = pneg %p168
      $region34: #{dense_block_pallas.1} parent=11 // pred_check_branch
        %289 = sbr.rel (%p287) target = $region36
      $region35: #{dense_block_pallas.1} parent=11 // pred_region
        _
      $region36: #{dense_block_pallas.1} parent=11 // pred_fallthru
        _
      // Predicated region
      $region37: #{dense_block_pallas.1} parent=11 // pred_check
        %p290 = pneg %p189
      $region38: #{dense_block_pallas.1} parent=11 // pred_check_branch
        %292 = sbr.rel (%p290) target = $region40
      $region39: #{dense_block_pallas.1} parent=11 // pred_region
        _
      $region40: #{dense_block_pallas.1} parent=11 // pred_fallthru
        _
      // Predicated region
      $region41: #{dense_block_pallas.1} parent=11 // pred_check
        %p293 = pneg %p210
      $region42: #{dense_block_pallas.1} parent=11 // pred_check_branch
        %295 = sbr.rel (%p293) target = $region44
      $region43: #{dense_block_pallas.1} parent=11 // pred_region
        _
      $region44: #{dense_block_pallas.1} parent=11 // pred_fallthru
        _
      // Predicated region
      $region45: #{dense_block_pallas.1} parent=11 // pred_check
        %p296 = pneg %p231
      $region46: #{dense_block_pallas.1} parent=11 // pred_check_branch
        %298 = sbr.rel (%p296) target = $region48
      $region47: #{dense_block_pallas.1} parent=11 // pred_region
        _
      $region48: #{dense_block_pallas.1} parent=11 // pred_fallthru
        _
    $region12: #{dense_block_pallas.1} parent=5 // pred_fallthru
      _
    %p299 = scmp.lt.s32.totalorder %s16, 2
    // Predicated region
    $region49: #{dense_block_pallas.1} parent=5 // pred_check
      %p300 = pneg %p299
    $region50: #{dense_block_pallas.1} parent=5 // pred_check_branch
      %302 = sbr.rel (%p300) target = $region52
    $region51: #{dense_block_pallas.1} parent=5 // pred_region
      // Predicated region
      $region53: #{dense_block_pallas.1} parent=51 // pred_check
        %p303 = pneg %p36
      $region54: #{dense_block_pallas.1} parent=51 // pred_check_branch
        %305 = sbr.rel (%p303) target = $region56
      $region55: #{dense_block_pallas.1} parent=51 // pred_region
        %p306 = scmp.lt.s32.totalorder %s16, 1
        %s307 = scalar_select %p306, %s16, 1
        %s308 = smul.addr %s307, 32
        %s309 = smul.addr %s308, 8
        %s310 = scalar_lea.vmem %s0, %s309
      $region56: #{dense_block_pallas.1} parent=51 // pred_fallthru
        _
    $region52: #{dense_block_pallas.1} parent=5 // pred_fallthru
      _
    %p311 = scmp.le.s32.totalorder 1, %s16
    %p312 = scmp.lt.s32.totalorder %s16, 3
    %p313 = pnand %p311, %p312
    %p314 = pneg %p313
    // Predicated region
    $region57: #{dense_block_pallas.1} parent=5 // pred_check
      _
    $region58: #{dense_block_pallas.1} parent=5 // pred_check_branch
      %316 = sbr.rel (%p313) target = $region60
    $region59: #{dense_block_pallas.1} parent=5 // pred_region
      %s317 = ssub.s32 %s16, 1
      %p318 = scmp.lt.s32.totalorder %s21, 1
      %s319 = scalar_select %p318, %s21, 1
      %s320 = smul.addr %s319, 32
      %s321 = smul.addr %s320, 8
      %s322 = scalar_lea.vmem %s0, %s321
      %p323 = pneg %p42
      %p324 = pneg %p39
      %p325 = pneg %p63
      %p326 = pneg %p60
      %p327 = pneg %p84
      %p328 = pneg %p81
      %p329 = pneg %p105
      %p330 = pneg %p102
      %p331 = pneg %p126
      %p332 = pneg %p123
      %p333 = pneg %p147
      %p334 = pneg %p144
      %p335 = pneg %p168
      %p336 = pneg %p165
      %p337 = pneg %p189
      %p338 = pneg %p186
      %p339 = pneg %p210
      %p340 = pneg %p207
      %p341 = pneg %p231
      %p342 = pneg %p228
      %p343 = pneg %p257
      %p344 = pneg %p254
      %p345 = scmp.lt.s32.totalorder %s21, 1
      %s346 = scalar_select %p345, %s21, 1
      %s347 = smul.addr %s346, 32
      %s348 = smul.addr %s347, 8
      %s349 = scalar_lea.vmem %s10, %s348
      %p350 = scmp.lt.s32.totalorder %s21, 1
      %s351 = scalar_select %p350, %s21, 1
      %s352 = smul.addr %s351, 32
      %s353 = smul.addr %s352, 8
      %s354 = scalar_lea.vmem %s0, %s353
      %p355 = scmp.lt.s32.totalorder %s21, 1
      %s356 = scalar_select %p355, %s21, 1
      %s357 = smul.addr %s356, 32
      %s358 = smul.addr %s357, 8
      %s359 = scalar_lea.vmem %s10, %s358
      %vm361 = vcmask 130048
      %362 = vst.msk [vmem:[#allocation2] sm:$0xff] %vm361, 0.0
      %363 = vst.msk [vmem:[#allocation2 + $0x8] sm:$0xff] %vm361, 0.0
      %364 = vst.msk [vmem:[#allocation2 + $0x10] sm:$0xff] %vm361, 0.0
      %365 = vst.msk [vmem:[#allocation2 + $0x118] sm:$0xff] %vm361, 0.0
      %366 = vst.msk [vmem:[#allocation2 + $0x120] sm:$0xff] %vm361, 0.0
      %367 = vst.msk [vmem:[#allocation2 + $0x128] sm:$0xff] %vm361, 0.0
      %v368 = vlaneseq
      %v369 = vshrl.u32 %v368, 7
      %v370 = vadd.s32 %v369, 8
      %v371 = vadd.s32 %v369, 16
      %v372 = vadd.s32 %v369, 24
      %v373 = vadd.s32 %v369, 32
      %v374 = vadd.s32 %v369, 40
      %v375 = vadd.s32 %v369, 48
      %v376 = vadd.s32 %v369, 56
      %v377 = vadd.s32 %v369, 64
      %v378 = vadd.s32 %v369, 72
      %v379 = vadd.s32 %v369, 80
      %v380 = vadd.s32 %v369, 88
      %v381 = vadd.s32 %v369, 96
      %v382 = vadd.s32 %v369, 104
      %v383 = vadd.s32 %v369, 112
      %v384 = vadd.s32 %v369, 120
      %v385 = vadd.s32 %v369, 128
      %v386 = vadd.s32 %v369, 136
      %v387 = vadd.s32 %v369, 144
      %v388 = vadd.s32 %v369, 152
      %v389 = vadd.s32 %v369, 160
      %v390 = vadd.s32 %v369, 168
      %v391 = vadd.s32 %v369, 176
      %v392 = vadd.s32 %v369, 184
      %v393 = vadd.s32 %v369, 192
      %v394 = vadd.s32 %v369, 200
      %v395 = vadd.s32 %v369, 208
      %v396 = vadd.s32 %v369, 216
      %v397 = vadd.s32 %v369, 224
      %v398 = vadd.s32 %v369, 232
      %v399 = vadd.s32 %v369, 240
      %v400 = vadd.s32 %v369, 248
      %vm401 = vcmp.lt.s32.totalorder %v369, 0
      %v402 = vsub.s32 0, %v369
      %v403 = vsel %vm401, %v402, %v369
      %v404 = vshrl.u32 %v403, 4
      %v405 = vand.u32 %v403, 15
      %v406 = vsub.s32 0, %v405
      %v407 = vsel %vm401, %v406, %v405
      %vm408 = vcmp.lt.s32.totalorder %v370, 0
      %v409 = vsub.s32 0, %v370
      %v410 = vsel %vm408, %v409, %v370
      %v411 = vshrl.u32 %v410, 4
      %v412 = vand.u32 %v410, 15
      %v413 = vsub.s32 0, %v412
      %v414 = vsel %vm408, %v413, %v412
      %vm415 = vcmp.lt.s32.totalorder %v371, 0
      %v416 = vsub.s32 0, %v371
      %v417 = vsel %vm415, %v416, %v371
      %v418 = vshrl.u32 %v417, 4
      %v419 = vand.u32 %v417, 15
      %v420 = vsub.s32 0, %v419
      %v421 = vsel %vm415, %v420, %v419
      %vm422 = vcmp.lt.s32.totalorder %v372, 0
      %v423 = vsub.s32 0, %v372
      %v424 = vsel %vm422, %v423, %v372
      %v425 = vshrl.u32 %v424, 4
      %v426 = vand.u32 %v424, 15
      %v427 = vsub.s32 0, %v426
      %v428 = vsel %vm422, %v427, %v426
      %vm429 = vcmp.lt.s32.totalorder %v373, 0
      %v430 = vsub.s32 0, %v373
      %v431 = vsel %vm429, %v430, %v373
      %v432 = vshrl.u32 %v431, 4
      %v433 = vand.u32 %v431, 15
      %v434 = vsub.s32 0, %v433
      %v435 = vsel %vm429, %v434, %v433
      %vm436 = vcmp.lt.s32.totalorder %v374, 0
      %v437 = vsub.s32 0, %v374
      %v438 = vsel %vm436, %v437, %v374
      %v439 = vshrl.u32 %v438, 4
      %v440 = vand.u32 %v438, 15
      %v441 = vsub.s32 0, %v440
      %v442 = vsel %vm436, %v441, %v440
      %vm443 = vcmp.lt.s32.totalorder %v375, 0
      %v444 = vsub.s32 0, %v375
      %v445 = vsel %vm443, %v444, %v375
      %v446 = vshrl.u32 %v445, 4
      %v447 = vand.u32 %v445, 15
      %v448 = vsub.s32 0, %v447
      %v449 = vsel %vm443, %v448, %v447
      %vm450 = vcmp.lt.s32.totalorder %v376, 0
      %v451 = vsub.s32 0, %v376
      %v452 = vsel %vm450, %v451, %v376
      %v453 = vshrl.u32 %v452, 4
      %v454 = vand.u32 %v452, 15
      %v455 = vsub.s32 0, %v454
      %v456 = vsel %vm450, %v455, %v454
      %vm457 = vcmp.lt.s32.totalorder %v377, 0
      %v458 = vsub.s32 0, %v377
      %v459 = vsel %vm457, %v458, %v377
      %v460 = vshrl.u32 %v459, 4
      %v461 = vand.u32 %v459, 15
      %v462 = vsub.s32 0, %v461
      %v463 = vsel %vm457, %v462, %v461
      %vm464 = vcmp.lt.s32.totalorder %v378, 0
      %v465 = vsub.s32 0, %v378
      %v466 = vsel %vm464, %v465, %v378
      %v467 = vshrl.u32 %v466, 4
      %v468 = vand.u32 %v466, 15
      %v469 = vsub.s32 0, %v468
      %v470 = vsel %vm464, %v469, %v468
      %vm471 = vcmp.lt.s32.totalorder %v379, 0
      %v472 = vsub.s32 0, %v379
      %v473 = vsel %vm471, %v472, %v379
      %v474 = vshrl.u32 %v473, 4
      %v475 = vand.u32 %v473, 15
      %v476 = vsub.s32 0, %v475
      %v477 = vsel %vm471, %v476, %v475
      %vm478 = vcmp.lt.s32.totalorder %v380, 0
      %v479 = vsub.s32 0, %v380
      %v480 = vsel %vm478, %v479, %v380
      %v481 = vshrl.u32 %v480, 4
      %v482 = vand.u32 %v480, 15
      %v483 = vsub.s32 0, %v482
      %v484 = vsel %vm478, %v483, %v482
      %vm485 = vcmp.lt.s32.totalorder %v381, 0
      %v486 = vsub.s32 0, %v381
      %v487 = vsel %vm485, %v486, %v381
      %v488 = vshrl.u32 %v487, 4
      %v489 = vand.u32 %v487, 15
      %v490 = vsub.s32 0, %v489
      %v491 = vsel %vm485, %v490, %v489
      %vm492 = vcmp.lt.s32.totalorder %v382, 0
      %v493 = vsub.s32 0, %v382
      %v494 = vsel %vm492, %v493, %v382
      %v495 = vshrl.u32 %v494, 4
      %v496 = vand.u32 %v494, 15
      %v497 = vsub.s32 0, %v496
      %v498 = vsel %vm492, %v497, %v496
      %vm499 = vcmp.lt.s32.totalorder %v383, 0
      %v500 = vsub.s32 0, %v383
      %v501 = vsel %vm499, %v500, %v383
      %v502 = vshrl.u32 %v501, 4
      %v503 = vand.u32 %v501, 15
      %v504 = vsub.s32 0, %v503
      %v505 = vsel %vm499, %v504, %v503
      %vm506 = vcmp.lt.s32.totalorder %v384, 0
      %v507 = vsub.s32 0, %v384
      %v508 = vsel %vm506, %v507, %v384
      %v509 = vshrl.u32 %v508, 4
      %v510 = vand.u32 %v508, 15
      %v511 = vsub.s32 0, %v510
      %v512 = vsel %vm506, %v511, %v510
      %vm513 = vcmp.lt.s32.totalorder %v385, 0
      %v514 = vsub.s32 0, %v385
      %v515 = vsel %vm513, %v514, %v385
      %v516 = vshrl.u32 %v515, 4
      %v517 = vand.u32 %v515, 15
      %v518 = vsub.s32 0, %v517
      %v519 = vsel %vm513, %v518, %v517
      %vm520 = vcmp.lt.s32.totalorder %v386, 0
      %v521 = vsub.s32 0, %v386
      %v522 = vsel %vm520, %v521, %v386
      %v523 = vshrl.u32 %v522, 4
      %v524 = vand.u32 %v522, 15
      %v525 = vsub.s32 0, %v524
      %v526 = vsel %vm520, %v525, %v524
      %vm527 = vcmp.lt.s32.totalorder %v387, 0
      %v528 = vsub.s32 0, %v387
      %v529 = vsel %vm527, %v528, %v387
      %v530 = vshrl.u32 %v529, 4
      %v531 = vand.u32 %v529, 15
      %v532 = vsub.s32 0, %v531
      %v533 = vsel %vm527, %v532, %v531
      %vm534 = vcmp.lt.s32.totalorder %v388, 0
      %v535 = vsub.s32 0, %v388
      %v536 = vsel %vm534, %v535, %v388
      %v537 = vshrl.u32 %v536, 4
      %v538 = vand.u32 %v536, 15
      %v539 = vsub.s32 0, %v538
      %v540 = vsel %vm534, %v539, %v538
      %vm541 = vcmp.lt.s32.totalorder %v389, 0
      %v542 = vsub.s32 0, %v389
      %v543 = vsel %vm541, %v542, %v389
      %v544 = vshrl.u32 %v543, 4
      %v545 = vand.u32 %v543, 15
      %v546 = vsub.s32 0, %v545
      %v547 = vsel %vm541, %v546, %v545
      %vm548 = vcmp.lt.s32.totalorder %v390, 0
      %v549 = vsub.s32 0, %v390
      %v550 = vsel %vm548, %v549, %v390
      %v551 = vshrl.u32 %v550, 4
      %v552 = vand.u32 %v550, 15
      %v553 = vsub.s32 0, %v552
      %v554 = vsel %vm548, %v553, %v552
      %vm555 = vcmp.lt.s32.totalorder %v391, 0
      %v556 = vsub.s32 0, %v391
      %v557 = vsel %vm555, %v556, %v391
      %v558 = vshrl.u32 %v557, 4
      %v559 = vand.u32 %v557, 15
      %v560 = vsub.s32 0, %v559
      %v561 = vsel %vm555, %v560, %v559
      %vm562 = vcmp.lt.s32.totalorder %v392, 0
      %v563 = vsub.s32 0, %v392
      %v564 = vsel %vm562, %v563, %v392
      %v565 = vshrl.u32 %v564, 4
      %v566 = vand.u32 %v564, 15
      %v567 = vsub.s32 0, %v566
      %v568 = vsel %vm562, %v567, %v566
      %vm569 = vcmp.lt.s32.totalorder %v393, 0
      %v570 = vsub.s32 0, %v393
      %v571 = vsel %vm569, %v570, %v393
      %v572 = vshrl.u32 %v571, 4
      %v573 = vand.u32 %v571, 15
      %v574 = vsub.s32 0, %v573
      %v575 = vsel %vm569, %v574, %v573
      %vm576 = vcmp.lt.s32.totalorder %v394, 0
      %v577 = vsub.s32 0, %v394
      %v578 = vsel %vm576, %v577, %v394
      %v579 = vshrl.u32 %v578, 4
      %v580 = vand.u32 %v578, 15
      %v581 = vsub.s32 0, %v580
      %v582 = vsel %vm576, %v581, %v580
      %vm583 = vcmp.lt.s32.totalorder %v395, 0
      %v584 = vsub.s32 0, %v395
      %v585 = vsel %vm583, %v584, %v395
      %v586 = vshrl.u32 %v585, 4
      %v587 = vand.u32 %v585, 15
      %v588 = vsub.s32 0, %v587
      %v589 = vsel %vm583, %v588, %v587
      %vm590 = vcmp.lt.s32.totalorder %v396, 0
      %v591 = vsub.s32 0, %v396
      %v592 = vsel %vm590, %v591, %v396
      %v593 = vshrl.u32 %v592, 4
      %v594 = vand.u32 %v592, 15
      %v595 = vsub.s32 0, %v594
      %v596 = vsel %vm590, %v595, %v594
      %vm597 = vcmp.lt.s32.totalorder %v397, 0
      %v598 = vsub.s32 0, %v397
      %v599 = vsel %vm597, %v598, %v397
      %v600 = vshrl.u32 %v599, 4
      %v601 = vand.u32 %v599, 15
      %v602 = vsub.s32 0, %v601
      %v603 = vsel %vm597, %v602, %v601
      %vm604 = vcmp.lt.s32.totalorder %v398, 0
      %v605 = vsub.s32 0, %v398
      %v606 = vsel %vm604, %v605, %v398
      %v607 = vshrl.u32 %v606, 4
      %v608 = vand.u32 %v606, 15
      %v609 = vsub.s32 0, %v608
      %v610 = vsel %vm604, %v609, %v608
      %vm611 = vcmp.lt.s32.totalorder %v399, 0
      %v612 = vsub.s32 0, %v399
      %v613 = vsel %vm611, %v612, %v399
      %v614 = vshrl.u32 %v613, 4
      %v615 = vand.u32 %v613, 15
      %v616 = vsub.s32 0, %v615
      %v617 = vsel %vm611, %v616, %v615
      %vm618 = vcmp.lt.s32.totalorder %v400, 0
      %v619 = vsub.s32 0, %v400
      %v620 = vsel %vm618, %v619, %v400
      %v621 = vshrl.u32 %v620, 4
      %v622 = vand.u32 %v620, 15
      %v623 = vsub.s32 0, %v622
      %v624 = vsel %vm618, %v623, %v622
      %vm625 = vcmp.ne.s32.totalorder %v407, 0
      %vm626 = vcmp.ne.s32.totalorder %v414, 0
      %vm627 = vcmp.ne.s32.totalorder %v421, 0
      %vm628 = vcmp.ne.s32.totalorder %v428, 0
      %vm629 = vcmp.ne.s32.totalorder %v435, 0
      %vm630 = vcmp.ne.s32.totalorder %v442, 0
      %vm631 = vcmp.ne.s32.totalorder %v449, 0
      %vm632 = vcmp.ne.s32.totalorder %v456, 0
      %vm633 = vcmp.ne.s32.totalorder %v463, 0
      %vm634 = vcmp.ne.s32.totalorder %v470, 0
      %vm635 = vcmp.ne.s32.totalorder %v477, 0
      %vm636 = vcmp.ne.s32.totalorder %v484, 0
      %vm637 = vcmp.ne.s32.totalorder %v491, 0
      %vm638 = vcmp.ne.s32.totalorder %v498, 0
      %vm639 = vcmp.ne.s32.totalorder %v505, 0
      %vm640 = vcmp.ne.s32.totalorder %v512, 0
      %vm641 = vcmp.ne.s32.totalorder %v519, 0
      %vm642 = vcmp.ne.s32.totalorder %v526, 0
      %vm643 = vcmp.ne.s32.totalorder %v533, 0
      %vm644 = vcmp.ne.s32.totalorder %v540, 0
      %vm645 = vcmp.ne.s32.totalorder %v547, 0
      %vm646 = vcmp.ne.s32.totalorder %v554, 0
      %vm647 = vcmp.ne.s32.totalorder %v561, 0
      %vm648 = vcmp.ne.s32.totalorder %v568, 0
      %vm649 = vcmp.ne.s32.totalorder %v575, 0
      %vm650 = vcmp.ne.s32.totalorder %v582, 0
      %vm651 = vcmp.ne.s32.totalorder %v589, 0
      %vm652 = vcmp.ne.s32.totalorder %v596, 0
      %vm653 = vcmp.ne.s32.totalorder %v603, 0
      %vm654 = vcmp.ne.s32.totalorder %v610, 0
      %vm655 = vcmp.ne.s32.totalorder %v617, 0
      %vm656 = vcmp.ne.s32.totalorder %v624, 0
      %vm657 = vcmp.lt.s32.totalorder %v407, 0
      %vm658 = vcmp.lt.s32.totalorder %v414, 0
      %vm659 = vcmp.lt.s32.totalorder %v421, 0
      %vm660 = vcmp.lt.s32.totalorder %v428, 0
      %vm661 = vcmp.lt.s32.totalorder %v435, 0
      %vm662 = vcmp.lt.s32.totalorder %v442, 0
      %vm663 = vcmp.lt.s32.totalorder %v449, 0
      %vm664 = vcmp.lt.s32.totalorder %v456, 0
      %vm665 = vcmp.lt.s32.totalorder %v463, 0
      %vm666 = vcmp.lt.s32.totalorder %v470, 0
      %vm667 = vcmp.lt.s32.totalorder %v477, 0
      %vm668 = vcmp.lt.s32.totalorder %v484, 0
      %vm669 = vcmp.lt.s32.totalorder %v491, 0
      %vm670 = vcmp.lt.s32.totalorder %v498, 0
      %vm671 = vcmp.lt.s32.totalorder %v505, 0
      %vm672 = vcmp.lt.s32.totalorder %v512, 0
      %vm673 = vcmp.lt.s32.totalorder %v519, 0
      %vm674 = vcmp.lt.s32.totalorder %v526, 0
      %vm675 = vcmp.lt.s32.totalorder %v533, 0
      %vm676 = vcmp.lt.s32.totalorder %v540, 0
      %vm677 = vcmp.lt.s32.totalorder %v547, 0
      %vm678 = vcmp.lt.s32.totalorder %v554, 0
      %vm679 = vcmp.lt.s32.totalorder %v561, 0
      %vm680 = vcmp.lt.s32.totalorder %v568, 0
      %vm681 = vcmp.lt.s32.totalorder %v575, 0
      %vm682 = vcmp.lt.s32.totalorder %v582, 0
      %vm683 = vcmp.lt.s32.totalorder %v589, 0
      %vm684 = vcmp.lt.s32.totalorder %v596, 0
      %vm685 = vcmp.lt.s32.totalorder %v603, 0
      %vm686 = vcmp.lt.s32.totalorder %v610, 0
      %vm687 = vcmp.lt.s32.totalorder %v617, 0
      %vm688 = vcmp.lt.s32.totalorder %v624, 0
      %vm689 = vmand %vm657, %vm625
      %vm690 = vmand %vm658, %vm626
      %vm691 = vmand %vm659, %vm627
      %vm692 = vmand %vm660, %vm628
      %vm693 = vmand %vm661, %vm629
      %vm694 = vmand %vm662, %vm630
      %vm695 = vmand %vm663, %vm631
      %vm696 = vmand %vm664, %vm632
      %vm697 = vmand %vm665, %vm633
      %vm698 = vmand %vm666, %vm634
      %vm699 = vmand %vm667, %vm635
      %vm700 = vmand %vm668, %vm636
      %vm701 = vmand %vm669, %vm637
      %vm702 = vmand %vm670, %vm638
      %vm703 = vmand %vm671, %vm639
      %vm704 = vmand %vm672, %vm640
      %vm705 = vmand %vm673, %vm641
      %vm706 = vmand %vm674, %vm642
      %vm707 = vmand %vm675, %vm643
      %vm708 = vmand %vm676, %vm644
      %vm709 = vmand %vm677, %vm645
      %vm710 = vmand %vm678, %vm646
      %vm711 = vmand %vm679, %vm647
      %vm712 = vmand %vm680, %vm648
      %vm713 = vmand %vm681, %vm649
      %vm714 = vmand %vm682, %vm650
      %vm715 = vmand %vm683, %vm651
      %vm716 = vmand %vm684, %vm652
      %vm717 = vmand %vm685, %vm653
      %vm718 = vmand %vm686, %vm654
      %vm719 = vmand %vm687, %vm655
      %vm720 = vmand %vm688, %vm656
      %v721 = vadd.s32 %v407, 16
      %v722 = vadd.s32 %v414, 16
      %v723 = vadd.s32 %v421, 16
      %v724 = vadd.s32 %v428, 16
      %v725 = vadd.s32 %v435, 16
      %v726 = vadd.s32 %v442, 16
      %v727 = vadd.s32 %v449, 16
      %v728 = vadd.s32 %v456, 16
      %v729 = vadd.s32 %v463, 16
      %v730 = vadd.s32 %v470, 16
      %v731 = vadd.s32 %v477, 16
      %v732 = vadd.s32 %v484, 16
      %v733 = vadd.s32 %v491, 16
      %v734 = vadd.s32 %v498, 16
      %v735 = vadd.s32 %v505, 16
      %v736 = vadd.s32 %v512, 16
      %v737 = vadd.s32 %v519, 16
      %v738 = vadd.s32 %v526, 16
      %v739 = vadd.s32 %v533, 16
      %v740 = vadd.s32 %v540, 16
      %v741 = vadd.s32 %v547, 16
      %v742 = vadd.s32 %v554, 16
      %v743 = vadd.s32 %v561, 16
      %v744 = vadd.s32 %v568, 16
      %v745 = vadd.s32 %v575, 16
      %v746 = vadd.s32 %v582, 16
      %v747 = vadd.s32 %v589, 16
      %v748 = vadd.s32 %v596, 16
      %v749 = vadd.s32 %v603, 16
      %v750 = vadd.s32 %v610, 16
      %v751 = vadd.s32 %v617, 16
      %v752 = vadd.s32 %v624, 16
      %v753 = vsel %vm689, %v721, %v407
      %v754 = vsel %vm690, %v722, %v414
      %v755 = vsel %vm691, %v723, %v421
      %v756 = vsel %vm692, %v724, %v428
      %v757 = vsel %vm693, %v725, %v435
      %v758 = vsel %vm694, %v726, %v442
      %v759 = vsel %vm695, %v727, %v449
      %v760 = vsel %vm696, %v728, %v456
      %v761 = vsel %vm697, %v729, %v463
      %v762 = vsel %vm698, %v730, %v470
      %v763 = vsel %vm699, %v731, %v477
      %v764 = vsel %vm700, %v732, %v484
      %v765 = vsel %vm701, %v733, %v491
      %v766 = vsel %vm702, %v734, %v498
      %v767 = vsel %vm703, %v735, %v505
      %v768 = vsel %vm704, %v736, %v512
      %v769 = vsel %vm705, %v737, %v519
      %v770 = vsel %vm706, %v738, %v526
      %v771 = vsel %vm707, %v739, %v533
      %v772 = vsel %vm708, %v740, %v540
      %v773 = vsel %vm709, %v741, %v547
      %v774 = vsel %vm710, %v742, %v554
      %v775 = vsel %vm711, %v743, %v561
      %v776 = vsel %vm712, %v744, %v568
      %v777 = vsel %vm713, %v745, %v575
      %v778 = vsel %vm714, %v746, %v582
      %v779 = vsel %vm715, %v747, %v589
      %v780 = vsel %vm716, %v748, %v596
      %v781 = vsel %vm717, %v749, %v603
      %v782 = vsel %vm718, %v750, %v610
      %v783 = vsel %vm719, %v751, %v617
      %v784 = vsel %vm720, %v752, %v624
      %vm785 = vcmp.ge.s32.totalorder %v753, 1
      %vm786 = vcmp.ge.s32.totalorder %v754, 1
      %vm787 = vcmp.ge.s32.totalorder %v755, 1
      %vm788 = vcmp.ge.s32.totalorder %v756, 1
      %vm789 = vcmp.ge.s32.totalorder %v757, 1
      %vm790 = vcmp.ge.s32.totalorder %v758, 1
      %vm791 = vcmp.ge.s32.totalorder %v759, 1
      %vm792 = vcmp.ge.s32.totalorder %v760, 1
      %vm793 = vcmp.ge.s32.totalorder %v761, 1
      %vm794 = vcmp.ge.s32.totalorder %v762, 1
      %vm795 = vcmp.ge.s32.totalorder %v763, 1
      %vm796 = vcmp.ge.s32.totalorder %v764, 1
      %vm797 = vcmp.ge.s32.totalorder %v765, 1
      %vm798 = vcmp.ge.s32.totalorder %v766, 1
      %vm799 = vcmp.ge.s32.totalorder %v767, 1
      %vm800 = vcmp.ge.s32.totalorder %v768, 1
      %vm801 = vcmp.ge.s32.totalorder %v769, 1
      %vm802 = vcmp.ge.s32.totalorder %v770, 1
      %vm803 = vcmp.ge.s32.totalorder %v771, 1
      %vm804 = vcmp.ge.s32.totalorder %v772, 1
      %vm805 = vcmp.ge.s32.totalorder %v773, 1
      %vm806 = vcmp.ge.s32.totalorder %v774, 1
      %vm807 = vcmp.ge.s32.totalorder %v775, 1
      %vm808 = vcmp.ge.s32.totalorder %v776, 1
      %vm809 = vcmp.ge.s32.totalorder %v777, 1
      %vm810 = vcmp.ge.s32.totalorder %v778, 1
      %vm811 = vcmp.ge.s32.totalorder %v779, 1
      %vm812 = vcmp.ge.s32.totalorder %v780, 1
      %vm813 = vcmp.ge.s32.totalorder %v781, 1
      %vm814 = vcmp.ge.s32.totalorder %v782, 1
      %vm815 = vcmp.ge.s32.totalorder %v783, 1
      %vm816 = vcmp.ge.s32.totalorder %v784, 1
      %v817 = vsel %vm785, 1, 0
      %v818 = vsel %vm786, 1, 0
      %v819 = vsel %vm787, 1, 0
      %v820 = vsel %vm788, 1, 0
      %v821 = vsel %vm789, 1, 0
      %v822 = vsel %vm790, 1, 0
      %v823 = vsel %vm791, 1, 0
      %v824 = vsel %vm792, 1, 0
      %v825 = vsel %vm793, 1, 0
      %v826 = vsel %vm794, 1, 0
      %v827 = vsel %vm795, 1, 0
      %v828 = vsel %vm796, 1, 0
      %v829 = vsel %vm797, 1, 0
      %v830 = vsel %vm798, 1, 0
      %v831 = vsel %vm799, 1, 0
      %v832 = vsel %vm800, 1, 0
      %v833 = vsel %vm801, 1, 0
      %v834 = vsel %vm802, 1, 0
      %v835 = vsel %vm803, 1, 0
      %v836 = vsel %vm804, 1, 0
      %v837 = vsel %vm805, 1, 0
      %v838 = vsel %vm806, 1, 0
      %v839 = vsel %vm807, 1, 0
      %v840 = vsel %vm808, 1, 0
      %v841 = vsel %vm809, 1, 0
      %v842 = vsel %vm810, 1, 0
      %v843 = vsel %vm811, 1, 0
      %v844 = vsel %vm812, 1, 0
      %v845 = vsel %vm813, 1, 0
      %v846 = vsel %vm814, 1, 0
      %v847 = vsel %vm815, 1, 0
      %v848 = vsel %vm816, 1, 0
      %v849 = vcvt.s32.f32 %v817
      %v850 = vcvt.s32.f32 %v818
      %v851 = vcvt.s32.f32 %v819
      %v852 = vcvt.s32.f32 %v820
      %v853 = vcvt.s32.f32 %v821
      %v854 = vcvt.s32.f32 %v822
      %v855 = vcvt.s32.f32 %v823
      %v856 = vcvt.s32.f32 %v824
      %v857 = vcvt.s32.f32 %v825
      %v858 = vcvt.s32.f32 %v826
      %v859 = vcvt.s32.f32 %v827
      %v860 = vcvt.s32.f32 %v828
      %v861 = vcvt.s32.f32 %v829
      %v862 = vcvt.s32.f32 %v830
      %v863 = vcvt.s32.f32 %v831
      %v864 = vcvt.s32.f32 %v832
      %v865 = vcvt.s32.f32 %v833
      %v866 = vcvt.s32.f32 %v834
      %v867 = vcvt.s32.f32 %v835
      %v868 = vcvt.s32.f32 %v836
      %v869 = vcvt.s32.f32 %v837
      %v870 = vcvt.s32.f32 %v838
      %v871 = vcvt.s32.f32 %v839
      %v872 = vcvt.s32.f32 %v840
      %v873 = vcvt.s32.f32 %v841
      %v874 = vcvt.s32.f32 %v842
      %v875 = vcvt.s32.f32 %v843
      %v876 = vcvt.s32.f32 %v844
      %v877 = vcvt.s32.f32 %v845
      %v878 = vcvt.s32.f32 %v846
      %v879 = vcvt.s32.f32 %v847
      %v880 = vcvt.s32.f32 %v848
      %vm881 = vcmp.le.s32.totalorder %v753, 14
      %vm882 = vcmp.le.s32.totalorder %v754, 14
      %vm883 = vcmp.le.s32.totalorder %v755, 14
      %vm884 = vcmp.le.s32.totalorder %v756, 14
      %vm885 = vcmp.le.s32.totalorder %v757, 14
      %vm886 = vcmp.le.s32.totalorder %v758, 14
      %vm887 = vcmp.le.s32.totalorder %v759, 14
      %vm888 = vcmp.le.s32.totalorder %v760, 14
      %vm889 = vcmp.le.s32.totalorder %v761, 14
      %vm890 = vcmp.le.s32.totalorder %v762, 14
      %vm891 = vcmp.le.s32.totalorder %v763, 14
      %vm892 = vcmp.le.s32.totalorder %v764, 14
      %vm893 = vcmp.le.s32.totalorder %v765, 14
      %vm894 = vcmp.le.s32.totalorder %v766, 14
      %vm895 = vcmp.le.s32.totalorder %v767, 14
      %vm896 = vcmp.le.s32.totalorder %v768, 14
      %vm897 = vcmp.le.s32.totalorder %v769, 14
      %vm898 = vcmp.le.s32.totalorder %v770, 14
      %vm899 = vcmp.le.s32.totalorder %v771, 14
      %vm900 = vcmp.le.s32.totalorder %v772, 14
      %vm901 = vcmp.le.s32.totalorder %v773, 14
      %vm902 = vcmp.le.s32.totalorder %v774, 14
      %vm903 = vcmp.le.s32.totalorder %v775, 14
      %vm904 = vcmp.le.s32.totalorder %v776, 14
      %vm905 = vcmp.le.s32.totalorder %v777, 14
      %vm906 = vcmp.le.s32.totalorder %v778, 14
      %vm907 = vcmp.le.s32.totalorder %v779, 14
      %vm908 = vcmp.le.s32.totalorder %v780, 14
      %vm909 = vcmp.le.s32.totalorder %v781, 14
      %vm910 = vcmp.le.s32.totalorder %v782, 14
      %vm911 = vcmp.le.s32.totalorder %v783, 14
      %vm912 = vcmp.le.s32.totalorder %v784, 14
      %v913 = vsel %vm881, 1, 0
      %v914 = vsel %vm882, 1, 0
      %v915 = vsel %vm883, 1, 0
      %v916 = vsel %vm884, 1, 0
      %v917 = vsel %vm885, 1, 0
      %v918 = vsel %vm886, 1, 0
      %v919 = vsel %vm887, 1, 0
      %v920 = vsel %vm888, 1, 0
      %v921 = vsel %vm889, 1, 0
      %v922 = vsel %vm890, 1, 0
      %v923 = vsel %vm891, 1, 0
      %v924 = vsel %vm892, 1, 0
      %v925 = vsel %vm893, 1, 0
      %v926 = vsel %vm894, 1, 0
      %v927 = vsel %vm895, 1, 0
      %v928 = vsel %vm896, 1, 0
      %v929 = vsel %vm897, 1, 0
      %v930 = vsel %vm898, 1, 0
      %v931 = vsel %vm899, 1, 0
      %v932 = vsel %vm900, 1, 0
      %v933 = vsel %vm901, 1, 0
      %v934 = vsel %vm902, 1, 0
      %v935 = vsel %vm903, 1, 0
      %v936 = vsel %vm904, 1, 0
      %v937 = vsel %vm905, 1, 0
      %v938 = vsel %vm906, 1, 0
      %v939 = vsel %vm907, 1, 0
      %v940 = vsel %vm908, 1, 0
      %v941 = vsel %vm909, 1, 0
      %v942 = vsel %vm910, 1, 0
      %v943 = vsel %vm911, 1, 0
      %v944 = vsel %vm912, 1, 0
      %v945 = vcvt.s32.f32 %v913
      %v946 = vcvt.s32.f32 %v914
      %v947 = vcvt.s32.f32 %v915
      %v948 = vcvt.s32.f32 %v916
      %v949 = vcvt.s32.f32 %v917
      %v950 = vcvt.s32.f32 %v918
      %v951 = vcvt.s32.f32 %v919
      %v952 = vcvt.s32.f32 %v920
      %v953 = vcvt.s32.f32 %v921
      %v954 = vcvt.s32.f32 %v922
      %v955 = vcvt.s32.f32 %v923
      %v956 = vcvt.s32.f32 %v924
      %v957 = vcvt.s32.f32 %v925
      %v958 = vcvt.s32.f32 %v926
      %v959 = vcvt.s32.f32 %v927
      %v960 = vcvt.s32.f32 %v928
      %v961 = vcvt.s32.f32 %v929
      %v962 = vcvt.s32.f32 %v930
      %v963 = vcvt.s32.f32 %v931
      %v964 = vcvt.s32.f32 %v932
      %v965 = vcvt.s32.f32 %v933
      %v966 = vcvt.s32.f32 %v934
      %v967 = vcvt.s32.f32 %v935
      %v968 = vcvt.s32.f32 %v936
      %v969 = vcvt.s32.f32 %v937
      %v970 = vcvt.s32.f32 %v938
      %v971 = vcvt.s32.f32 %v939
      %v972 = vcvt.s32.f32 %v940
      %v973 = vcvt.s32.f32 %v941
      %v974 = vcvt.s32.f32 %v942
      %v975 = vcvt.s32.f32 %v943
      %v976 = vcvt.s32.f32 %v944
      %v977 = vld [vmem:[%s354] sm:$0xff]
      %v978 = vld [vmem:[%s354 + $0x8] sm:$0xff]
      %v979 = vld [vmem:[%s354 + $0x10] sm:$0xff]
      %v980 = vld [vmem:[%s354 + $0x18] sm:$0xff]
      %v981 = vld [vmem:[%s354 + $0x20] sm:$0xff]
      %v982 = vld [vmem:[%s354 + $0x28] sm:$0xff]
      %v983 = vld [vmem:[%s354 + $0x30] sm:$0xff]
      %v984 = vld [vmem:[%s354 + $0x38] sm:$0xff]
      %v985 = vld [vmem:[%s354 + $0x40] sm:$0xff]
      %v986 = vld [vmem:[%s354 + $0x48] sm:$0xff]
      %v987 = vld [vmem:[%s354 + $0x50] sm:$0xff]
      %v988 = vld [vmem:[%s354 + $0x58] sm:$0xff]
      %v989 = vld [vmem:[%s354 + $0x60] sm:$0xff]
      %v990 = vld [vmem:[%s354 + $0x68] sm:$0xff]
      %v991 = vld [vmem:[%s354 + $0x70] sm:$0xff]
      %v992 = vld [vmem:[%s354 + $0x78] sm:$0xff]
      %v993 = vld [vmem:[%s354 + $0x80] sm:$0xff]
      %v994 = vld [vmem:[%s354 + $0x88] sm:$0xff]
      %v995 = vld [vmem:[%s354 + $0x90] sm:$0xff]
      %v996 = vld [vmem:[%s354 + $0x98] sm:$0xff]
      %v997 = vld [vmem:[%s354 + $0xa0] sm:$0xff]
      %v998 = vld [vmem:[%s354 + $0xa8] sm:$0xff]
      %v999 = vld [vmem:[%s354 + $0xb0] sm:$0xff]
      %v1000 = vld [vmem:[%s354 + $0xb8] sm:$0xff]
      %v1001 = vld [vmem:[%s354 + $0xc0] sm:$0xff]
      %v1002 = vld [vmem:[%s354 + $0xc8] sm:$0xff]
      %v1003 = vld [vmem:[%s354 + $0xd0] sm:$0xff]
      %v1004 = vld [vmem:[%s354 + $0xd8] sm:$0xff]
      %v1005 = vld [vmem:[%s354 + $0xe0] sm:$0xff]
      %v1006 = vld [vmem:[%s354 + $0xe8] sm:$0xff]
      %v1007 = vld [vmem:[%s354 + $0xf0] sm:$0xff]
      %v1008 = vld [vmem:[%s354 + $0xf8] sm:$0xff]
      %vm1009 = vcmask 31744
      %1010 = vst.msk [vmem:[#allocation2 + $0x18] sm:$0xff] %vm1009, %v977
      %1011 = vst.msk [vmem:[#allocation2 + $0x20] sm:$0xff] %vm1009, %v978
      %1012 = vst.msk [vmem:[#allocation2 + $0x28] sm:$0xff] %vm1009, %v979
      %1013 = vst.msk [vmem:[#allocation2 + $0x30] sm:$0xff] %vm1009, %v980
      %1014 = vst.msk [vmem:[#allocation2 + $0x38] sm:$0xff] %vm1009, %v981
      %1015 = vst.msk [vmem:[#allocation2 + $0x40] sm:$0xff] %vm1009, %v982
      %1016 = vst.msk [vmem:[#allocation2 + $0x48] sm:$0xff] %vm1009, %v983
      %1017 = vst.msk [vmem:[#allocation2 + $0x50] sm:$0xff] %vm1009, %v984
      %1018 = vst.msk [vmem:[#allocation2 + $0x58] sm:$0xff] %vm1009, %v985
      %1019 = vst.msk [vmem:[#allocation2 + $0x60] sm:$0xff] %vm1009, %v986
      %1020 = vst.msk [vmem:[#allocation2 + $0x68] sm:$0xff] %vm1009, %v987
      %1021 = vst.msk [vmem:[#allocation2 + $0x70] sm:$0xff] %vm1009, %v988
      %1022 = vst.msk [vmem:[#allocation2 + $0x78] sm:$0xff] %vm1009, %v989
      %1023 = vst.msk [vmem:[#allocation2 + $0x80] sm:$0xff] %vm1009, %v990
      %1024 = vst.msk [vmem:[#allocation2 + $0x88] sm:$0xff] %vm1009, %v991
      %1025 = vst.msk [vmem:[#allocation2 + $0x90] sm:$0xff] %vm1009, %v992
      %1026 = vst.msk [vmem:[#allocation2 + $0x98] sm:$0xff] %vm1009, %v993
      %1027 = vst.msk [vmem:[#allocation2 + $0xa0] sm:$0xff] %vm1009, %v994
      %1028 = vst.msk [vmem:[#allocation2 + $0xa8] sm:$0xff] %vm1009, %v995
      %1029 = vst.msk [vmem:[#allocation2 + $0xb0] sm:$0xff] %vm1009, %v996
      %1030 = vst.msk [vmem:[#allocation2 + $0xb8] sm:$0xff] %vm1009, %v997
      %1031 = vst.msk [vmem:[#allocation2 + $0xc0] sm:$0xff] %vm1009, %v998
      %1032 = vst.msk [vmem:[#allocation2 + $0xc8] sm:$0xff] %vm1009, %v999
      %1033 = vst.msk [vmem:[#allocation2 + $0xd0] sm:$0xff] %vm1009, %v1000
      %1034 = vst.msk [vmem:[#allocation2 + $0xd8] sm:$0xff] %vm1009, %v1001
      %1035 = vst.msk [vmem:[#allocation2 + $0xe0] sm:$0xff] %vm1009, %v1002
      %1036 = vst.msk [vmem:[#allocation2 + $0xe8] sm:$0xff] %vm1009, %v1003
      %1037 = vst.msk [vmem:[#allocation2 + $0xf0] sm:$0xff] %vm1009, %v1004
      %1038 = vst.msk [vmem:[#allocation2 + $0xf8] sm:$0xff] %vm1009, %v1005
      %1039 = vst.msk [vmem:[#allocation2 + $0x100] sm:$0xff] %vm1009, %v1006
      %1040 = vst.msk [vmem:[#allocation2 + $0x108] sm:$0xff] %vm1009, %v1007
      %1041 = vst.msk [vmem:[#allocation2 + $0x110] sm:$0xff] %vm1009, %v1008
      %v1042 = vld [vmem:[#allocation2 + $0x7] sm:$0xff]
      %v1043 = vld [vmem:[#allocation2 + $0xf] sm:$0xff]
      %v1044 = vld [vmem:[#allocation2 + $0x17] sm:$0xff]
      %v1045 = vld [vmem:[#allocation2 + $0x1f] sm:$0xff]
      %v1046 = vld [vmem:[#allocation2 + $0x27] sm:$0xff]
      %v1047 = vld [vmem:[#allocation2 + $0x2f] sm:$0xff]
      %v1048 = vld [vmem:[#allocation2 + $0x37] sm:$0xff]
      %v1049 = vld [vmem:[#allocation2 + $0x3f] sm:$0xff]
      %v1050 = vld [vmem:[#allocation2 + $0x47] sm:$0xff]
      %v1051 = vld [vmem:[#allocation2 + $0x4f] sm:$0xff]
      %v1052 = vld [vmem:[#allocation2 + $0x57] sm:$0xff]
      %v1053 = vld [vmem:[#allocation2 + $0x5f] sm:$0xff]
      %v1054 = vld [vmem:[#allocation2 + $0x67] sm:$0xff]
      %v1055 = vld [vmem:[#allocation2 + $0x6f] sm:$0xff]
      %v1056 = vld [vmem:[#allocation2 + $0x77] sm:$0xff]
      %v1057 = vld [vmem:[#allocation2 + $0x7f] sm:$0xff]
      %v1058 = vld [vmem:[#allocation2 + $0x87] sm:$0xff]
      %v1059 = vld [vmem:[#allocation2 + $0x8f] sm:$0xff]
      %v1060 = vld [vmem:[#allocation2 + $0x97] sm:$0xff]
      %v1061 = vld [vmem:[#allocation2 + $0x9f] sm:$0xff]
      %v1062 = vld [vmem:[#allocation2 + $0xa7] sm:$0xff]
      %v1063 = vld [vmem:[#allocation2 + $0xaf] sm:$0xff]
      %v1064 = vld [vmem:[#allocation2 + $0xb7] sm:$0xff]
      %v1065 = vld [vmem:[#allocation2 + $0xbf] sm:$0xff]
      %v1066 = vld [vmem:[#allocation2 + $0xc7] sm:$0xff]
      %v1067 = vld [vmem:[#allocation2 + $0xcf] sm:$0xff]
      %v1068 = vld [vmem:[#allocation2 + $0xd7] sm:$0xff]
      %v1069 = vld [vmem:[#allocation2 + $0xdf] sm:$0xff]
      %v1070 = vld [vmem:[#allocation2 + $0xe7] sm:$0xff]
      %v1071 = vld [vmem:[#allocation2 + $0xef] sm:$0xff]
      %v1072 = vld [vmem:[#allocation2 + $0xf7] sm:$0xff]
      %v1073 = vld [vmem:[#allocation2 + $0xff] sm:$0xff]
      %v1074 = vmul.f32 %v1042, %v849
      %v1075 = vmul.f32 %v1043, %v850
      %v1076 = vmul.f32 %v1044, %v851
      %v1077 = vmul.f32 %v1045, %v852
      %v1078 = vmul.f32 %v1046, %v853
      %v1079 = vmul.f32 %v1047, %v854
      %v1080 = vmul.f32 %v1048, %v855
      %v1081 = vmul.f32 %v1049, %v856
      %v1082 = vmul.f32 %v1050, %v857
      %v1083 = vmul.f32 %v1051, %v858
      %v1084 = vmul.f32 %v1052, %v859
      %v1085 = vmul.f32 %v1053, %v860
      %v1086 = vmul.f32 %v1054, %v861
      %v1087 = vmul.f32 %v1055, %v862
      %v1088 = vmul.f32 %v1056, %v863
      %v1089 = vmul.f32 %v1057, %v864
      %v1090 = vmul.f32 %v1058, %v865
      %v1091 = vmul.f32 %v1059, %v866
      %v1092 = vmul.f32 %v1060, %v867
      %v1093 = vmul.f32 %v1061, %v868
      %v1094 = vmul.f32 %v1062, %v869
      %v1095 = vmul.f32 %v1063, %v870
      %v1096 = vmul.f32 %v1064, %v871
      %v1097 = vmul.f32 %v1065, %v872
      %v1098 = vmul.f32 %v1066, %v873
      %v1099 = vmul.f32 %v1067, %v874
      %v1100 = vmul.f32 %v1068, %v875
      %v1101 = vmul.f32 %v1069, %v876
      %v1102 = vmul.f32 %v1070, %v877
      %v1103 = vmul.f32 %v1071, %v878
      %v1104 = vmul.f32 %v1072, %v879
      %v1105 = vmul.f32 %v1073, %v880
      %v1106 = vld [vmem:[#allocation2 + $0x8] sm:$0xff]
      %v1107 = vld [vmem:[#allocation2 + $0x10] sm:$0xff]
      %v1108 = vld [vmem:[#allocation2 + $0x18] sm:$0xff]
      %v1109 = vld [vmem:[#allocation2 + $0x20] sm:$0xff]
      %v1110 = vld [vmem:[#allocation2 + $0x28] sm:$0xff]
      %v1111 = vld [vmem:[#allocation2 + $0x30] sm:$0xff]
      %v1112 = vld [vmem:[#allocation2 + $0x38] sm:$0xff]
      %v1113 = vld [vmem:[#allocation2 + $0x40] sm:$0xff]
      %v1114 = vld [vmem:[#allocation2 + $0x48] sm:$0xff]
      %v1115 = vld [vmem:[#allocation2 + $0x50] sm:$0xff]
      %v1116 = vld [vmem:[#allocation2 + $0x58] sm:$0xff]
      %v1117 = vld [vmem:[#allocation2 + $0x60] sm:$0xff]
      %v1118 = vld [vmem:[#allocation2 + $0x68] sm:$0xff]
      %v1119 = vld [vmem:[#allocation2 + $0x70] sm:$0xff]
      %v1120 = vld [vmem:[#allocation2 + $0x78] sm:$0xff]
      %v1121 = vld [vmem:[#allocation2 + $0x80] sm:$0xff]
      %v1122 = vld [vmem:[#allocation2 + $0x88] sm:$0xff]
      %v1123 = vld [vmem:[#allocation2 + $0x90] sm:$0xff]
      %v1124 = vld [vmem:[#allocation2 + $0x98] sm:$0xff]
      %v1125 = vld [vmem:[#allocation2 + $0xa0] sm:$0xff]
      %v1126 = vld [vmem:[#allocation2 + $0xa8] sm:$0xff]
      %v1127 = vld [vmem:[#allocation2 + $0xb0] sm:$0xff]
      %v1128 = vld [vmem:[#allocation2 + $0xb8] sm:$0xff]
      %v1129 = vld [vmem:[#allocation2 + $0xc0] sm:$0xff]
      %v1130 = vld [vmem:[#allocation2 + $0xc8] sm:$0xff]
      %v1131 = vld [vmem:[#allocation2 + $0xd0] sm:$0xff]
      %v1132 = vld [vmem:[#allocation2 + $0xd8] sm:$0xff]
      %v1133 = vld [vmem:[#allocation2 + $0xe0] sm:$0xff]
      %v1134 = vld [vmem:[#allocation2 + $0xe8] sm:$0xff]
      %v1135 = vld [vmem:[#allocation2 + $0xf0] sm:$0xff]
      %v1136 = vld [vmem:[#allocation2 + $0xf8] sm:$0xff]
      %v1137 = vld [vmem:[#allocation2 + $0x100] sm:$0xff]
      %v1138 = vld [vmem:[#allocation2 + $0x9] sm:$0xff]
      %v1139 = vld [vmem:[#allocation2 + $0x11] sm:$0xff]
      %v1140 = vld [vmem:[#allocation2 + $0x19] sm:$0xff]
      %v1141 = vld [vmem:[#allocation2 + $0x21] sm:$0xff]
      %v1142 = vld [vmem:[#allocation2 + $0x29] sm:$0xff]
      %v1143 = vld [vmem:[#allocation2 + $0x31] sm:$0xff]
      %v1144 = vld [vmem:[#allocation2 + $0x39] sm:$0xff]
      %v1145 = vld [vmem:[#allocation2 + $0x41] sm:$0xff]
      %v1146 = vld [vmem:[#allocation2 + $0x49] sm:$0xff]
      %v1147 = vld [vmem:[#allocation2 + $0x51] sm:$0xff]
      %v1148 = vld [vmem:[#allocation2 + $0x59] sm:$0xff]
      %v1149 = vld [vmem:[#allocation2 + $0x61] sm:$0xff]
      %v1150 = vld [vmem:[#allocation2 + $0x69] sm:$0xff]
      %v1151 = vld [vmem:[#allocation2 + $0x71] sm:$0xff]
      %v1152 = vld [vmem:[#allocation2 + $0x79] sm:$0xff]
      %v1153 = vld [vmem:[#allocation2 + $0x81] sm:$0xff]
      %v1154 = vld [vmem:[#allocation2 + $0x89] sm:$0xff]
      %v1155 = vld [vmem:[#allocation2 + $0x91] sm:$0xff]
      %v1156 = vld [vmem:[#allocation2 + $0x99] sm:$0xff]
      %v1157 = vld [vmem:[#allocation2 + $0xa1] sm:$0xff]
      %v1158 = vld [vmem:[#allocation2 + $0xa9] sm:$0xff]
      %v1159 = vld [vmem:[#allocation2 + $0xb1] sm:$0xff]
      %v1160 = vld [vmem:[#allocation2 + $0xb9] sm:$0xff]
      %v1161 = vld [vmem:[#allocation2 + $0xc1] sm:$0xff]
      %v1162 = vld [vmem:[#allocation2 + $0xc9] sm:$0xff]
      %v1163 = vld [vmem:[#allocation2 + $0xd1] sm:$0xff]
      %v1164 = vld [vmem:[#allocation2 + $0xd9] sm:$0xff]
      %v1165 = vld [vmem:[#allocation2 + $0xe1] sm:$0xff]
      %v1166 = vld [vmem:[#allocation2 + $0xe9] sm:$0xff]
      %v1167 = vld [vmem:[#allocation2 + $0xf1] sm:$0xff]
      %v1168 = vld [vmem:[#allocation2 + $0xf9] sm:$0xff]
      %v1169 = vld [vmem:[#allocation2 + $0x101] sm:$0xff]
      %v1170 = vmul.f32 %v1138, %v945
      %v1171 = vmul.f32 %v1139, %v946
      %v1172 = vmul.f32 %v1140, %v947
      %v1173 = vmul.f32 %v1141, %v948
      %v1174 = vmul.f32 %v1142, %v949
      %v1175 = vmul.f32 %v1143, %v950
      %v1176 = vmul.f32 %v1144, %v951
      %v1177 = vmul.f32 %v1145, %v952
      %v1178 = vmul.f32 %v1146, %v953
      %v1179 = vmul.f32 %v1147, %v954
      %v1180 = vmul.f32 %v1148, %v955
      %v1181 = vmul.f32 %v1149, %v956
      %v1182 = vmul.f32 %v1150, %v957
      %v1183 = vmul.f32 %v1151, %v958
      %v1184 = vmul.f32 %v1152, %v959
      %v1185 = vmul.f32 %v1153, %v960
      %v1186 = vmul.f32 %v1154, %v961
      %v1187 = vmul.f32 %v1155, %v962
      %v1188 = vmul.f32 %v1156, %v963
      %v1189 = vmul.f32 %v1157, %v964
      %v1190 = vmul.f32 %v1158, %v965
      %v1191 = vmul.f32 %v1159, %v966
      %v1192 = vmul.f32 %v1160, %v967
      %v1193 = vmul.f32 %v1161, %v968
      %v1194 = vmul.f32 %v1162, %v969
      %v1195 = vmul.f32 %v1163, %v970
      %v1196 = vmul.f32 %v1164, %v971
      %v1197 = vmul.f32 %v1165, %v972
      %v1198 = vmul.f32 %v1166, %v973
      %v1199 = vmul.f32 %v1167, %v974
      %v1200 = vmul.f32 %v1168, %v975
      %v1201 = vmul.f32 %v1169, %v976
      %v1202 = vld [vmem:[#allocation2 + $0x107] sm:$0xff]
      %v1203 = vld [vmem:[#allocation2 + $0x10f] sm:$0xff]
      %v1204 = vmul.f32 %v1044, %v849
      %v1205 = vmul.f32 %v1045, %v850
      %v1206 = vmul.f32 %v1046, %v851
      %v1207 = vmul.f32 %v1047, %v852
      %v1208 = vmul.f32 %v1048, %v853
      %v1209 = vmul.f32 %v1049, %v854
      %v1210 = vmul.f32 %v1050, %v855
      %v1211 = vmul.f32 %v1051, %v856
      %v1212 = vmul.f32 %v1052, %v857
      %v1213 = vmul.f32 %v1053, %v858
      %v1214 = vmul.f32 %v1054, %v859
      %v1215 = vmul.f32 %v1055, %v860
      %v1216 = vmul.f32 %v1056, %v861
      %v1217 = vmul.f32 %v1057, %v862
      %v1218 = vmul.f32 %v1058, %v863
      %v1219 = vmul.f32 %v1059, %v864
      %v1220 = vmul.f32 %v1060, %v865
      %v1221 = vmul.f32 %v1061, %v866
      %v1222 = vmul.f32 %v1062, %v867
      %v1223 = vmul.f32 %v1063, %v868
      %v1224 = vmul.f32 %v1064, %v869
      %v1225 = vmul.f32 %v1065, %v870
      %v1226 = vmul.f32 %v1066, %v871
      %v1227 = vmul.f32 %v1067, %v872
      %v1228 = vmul.f32 %v1068, %v873
      %v1229 = vmul.f32 %v1069, %v874
      %v1230 = vmul.f32 %v1070, %v875
      %v1231 = vmul.f32 %v1071, %v876
      %v1232 = vmul.f32 %v1072, %v877
      %v1233 = vmul.f32 %v1073, %v878
      %v1234 = vmul.f32 %v1202, %v879
      %v1235 = vmul.f32 %v1203, %v880
      %v1236 = vld [vmem:[#allocation2 + $0x108] sm:$0xff]
      %v1237 = vld [vmem:[#allocation2 + $0x110] sm:$0xff]
      %v1238 = vld [vmem:[#allocation2 + $0x109] sm:$0xff]
      %v1239 = vld [vmem:[#allocation2 + $0x111] sm:$0xff]
      %v1240 = vmul.f32 %v1140, %v945
      %v1241 = vmul.f32 %v1141, %v946
      %v1242 = vmul.f32 %v1142, %v947
      %v1243 = vmul.f32 %v1143, %v948
      %v1244 = vmul.f32 %v1144, %v949
      %v1245 = vmul.f32 %v1145, %v950
      %v1246 = vmul.f32 %v1146, %v951
      %v1247 = vmul.f32 %v1147, %v952
      %v1248 = vmul.f32 %v1148, %v953
      %v1249 = vmul.f32 %v1149, %v954
      %v1250 = vmul.f32 %v1150, %v955
      %v1251 = vmul.f32 %v1151, %v956
      %v1252 = vmul.f32 %v1152, %v957
      %v1253 = vmul.f32 %v1153, %v958
      %v1254 = vmul.f32 %v1154, %v959
      %v1255 = vmul.f32 %v1155, %v960
      %v1256 = vmul.f32 %v1156, %v961
      %v1257 = vmul.f32 %v1157, %v962
      %v1258 = vmul.f32 %v1158, %v963
      %v1259 = vmul.f32 %v1159, %v964
      %v1260 = vmul.f32 %v1160, %v965
      %v1261 = vmul.f32 %v1161, %v966
      %v1262 = vmul.f32 %v1162, %v967
      %v1263 = vmul.f32 %v1163, %v968
      %v1264 = vmul.f32 %v1164, %v969
      %v1265 = vmul.f32 %v1165, %v970
      %v1266 = vmul.f32 %v1166, %v971
      %v1267 = vmul.f32 %v1167, %v972
      %v1268 = vmul.f32 %v1168, %v973
      %v1269 = vmul.f32 %v1169, %v974
      %v1270 = vmul.f32 %v1238, %v975
      %v1271 = vmul.f32 %v1239, %v976
      %v1272 = vld [vmem:[#allocation2 + $0x117] sm:$0xff]
      %v1273 = vld [vmem:[#allocation2 + $0x11f] sm:$0xff]
      %v1274 = vmul.f32 %v1046, %v849
      %v1275 = vmul.f32 %v1047, %v850
      %v1276 = vmul.f32 %v1048, %v851
      %v1277 = vmul.f32 %v1049, %v852
      %v1278 = vmul.f32 %v1050, %v853
      %v1279 = vmul.f32 %v1051, %v854
      %v1280 = vmul.f32 %v1052, %v855
      %v1281 = vmul.f32 %v1053, %v856
      %v1282 = vmul.f32 %v1054, %v857
      %v1283 = vmul.f32 %v1055, %v858
      %v1284 = vmul.f32 %v1056, %v859
      %v1285 = vmul.f32 %v1057, %v860
      %v1286 = vmul.f32 %v1058, %v861
      %v1287 = vmul.f32 %v1059, %v862
      %v1288 = vmul.f32 %v1060, %v863
      %v1289 = vmul.f32 %v1061, %v864
      %v1290 = vmul.f32 %v1062, %v865
      %v1291 = vmul.f32 %v1063, %v866
      %v1292 = vmul.f32 %v1064, %v867
      %v1293 = vmul.f32 %v1065, %v868
      %v1294 = vmul.f32 %v1066, %v869
      %v1295 = vmul.f32 %v1067, %v870
      %v1296 = vmul.f32 %v1068, %v871
      %v1297 = vmul.f32 %v1069, %v872
      %v1298 = vmul.f32 %v1070, %v873
      %v1299 = vmul.f32 %v1071, %v874
      %v1300 = vmul.f32 %v1072, %v875
      %v1301 = vmul.f32 %v1073, %v876
      %v1302 = vmul.f32 %v1202, %v877
      %v1303 = vmul.f32 %v1203, %v878
      %v1304 = vmul.f32 %v1272, %v879
      %v1305 = vmul.f32 %v1273, %v880
      %v1306 = vld [vmem:[#allocation2 + $0x118] sm:$0xff]
      %v1307 = vld [vmem:[#allocation2 + $0x120] sm:$0xff]
      %v1308 = vld [vmem:[#allocation2 + $0x119] sm:$0xff]
      %v1309 = vld [vmem:[#allocation2 + $0x121] sm:$0xff]
      %v1310 = vmul.f32 %v1142, %v945
      %v1311 = vmul.f32 %v1143, %v946
      %v1312 = vmul.f32 %v1144, %v947
      %v1313 = vmul.f32 %v1145, %v948
      %v1314 = vmul.f32 %v1146, %v949
      %v1315 = vmul.f32 %v1147, %v950
      %v1316 = vmul.f32 %v1148, %v951
      %v1317 = vmul.f32 %v1149, %v952
      %v1318 = vmul.f32 %v1150, %v953
      %v1319 = vmul.f32 %v1151, %v954
      %v1320 = vmul.f32 %v1152, %v955
      %v1321 = vmul.f32 %v1153, %v956
      %v1322 = vmul.f32 %v1154, %v957
      %v1323 = vmul.f32 %v1155, %v958
      %v1324 = vmul.f32 %v1156, %v959
      %v1325 = vmul.f32 %v1157, %v960
      %v1326 = vmul.f32 %v1158, %v961
      %v1327 = vmul.f32 %v1159, %v962
      %v1328 = vmul.f32 %v1160, %v963
      %v1329 = vmul.f32 %v1161, %v964
      %v1330 = vmul.f32 %v1162, %v965
      %v1331 = vmul.f32 %v1163, %v966
      %v1332 = vmul.f32 %v1164, %v967
      %v1333 = vmul.f32 %v1165, %v968
      %v1334 = vmul.f32 %v1166, %v969
      %v1335 = vmul.f32 %v1167, %v970
      %v1336 = vmul.f32 %v1168, %v971
      %v1337 = vmul.f32 %v1169, %v972
      %v1338 = vmul.f32 %v1238, %v973
      %v1339 = vmul.f32 %v1239, %v974
      %v1340 = vmul.f32 %v1308, %v975
      %v1341 = vmul.f32 %v1309, %v976
      %1374 = vrot.lane.b32.xlu0 %v1106, 4
      %v1375 = vpop.permute.xlu0 %1374
      %1376 = vrot.lane.b32.xlu0 %v1107, 4
      %v1377 = vpop.permute.xlu0 %1376
      %1378 = vrot.lane.b32.xlu0 %v1108, 4
      %v1379 = vpop.permute.xlu0 %1378
      %1380 = vrot.lane.b32.xlu0 %v1109, 4
      %v1381 = vpop.permute.xlu0 %1380
      %1382 = vrot.lane.b32.xlu0 %v1110, 4
      %v1383 = vpop.permute.xlu0 %1382
      %1384 = vrot.lane.b32.xlu0 %v1111, 4
      %v1385 = vpop.permute.xlu0 %1384
      %1386 = vrot.lane.b32.xlu0 %v1112, 4
      %v1387 = vpop.permute.xlu0 %1386
      %1388 = vrot.lane.b32.xlu0 %v1113, 4
      %v1389 = vpop.permute.xlu0 %1388
      %1390 = vrot.lane.b32.xlu0 %v1114, 4
      %v1391 = vpop.permute.xlu0 %1390
      %1392 = vrot.lane.b32.xlu0 %v1115, 4
      %v1393 = vpop.permute.xlu0 %1392
      %1394 = vrot.lane.b32.xlu0 %v1116, 4
      %v1395 = vpop.permute.xlu0 %1394
      %1396 = vrot.lane.b32.xlu0 %v1117, 4
      %v1397 = vpop.permute.xlu0 %1396
      %1398 = vrot.lane.b32.xlu0 %v1118, 4
      %v1399 = vpop.permute.xlu0 %1398
      %1400 = vrot.lane.b32.xlu0 %v1119, 4
      %v1401 = vpop.permute.xlu0 %1400
      %1402 = vrot.lane.b32.xlu0 %v1120, 4
      %v1403 = vpop.permute.xlu0 %1402
      %1404 = vrot.lane.b32.xlu0 %v1121, 4
      %v1405 = vpop.permute.xlu0 %1404
      %1406 = vrot.lane.b32.xlu0 %v1122, 4
      %v1407 = vpop.permute.xlu0 %1406
      %1408 = vrot.lane.b32.xlu0 %v1123, 4
      %v1409 = vpop.permute.xlu0 %1408
      %1410 = vrot.lane.b32.xlu0 %v1124, 4
      %v1411 = vpop.permute.xlu0 %1410
      %1412 = vrot.lane.b32.xlu0 %v1125, 4
      %v1413 = vpop.permute.xlu0 %1412
      %1414 = vrot.lane.b32.xlu0 %v1126, 4
      %v1415 = vpop.permute.xlu0 %1414
      %1416 = vrot.lane.b32.xlu0 %v1127, 4
      %v1417 = vpop.permute.xlu0 %1416
      %1418 = vrot.lane.b32.xlu0 %v1128, 4
      %v1419 = vpop.permute.xlu0 %1418
      %1420 = vrot.lane.b32.xlu0 %v1129, 4
      %v1421 = vpop.permute.xlu0 %1420
      %1422 = vrot.lane.b32.xlu0 %v1130, 4
      %v1423 = vpop.permute.xlu0 %1422
      %1424 = vrot.lane.b32.xlu0 %v1131, 4
      %v1425 = vpop.permute.xlu0 %1424
      %1426 = vrot.lane.b32.xlu0 %v1132, 4
      %v1427 = vpop.permute.xlu0 %1426
      %1428 = vrot.lane.b32.xlu0 %v1133, 4
      %v1429 = vpop.permute.xlu0 %1428
      %1430 = vrot.lane.b32.xlu0 %v1134, 4
      %v1431 = vpop.permute.xlu0 %1430
      %1432 = vrot.lane.b32.xlu0 %v1135, 4
      %v1433 = vpop.permute.xlu0 %1432
      %1434 = vrot.lane.b32.xlu0 %v1136, 4
      %v1435 = vpop.permute.xlu0 %1434
      %1436 = vrot.lane.b32.xlu0 %v1137, 4
      %v1437 = vpop.permute.xlu0 %1436
      %1502 = vrot.lane.b32.xlu0 %v1170, 8
      %v1503 = vpop.permute.xlu0 %1502
      %1504 = vrot.lane.b32.xlu0 %v1171, 8
      %v1505 = vpop.permute.xlu0 %1504
      %1506 = vrot.lane.b32.xlu0 %v1172, 8
      %v1507 = vpop.permute.xlu0 %1506
      %1508 = vrot.lane.b32.xlu0 %v1173, 8
      %v1509 = vpop.permute.xlu0 %1508
      %1510 = vrot.lane.b32.xlu0 %v1174, 8
      %v1511 = vpop.permute.xlu0 %1510
      %1512 = vrot.lane.b32.xlu0 %v1175, 8
      %v1513 = vpop.permute.xlu0 %1512
      %1514 = vrot.lane.b32.xlu0 %v1176, 8
      %v1515 = vpop.permute.xlu0 %1514
      %1516 = vrot.lane.b32.xlu0 %v1177, 8
      %v1517 = vpop.permute.xlu0 %1516
      %1518 = vrot.lane.b32.xlu0 %v1178, 8
      %v1519 = vpop.permute.xlu0 %1518
      %1520 = vrot.lane.b32.xlu0 %v1179, 8
      %v1521 = vpop.permute.xlu0 %1520
      %1522 = vrot.lane.b32.xlu0 %v1180, 8
      %v1523 = vpop.permute.xlu0 %1522
      %1524 = vrot.lane.b32.xlu0 %v1181, 8
      %v1525 = vpop.permute.xlu0 %1524
      %1526 = vrot.lane.b32.xlu0 %v1182, 8
      %v1527 = vpop.permute.xlu0 %1526
      %1528 = vrot.lane.b32.xlu0 %v1183, 8
      %v1529 = vpop.permute.xlu0 %1528
      %1530 = vrot.lane.b32.xlu0 %v1184, 8
      %v1531 = vpop.permute.xlu0 %1530
      %1532 = vrot.lane.b32.xlu0 %v1185, 8
      %v1533 = vpop.permute.xlu0 %1532
      %1534 = vrot.lane.b32.xlu0 %v1186, 8
      %v1535 = vpop.permute.xlu0 %1534
      %1536 = vrot.lane.b32.xlu0 %v1187, 8
      %v1537 = vpop.permute.xlu0 %1536
      %1538 = vrot.lane.b32.xlu0 %v1188, 8
      %v1539 = vpop.permute.xlu0 %1538
      %1540 = vrot.lane.b32.xlu0 %v1189, 8
      %v1541 = vpop.permute.xlu0 %1540
      %1542 = vrot.lane.b32.xlu0 %v1190, 8
      %v1543 = vpop.permute.xlu0 %1542
      %1544 = vrot.lane.b32.xlu0 %v1191, 8
      %v1545 = vpop.permute.xlu0 %1544
      %1546 = vrot.lane.b32.xlu0 %v1192, 8
      %v1547 = vpop.permute.xlu0 %1546
      %1548 = vrot.lane.b32.xlu0 %v1193, 8
      %v1549 = vpop.permute.xlu0 %1548
      %1550 = vrot.lane.b32.xlu0 %v1194, 8
      %v1551 = vpop.permute.xlu0 %1550
      %1552 = vrot.lane.b32.xlu0 %v1195, 8
      %v1553 = vpop.permute.xlu0 %1552
      %1554 = vrot.lane.b32.xlu0 %v1196, 8
      %v1555 = vpop.permute.xlu0 %1554
      %1556 = vrot.lane.b32.xlu0 %v1197, 8
      %v1557 = vpop.permute.xlu0 %1556
      %1558 = vrot.lane.b32.xlu0 %v1198, 8
      %v1559 = vpop.permute.xlu0 %1558
      %1560 = vrot.lane.b32.xlu0 %v1199, 8
      %v1561 = vpop.permute.xlu0 %1560
      %1562 = vrot.lane.b32.xlu0 %v1200, 8
      %v1563 = vpop.permute.xlu0 %1562
      %1564 = vrot.lane.b32.xlu0 %v1201, 8
      %v1565 = vpop.permute.xlu0 %1564
      %1630 = vrot.lane.b32.xlu0 %v1204, 12
      %v1631 = vpop.permute.xlu0 %1630
      %1632 = vrot.lane.b32.xlu0 %v1205, 12
      %v1633 = vpop.permute.xlu0 %1632
      %1634 = vrot.lane.b32.xlu0 %v1206, 12
      %v1635 = vpop.permute.xlu0 %1634
      %1636 = vrot.lane.b32.xlu0 %v1207, 12
      %v1637 = vpop.permute.xlu0 %1636
      %1638 = vrot.lane.b32.xlu0 %v1208, 12
      %v1639 = vpop.permute.xlu0 %1638
      %1640 = vrot.lane.b32.xlu0 %v1209, 12
      %v1641 = vpop.permute.xlu0 %1640
      %1642 = vrot.lane.b32.xlu0 %v1210, 12
      %v1643 = vpop.permute.xlu0 %1642
      %1644 = vrot.lane.b32.xlu0 %v1211, 12
      %v1645 = vpop.permute.xlu0 %1644
      %1646 = vrot.lane.b32.xlu0 %v1212, 12
      %v1647 = vpop.permute.xlu0 %1646
      %1648 = vrot.lane.b32.xlu0 %v1213, 12
      %v1649 = vpop.permute.xlu0 %1648
      %1650 = vrot.lane.b32.xlu0 %v1214, 12
      %v1651 = vpop.permute.xlu0 %1650
      %1652 = vrot.lane.b32.xlu0 %v1215, 12
      %v1653 = vpop.permute.xlu0 %1652
      %1654 = vrot.lane.b32.xlu0 %v1216, 12
      %v1655 = vpop.permute.xlu0 %1654
      %1656 = vrot.lane.b32.xlu0 %v1217, 12
      %v1657 = vpop.permute.xlu0 %1656
      %1658 = vrot.lane.b32.xlu0 %v1218, 12
      %v1659 = vpop.permute.xlu0 %1658
      %1660 = vrot.lane.b32.xlu0 %v1219, 12
      %v1661 = vpop.permute.xlu0 %1660
      %1662 = vrot.lane.b32.xlu0 %v1220, 12
      %v1663 = vpop.permute.xlu0 %1662
      %1664 = vrot.lane.b32.xlu0 %v1221, 12
      %v1665 = vpop.permute.xlu0 %1664
      %1666 = vrot.lane.b32.xlu0 %v1222, 12
      %v1667 = vpop.permute.xlu0 %1666
      %1668 = vrot.lane.b32.xlu0 %v1223, 12
      %v1669 = vpop.permute.xlu0 %1668
      %1670 = vrot.lane.b32.xlu0 %v1224, 12
      %v1671 = vpop.permute.xlu0 %1670
      %1672 = vrot.lane.b32.xlu0 %v1225, 12
      %v1673 = vpop.permute.xlu0 %1672
      %1674 = vrot.lane.b32.xlu0 %v1226, 12
      %v1675 = vpop.permute.xlu0 %1674
      %1676 = vrot.lane.b32.xlu0 %v1227, 12
      %v1677 = vpop.permute.xlu0 %1676
      %1678 = vrot.lane.b32.xlu0 %v1228, 12
      %v1679 = vpop.permute.xlu0 %1678
      %1680 = vrot.lane.b32.xlu0 %v1229, 12
      %v1681 = vpop.permute.xlu0 %1680
      %1682 = vrot.lane.b32.xlu0 %v1230, 12
      %v1683 = vpop.permute.xlu0 %1682
      %1684 = vrot.lane.b32.xlu0 %v1231, 12
      %v1685 = vpop.permute.xlu0 %1684
      %1686 = vrot.lane.b32.xlu0 %v1232, 12
      %v1687 = vpop.permute.xlu0 %1686
      %1688 = vrot.lane.b32.xlu0 %v1233, 12
      %v1689 = vpop.permute.xlu0 %1688
      %1690 = vrot.lane.b32.xlu0 %v1234, 12
      %v1691 = vpop.permute.xlu0 %1690
      %1692 = vrot.lane.b32.xlu0 %v1235, 12
      %v1693 = vpop.permute.xlu0 %1692
      %1728 = vrot.lane.b32.xlu0 %v1108, 16
      %v1729 = vpop.permute.xlu0 %1728
      %1730 = vrot.lane.b32.xlu0 %v1109, 16
      %v1731 = vpop.permute.xlu0 %1730
      %1732 = vrot.lane.b32.xlu0 %v1110, 16
      %v1733 = vpop.permute.xlu0 %1732
      %1734 = vrot.lane.b32.xlu0 %v1111, 16
      %v1735 = vpop.permute.xlu0 %1734
      %1736 = vrot.lane.b32.xlu0 %v1112, 16
      %v1737 = vpop.permute.xlu0 %1736
      %1738 = vrot.lane.b32.xlu0 %v1113, 16
      %v1739 = vpop.permute.xlu0 %1738
      %1740 = vrot.lane.b32.xlu0 %v1114, 16
      %v1741 = vpop.permute.xlu0 %1740
      %1742 = vrot.lane.b32.xlu0 %v1115, 16
      %v1743 = vpop.permute.xlu0 %1742
      %1744 = vrot.lane.b32.xlu0 %v1116, 16
      %v1745 = vpop.permute.xlu0 %1744
      %1746 = vrot.lane.b32.xlu0 %v1117, 16
      %v1747 = vpop.permute.xlu0 %1746
      %1748 = vrot.lane.b32.xlu0 %v1118, 16
      %v1749 = vpop.permute.xlu0 %1748
      %1750 = vrot.lane.b32.xlu0 %v1119, 16
      %v1751 = vpop.permute.xlu0 %1750
      %1752 = vrot.lane.b32.xlu0 %v1120, 16
      %v1753 = vpop.permute.xlu0 %1752
      %1754 = vrot.lane.b32.xlu0 %v1121, 16
      %v1755 = vpop.permute.xlu0 %1754
      %1756 = vrot.lane.b32.xlu0 %v1122, 16
      %v1757 = vpop.permute.xlu0 %1756
      %1758 = vrot.lane.b32.xlu0 %v1123, 16
      %v1759 = vpop.permute.xlu0 %1758
      %1760 = vrot.lane.b32.xlu0 %v1124, 16
      %v1761 = vpop.permute.xlu0 %1760
      %1762 = vrot.lane.b32.xlu0 %v1125, 16
      %v1763 = vpop.permute.xlu0 %1762
      %1764 = vrot.lane.b32.xlu0 %v1126, 16
      %v1765 = vpop.permute.xlu0 %1764
      %1766 = vrot.lane.b32.xlu0 %v1127, 16
      %v1767 = vpop.permute.xlu0 %1766
      %1768 = vrot.lane.b32.xlu0 %v1128, 16
      %v1769 = vpop.permute.xlu0 %1768
      %1770 = vrot.lane.b32.xlu0 %v1129, 16
      %v1771 = vpop.permute.xlu0 %1770
      %1772 = vrot.lane.b32.xlu0 %v1130, 16
      %v1773 = vpop.permute.xlu0 %1772
      %1774 = vrot.lane.b32.xlu0 %v1131, 16
      %v1775 = vpop.permute.xlu0 %1774
      %1776 = vrot.lane.b32.xlu0 %v1132, 16
      %v1777 = vpop.permute.xlu0 %1776
      %1778 = vrot.lane.b32.xlu0 %v1133, 16
      %v1779 = vpop.permute.xlu0 %1778
      %1780 = vrot.lane.b32.xlu0 %v1134, 16
      %v1781 = vpop.permute.xlu0 %1780
      %1782 = vrot.lane.b32.xlu0 %v1135, 16
      %v1783 = vpop.permute.xlu0 %1782
      %1784 = vrot.lane.b32.xlu0 %v1136, 16
      %v1785 = vpop.permute.xlu0 %1784
      %1786 = vrot.lane.b32.xlu0 %v1137, 16
      %v1787 = vpop.permute.xlu0 %1786
      %1788 = vrot.lane.b32.xlu0 %v1236, 16
      %v1789 = vpop.permute.xlu0 %1788
      %1790 = vrot.lane.b32.xlu0 %v1237, 16
      %v1791 = vpop.permute.xlu0 %1790
      %1856 = vrot.lane.b32.xlu0 %v1240, 20
      %v1857 = vpop.permute.xlu0 %1856
      %1858 = vrot.lane.b32.xlu0 %v1241, 20
      %v1859 = vpop.permute.xlu0 %1858
      %1860 = vrot.lane.b32.xlu0 %v1242, 20
      %v1861 = vpop.permute.xlu0 %1860
      %1862 = vrot.lane.b32.xlu0 %v1243, 20
      %v1863 = vpop.permute.xlu0 %1862
      %1864 = vrot.lane.b32.xlu0 %v1244, 20
      %v1865 = vpop.permute.xlu0 %1864
      %1866 = vrot.lane.b32.xlu0 %v1245, 20
      %v1867 = vpop.permute.xlu0 %1866
      %1868 = vrot.lane.b32.xlu0 %v1246, 20
      %v1869 = vpop.permute.xlu0 %1868
      %1870 = vrot.lane.b32.xlu0 %v1247, 20
      %v1871 = vpop.permute.xlu0 %1870
      %1872 = vrot.lane.b32.xlu0 %v1248, 20
      %v1873 = vpop.permute.xlu0 %1872
      %1874 = vrot.lane.b32.xlu0 %v1249, 20
      %v1875 = vpop.permute.xlu0 %1874
      %1876 = vrot.lane.b32.xlu0 %v1250, 20
      %v1877 = vpop.permute.xlu0 %1876
      %1878 = vrot.lane.b32.xlu0 %v1251, 20
      %v1879 = vpop.permute.xlu0 %1878
      %1880 = vrot.lane.b32.xlu0 %v1252, 20
      %v1881 = vpop.permute.xlu0 %1880
      %1882 = vrot.lane.b32.xlu0 %v1253, 20
      %v1883 = vpop.permute.xlu0 %1882
      %1884 = vrot.lane.b32.xlu0 %v1254, 20
      %v1885 = vpop.permute.xlu0 %1884
      %1886 = vrot.lane.b32.xlu0 %v1255, 20
      %v1887 = vpop.permute.xlu0 %1886
      %1888 = vrot.lane.b32.xlu0 %v1256, 20
      %v1889 = vpop.permute.xlu0 %1888
      %1890 = vrot.lane.b32.xlu0 %v1257, 20
      %v1891 = vpop.permute.xlu0 %1890
      %1892 = vrot.lane.b32.xlu0 %v1258, 20
      %v1893 = vpop.permute.xlu0 %1892
      %1894 = vrot.lane.b32.xlu0 %v1259, 20
      %v1895 = vpop.permute.xlu0 %1894
      %1896 = vrot.lane.b32.xlu0 %v1260, 20
      %v1897 = vpop.permute.xlu0 %1896
      %1898 = vrot.lane.b32.xlu0 %v1261, 20
      %v1899 = vpop.permute.xlu0 %1898
      %1900 = vrot.lane.b32.xlu0 %v1262, 20
      %v1901 = vpop.permute.xlu0 %1900
      %1902 = vrot.lane.b32.xlu0 %v1263, 20
      %v1903 = vpop.permute.xlu0 %1902
      %1904 = vrot.lane.b32.xlu0 %v1264, 20
      %v1905 = vpop.permute.xlu0 %1904
      %1906 = vrot.lane.b32.xlu0 %v1265, 20
      %v1907 = vpop.permute.xlu0 %1906
      %1908 = vrot.lane.b32.xlu0 %v1266, 20
      %v1909 = vpop.permute.xlu0 %1908
      %1910 = vrot.lane.b32.xlu0 %v1267, 20
      %v1911 = vpop.permute.xlu0 %1910
      %1912 = vrot.lane.b32.xlu0 %v1268, 20
      %v1913 = vpop.permute.xlu0 %1912
      %1914 = vrot.lane.b32.xlu0 %v1269, 20
      %v1915 = vpop.permute.xlu0 %1914
      %1916 = vrot.lane.b32.xlu0 %v1270, 20
      %v1917 = vpop.permute.xlu0 %1916
      %1918 = vrot.lane.b32.xlu0 %v1271, 20
      %v1919 = vpop.permute.xlu0 %1918
      %1984 = vrot.lane.b32.xlu0 %v1274, 24
      %v1985 = vpop.permute.xlu0 %1984
      %1986 = vrot.lane.b32.xlu0 %v1275, 24
      %v1987 = vpop.permute.xlu0 %1986
      %1988 = vrot.lane.b32.xlu0 %v1276, 24
      %v1989 = vpop.permute.xlu0 %1988
      %1990 = vrot.lane.b32.xlu0 %v1277, 24
      %v1991 = vpop.permute.xlu0 %1990
      %1992 = vrot.lane.b32.xlu0 %v1278, 24
      %v1993 = vpop.permute.xlu0 %1992
      %1994 = vrot.lane.b32.xlu0 %v1279, 24
      %v1995 = vpop.permute.xlu0 %1994
      %1996 = vrot.lane.b32.xlu0 %v1280, 24
      %v1997 = vpop.permute.xlu0 %1996
      %1998 = vrot.lane.b32.xlu0 %v1281, 24
      %v1999 = vpop.permute.xlu0 %1998
      %2000 = vrot.lane.b32.xlu0 %v1282, 24
      %v2001 = vpop.permute.xlu0 %2000
      %2002 = vrot.lane.b32.xlu0 %v1283, 24
      %v2003 = vpop.permute.xlu0 %2002
      %2004 = vrot.lane.b32.xlu0 %v1284, 24
      %v2005 = vpop.permute.xlu0 %2004
      %2006 = vrot.lane.b32.xlu0 %v1285, 24
      %v2007 = vpop.permute.xlu0 %2006
      %2008 = vrot.lane.b32.xlu0 %v1286, 24
      %v2009 = vpop.permute.xlu0 %2008
      %2010 = vrot.lane.b32.xlu0 %v1287, 24
      %v2011 = vpop.permute.xlu0 %2010
      %2012 = vrot.lane.b32.xlu0 %v1288, 24
      %v2013 = vpop.permute.xlu0 %2012
      %2014 = vrot.lane.b32.xlu0 %v1289, 24
      %v2015 = vpop.permute.xlu0 %2014
      %2016 = vrot.lane.b32.xlu0 %v1290, 24
      %v2017 = vpop.permute.xlu0 %2016
      %2018 = vrot.lane.b32.xlu0 %v1291, 24
      %v2019 = vpop.permute.xlu0 %2018
      %2020 = vrot.lane.b32.xlu0 %v1292, 24
      %v2021 = vpop.permute.xlu0 %2020
      %2022 = vrot.lane.b32.xlu0 %v1293, 24
      %v2023 = vpop.permute.xlu0 %2022
      %2024 = vrot.lane.b32.xlu0 %v1294, 24
      %v2025 = vpop.permute.xlu0 %2024
      %2026 = vrot.lane.b32.xlu0 %v1295, 24
      %v2027 = vpop.permute.xlu0 %2026
      %2028 = vrot.lane.b32.xlu0 %v1296, 24
      %v2029 = vpop.permute.xlu0 %2028
      %2030 = vrot.lane.b32.xlu0 %v1297, 24
      %v2031 = vpop.permute.xlu0 %2030
      %2032 = vrot.lane.b32.xlu0 %v1298, 24
      %v2033 = vpop.permute.xlu0 %2032
      %2034 = vrot.lane.b32.xlu0 %v1299, 24
      %v2035 = vpop.permute.xlu0 %2034
      %2036 = vrot.lane.b32.xlu0 %v1300, 24
      %v2037 = vpop.permute.xlu0 %2036
      %2038 = vrot.lane.b32.xlu0 %v1301, 24
      %v2039 = vpop.permute.xlu0 %2038
      %2040 = vrot.lane.b32.xlu0 %v1302, 24
      %v2041 = vpop.permute.xlu0 %2040
      %2042 = vrot.lane.b32.xlu0 %v1303, 24
      %v2043 = vpop.permute.xlu0 %2042
      %2044 = vrot.lane.b32.xlu0 %v1304, 24
      %v2045 = vpop.permute.xlu0 %2044
      %2046 = vrot.lane.b32.xlu0 %v1305, 24
      %v2047 = vpop.permute.xlu0 %2046
      %2082 = vrot.lane.b32.xlu0 %v1110, 28
      %v2083 = vpop.permute.xlu0 %2082
      %2084 = vrot.lane.b32.xlu0 %v1111, 28
      %v2085 = vpop.permute.xlu0 %2084
      %2086 = vrot.lane.b32.xlu0 %v1112, 28
      %v2087 = vpop.permute.xlu0 %2086
      %2088 = vrot.lane.b32.xlu0 %v1113, 28
      %v2089 = vpop.permute.xlu0 %2088
      %2090 = vrot.lane.b32.xlu0 %v1114, 28
      %v2091 = vpop.permute.xlu0 %2090
      %2092 = vrot.lane.b32.xlu0 %v1115, 28
      %v2093 = vpop.permute.xlu0 %2092
      %2094 = vrot.lane.b32.xlu0 %v1116, 28
      %v2095 = vpop.permute.xlu0 %2094
      %2096 = vrot.lane.b32.xlu0 %v1117, 28
      %v2097 = vpop.permute.xlu0 %2096
      %2098 = vrot.lane.b32.xlu0 %v1118, 28
      %v2099 = vpop.permute.xlu0 %2098
      %2100 = vrot.lane.b32.xlu0 %v1119, 28
      %v2101 = vpop.permute.xlu0 %2100
      %2102 = vrot.lane.b32.xlu0 %v1120, 28
      %v2103 = vpop.permute.xlu0 %2102
      %2104 = vrot.lane.b32.xlu0 %v1121, 28
      %v2105 = vpop.permute.xlu0 %2104
      %2106 = vrot.lane.b32.xlu0 %v1122, 28
      %v2107 = vpop.permute.xlu0 %2106
      %2108 = vrot.lane.b32.xlu0 %v1123, 28
      %v2109 = vpop.permute.xlu0 %2108
      %2110 = vrot.lane.b32.xlu0 %v1124, 28
      %v2111 = vpop.permute.xlu0 %2110
      %2112 = vrot.lane.b32.xlu0 %v1125, 28
      %v2113 = vpop.permute.xlu0 %2112
      %2114 = vrot.lane.b32.xlu0 %v1126, 28
      %v2115 = vpop.permute.xlu0 %2114
      %2116 = vrot.lane.b32.xlu0 %v1127, 28
      %v2117 = vpop.permute.xlu0 %2116
      %2118 = vrot.lane.b32.xlu0 %v1128, 28
      %v2119 = vpop.permute.xlu0 %2118
      %2120 = vrot.lane.b32.xlu0 %v1129, 28
      %v2121 = vpop.permute.xlu0 %2120
      %2122 = vrot.lane.b32.xlu0 %v1130, 28
      %v2123 = vpop.permute.xlu0 %2122
      %2124 = vrot.lane.b32.xlu0 %v1131, 28
      %v2125 = vpop.permute.xlu0 %2124
      %2126 = vrot.lane.b32.xlu0 %v1132, 28
      %v2127 = vpop.permute.xlu0 %2126
      %2128 = vrot.lane.b32.xlu0 %v1133, 28
      %v2129 = vpop.permute.xlu0 %2128
      %2130 = vrot.lane.b32.xlu0 %v1134, 28
      %v2131 = vpop.permute.xlu0 %2130
      %2132 = vrot.lane.b32.xlu0 %v1135, 28
      %v2133 = vpop.permute.xlu0 %2132
      %2134 = vrot.lane.b32.xlu0 %v1136, 28
      %v2135 = vpop.permute.xlu0 %2134
      %2136 = vrot.lane.b32.xlu0 %v1137, 28
      %v2137 = vpop.permute.xlu0 %2136
      %2138 = vrot.lane.b32.xlu0 %v1236, 28
      %v2139 = vpop.permute.xlu0 %2138
      %2140 = vrot.lane.b32.xlu0 %v1237, 28
      %v2141 = vpop.permute.xlu0 %2140
      %2142 = vrot.lane.b32.xlu0 %v1306, 28
      %v2143 = vpop.permute.xlu0 %2142
      %2144 = vrot.lane.b32.xlu0 %v1307, 28
      %v2145 = vpop.permute.xlu0 %2144
      %2210 = vrot.lane.b32.xlu0 %v1310, 32
      %v2211 = vpop.permute.xlu0 %2210
      %2212 = vrot.lane.b32.xlu0 %v1311, 32
      %v2213 = vpop.permute.xlu0 %2212
      %2214 = vrot.lane.b32.xlu0 %v1312, 32
      %v2215 = vpop.permute.xlu0 %2214
      %2216 = vrot.lane.b32.xlu0 %v1313, 32
      %v2217 = vpop.permute.xlu0 %2216
      %2218 = vrot.lane.b32.xlu0 %v1314, 32
      %v2219 = vpop.permute.xlu0 %2218
      %2220 = vrot.lane.b32.xlu0 %v1315, 32
      %v2221 = vpop.permute.xlu0 %2220
      %2222 = vrot.lane.b32.xlu0 %v1316, 32
      %v2223 = vpop.permute.xlu0 %2222
      %2224 = vrot.lane.b32.xlu0 %v1317, 32
      %v2225 = vpop.permute.xlu0 %2224
      %2226 = vrot.lane.b32.xlu0 %v1318, 32
      %v2227 = vpop.permute.xlu0 %2226
      %2228 = vrot.lane.b32.xlu0 %v1319, 32
      %v2229 = vpop.permute.xlu0 %2228
      %2230 = vrot.lane.b32.xlu0 %v1320, 32
      %v2231 = vpop.permute.xlu0 %2230
      %2232 = vrot.lane.b32.xlu0 %v1321, 32
      %v2233 = vpop.permute.xlu0 %2232
      %2234 = vrot.lane.b32.xlu0 %v1322, 32
      %v2235 = vpop.permute.xlu0 %2234
      %2236 = vrot.lane.b32.xlu0 %v1323, 32
      %v2237 = vpop.permute.xlu0 %2236
      %2238 = vrot.lane.b32.xlu0 %v1324, 32
      %v2239 = vpop.permute.xlu0 %2238
      %2240 = vrot.lane.b32.xlu0 %v1325, 32
      %v2241 = vpop.permute.xlu0 %2240
      %2242 = vrot.lane.b32.xlu0 %v1326, 32
      %v2243 = vpop.permute.xlu0 %2242
      %2244 = vrot.lane.b32.xlu0 %v1327, 32
      %v2245 = vpop.permute.xlu0 %2244
      %2246 = vrot.lane.b32.xlu0 %v1328, 32
      %v2247 = vpop.permute.xlu0 %2246
      %2248 = vrot.lane.b32.xlu0 %v1329, 32
      %v2249 = vpop.permute.xlu0 %2248
      %2250 = vrot.lane.b32.xlu0 %v1330, 32
      %v2251 = vpop.permute.xlu0 %2250
      %2252 = vrot.lane.b32.xlu0 %v1331, 32
      %v2253 = vpop.permute.xlu0 %2252
      %2254 = vrot.lane.b32.xlu0 %v1332, 32
      %v2255 = vpop.permute.xlu0 %2254
      %2256 = vrot.lane.b32.xlu0 %v1333, 32
      %v2257 = vpop.permute.xlu0 %2256
      %2258 = vrot.lane.b32.xlu0 %v1334, 32
      %v2259 = vpop.permute.xlu0 %2258
      %2260 = vrot.lane.b32.xlu0 %v1335, 32
      %v2261 = vpop.permute.xlu0 %2260
      %2262 = vrot.lane.b32.xlu0 %v1336, 32
      %v2263 = vpop.permute.xlu0 %2262
      %2264 = vrot.lane.b32.xlu0 %v1337, 32
      %v2265 = vpop.permute.xlu0 %2264
      %2266 = vrot.lane.b32.xlu0 %v1338, 32
      %v2267 = vpop.permute.xlu0 %2266
      %2268 = vrot.lane.b32.xlu0 %v1339, 32
      %v2269 = vpop.permute.xlu0 %2268
      %2270 = vrot.lane.b32.xlu0 %v1340, 32
      %v2271 = vpop.permute.xlu0 %2270
      %2272 = vrot.lane.b32.xlu0 %v1341, 32
      %v2273 = vpop.permute.xlu0 %2272
      %v2306 = vsel %vm1009, %v1074, %v1375
      %v2307 = vsel %vm1009, %v1075, %v1377
      %v2308 = vsel %vm1009, %v1076, %v1379
      %v2309 = vsel %vm1009, %v1077, %v1381
      %v2310 = vsel %vm1009, %v1078, %v1383
      %v2311 = vsel %vm1009, %v1079, %v1385
      %v2312 = vsel %vm1009, %v1080, %v1387
      %v2313 = vsel %vm1009, %v1081, %v1389
      %v2314 = vsel %vm1009, %v1082, %v1391
      %v2315 = vsel %vm1009, %v1083, %v1393
      %v2316 = vsel %vm1009, %v1084, %v1395
      %v2317 = vsel %vm1009, %v1085, %v1397
      %v2318 = vsel %vm1009, %v1086, %v1399
      %v2319 = vsel %vm1009, %v1087, %v1401
      %v2320 = vsel %vm1009, %v1088, %v1403
      %v2321 = vsel %vm1009, %v1089, %v1405
      %v2322 = vsel %vm1009, %v1090, %v1407
      %v2323 = vsel %vm1009, %v1091, %v1409
      %v2324 = vsel %vm1009, %v1092, %v1411
      %v2325 = vsel %vm1009, %v1093, %v1413
      %v2326 = vsel %vm1009, %v1094, %v1415
      %v2327 = vsel %vm1009, %v1095, %v1417
      %v2328 = vsel %vm1009, %v1096, %v1419
      %v2329 = vsel %vm1009, %v1097, %v1421
      %v2330 = vsel %vm1009, %v1098, %v1423
      %v2331 = vsel %vm1009, %v1099, %v1425
      %v2332 = vsel %vm1009, %v1100, %v1427
      %v2333 = vsel %vm1009, %v1101, %v1429
      %v2334 = vsel %vm1009, %v1102, %v1431
      %v2335 = vsel %vm1009, %v1103, %v1433
      %v2336 = vsel %vm1009, %v1104, %v1435
      %v2337 = vsel %vm1009, %v1105, %v1437
      %vm2338 = vcmask 64512
      %v2339 = vsel %vm2338, %v2306, %v1503
      %v2340 = vsel %vm2338, %v2307, %v1505
      %v2341 = vsel %vm2338, %v2308, %v1507
      %v2342 = vsel %vm2338, %v2309, %v1509
      %v2343 = vsel %vm2338, %v2310, %v1511
      %v2344 = vsel %vm2338, %v2311, %v1513
      %v2345 = vsel %vm2338, %v2312, %v1515
      %v2346 = vsel %vm2338, %v2313, %v1517
      %v2347 = vsel %vm2338, %v2314, %v1519
      %v2348 = vsel %vm2338, %v2315, %v1521
      %v2349 = vsel %vm2338, %v2316, %v1523
      %v2350 = vsel %vm2338, %v2317, %v1525
      %v2351 = vsel %vm2338, %v2318, %v1527
      %v2352 = vsel %vm2338, %v2319, %v1529
      %v2353 = vsel %vm2338, %v2320, %v1531
      %v2354 = vsel %vm2338, %v2321, %v1533
      %v2355 = vsel %vm2338, %v2322, %v1535
      %v2356 = vsel %vm2338, %v2323, %v1537
      %v2357 = vsel %vm2338, %v2324, %v1539
      %v2358 = vsel %vm2338, %v2325, %v1541
      %v2359 = vsel %vm2338, %v2326, %v1543
      %v2360 = vsel %vm2338, %v2327, %v1545
      %v2361 = vsel %vm2338, %v2328, %v1547
      %v2362 = vsel %vm2338, %v2329, %v1549
      %v2363 = vsel %vm2338, %v2330, %v1551
      %v2364 = vsel %vm2338, %v2331, %v1553
      %v2365 = vsel %vm2338, %v2332, %v1555
      %v2366 = vsel %vm2338, %v2333, %v1557
      %v2367 = vsel %vm2338, %v2334, %v1559
      %v2368 = vsel %vm2338, %v2335, %v1561
      %v2369 = vsel %vm2338, %v2336, %v1563
      %v2370 = vsel %vm2338, %v2337, %v1565
      %vm2371 = vcmask 97280
      %v2372 = vsel %vm2371, %v2339, %v1631
      %v2373 = vsel %vm2371, %v2340, %v1633
      %v2374 = vsel %vm2371, %v2341, %v1635
      %v2375 = vsel %vm2371, %v2342, %v1637
      %v2376 = vsel %vm2371, %v2343, %v1639
      %v2377 = vsel %vm2371, %v2344, %v1641
      %v2378 = vsel %vm2371, %v2345, %v1643
      %v2379 = vsel %vm2371, %v2346, %v1645
      %v2380 = vsel %vm2371, %v2347, %v1647
      %v2381 = vsel %vm2371, %v2348, %v1649
      %v2382 = vsel %vm2371, %v2349, %v1651
      %v2383 = vsel %vm2371, %v2350, %v1653
      %v2384 = vsel %vm2371, %v2351, %v1655
      %v2385 = vsel %vm2371, %v2352, %v1657
      %v2386 = vsel %vm2371, %v2353, %v1659
      %v2387 = vsel %vm2371, %v2354, %v1661
      %v2388 = vsel %vm2371, %v2355, %v1663
      %v2389 = vsel %vm2371, %v2356, %v1665
      %v2390 = vsel %vm2371, %v2357, %v1667
      %v2391 = vsel %vm2371, %v2358, %v1669
      %v2392 = vsel %vm2371, %v2359, %v1671
      %v2393 = vsel %vm2371, %v2360, %v1673
      %v2394 = vsel %vm2371, %v2361, %v1675
      %v2395 = vsel %vm2371, %v2362, %v1677
      %v2396 = vsel %vm2371, %v2363, %v1679
      %v2397 = vsel %vm2371, %v2364, %v1681
      %v2398 = vsel %vm2371, %v2365, %v1683
      %v2399 = vsel %vm2371, %v2366, %v1685
      %v2400 = vsel %vm2371, %v2367, %v1687
      %v2401 = vsel %vm2371, %v2368, %v1689
      %v2402 = vsel %vm2371, %v2369, %v1691
      %v2403 = vsel %vm2371, %v2370, %v1693
      %v2404 = vsel %vm361, %v2372, %v1729
      %v2405 = vsel %vm361, %v2373, %v1731
      %v2406 = vsel %vm361, %v2374, %v1733
      %v2407 = vsel %vm361, %v2375, %v1735
      %v2408 = vsel %vm361, %v2376, %v1737
      %v2409 = vsel %vm361, %v2377, %v1739
      %v2410 = vsel %vm361, %v2378, %v1741
      %v2411 = vsel %vm361, %v2379, %v1743
      %v2412 = vsel %vm361, %v2380, %v1745
      %v2413 = vsel %vm361, %v2381, %v1747
      %v2414 = vsel %vm361, %v2382, %v1749
      %v2415 = vsel %vm361, %v2383, %v1751
      %v2416 = vsel %vm361, %v2384, %v1753
      %v2417 = vsel %vm361, %v2385, %v1755
      %v2418 = vsel %vm361, %v2386, %v1757
      %v2419 = vsel %vm361, %v2387, %v1759
      %v2420 = vsel %vm361, %v2388, %v1761
      %v2421 = vsel %vm361, %v2389, %v1763
      %v2422 = vsel %vm361, %v2390, %v1765
      %v2423 = vsel %vm361, %v2391, %v1767
      %v2424 = vsel %vm361, %v2392, %v1769
      %v2425 = vsel %vm361, %v2393, %v1771
      %v2426 = vsel %vm361, %v2394, %v1773
      %v2427 = vsel %vm361, %v2395, %v1775
      %v2428 = vsel %vm361, %v2396, %v1777
      %v2429 = vsel %vm361, %v2397, %v1779
      %v2430 = vsel %vm361, %v2398, %v1781
      %v2431 = vsel %vm361, %v2399, %v1783
      %v2432 = vsel %vm361, %v2400, %v1785
      %v2433 = vsel %vm361, %v2401, %v1787
      %v2434 = vsel %vm361, %v2402, %v1789
      %v2435 = vsel %vm361, %v2403, %v1791
      %vm2436 = vcmask 162816
      %v2437 = vsel %vm2436, %v2404, %v1857
      %v2438 = vsel %vm2436, %v2405, %v1859
      %v2439 = vsel %vm2436, %v2406, %v1861
      %v2440 = vsel %vm2436, %v2407, %v1863
      %v2441 = vsel %vm2436, %v2408, %v1865
      %v2442 = vsel %vm2436, %v2409, %v1867
      %v2443 = vsel %vm2436, %v2410, %v1869
      %v2444 = vsel %vm2436, %v2411, %v1871
      %v2445 = vsel %vm2436, %v2412, %v1873
      %v2446 = vsel %vm2436, %v2413, %v1875
      %v2447 = vsel %vm2436, %v2414, %v1877
      %v2448 = vsel %vm2436, %v2415, %v1879
      %v2449 = vsel %vm2436, %v2416, %v1881
      %v2450 = vsel %vm2436, %v2417, %v1883
      %v2451 = vsel %vm2436, %v2418, %v1885
      %v2452 = vsel %vm2436, %v2419, %v1887
      %v2453 = vsel %vm2436, %v2420, %v1889
      %v2454 = vsel %vm2436, %v2421, %v1891
      %v2455 = vsel %vm2436, %v2422, %v1893
      %v2456 = vsel %vm2436, %v2423, %v1895
      %v2457 = vsel %vm2436, %v2424, %v1897
      %v2458 = vsel %vm2436, %v2425, %v1899
      %v2459 = vsel %vm2436, %v2426, %v1901
      %v2460 = vsel %vm2436, %v2427, %v1903
      %v2461 = vsel %vm2436, %v2428, %v1905
      %v2462 = vsel %vm2436, %v2429, %v1907
      %v2463 = vsel %vm2436, %v2430, %v1909
      %v2464 = vsel %vm2436, %v2431, %v1911
      %v2465 = vsel %vm2436, %v2432, %v1913
      %v2466 = vsel %vm2436, %v2433, %v1915
      %v2467 = vsel %vm2436, %v2434, %v1917
      %v2468 = vsel %vm2436, %v2435, %v1919
      %vm2469 = vcmask 195584
      %v2470 = vsel %vm2469, %v2437, %v1985
      %v2471 = vsel %vm2469, %v2438, %v1987
      %v2472 = vsel %vm2469, %v2439, %v1989
      %v2473 = vsel %vm2469, %v2440, %v1991
      %v2474 = vsel %vm2469, %v2441, %v1993
      %v2475 = vsel %vm2469, %v2442, %v1995
      %v2476 = vsel %vm2469, %v2443, %v1997
      %v2477 = vsel %vm2469, %v2444, %v1999
      %v2478 = vsel %vm2469, %v2445, %v2001
      %v2479 = vsel %vm2469, %v2446, %v2003
      %v2480 = vsel %vm2469, %v2447, %v2005
      %v2481 = vsel %vm2469, %v2448, %v2007
      %v2482 = vsel %vm2469, %v2449, %v2009
      %v2483 = vsel %vm2469, %v2450, %v2011
      %v2484 = vsel %vm2469, %v2451, %v2013
      %v2485 = vsel %vm2469, %v2452, %v2015
      %v2486 = vsel %vm2469, %v2453, %v2017
      %v2487 = vsel %vm2469, %v2454, %v2019
      %v2488 = vsel %vm2469, %v2455, %v2021
      %v2489 = vsel %vm2469, %v2456, %v2023
      %v2490 = vsel %vm2469, %v2457, %v2025
      %v2491 = vsel %vm2469, %v2458, %v2027
      %v2492 = vsel %vm2469, %v2459, %v2029
      %v2493 = vsel %vm2469, %v2460, %v2031
      %v2494 = vsel %vm2469, %v2461, %v2033
      %v2495 = vsel %vm2469, %v2462, %v2035
      %v2496 = vsel %vm2469, %v2463, %v2037
      %v2497 = vsel %vm2469, %v2464, %v2039
      %v2498 = vsel %vm2469, %v2465, %v2041
      %v2499 = vsel %vm2469, %v2466, %v2043
      %v2500 = vsel %vm2469, %v2467, %v2045
      %v2501 = vsel %vm2469, %v2468, %v2047
      %vm2502 = vcmask 228352
      %v2503 = vsel %vm2502, %v2470, %v2083
      %v2504 = vsel %vm2502, %v2471, %v2085
      %v2505 = vsel %vm2502, %v2472, %v2087
      %v2506 = vsel %vm2502, %v2473, %v2089
      %v2507 = vsel %vm2502, %v2474, %v2091
      %v2508 = vsel %vm2502, %v2475, %v2093
      %v2509 = vsel %vm2502, %v2476, %v2095
      %v2510 = vsel %vm2502, %v2477, %v2097
      %v2511 = vsel %vm2502, %v2478, %v2099
      %v2512 = vsel %vm2502, %v2479, %v2101
      %v2513 = vsel %vm2502, %v2480, %v2103
      %v2514 = vsel %vm2502, %v2481, %v2105
      %v2515 = vsel %vm2502, %v2482, %v2107
      %v2516 = vsel %vm2502, %v2483, %v2109
      %v2517 = vsel %vm2502, %v2484, %v2111
      %v2518 = vsel %vm2502, %v2485, %v2113
      %v2519 = vsel %vm2502, %v2486, %v2115
      %v2520 = vsel %vm2502, %v2487, %v2117
      %v2521 = vsel %vm2502, %v2488, %v2119
      %v2522 = vsel %vm2502, %v2489, %v2121
      %v2523 = vsel %vm2502, %v2490, %v2123
      %v2524 = vsel %vm2502, %v2491, %v2125
      %v2525 = vsel %vm2502, %v2492, %v2127
      %v2526 = vsel %vm2502, %v2493, %v2129
      %v2527 = vsel %vm2502, %v2494, %v2131
      %v2528 = vsel %vm2502, %v2495, %v2133
      %v2529 = vsel %vm2502, %v2496, %v2135
      %v2530 = vsel %vm2502, %v2497, %v2137
      %v2531 = vsel %vm2502, %v2498, %v2139
      %v2532 = vsel %vm2502, %v2499, %v2141
      %v2533 = vsel %vm2502, %v2500, %v2143
      %v2534 = vsel %vm2502, %v2501, %v2145
      %vm2535 = vcmask 261120
      %v2536 = vsel %vm2535, %v2503, %v2211
      %v2537 = vsel %vm2535, %v2504, %v2213
      %v2538 = vsel %vm2535, %v2505, %v2215
      %v2539 = vsel %vm2535, %v2506, %v2217
      %v2540 = vsel %vm2535, %v2507, %v2219
      %v2541 = vsel %vm2535, %v2508, %v2221
      %v2542 = vsel %vm2535, %v2509, %v2223
      %v2543 = vsel %vm2535, %v2510, %v2225
      %v2544 = vsel %vm2535, %v2511, %v2227
      %v2545 = vsel %vm2535, %v2512, %v2229
      %v2546 = vsel %vm2535, %v2513, %v2231
      %v2547 = vsel %vm2535, %v2514, %v2233
      %v2548 = vsel %vm2535, %v2515, %v2235
      %v2549 = vsel %vm2535, %v2516, %v2237
      %v2550 = vsel %vm2535, %v2517, %v2239
      %v2551 = vsel %vm2535, %v2518, %v2241
      %v2552 = vsel %vm2535, %v2519, %v2243
      %v2553 = vsel %vm2535, %v2520, %v2245
      %v2554 = vsel %vm2535, %v2521, %v2247
      %v2555 = vsel %vm2535, %v2522, %v2249
      %v2556 = vsel %vm2535, %v2523, %v2251
      %v2557 = vsel %vm2535, %v2524, %v2253
      %v2558 = vsel %vm2535, %v2525, %v2255
      %v2559 = vsel %vm2535, %v2526, %v2257
      %v2560 = vsel %vm2535, %v2527, %v2259
      %v2561 = vsel %vm2535, %v2528, %v2261
      %v2562 = vsel %vm2535, %v2529, %v2263
      %v2563 = vsel %vm2535, %v2530, %v2265
      %v2564 = vsel %vm2535, %v2531, %v2267
      %v2565 = vsel %vm2535, %v2532, %v2269
      %v2566 = vsel %vm2535, %v2533, %v2271
      %v2567 = vsel %vm2535, %v2534, %v2273
      %v2568 = vpack.c.bf16 %v2537, %v2536
      %v2569 = vpack.c.bf16 %v2539, %v2538
      %v2570 = vpack.c.bf16 %v2541, %v2540
      %v2571 = vpack.c.bf16 %v2543, %v2542
      %v2572 = vpack.c.bf16 %v2545, %v2544
      %v2573 = vpack.c.bf16 %v2547, %v2546
      %v2574 = vpack.c.bf16 %v2549, %v2548
      %v2575 = vpack.c.bf16 %v2551, %v2550
      %v2576 = vpack.c.bf16 %v2553, %v2552
      %v2577 = vpack.c.bf16 %v2555, %v2554
      %v2578 = vpack.c.bf16 %v2557, %v2556
      %v2579 = vpack.c.bf16 %v2559, %v2558
      %v2580 = vpack.c.bf16 %v2561, %v2560
      %v2581 = vpack.c.bf16 %v2563, %v2562
      %v2582 = vpack.c.bf16 %v2565, %v2564
      %v2583 = vpack.c.bf16 %v2567, %v2566
      %v2584 = vld [vmem:[%s1] sm:$0xf]
      %v2585 = vld [vmem:[%s1 + $0x4] sm:$0xf]
      %v2586 = vld [vmem:[%s1 + $0x8] sm:$0xf]
      %v2587 = vld [vmem:[%s1 + $0xc] sm:$0xf]
      %v2588 = vld [vmem:[%s1 + $0x10] sm:$0x3]
      %v2589 = vld [vmem:[%s2] sm:$0x1]
      %v2591 = vlaneseq
      %v2592 = vshrl.u32 %v2591, 7
      %v2593 = vsub.s32 0, %v2592
      %v2594 = vrot.slane %v2589, %v2593
      %v2601 = vunpack.c.l.b16 %v2584
      %v2602 = vunpack.c.l.b16 %v2585
      %v2603 = vunpack.c.l.b16 %v2586
      %v2604 = vunpack.c.l.b16 %v2587
      %v2605 = vunpack.c.l.b16 %v2588
      %v2606 = vpack.c.b16 %v2602, %v2601
      %v2607 = vpack.c.b16 %v2604, %v2603
      %v2608 = vpack.c.b16 %v2605, %v2605
      %vm2611 = vcmask 293888
      %v2613 = vsel %vm2611, %v2568, 0
      %v2616 = vsel %vm2611, %v2569, 0
      %v2619 = vsel %vm2611, %v2570, 0
      %v2622 = vsel %vm2611, %v2571, 0
      %v2625 = vsel %vm2611, %v2572, 0
      %v2628 = vsel %vm2611, %v2573, 0
      %v2631 = vsel %vm2611, %v2574, 0
      %v2634 = vsel %vm2611, %v2575, 0
      %v2637 = vsel %vm2611, %v2576, 0
      %v2640 = vsel %vm2611, %v2577, 0
      %v2643 = vsel %vm2611, %v2578, 0
      %v2646 = vsel %vm2611, %v2579, 0
      %v2649 = vsel %vm2611, %v2580, 0
      %v2652 = vsel %vm2611, %v2581, 0
      %v2655 = vsel %vm2611, %v2582, 0
      %v2658 = vsel %vm2611, %v2583, 0
      %vm2660 = vcmask 1041408
      %v2662 = vsel %vm2660, %v2608, 0
      %2664 = vmatprep.subr.bf16.mxu0 0
      %2665 = vmatpush1.bf16.msra.mxu0 %v2606
      %2666 = vmatprep.subr.bf16.mxu0 0
      %2667 = vmatpush1.bf16.msra.mxu0 %v2607
      %2668 = vmatprep.subr.bf16.mxu0 0
      %2669 = vmatpush1.bf16.msra.mxu0 %v2662
      %2670 = vmatprep.subr.bf16.mxu0 0
      %2671 = vmatpush1.bf16.msra.mxu0 0
      %2672 = vmatprep.subr.bf16.mxu0 0
      %2673 = vmatpush1.bf16.msra.mxu0 0
      %2674 = vmatprep.subr.bf16.mxu0 0
      %2675 = vmatpush1.bf16.msra.mxu0 0
      %2676 = vmatprep.subr.bf16.mxu0 0
      %2677 = vmatpush1.bf16.msra.mxu0 0
      %2678 = vmatprep.subr.bf16.mxu0 0
      %2679 = vmatpush1.bf16.msra.mxu0 0
      %2680 = vmatprep.subr.bf16.mxu0 0
      %2681 = vmatpush1.bf16.msra.mxu0 0
      %2682 = vmatprep.subr.bf16.mxu0 0
      %2683 = vmatpush1.bf16.msra.mxu0 0
      %2684 = vmatprep.subr.bf16.mxu0 0
      %2685 = vmatpush1.bf16.msra.mxu0 0
      %2686 = vmatprep.subr.bf16.mxu0 0
      %2687 = vmatpush1.bf16.msra.mxu0 0
      %2688 = vmatprep.subr.bf16.mxu0 0
      %2689 = vmatpush1.bf16.msra.mxu0 0
      %2690 = vmatprep.subr.bf16.mxu0 0
      %2691 = vmatpush1.bf16.msra.mxu0 0
      %2692 = vmatprep.subr.bf16.mxu0 0
      %2693 = vmatpush1.bf16.msra.mxu0 0
      %2694 = vmatprep.subr.bf16.mxu0 0
      %2695 = vmatpush1.bf16.msra.mxu0 0
      %2696 = vmatprep.mubr.bf16.mxu0 0
      %2697 = vmatmul.mubr.bf16.gmra.mrb[0].mxu0 %v2613
      %v2698 = vpop.f32.mrb[0].mxu0
      %v2699 = vadd.f32 %v2594, %v2698
      %v2700 = vpop.f32.mrb[0].mxu0
      %v2701 = vpop.f32.mrb[0].mxu0
      %v2702 = vadd.f32 %v2594, %v2701
      %v2703 = vpop.f32.mrb[0].mxu0
      %2704 = vmatprep.mubr.bf16.mxu0 0
      %2705 = vmatmul.mubr.bf16.gmra.mrb[0].mxu0 %v2616
      %v2706 = vpop.f32.mrb[0].mxu0
      %v2707 = vadd.f32 %v2594, %v2706
      %v2708 = vpop.f32.mrb[0].mxu0
      %v2709 = vpop.f32.mrb[0].mxu0
      %v2710 = vadd.f32 %v2594, %v2709
      %v2711 = vpop.f32.mrb[0].mxu0
      %2712 = vmatprep.mubr.bf16.mxu0 0
      %2713 = vmatmul.mubr.bf16.gmra.mrb[0].mxu0 %v2619
      %v2714 = vpop.f32.mrb[0].mxu0
      %v2715 = vadd.f32 %v2594, %v2714
      %v2716 = vpop.f32.mrb[0].mxu0
      %v2717 = vpop.f32.mrb[0].mxu0
      %v2718 = vadd.f32 %v2594, %v2717
      %v2719 = vpop.f32.mrb[0].mxu0
      %2720 = vmatprep.mubr.bf16.mxu0 0
      %2721 = vmatmul.mubr.bf16.gmra.mrb[0].mxu0 %v2622
      %v2722 = vpop.f32.mrb[0].mxu0
      %v2723 = vadd.f32 %v2594, %v2722
      %v2724 = vpop.f32.mrb[0].mxu0
      %v2725 = vpop.f32.mrb[0].mxu0
      %v2726 = vadd.f32 %v2594, %v2725
      %v2727 = vpop.f32.mrb[0].mxu0
      %2728 = vmatprep.mubr.bf16.mxu0 0
      %2729 = vmatmul.mubr.bf16.gmra.mrb[0].mxu0 %v2625
      %v2730 = vpop.f32.mrb[0].mxu0
      %v2731 = vadd.f32 %v2594, %v2730
      %v2732 = vpop.f32.mrb[0].mxu0
      %v2733 = vpop.f32.mrb[0].mxu0
      %v2734 = vadd.f32 %v2594, %v2733
      %v2735 = vpop.f32.mrb[0].mxu0
      %2736 = vmatprep.mubr.bf16.mxu0 0
      %2737 = vmatmul.mubr.bf16.gmra.mrb[0].mxu0 %v2628
      %v2738 = vpop.f32.mrb[0].mxu0
      %v2739 = vadd.f32 %v2594, %v2738
      %v2740 = vpop.f32.mrb[0].mxu0
      %v2741 = vpop.f32.mrb[0].mxu0
      %v2742 = vadd.f32 %v2594, %v2741
      %v2743 = vpop.f32.mrb[0].mxu0
      %2744 = vmatprep.mubr.bf16.mxu0 0
      %2745 = vmatmul.mubr.bf16.gmra.mrb[0].mxu0 %v2631
      %v2746 = vpop.f32.mrb[0].mxu0
      %v2747 = vadd.f32 %v2594, %v2746
      %v2748 = vpop.f32.mrb[0].mxu0
      %v2749 = vpop.f32.mrb[0].mxu0
      %v2750 = vadd.f32 %v2594, %v2749
      %v2751 = vpop.f32.mrb[0].mxu0
      %2752 = vmatprep.mubr.bf16.mxu0 0
      %2753 = vmatmul.mubr.bf16.gmra.mrb[0].mxu0 %v2634
      %v2754 = vpop.f32.mrb[0].mxu0
      %v2755 = vadd.f32 %v2594, %v2754
      %v2756 = vpop.f32.mrb[0].mxu0
      %v2757 = vpop.f32.mrb[0].mxu0
      %v2758 = vadd.f32 %v2594, %v2757
      %v2759 = vpop.f32.mrb[0].mxu0
      %2760 = vmatprep.mubr.bf16.mxu0 0
      %2761 = vmatmul.mubr.bf16.gmra.mrb[0].mxu0 %v2637
      %v2762 = vpop.f32.mrb[0].mxu0
      %v2763 = vadd.f32 %v2594, %v2762
      %v2764 = vpop.f32.mrb[0].mxu0
      %v2765 = vpop.f32.mrb[0].mxu0
      %v2766 = vadd.f32 %v2594, %v2765
      %v2767 = vpop.f32.mrb[0].mxu0
      %2768 = vmatprep.mubr.bf16.mxu0 0
      %2769 = vmatmul.mubr.bf16.gmra.mrb[0].mxu0 %v2640
      %v2770 = vpop.f32.mrb[0].mxu0
      %v2771 = vadd.f32 %v2594, %v2770
      %v2772 = vpop.f32.mrb[0].mxu0
      %v2773 = vpop.f32.mrb[0].mxu0
      %v2774 = vadd.f32 %v2594, %v2773
      %v2775 = vpop.f32.mrb[0].mxu0
      %2776 = vmatprep.mubr.bf16.mxu0 0
      %2777 = vmatmul.mubr.bf16.gmra.mrb[0].mxu0 %v2643
      %v2778 = vpop.f32.mrb[0].mxu0
      %v2779 = vadd.f32 %v2594, %v2778
      %v2780 = vpop.f32.mrb[0].mxu0
      %v2781 = vpop.f32.mrb[0].mxu0
      %v2782 = vadd.f32 %v2594, %v2781
      %v2783 = vpop.f32.mrb[0].mxu0
      %2784 = vmatprep.mubr.bf16.mxu0 0
      %2785 = vmatmul.mubr.bf16.gmra.mrb[0].mxu0 %v2646
      %v2786 = vpop.f32.mrb[0].mxu0
      %v2787 = vadd.f32 %v2594, %v2786
      %v2788 = vpop.f32.mrb[0].mxu0
      %v2789 = vpop.f32.mrb[0].mxu0
      %v2790 = vadd.f32 %v2594, %v2789
      %v2791 = vpop.f32.mrb[0].mxu0
      %2792 = vmatprep.mubr.bf16.mxu0 0
      %2793 = vmatmul.mubr.bf16.gmra.mrb[0].mxu0 %v2649
      %v2794 = vpop.f32.mrb[0].mxu0
      %v2795 = vadd.f32 %v2594, %v2794
      %v2796 = vpop.f32.mrb[0].mxu0
      %v2797 = vpop.f32.mrb[0].mxu0
      %v2798 = vadd.f32 %v2594, %v2797
      %v2799 = vpop.f32.mrb[0].mxu0
      %2800 = vmatprep.mubr.bf16.mxu0 0
      %2801 = vmatmul.mubr.bf16.gmra.mrb[0].mxu0 %v2652
      %v2802 = vpop.f32.mrb[0].mxu0
      %v2803 = vadd.f32 %v2594, %v2802
      %v2804 = vpop.f32.mrb[0].mxu0
      %v2805 = vpop.f32.mrb[0].mxu0
      %v2806 = vadd.f32 %v2594, %v2805
      %v2807 = vpop.f32.mrb[0].mxu0
      %2808 = vmatprep.mubr.bf16.mxu0 0
      %2809 = vmatmul.mubr.bf16.gmra.mrb[0].mxu0 %v2655
      %v2810 = vpop.f32.mrb[0].mxu0
      %v2811 = vadd.f32 %v2594, %v2810
      %v2812 = vpop.f32.mrb[0].mxu0
      %v2813 = vpop.f32.mrb[0].mxu0
      %v2814 = vadd.f32 %v2594, %v2813
      %v2815 = vpop.f32.mrb[0].mxu0
      %2816 = vmatprep.mubr.bf16.mxu0 0
      %2817 = vmatmul.mubr.bf16.gmra.mrb[0].mxu0 %v2658
      %v2818 = vpop.f32.mrb[0].mxu0
      %v2819 = vadd.f32 %v2594, %v2818
      %v2820 = vpop.f32.mrb[0].mxu0
      %v2821 = vpop.f32.mrb[0].mxu0
      %v2822 = vadd.f32 %v2594, %v2821
      %v2823 = vpop.f32.mrb[0].mxu0
      %2824 = vdwg.mxu0
      %vm2825 = vcmp.gt.f32.partialorder %v2699, 0.0
      %vm2826 = vcmp.gt.f32.partialorder %v2702, 0.0
      %vm2827 = vcmp.gt.f32.partialorder %v2707, 0.0
      %vm2828 = vcmp.gt.f32.partialorder %v2710, 0.0
      %vm2829 = vcmp.gt.f32.partialorder %v2715, 0.0
      %vm2830 = vcmp.gt.f32.partialorder %v2718, 0.0
      %vm2831 = vcmp.gt.f32.partialorder %v2723, 0.0
      %vm2832 = vcmp.gt.f32.partialorder %v2726, 0.0
      %vm2833 = vcmp.gt.f32.partialorder %v2731, 0.0
      %vm2834 = vcmp.gt.f32.partialorder %v2734, 0.0
      %vm2835 = vcmp.gt.f32.partialorder %v2739, 0.0
      %vm2836 = vcmp.gt.f32.partialorder %v2742, 0.0
      %vm2837 = vcmp.gt.f32.partialorder %v2747, 0.0
      %vm2838 = vcmp.gt.f32.partialorder %v2750, 0.0
      %vm2839 = vcmp.gt.f32.partialorder %v2755, 0.0
      %vm2840 = vcmp.gt.f32.partialorder %v2758, 0.0
      %vm2841 = vcmp.gt.f32.partialorder %v2763, 0.0
      %vm2842 = vcmp.gt.f32.partialorder %v2766, 0.0
      %vm2843 = vcmp.gt.f32.partialorder %v2771, 0.0
      %vm2844 = vcmp.gt.f32.partialorder %v2774, 0.0
      %vm2845 = vcmp.gt.f32.partialorder %v2779, 0.0
      %vm2846 = vcmp.gt.f32.partialorder %v2782, 0.0
      %vm2847 = vcmp.gt.f32.partialorder %v2787, 0.0
      %vm2848 = vcmp.gt.f32.partialorder %v2790, 0.0
      %vm2849 = vcmp.gt.f32.partialorder %v2795, 0.0
      %vm2850 = vcmp.gt.f32.partialorder %v2798, 0.0
      %vm2851 = vcmp.gt.f32.partialorder %v2803, 0.0
      %vm2852 = vcmp.gt.f32.partialorder %v2806, 0.0
      %vm2853 = vcmp.gt.f32.partialorder %v2811, 0.0
      %vm2854 = vcmp.gt.f32.partialorder %v2814, 0.0
      %vm2855 = vcmp.gt.f32.partialorder %v2819, 0.0
      %vm2856 = vcmp.gt.f32.partialorder %v2822, 0.0
      %v2857 = vmul.f32 %v2699, 0.1
      %v2858 = vmul.f32 %v2702, 0.1
      %v2859 = vmul.f32 %v2707, 0.1
      %v2860 = vmul.f32 %v2710, 0.1
      %v2861 = vmul.f32 %v2715, 0.1
      %v2862 = vmul.f32 %v2718, 0.1
      %v2863 = vmul.f32 %v2723, 0.1
      %v2864 = vmul.f32 %v2726, 0.1
      %v2865 = vmul.f32 %v2731, 0.1
      %v2866 = vmul.f32 %v2734, 0.1
      %v2867 = vmul.f32 %v2739, 0.1
      %v2868 = vmul.f32 %v2742, 0.1
      %v2869 = vmul.f32 %v2747, 0.1
      %v2870 = vmul.f32 %v2750, 0.1
      %v2871 = vmul.f32 %v2755, 0.1
      %v2872 = vmul.f32 %v2758, 0.1
      %v2873 = vmul.f32 %v2763, 0.1
      %v2874 = vmul.f32 %v2766, 0.1
      %v2875 = vmul.f32 %v2771, 0.1
      %v2876 = vmul.f32 %v2774, 0.1
      %v2877 = vmul.f32 %v2779, 0.1
      %v2878 = vmul.f32 %v2782, 0.1
      %v2879 = vmul.f32 %v2787, 0.1
      %v2880 = vmul.f32 %v2790, 0.1
      %v2881 = vmul.f32 %v2795, 0.1
      %v2882 = vmul.f32 %v2798, 0.1
      %v2883 = vmul.f32 %v2803, 0.1
      %v2884 = vmul.f32 %v2806, 0.1
      %v2885 = vmul.f32 %v2811, 0.1
      %v2886 = vmul.f32 %v2814, 0.1
      %v2887 = vmul.f32 %v2819, 0.1
      %v2888 = vmul.f32 %v2822, 0.1
      %v2889 = vsel %vm2825, %v2699, %v2857
      %v2890 = vsel %vm2826, %v2702, %v2858
      %v2891 = vsel %vm2827, %v2707, %v2859
      %v2892 = vsel %vm2828, %v2710, %v2860
      %v2893 = vsel %vm2829, %v2715, %v2861
      %v2894 = vsel %vm2830, %v2718, %v2862
      %v2895 = vsel %vm2831, %v2723, %v2863
      %v2896 = vsel %vm2832, %v2726, %v2864
      %v2897 = vsel %vm2833, %v2731, %v2865
      %v2898 = vsel %vm2834, %v2734, %v2866
      %v2899 = vsel %vm2835, %v2739, %v2867
      %v2900 = vsel %vm2836, %v2742, %v2868
      %v2901 = vsel %vm2837, %v2747, %v2869
      %v2902 = vsel %vm2838, %v2750, %v2870
      %v2903 = vsel %vm2839, %v2755, %v2871
      %v2904 = vsel %vm2840, %v2758, %v2872
      %v2905 = vsel %vm2841, %v2763, %v2873
      %v2906 = vsel %vm2842, %v2766, %v2874
      %v2907 = vsel %vm2843, %v2771, %v2875
      %v2908 = vsel %vm2844, %v2774, %v2876
      %v2909 = vsel %vm2845, %v2779, %v2877
      %v2910 = vsel %vm2846, %v2782, %v2878
      %v2911 = vsel %vm2847, %v2787, %v2879
      %v2912 = vsel %vm2848, %v2790, %v2880
      %v2913 = vsel %vm2849, %v2795, %v2881
      %v2914 = vsel %vm2850, %v2798, %v2882
      %v2915 = vsel %vm2851, %v2803, %v2883
      %v2916 = vsel %vm2852, %v2806, %v2884
      %v2917 = vsel %vm2853, %v2811, %v2885
      %v2918 = vsel %vm2854, %v2814, %v2886
      %v2919 = vsel %vm2855, %v2819, %v2887
      %v2920 = vsel %vm2856, %v2822, %v2888
      %2921 = vst.msk [vmem:[#allocation2 + $0x18] sm:$0xff] %vm361, %v2889
      %2922 = vst.msk [vmem:[#allocation2 + $0x20] sm:$0xff] %vm361, %v2890
      %2923 = vst.msk [vmem:[#allocation2 + $0x28] sm:$0xff] %vm361, %v2891
      %2924 = vst.msk [vmem:[#allocation2 + $0x30] sm:$0xff] %vm361, %v2892
      %2925 = vst.msk [vmem:[#allocation2 + $0x38] sm:$0xff] %vm361, %v2893
      %2926 = vst.msk [vmem:[#allocation2 + $0x40] sm:$0xff] %vm361, %v2894
      %2927 = vst.msk [vmem:[#allocation2 + $0x48] sm:$0xff] %vm361, %v2895
      %2928 = vst.msk [vmem:[#allocation2 + $0x50] sm:$0xff] %vm361, %v2896
      %2929 = vst.msk [vmem:[#allocation2 + $0x58] sm:$0xff] %vm361, %v2897
      %2930 = vst.msk [vmem:[#allocation2 + $0x60] sm:$0xff] %vm361, %v2898
      %2931 = vst.msk [vmem:[#allocation2 + $0x68] sm:$0xff] %vm361, %v2899
      %2932 = vst.msk [vmem:[#allocation2 + $0x70] sm:$0xff] %vm361, %v2900
      %2933 = vst.msk [vmem:[#allocation2 + $0x78] sm:$0xff] %vm361, %v2901
      %2934 = vst.msk [vmem:[#allocation2 + $0x80] sm:$0xff] %vm361, %v2902
      %2935 = vst.msk [vmem:[#allocation2 + $0x88] sm:$0xff] %vm361, %v2903
      %2936 = vst.msk [vmem:[#allocation2 + $0x90] sm:$0xff] %vm361, %v2904
      %2937 = vst.msk [vmem:[#allocation2 + $0x98] sm:$0xff] %vm361, %v2905
      %2938 = vst.msk [vmem:[#allocation2 + $0xa0] sm:$0xff] %vm361, %v2906
      %2939 = vst.msk [vmem:[#allocation2 + $0xa8] sm:$0xff] %vm361, %v2907
      %2940 = vst.msk [vmem:[#allocation2 + $0xb0] sm:$0xff] %vm361, %v2908
      %2941 = vst.msk [vmem:[#allocation2 + $0xb8] sm:$0xff] %vm361, %v2909
      %2942 = vst.msk [vmem:[#allocation2 + $0xc0] sm:$0xff] %vm361, %v2910
      %2943 = vst.msk [vmem:[#allocation2 + $0xc8] sm:$0xff] %vm361, %v2911
      %2944 = vst.msk [vmem:[#allocation2 + $0xd0] sm:$0xff] %vm361, %v2912
      %2945 = vst.msk [vmem:[#allocation2 + $0xd8] sm:$0xff] %vm361, %v2913
      %2946 = vst.msk [vmem:[#allocation2 + $0xe0] sm:$0xff] %vm361, %v2914
      %2947 = vst.msk [vmem:[#allocation2 + $0xe8] sm:$0xff] %vm361, %v2915
      %2948 = vst.msk [vmem:[#allocation2 + $0xf0] sm:$0xff] %vm361, %v2916
      %2949 = vst.msk [vmem:[#allocation2 + $0xf8] sm:$0xff] %vm361, %v2917
      %2950 = vst.msk [vmem:[#allocation2 + $0x100] sm:$0xff] %vm361, %v2918
      %2951 = vst.msk [vmem:[#allocation2 + $0x108] sm:$0xff] %vm361, %v2919
      %2952 = vst.msk [vmem:[#allocation2 + $0x110] sm:$0xff] %vm361, %v2920
      %v2953 = vld [vmem:[#allocation2 + $0x7] sm:$0xff]
      %v2954 = vld [vmem:[#allocation2 + $0xf] sm:$0xff]
      %v2955 = vld [vmem:[#allocation2 + $0x17] sm:$0xff]
      %v2956 = vld [vmem:[#allocation2 + $0x1f] sm:$0xff]
      %v2957 = vld [vmem:[#allocation2 + $0x27] sm:$0xff]
      %v2958 = vld [vmem:[#allocation2 + $0x2f] sm:$0xff]
      %v2959 = vld [vmem:[#allocation2 + $0x37] sm:$0xff]
      %v2960 = vld [vmem:[#allocation2 + $0x3f] sm:$0xff]
      %v2961 = vld [vmem:[#allocation2 + $0x47] sm:$0xff]
      %v2962 = vld [vmem:[#allocation2 + $0x4f] sm:$0xff]
      %v2963 = vld [vmem:[#allocation2 + $0x57] sm:$0xff]
      %v2964 = vld [vmem:[#allocation2 + $0x5f] sm:$0xff]
      %v2965 = vld [vmem:[#allocation2 + $0x67] sm:$0xff]
      %v2966 = vld [vmem:[#allocation2 + $0x6f] sm:$0xff]
      %v2967 = vld [vmem:[#allocation2 + $0x77] sm:$0xff]
      %v2968 = vld [vmem:[#allocation2 + $0x7f] sm:$0xff]
      %v2969 = vld [vmem:[#allocation2 + $0x87] sm:$0xff]
      %v2970 = vld [vmem:[#allocation2 + $0x8f] sm:$0xff]
      %v2971 = vld [vmem:[#allocation2 + $0x97] sm:$0xff]
      %v2972 = vld [vmem:[#allocation2 + $0x9f] sm:$0xff]
      %v2973 = vld [vmem:[#allocation2 + $0xa7] sm:$0xff]
      %v2974 = vld [vmem:[#allocation2 + $0xaf] sm:$0xff]
      %v2975 = vld [vmem:[#allocation2 + $0xb7] sm:$0xff]
      %v2976 = vld [vmem:[#allocation2 + $0xbf] sm:$0xff]
      %v2977 = vld [vmem:[#allocation2 + $0xc7] sm:$0xff]
      %v2978 = vld [vmem:[#allocation2 + $0xcf] sm:$0xff]
      %v2979 = vld [vmem:[#allocation2 + $0xd7] sm:$0xff]
      %v2980 = vld [vmem:[#allocation2 + $0xdf] sm:$0xff]
      %v2981 = vld [vmem:[#allocation2 + $0xe7] sm:$0xff]
      %v2982 = vld [vmem:[#allocation2 + $0xef] sm:$0xff]
      %v2983 = vld [vmem:[#allocation2 + $0xf7] sm:$0xff]
      %v2984 = vld [vmem:[#allocation2 + $0xff] sm:$0xff]
      %v2985 = vmul.f32 %v2953, %v849
      %v2986 = vmul.f32 %v2954, %v850
      %v2987 = vmul.f32 %v2955, %v851
      %v2988 = vmul.f32 %v2956, %v852
      %v2989 = vmul.f32 %v2957, %v853
      %v2990 = vmul.f32 %v2958, %v854
      %v2991 = vmul.f32 %v2959, %v855
      %v2992 = vmul.f32 %v2960, %v856
      %v2993 = vmul.f32 %v2961, %v857
      %v2994 = vmul.f32 %v2962, %v858
      %v2995 = vmul.f32 %v2963, %v859
      %v2996 = vmul.f32 %v2964, %v860
      %v2997 = vmul.f32 %v2965, %v861
      %v2998 = vmul.f32 %v2966, %v862
      %v2999 = vmul.f32 %v2967, %v863
      %v3000 = vmul.f32 %v2968, %v864
      %v3001 = vmul.f32 %v2969, %v865
      %v3002 = vmul.f32 %v2970, %v866
      %v3003 = vmul.f32 %v2971, %v867
      %v3004 = vmul.f32 %v2972, %v868
      %v3005 = vmul.f32 %v2973, %v869
      %v3006 = vmul.f32 %v2974, %v870
      %v3007 = vmul.f32 %v2975, %v871
      %v3008 = vmul.f32 %v2976, %v872
      %v3009 = vmul.f32 %v2977, %v873
      %v3010 = vmul.f32 %v2978, %v874
      %v3011 = vmul.f32 %v2979, %v875
      %v3012 = vmul.f32 %v2980, %v876
      %v3013 = vmul.f32 %v2981, %v877
      %v3014 = vmul.f32 %v2982, %v878
      %v3015 = vmul.f32 %v2983, %v879
      %v3016 = vmul.f32 %v2984, %v880
      %v3017 = vld [vmem:[#allocation2 + $0x8] sm:$0xff]
      %v3018 = vld [vmem:[#allocation2 + $0x10] sm:$0xff]
      %v3019 = vld [vmem:[#allocation2 + $0x18] sm:$0xff]
      %v3020 = vld [vmem:[#allocation2 + $0x20] sm:$0xff]
      %v3021 = vld [vmem:[#allocation2 + $0x28] sm:$0xff]
      %v3022 = vld [vmem:[#allocation2 + $0x30] sm:$0xff]
      %v3023 = vld [vmem:[#allocation2 + $0x38] sm:$0xff]
      %v3024 = vld [vmem:[#allocation2 + $0x40] sm:$0xff]
      %v3025 = vld [vmem:[#allocation2 + $0x48] sm:$0xff]
      %v3026 = vld [vmem:[#allocation2 + $0x50] sm:$0xff]
      %v3027 = vld [vmem:[#allocation2 + $0x58] sm:$0xff]
      %v3028 = vld [vmem:[#allocation2 + $0x60] sm:$0xff]
      %v3029 = vld [vmem:[#allocation2 + $0x68] sm:$0xff]
      %v3030 = vld [vmem:[#allocation2 + $0x70] sm:$0xff]
      %v3031 = vld [vmem:[#allocation2 + $0x78] sm:$0xff]
      %v3032 = vld [vmem:[#allocation2 + $0x80] sm:$0xff]
      %v3033 = vld [vmem:[#allocation2 + $0x88] sm:$0xff]
      %v3034 = vld [vmem:[#allocation2 + $0x90] sm:$0xff]
      %v3035 = vld [vmem:[#allocation2 + $0x98] sm:$0xff]
      %v3036 = vld [vmem:[#allocation2 + $0xa0] sm:$0xff]
      %v3037 = vld [vmem:[#allocation2 + $0xa8] sm:$0xff]
      %v3038 = vld [vmem:[#allocation2 + $0xb0] sm:$0xff]
      %v3039 = vld [vmem:[#allocation2 + $0xb8] sm:$0xff]
      %v3040 = vld [vmem:[#allocation2 + $0xc0] sm:$0xff]
      %v3041 = vld [vmem:[#allocation2 + $0xc8] sm:$0xff]
      %v3042 = vld [vmem:[#allocation2 + $0xd0] sm:$0xff]
      %v3043 = vld [vmem:[#allocation2 + $0xd8] sm:$0xff]
      %v3044 = vld [vmem:[#allocation2 + $0xe0] sm:$0xff]
      %v3045 = vld [vmem:[#allocation2 + $0xe8] sm:$0xff]
      %v3046 = vld [vmem:[#allocation2 + $0xf0] sm:$0xff]
      %v3047 = vld [vmem:[#allocation2 + $0xf8] sm:$0xff]
      %v3048 = vld [vmem:[#allocation2 + $0x100] sm:$0xff]
      %v3049 = vld [vmem:[#allocation2 + $0x9] sm:$0xff]
      %v3050 = vld [vmem:[#allocation2 + $0x11] sm:$0xff]
      %v3051 = vld [vmem:[#allocation2 + $0x19] sm:$0xff]
      %v3052 = vld [vmem:[#allocation2 + $0x21] sm:$0xff]
      %v3053 = vld [vmem:[#allocation2 + $0x29] sm:$0xff]
      %v3054 = vld [vmem:[#allocation2 + $0x31] sm:$0xff]
      %v3055 = vld [vmem:[#allocation2 + $0x39] sm:$0xff]
      %v3056 = vld [vmem:[#allocation2 + $0x41] sm:$0xff]
      %v3057 = vld [vmem:[#allocation2 + $0x49] sm:$0xff]
      %v3058 = vld [vmem:[#allocation2 + $0x51] sm:$0xff]
      %v3059 = vld [vmem:[#allocation2 + $0x59] sm:$0xff]
      %v3060 = vld [vmem:[#allocation2 + $0x61] sm:$0xff]
      %v3061 = vld [vmem:[#allocation2 + $0x69] sm:$0xff]
      %v3062 = vld [vmem:[#allocation2 + $0x71] sm:$0xff]
      %v3063 = vld [vmem:[#allocation2 + $0x79] sm:$0xff]
      %v3064 = vld [vmem:[#allocation2 + $0x81] sm:$0xff]
      %v3065 = vld [vmem:[#allocation2 + $0x89] sm:$0xff]
      %v3066 = vld [vmem:[#allocation2 + $0x91] sm:$0xff]
      %v3067 = vld [vmem:[#allocation2 + $0x99] sm:$0xff]
      %v3068 = vld [vmem:[#allocation2 + $0xa1] sm:$0xff]
      %v3069 = vld [vmem:[#allocation2 + $0xa9] sm:$0xff]
      %v3070 = vld [vmem:[#allocation2 + $0xb1] sm:$0xff]
      %v3071 = vld [vmem:[#allocation2 + $0xb9] sm:$0xff]
      %v3072 = vld [vmem:[#allocation2 + $0xc1] sm:$0xff]
      %v3073 = vld [vmem:[#allocation2 + $0xc9] sm:$0xff]
      %v3074 = vld [vmem:[#allocation2 + $0xd1] sm:$0xff]
      %v3075 = vld [vmem:[#allocation2 + $0xd9] sm:$0xff]
      %v3076 = vld [vmem:[#allocation2 + $0xe1] sm:$0xff]
      %v3077 = vld [vmem:[#allocation2 + $0xe9] sm:$0xff]
      %v3078 = vld [vmem:[#allocation2 + $0xf1] sm:$0xff]
      %v3079 = vld [vmem:[#allocation2 + $0xf9] sm:$0xff]
      %v3080 = vld [vmem:[#allocation2 + $0x101] sm:$0xff]
      %v3081 = vmul.f32 %v3049, %v945
      %v3082 = vmul.f32 %v3050, %v946
      %v3083 = vmul.f32 %v3051, %v947
      %v3084 = vmul.f32 %v3052, %v948
      %v3085 = vmul.f32 %v3053, %v949
      %v3086 = vmul.f32 %v3054, %v950
      %v3087 = vmul.f32 %v3055, %v951
      %v3088 = vmul.f32 %v3056, %v952
      %v3089 = vmul.f32 %v3057, %v953
      %v3090 = vmul.f32 %v3058, %v954
      %v3091 = vmul.f32 %v3059, %v955
      %v3092 = vmul.f32 %v3060, %v956
      %v3093 = vmul.f32 %v3061, %v957
      %v3094 = vmul.f32 %v3062, %v958
      %v3095 = vmul.f32 %v3063, %v959
      %v3096 = vmul.f32 %v3064, %v960
      %v3097 = vmul.f32 %v3065, %v961
      %v3098 = vmul.f32 %v3066, %v962
      %v3099 = vmul.f32 %v3067, %v963
      %v3100 = vmul.f32 %v3068, %v964
      %v3101 = vmul.f32 %v3069, %v965
      %v3102 = vmul.f32 %v3070, %v966
      %v3103 = vmul.f32 %v3071, %v967
      %v3104 = vmul.f32 %v3072, %v968
      %v3105 = vmul.f32 %v3073, %v969
      %v3106 = vmul.f32 %v3074, %v970
      %v3107 = vmul.f32 %v3075, %v971
      %v3108 = vmul.f32 %v3076, %v972
      %v3109 = vmul.f32 %v3077, %v973
      %v3110 = vmul.f32 %v3078, %v974
      %v3111 = vmul.f32 %v3079, %v975
      %v3112 = vmul.f32 %v3080, %v976
      %v3113 = vld [vmem:[#allocation2 + $0x107] sm:$0xff]
      %v3114 = vld [vmem:[#allocation2 + $0x10f] sm:$0xff]
      %v3115 = vmul.f32 %v2955, %v849
      %v3116 = vmul.f32 %v2956, %v850
      %v3117 = vmul.f32 %v2957, %v851
      %v3118 = vmul.f32 %v2958, %v852
      %v3119 = vmul.f32 %v2959, %v853
      %v3120 = vmul.f32 %v2960, %v854
      %v3121 = vmul.f32 %v2961, %v855
      %v3122 = vmul.f32 %v2962, %v856
      %v3123 = vmul.f32 %v2963, %v857
      %v3124 = vmul.f32 %v2964, %v858
      %v3125 = vmul.f32 %v2965, %v859
      %v3126 = vmul.f32 %v2966, %v860
      %v3127 = vmul.f32 %v2967, %v861
      %v3128 = vmul.f32 %v2968, %v862
      %v3129 = vmul.f32 %v2969, %v863
      %v3130 = vmul.f32 %v2970, %v864
      %v3131 = vmul.f32 %v2971, %v865
      %v3132 = vmul.f32 %v2972, %v866
      %v3133 = vmul.f32 %v2973, %v867
      %v3134 = vmul.f32 %v2974, %v868
      %v3135 = vmul.f32 %v2975, %v869
      %v3136 = vmul.f32 %v2976, %v870
      %v3137 = vmul.f32 %v2977, %v871
      %v3138 = vmul.f32 %v2978, %v872
      %v3139 = vmul.f32 %v2979, %v873
      %v3140 = vmul.f32 %v2980, %v874
      %v3141 = vmul.f32 %v2981, %v875
      %v3142 = vmul.f32 %v2982, %v876
      %v3143 = vmul.f32 %v2983, %v877
      %v3144 = vmul.f32 %v2984, %v878
      %v3145 = vmul.f32 %v3113, %v879
      %v3146 = vmul.f32 %v3114, %v880
      %v3147 = vld [vmem:[#allocation2 + $0x108] sm:$0xff]
      %v3148 = vld [vmem:[#allocation2 + $0x110] sm:$0xff]
      %v3149 = vld [vmem:[#allocation2 + $0x109] sm:$0xff]
      %v3150 = vld [vmem:[#allocation2 + $0x111] sm:$0xff]
      %v3151 = vmul.f32 %v3051, %v945
      %v3152 = vmul.f32 %v3052, %v946
      %v3153 = vmul.f32 %v3053, %v947
      %v3154 = vmul.f32 %v3054, %v948
      %v3155 = vmul.f32 %v3055, %v949
      %v3156 = vmul.f32 %v3056, %v950
      %v3157 = vmul.f32 %v3057, %v951
      %v3158 = vmul.f32 %v3058, %v952
      %v3159 = vmul.f32 %v3059, %v953
      %v3160 = vmul.f32 %v3060, %v954
      %v3161 = vmul.f32 %v3061, %v955
      %v3162 = vmul.f32 %v3062, %v956
      %v3163 = vmul.f32 %v3063, %v957
      %v3164 = vmul.f32 %v3064, %v958
      %v3165 = vmul.f32 %v3065, %v959
      %v3166 = vmul.f32 %v3066, %v960
      %v3167 = vmul.f32 %v3067, %v961
      %v3168 = vmul.f32 %v3068, %v962
      %v3169 = vmul.f32 %v3069, %v963
      %v3170 = vmul.f32 %v3070, %v964
      %v3171 = vmul.f32 %v3071, %v965
      %v3172 = vmul.f32 %v3072, %v966
      %v3173 = vmul.f32 %v3073, %v967
      %v3174 = vmul.f32 %v3074, %v968
      %v3175 = vmul.f32 %v3075, %v969
      %v3176 = vmul.f32 %v3076, %v970
      %v3177 = vmul.f32 %v3077, %v971
      %v3178 = vmul.f32 %v3078, %v972
      %v3179 = vmul.f32 %v3079, %v973
      %v3180 = vmul.f32 %v3080, %v974
      %v3181 = vmul.f32 %v3149, %v975
      %v3182 = vmul.f32 %v3150, %v976
      %v3183 = vld [vmem:[#allocation2 + $0x117] sm:$0xff]
      %v3184 = vld [vmem:[#allocation2 + $0x11f] sm:$0xff]
      %v3185 = vmul.f32 %v2957, %v849
      %v3186 = vmul.f32 %v2958, %v850
      %v3187 = vmul.f32 %v2959, %v851
      %v3188 = vmul.f32 %v2960, %v852
      %v3189 = vmul.f32 %v2961, %v853
      %v3190 = vmul.f32 %v2962, %v854
      %v3191 = vmul.f32 %v2963, %v855
      %v3192 = vmul.f32 %v2964, %v856
      %v3193 = vmul.f32 %v2965, %v857
      %v3194 = vmul.f32 %v2966, %v858
      %v3195 = vmul.f32 %v2967, %v859
      %v3196 = vmul.f32 %v2968, %v860
      %v3197 = vmul.f32 %v2969, %v861
      %v3198 = vmul.f32 %v2970, %v862
      %v3199 = vmul.f32 %v2971, %v863
      %v3200 = vmul.f32 %v2972, %v864
      %v3201 = vmul.f32 %v2973, %v865
      %v3202 = vmul.f32 %v2974, %v866
      %v3203 = vmul.f32 %v2975, %v867
      %v3204 = vmul.f32 %v2976, %v868
      %v3205 = vmul.f32 %v2977, %v869
      %v3206 = vmul.f32 %v2978, %v870
      %v3207 = vmul.f32 %v2979, %v871
      %v3208 = vmul.f32 %v2980, %v872
      %v3209 = vmul.f32 %v2981, %v873
      %v3210 = vmul.f32 %v2982, %v874
      %v3211 = vmul.f32 %v2983, %v875
      %v3212 = vmul.f32 %v2984, %v876
      %v3213 = vmul.f32 %v3113, %v877
      %v3214 = vmul.f32 %v3114, %v878
      %v3215 = vmul.f32 %v3183, %v879
      %v3216 = vmul.f32 %v3184, %v880
      %v3217 = vld [vmem:[#allocation2 + $0x118] sm:$0xff]
      %v3218 = vld [vmem:[#allocation2 + $0x120] sm:$0xff]
      %v3219 = vld [vmem:[#allocation2 + $0x119] sm:$0xff]
      %v3220 = vld [vmem:[#allocation2 + $0x121] sm:$0xff]
      %v3221 = vmul.f32 %v3053, %v945
      %v3222 = vmul.f32 %v3054, %v946
      %v3223 = vmul.f32 %v3055, %v947
      %v3224 = vmul.f32 %v3056, %v948
      %v3225 = vmul.f32 %v3057, %v949
      %v3226 = vmul.f32 %v3058, %v950
      %v3227 = vmul.f32 %v3059, %v951
      %v3228 = vmul.f32 %v3060, %v952
      %v3229 = vmul.f32 %v3061, %v953
      %v3230 = vmul.f32 %v3062, %v954
      %v3231 = vmul.f32 %v3063, %v955
      %v3232 = vmul.f32 %v3064, %v956
      %v3233 = vmul.f32 %v3065, %v957
      %v3234 = vmul.f32 %v3066, %v958
      %v3235 = vmul.f32 %v3067, %v959
      %v3236 = vmul.f32 %v3068, %v960
      %v3237 = vmul.f32 %v3069, %v961
      %v3238 = vmul.f32 %v3070, %v962
      %v3239 = vmul.f32 %v3071, %v963
      %v3240 = vmul.f32 %v3072, %v964
      %v3241 = vmul.f32 %v3073, %v965
      %v3242 = vmul.f32 %v3074, %v966
      %v3243 = vmul.f32 %v3075, %v967
      %v3244 = vmul.f32 %v3076, %v968
      %v3245 = vmul.f32 %v3077, %v969
      %v3246 = vmul.f32 %v3078, %v970
      %v3247 = vmul.f32 %v3079, %v971
      %v3248 = vmul.f32 %v3080, %v972
      %v3249 = vmul.f32 %v3149, %v973
      %v3250 = vmul.f32 %v3150, %v974
      %v3251 = vmul.f32 %v3219, %v975
      %v3252 = vmul.f32 %v3220, %v976
      %3285 = vrot.lane.b32.xlu0 %v3017, 16
      %v3286 = vpop.permute.xlu0 %3285
      %3287 = vrot.lane.b32.xlu0 %v3018, 16
      %v3288 = vpop.permute.xlu0 %3287
      %3289 = vrot.lane.b32.xlu0 %v3019, 16
      %v3290 = vpop.permute.xlu0 %3289
      %3291 = vrot.lane.b32.xlu0 %v3020, 16
      %v3292 = vpop.permute.xlu0 %3291
      %3293 = vrot.lane.b32.xlu0 %v3021, 16
      %v3294 = vpop.permute.xlu0 %3293
      %3295 = vrot.lane.b32.xlu0 %v3022, 16
      %v3296 = vpop.permute.xlu0 %3295
      %3297 = vrot.lane.b32.xlu0 %v3023, 16
      %v3298 = vpop.permute.xlu0 %3297
      %3299 = vrot.lane.b32.xlu0 %v3024, 16
      %v3300 = vpop.permute.xlu0 %3299
      %3301 = vrot.lane.b32.xlu0 %v3025, 16
      %v3302 = vpop.permute.xlu0 %3301
      %3303 = vrot.lane.b32.xlu0 %v3026, 16
      %v3304 = vpop.permute.xlu0 %3303
      %3305 = vrot.lane.b32.xlu0 %v3027, 16
      %v3306 = vpop.permute.xlu0 %3305
      %3307 = vrot.lane.b32.xlu0 %v3028, 16
      %v3308 = vpop.permute.xlu0 %3307
      %3309 = vrot.lane.b32.xlu0 %v3029, 16
      %v3310 = vpop.permute.xlu0 %3309
      %3311 = vrot.lane.b32.xlu0 %v3030, 16
      %v3312 = vpop.permute.xlu0 %3311
      %3313 = vrot.lane.b32.xlu0 %v3031, 16
      %v3314 = vpop.permute.xlu0 %3313
      %3315 = vrot.lane.b32.xlu0 %v3032, 16
      %v3316 = vpop.permute.xlu0 %3315
      %3317 = vrot.lane.b32.xlu0 %v3033, 16
      %v3318 = vpop.permute.xlu0 %3317
      %3319 = vrot.lane.b32.xlu0 %v3034, 16
      %v3320 = vpop.permute.xlu0 %3319
      %3321 = vrot.lane.b32.xlu0 %v3035, 16
      %v3322 = vpop.permute.xlu0 %3321
      %3323 = vrot.lane.b32.xlu0 %v3036, 16
      %v3324 = vpop.permute.xlu0 %3323
      %3325 = vrot.lane.b32.xlu0 %v3037, 16
      %v3326 = vpop.permute.xlu0 %3325
      %3327 = vrot.lane.b32.xlu0 %v3038, 16
      %v3328 = vpop.permute.xlu0 %3327
      %3329 = vrot.lane.b32.xlu0 %v3039, 16
      %v3330 = vpop.permute.xlu0 %3329
      %3331 = vrot.lane.b32.xlu0 %v3040, 16
      %v3332 = vpop.permute.xlu0 %3331
      %3333 = vrot.lane.b32.xlu0 %v3041, 16
      %v3334 = vpop.permute.xlu0 %3333
      %3335 = vrot.lane.b32.xlu0 %v3042, 16
      %v3336 = vpop.permute.xlu0 %3335
      %3337 = vrot.lane.b32.xlu0 %v3043, 16
      %v3338 = vpop.permute.xlu0 %3337
      %3339 = vrot.lane.b32.xlu0 %v3044, 16
      %v3340 = vpop.permute.xlu0 %3339
      %3341 = vrot.lane.b32.xlu0 %v3045, 16
      %v3342 = vpop.permute.xlu0 %3341
      %3343 = vrot.lane.b32.xlu0 %v3046, 16
      %v3344 = vpop.permute.xlu0 %3343
      %3345 = vrot.lane.b32.xlu0 %v3047, 16
      %v3346 = vpop.permute.xlu0 %3345
      %3347 = vrot.lane.b32.xlu0 %v3048, 16
      %v3348 = vpop.permute.xlu0 %3347
      %3413 = vrot.lane.b32.xlu0 %v3081, 32
      %v3414 = vpop.permute.xlu0 %3413
      %3415 = vrot.lane.b32.xlu0 %v3082, 32
      %v3416 = vpop.permute.xlu0 %3415
      %3417 = vrot.lane.b32.xlu0 %v3083, 32
      %v3418 = vpop.permute.xlu0 %3417
      %3419 = vrot.lane.b32.xlu0 %v3084, 32
      %v3420 = vpop.permute.xlu0 %3419
      %3421 = vrot.lane.b32.xlu0 %v3085, 32
      %v3422 = vpop.permute.xlu0 %3421
      %3423 = vrot.lane.b32.xlu0 %v3086, 32
      %v3424 = vpop.permute.xlu0 %3423
      %3425 = vrot.lane.b32.xlu0 %v3087, 32
      %v3426 = vpop.permute.xlu0 %3425
      %3427 = vrot.lane.b32.xlu0 %v3088, 32
      %v3428 = vpop.permute.xlu0 %3427
      %3429 = vrot.lane.b32.xlu0 %v3089, 32
      %v3430 = vpop.permute.xlu0 %3429
      %3431 = vrot.lane.b32.xlu0 %v3090, 32
      %v3432 = vpop.permute.xlu0 %3431
      %3433 = vrot.lane.b32.xlu0 %v3091, 32
      %v3434 = vpop.permute.xlu0 %3433
      %3435 = vrot.lane.b32.xlu0 %v3092, 32
      %v3436 = vpop.permute.xlu0 %3435
      %3437 = vrot.lane.b32.xlu0 %v3093, 32
      %v3438 = vpop.permute.xlu0 %3437
      %3439 = vrot.lane.b32.xlu0 %v3094, 32
      %v3440 = vpop.permute.xlu0 %3439
      %3441 = vrot.lane.b32.xlu0 %v3095, 32
      %v3442 = vpop.permute.xlu0 %3441
      %3443 = vrot.lane.b32.xlu0 %v3096, 32
      %v3444 = vpop.permute.xlu0 %3443
      %3445 = vrot.lane.b32.xlu0 %v3097, 32
      %v3446 = vpop.permute.xlu0 %3445
      %3447 = vrot.lane.b32.xlu0 %v3098, 32
      %v3448 = vpop.permute.xlu0 %3447
      %3449 = vrot.lane.b32.xlu0 %v3099, 32
      %v3450 = vpop.permute.xlu0 %3449
      %3451 = vrot.lane.b32.xlu0 %v3100, 32
      %v3452 = vpop.permute.xlu0 %3451
      %3453 = vrot.lane.b32.xlu0 %v3101, 32
      %v3454 = vpop.permute.xlu0 %3453
      %3455 = vrot.lane.b32.xlu0 %v3102, 32
      %v3456 = vpop.permute.xlu0 %3455
      %3457 = vrot.lane.b32.xlu0 %v3103, 32
      %v3458 = vpop.permute.xlu0 %3457
      %3459 = vrot.lane.b32.xlu0 %v3104, 32
      %v3460 = vpop.permute.xlu0 %3459
      %3461 = vrot.lane.b32.xlu0 %v3105, 32
      %v3462 = vpop.permute.xlu0 %3461
      %3463 = vrot.lane.b32.xlu0 %v3106, 32
      %v3464 = vpop.permute.xlu0 %3463
      %3465 = vrot.lane.b32.xlu0 %v3107, 32
      %v3466 = vpop.permute.xlu0 %3465
      %3467 = vrot.lane.b32.xlu0 %v3108, 32
      %v3468 = vpop.permute.xlu0 %3467
      %3469 = vrot.lane.b32.xlu0 %v3109, 32
      %v3470 = vpop.permute.xlu0 %3469
      %3471 = vrot.lane.b32.xlu0 %v3110, 32
      %v3472 = vpop.permute.xlu0 %3471
      %3473 = vrot.lane.b32.xlu0 %v3111, 32
      %v3474 = vpop.permute.xlu0 %3473
      %3475 = vrot.lane.b32.xlu0 %v3112, 32
      %v3476 = vpop.permute.xlu0 %3475
      %3541 = vrot.lane.b32.xlu0 %v3115, 48
      %v3542 = vpop.permute.xlu0 %3541
      %3543 = vrot.lane.b32.xlu0 %v3116, 48
      %v3544 = vpop.permute.xlu0 %3543
      %3545 = vrot.lane.b32.xlu0 %v3117, 48
      %v3546 = vpop.permute.xlu0 %3545
      %3547 = vrot.lane.b32.xlu0 %v3118, 48
      %v3548 = vpop.permute.xlu0 %3547
      %3549 = vrot.lane.b32.xlu0 %v3119, 48
      %v3550 = vpop.permute.xlu0 %3549
      %3551 = vrot.lane.b32.xlu0 %v3120, 48
      %v3552 = vpop.permute.xlu0 %3551
      %3553 = vrot.lane.b32.xlu0 %v3121, 48
      %v3554 = vpop.permute.xlu0 %3553
      %3555 = vrot.lane.b32.xlu0 %v3122, 48
      %v3556 = vpop.permute.xlu0 %3555
      %3557 = vrot.lane.b32.xlu0 %v3123, 48
      %v3558 = vpop.permute.xlu0 %3557
      %3559 = vrot.lane.b32.xlu0 %v3124, 48
      %v3560 = vpop.permute.xlu0 %3559
      %3561 = vrot.lane.b32.xlu0 %v3125, 48
      %v3562 = vpop.permute.xlu0 %3561
      %3563 = vrot.lane.b32.xlu0 %v3126, 48
      %v3564 = vpop.permute.xlu0 %3563
      %3565 = vrot.lane.b32.xlu0 %v3127, 48
      %v3566 = vpop.permute.xlu0 %3565
      %3567 = vrot.lane.b32.xlu0 %v3128, 48
      %v3568 = vpop.permute.xlu0 %3567
      %3569 = vrot.lane.b32.xlu0 %v3129, 48
      %v3570 = vpop.permute.xlu0 %3569
      %3571 = vrot.lane.b32.xlu0 %v3130, 48
      %v3572 = vpop.permute.xlu0 %3571
      %3573 = vrot.lane.b32.xlu0 %v3131, 48
      %v3574 = vpop.permute.xlu0 %3573
      %3575 = vrot.lane.b32.xlu0 %v3132, 48
      %v3576 = vpop.permute.xlu0 %3575
      %3577 = vrot.lane.b32.xlu0 %v3133, 48
      %v3578 = vpop.permute.xlu0 %3577
      %3579 = vrot.lane.b32.xlu0 %v3134, 48
      %v3580 = vpop.permute.xlu0 %3579
      %3581 = vrot.lane.b32.xlu0 %v3135, 48
      %v3582 = vpop.permute.xlu0 %3581
      %3583 = vrot.lane.b32.xlu0 %v3136, 48
      %v3584 = vpop.permute.xlu0 %3583
      %3585 = vrot.lane.b32.xlu0 %v3137, 48
      %v3586 = vpop.permute.xlu0 %3585
      %3587 = vrot.lane.b32.xlu0 %v3138, 48
      %v3588 = vpop.permute.xlu0 %3587
      %3589 = vrot.lane.b32.xlu0 %v3139, 48
      %v3590 = vpop.permute.xlu0 %3589
      %3591 = vrot.lane.b32.xlu0 %v3140, 48
      %v3592 = vpop.permute.xlu0 %3591
      %3593 = vrot.lane.b32.xlu0 %v3141, 48
      %v3594 = vpop.permute.xlu0 %3593
      %3595 = vrot.lane.b32.xlu0 %v3142, 48
      %v3596 = vpop.permute.xlu0 %3595
      %3597 = vrot.lane.b32.xlu0 %v3143, 48
      %v3598 = vpop.permute.xlu0 %3597
      %3599 = vrot.lane.b32.xlu0 %v3144, 48
      %v3600 = vpop.permute.xlu0 %3599
      %3601 = vrot.lane.b32.xlu0 %v3145, 48
      %v3602 = vpop.permute.xlu0 %3601
      %3603 = vrot.lane.b32.xlu0 %v3146, 48
      %v3604 = vpop.permute.xlu0 %3603
      %3639 = vrot.lane.b32.xlu0 %v3019, 64
      %v3640 = vpop.permute.xlu0 %3639
      %3641 = vrot.lane.b32.xlu0 %v3020, 64
      %v3642 = vpop.permute.xlu0 %3641
      %3643 = vrot.lane.b32.xlu0 %v3021, 64
      %v3644 = vpop.permute.xlu0 %3643
      %3645 = vrot.lane.b32.xlu0 %v3022, 64
      %v3646 = vpop.permute.xlu0 %3645
      %3647 = vrot.lane.b32.xlu0 %v3023, 64
      %v3648 = vpop.permute.xlu0 %3647
      %3649 = vrot.lane.b32.xlu0 %v3024, 64
      %v3650 = vpop.permute.xlu0 %3649
      %3651 = vrot.lane.b32.xlu0 %v3025, 64
      %v3652 = vpop.permute.xlu0 %3651
      %3653 = vrot.lane.b32.xlu0 %v3026, 64
      %v3654 = vpop.permute.xlu0 %3653
      %3655 = vrot.lane.b32.xlu0 %v3027, 64
      %v3656 = vpop.permute.xlu0 %3655
      %3657 = vrot.lane.b32.xlu0 %v3028, 64
      %v3658 = vpop.permute.xlu0 %3657
      %3659 = vrot.lane.b32.xlu0 %v3029, 64
      %v3660 = vpop.permute.xlu0 %3659
      %3661 = vrot.lane.b32.xlu0 %v3030, 64
      %v3662 = vpop.permute.xlu0 %3661
      %3663 = vrot.lane.b32.xlu0 %v3031, 64
      %v3664 = vpop.permute.xlu0 %3663
      %3665 = vrot.lane.b32.xlu0 %v3032, 64
      %v3666 = vpop.permute.xlu0 %3665
      %3667 = vrot.lane.b32.xlu0 %v3033, 64
      %v3668 = vpop.permute.xlu0 %3667
      %3669 = vrot.lane.b32.xlu0 %v3034, 64
      %v3670 = vpop.permute.xlu0 %3669
      %3671 = vrot.lane.b32.xlu0 %v3035, 64
      %v3672 = vpop.permute.xlu0 %3671
      %3673 = vrot.lane.b32.xlu0 %v3036, 64
      %v3674 = vpop.permute.xlu0 %3673
      %3675 = vrot.lane.b32.xlu0 %v3037, 64
      %v3676 = vpop.permute.xlu0 %3675
      %3677 = vrot.lane.b32.xlu0 %v3038, 64
      %v3678 = vpop.permute.xlu0 %3677
      %3679 = vrot.lane.b32.xlu0 %v3039, 64
      %v3680 = vpop.permute.xlu0 %3679
      %3681 = vrot.lane.b32.xlu0 %v3040, 64
      %v3682 = vpop.permute.xlu0 %3681
      %3683 = vrot.lane.b32.xlu0 %v3041, 64
      %v3684 = vpop.permute.xlu0 %3683
      %3685 = vrot.lane.b32.xlu0 %v3042, 64
      %v3686 = vpop.permute.xlu0 %3685
      %3687 = vrot.lane.b32.xlu0 %v3043, 64
      %v3688 = vpop.permute.xlu0 %3687
      %3689 = vrot.lane.b32.xlu0 %v3044, 64
      %v3690 = vpop.permute.xlu0 %3689
      %3691 = vrot.lane.b32.xlu0 %v3045, 64
      %v3692 = vpop.permute.xlu0 %3691
      %3693 = vrot.lane.b32.xlu0 %v3046, 64
      %v3694 = vpop.permute.xlu0 %3693
      %3695 = vrot.lane.b32.xlu0 %v3047, 64
      %v3696 = vpop.permute.xlu0 %3695
      %3697 = vrot.lane.b32.xlu0 %v3048, 64
      %v3698 = vpop.permute.xlu0 %3697
      %3699 = vrot.lane.b32.xlu0 %v3147, 64
      %v3700 = vpop.permute.xlu0 %3699
      %3701 = vrot.lane.b32.xlu0 %v3148, 64
      %v3702 = vpop.permute.xlu0 %3701
      %3767 = vrot.lane.b32.xlu0 %v3151, 80
      %v3768 = vpop.permute.xlu0 %3767
      %3769 = vrot.lane.b32.xlu0 %v3152, 80
      %v3770 = vpop.permute.xlu0 %3769
      %3771 = vrot.lane.b32.xlu0 %v3153, 80
      %v3772 = vpop.permute.xlu0 %3771
      %3773 = vrot.lane.b32.xlu0 %v3154, 80
      %v3774 = vpop.permute.xlu0 %3773
      %3775 = vrot.lane.b32.xlu0 %v3155, 80
      %v3776 = vpop.permute.xlu0 %3775
      %3777 = vrot.lane.b32.xlu0 %v3156, 80
      %v3778 = vpop.permute.xlu0 %3777
      %3779 = vrot.lane.b32.xlu0 %v3157, 80
      %v3780 = vpop.permute.xlu0 %3779
      %3781 = vrot.lane.b32.xlu0 %v3158, 80
      %v3782 = vpop.permute.xlu0 %3781
      %3783 = vrot.lane.b32.xlu0 %v3159, 80
      %v3784 = vpop.permute.xlu0 %3783
      %3785 = vrot.lane.b32.xlu0 %v3160, 80
      %v3786 = vpop.permute.xlu0 %3785
      %3787 = vrot.lane.b32.xlu0 %v3161, 80
      %v3788 = vpop.permute.xlu0 %3787
      %3789 = vrot.lane.b32.xlu0 %v3162, 80
      %v3790 = vpop.permute.xlu0 %3789
      %3791 = vrot.lane.b32.xlu0 %v3163, 80
      %v3792 = vpop.permute.xlu0 %3791
      %3793 = vrot.lane.b32.xlu0 %v3164, 80
      %v3794 = vpop.permute.xlu0 %3793
      %3795 = vrot.lane.b32.xlu0 %v3165, 80
      %v3796 = vpop.permute.xlu0 %3795
      %3797 = vrot.lane.b32.xlu0 %v3166, 80
      %v3798 = vpop.permute.xlu0 %3797
      %3799 = vrot.lane.b32.xlu0 %v3167, 80
      %v3800 = vpop.permute.xlu0 %3799
      %3801 = vrot.lane.b32.xlu0 %v3168, 80
      %v3802 = vpop.permute.xlu0 %3801
      %3803 = vrot.lane.b32.xlu0 %v3169, 80
      %v3804 = vpop.permute.xlu0 %3803
      %3805 = vrot.lane.b32.xlu0 %v3170, 80
      %v3806 = vpop.permute.xlu0 %3805
      %3807 = vrot.lane.b32.xlu0 %v3171, 80
      %v3808 = vpop.permute.xlu0 %3807
      %3809 = vrot.lane.b32.xlu0 %v3172, 80
      %v3810 = vpop.permute.xlu0 %3809
      %3811 = vrot.lane.b32.xlu0 %v3173, 80
      %v3812 = vpop.permute.xlu0 %3811
      %3813 = vrot.lane.b32.xlu0 %v3174, 80
      %v3814 = vpop.permute.xlu0 %3813
      %3815 = vrot.lane.b32.xlu0 %v3175, 80
      %v3816 = vpop.permute.xlu0 %3815
      %3817 = vrot.lane.b32.xlu0 %v3176, 80
      %v3818 = vpop.permute.xlu0 %3817
      %3819 = vrot.lane.b32.xlu0 %v3177, 80
      %v3820 = vpop.permute.xlu0 %3819
      %3821 = vrot.lane.b32.xlu0 %v3178, 80
      %v3822 = vpop.permute.xlu0 %3821
      %3823 = vrot.lane.b32.xlu0 %v3179, 80
      %v3824 = vpop.permute.xlu0 %3823
      %3825 = vrot.lane.b32.xlu0 %v3180, 80
      %v3826 = vpop.permute.xlu0 %3825
      %3827 = vrot.lane.b32.xlu0 %v3181, 80
      %v3828 = vpop.permute.xlu0 %3827
      %3829 = vrot.lane.b32.xlu0 %v3182, 80
      %v3830 = vpop.permute.xlu0 %3829
      %3895 = vrot.lane.b32.xlu0 %v3185, 96
      %v3896 = vpop.permute.xlu0 %3895
      %3897 = vrot.lane.b32.xlu0 %v3186, 96
      %v3898 = vpop.permute.xlu0 %3897
      %3899 = vrot.lane.b32.xlu0 %v3187, 96
      %v3900 = vpop.permute.xlu0 %3899
      %3901 = vrot.lane.b32.xlu0 %v3188, 96
      %v3902 = vpop.permute.xlu0 %3901
      %3903 = vrot.lane.b32.xlu0 %v3189, 96
      %v3904 = vpop.permute.xlu0 %3903
      %3905 = vrot.lane.b32.xlu0 %v3190, 96
      %v3906 = vpop.permute.xlu0 %3905
      %3907 = vrot.lane.b32.xlu0 %v3191, 96
      %v3908 = vpop.permute.xlu0 %3907
      %3909 = vrot.lane.b32.xlu0 %v3192, 96
      %v3910 = vpop.permute.xlu0 %3909
      %3911 = vrot.lane.b32.xlu0 %v3193, 96
      %v3912 = vpop.permute.xlu0 %3911
      %3913 = vrot.lane.b32.xlu0 %v3194, 96
      %v3914 = vpop.permute.xlu0 %3913
      %3915 = vrot.lane.b32.xlu0 %v3195, 96
      %v3916 = vpop.permute.xlu0 %3915
      %3917 = vrot.lane.b32.xlu0 %v3196, 96
      %v3918 = vpop.permute.xlu0 %3917
      %3919 = vrot.lane.b32.xlu0 %v3197, 96
      %v3920 = vpop.permute.xlu0 %3919
      %3921 = vrot.lane.b32.xlu0 %v3198, 96
      %v3922 = vpop.permute.xlu0 %3921
      %3923 = vrot.lane.b32.xlu0 %v3199, 96
      %v3924 = vpop.permute.xlu0 %3923
      %3925 = vrot.lane.b32.xlu0 %v3200, 96
      %v3926 = vpop.permute.xlu0 %3925
      %3927 = vrot.lane.b32.xlu0 %v3201, 96
      %v3928 = vpop.permute.xlu0 %3927
      %3929 = vrot.lane.b32.xlu0 %v3202, 96
      %v3930 = vpop.permute.xlu0 %3929
      %3931 = vrot.lane.b32.xlu0 %v3203, 96
      %v3932 = vpop.permute.xlu0 %3931
      %3933 = vrot.lane.b32.xlu0 %v3204, 96
      %v3934 = vpop.permute.xlu0 %3933
      %3935 = vrot.lane.b32.xlu0 %v3205, 96
      %v3936 = vpop.permute.xlu0 %3935
      %3937 = vrot.lane.b32.xlu0 %v3206, 96
      %v3938 = vpop.permute.xlu0 %3937
      %3939 = vrot.lane.b32.xlu0 %v3207, 96
      %v3940 = vpop.permute.xlu0 %3939
      %3941 = vrot.lane.b32.xlu0 %v3208, 96
      %v3942 = vpop.permute.xlu0 %3941
      %3943 = vrot.lane.b32.xlu0 %v3209, 96
      %v3944 = vpop.permute.xlu0 %3943
      %3945 = vrot.lane.b32.xlu0 %v3210, 96
      %v3946 = vpop.permute.xlu0 %3945
      %3947 = vrot.lane.b32.xlu0 %v3211, 96
      %v3948 = vpop.permute.xlu0 %3947
      %3949 = vrot.lane.b32.xlu0 %v3212, 96
      %v3950 = vpop.permute.xlu0 %3949
      %3951 = vrot.lane.b32.xlu0 %v3213, 96
      %v3952 = vpop.permute.xlu0 %3951
      %3953 = vrot.lane.b32.xlu0 %v3214, 96
      %v3954 = vpop.permute.xlu0 %3953
      %3955 = vrot.lane.b32.xlu0 %v3215, 96
      %v3956 = vpop.permute.xlu0 %3955
      %3957 = vrot.lane.b32.xlu0 %v3216, 96
      %v3958 = vpop.permute.xlu0 %3957
      %3993 = vrot.lane.b32.xlu0 %v3021, 112
      %v3994 = vpop.permute.xlu0 %3993
      %3995 = vrot.lane.b32.xlu0 %v3022, 112
      %v3996 = vpop.permute.xlu0 %3995
      %3997 = vrot.lane.b32.xlu0 %v3023, 112
      %v3998 = vpop.permute.xlu0 %3997
      %3999 = vrot.lane.b32.xlu0 %v3024, 112
      %v4000 = vpop.permute.xlu0 %3999
      %4001 = vrot.lane.b32.xlu0 %v3025, 112
      %v4002 = vpop.permute.xlu0 %4001
      %4003 = vrot.lane.b32.xlu0 %v3026, 112
      %v4004 = vpop.permute.xlu0 %4003
      %4005 = vrot.lane.b32.xlu0 %v3027, 112
      %v4006 = vpop.permute.xlu0 %4005
      %4007 = vrot.lane.b32.xlu0 %v3028, 112
      %v4008 = vpop.permute.xlu0 %4007
      %4009 = vrot.lane.b32.xlu0 %v3029, 112
      %v4010 = vpop.permute.xlu0 %4009
      %4011 = vrot.lane.b32.xlu0 %v3030, 112
      %v4012 = vpop.permute.xlu0 %4011
      %4013 = vrot.lane.b32.xlu0 %v3031, 112
      %v4014 = vpop.permute.xlu0 %4013
      %4015 = vrot.lane.b32.xlu0 %v3032, 112
      %v4016 = vpop.permute.xlu0 %4015
      %4017 = vrot.lane.b32.xlu0 %v3033, 112
      %v4018 = vpop.permute.xlu0 %4017
      %4019 = vrot.lane.b32.xlu0 %v3034, 112
      %v4020 = vpop.permute.xlu0 %4019
      %4021 = vrot.lane.b32.xlu0 %v3035, 112
      %v4022 = vpop.permute.xlu0 %4021
      %4023 = vrot.lane.b32.xlu0 %v3036, 112
      %v4024 = vpop.permute.xlu0 %4023
      %4025 = vrot.lane.b32.xlu0 %v3037, 112
      %v4026 = vpop.permute.xlu0 %4025
      %4027 = vrot.lane.b32.xlu0 %v3038, 112
      %v4028 = vpop.permute.xlu0 %4027
      %4029 = vrot.lane.b32.xlu0 %v3039, 112
      %v4030 = vpop.permute.xlu0 %4029
      %4031 = vrot.lane.b32.xlu0 %v3040, 112
      %v4032 = vpop.permute.xlu0 %4031
      %4033 = vrot.lane.b32.xlu0 %v3041, 112
      %v4034 = vpop.permute.xlu0 %4033
      %4035 = vrot.lane.b32.xlu0 %v3042, 112
      %v4036 = vpop.permute.xlu0 %4035
      %4037 = vrot.lane.b32.xlu0 %v3043, 112
      %v4038 = vpop.permute.xlu0 %4037
      %4039 = vrot.lane.b32.xlu0 %v3044, 112
      %v4040 = vpop.permute.xlu0 %4039
      %4041 = vrot.lane.b32.xlu0 %v3045, 112
      %v4042 = vpop.permute.xlu0 %4041
      %4043 = vrot.lane.b32.xlu0 %v3046, 112
      %v4044 = vpop.permute.xlu0 %4043
      %4045 = vrot.lane.b32.xlu0 %v3047, 112
      %v4046 = vpop.permute.xlu0 %4045
      %4047 = vrot.lane.b32.xlu0 %v3048, 112
      %v4048 = vpop.permute.xlu0 %4047
      %4049 = vrot.lane.b32.xlu0 %v3147, 112
      %v4050 = vpop.permute.xlu0 %4049
      %4051 = vrot.lane.b32.xlu0 %v3148, 112
      %v4052 = vpop.permute.xlu0 %4051
      %4053 = vrot.lane.b32.xlu0 %v3217, 112
      %v4054 = vpop.permute.xlu0 %4053
      %4055 = vrot.lane.b32.xlu0 %v3218, 112
      %v4056 = vpop.permute.xlu0 %4055
      %v4089 = vsel %vm361, %v2985, %v3286
      %v4090 = vsel %vm361, %v2986, %v3288
      %v4091 = vsel %vm361, %v2987, %v3290
      %v4092 = vsel %vm361, %v2988, %v3292
      %v4093 = vsel %vm361, %v2989, %v3294
      %v4094 = vsel %vm361, %v2990, %v3296
      %v4095 = vsel %vm361, %v2991, %v3298
      %v4096 = vsel %vm361, %v2992, %v3300
      %v4097 = vsel %vm361, %v2993, %v3302
      %v4098 = vsel %vm361, %v2994, %v3304
      %v4099 = vsel %vm361, %v2995, %v3306
      %v4100 = vsel %vm361, %v2996, %v3308
      %v4101 = vsel %vm361, %v2997, %v3310
      %v4102 = vsel %vm361, %v2998, %v3312
      %v4103 = vsel %vm361, %v2999, %v3314
      %v4104 = vsel %vm361, %v3000, %v3316
      %v4105 = vsel %vm361, %v3001, %v3318
      %v4106 = vsel %vm361, %v3002, %v3320
      %v4107 = vsel %vm361, %v3003, %v3322
      %v4108 = vsel %vm361, %v3004, %v3324
      %v4109 = vsel %vm361, %v3005, %v3326
      %v4110 = vsel %vm361, %v3006, %v3328
      %v4111 = vsel %vm361, %v3007, %v3330
      %v4112 = vsel %vm361, %v3008, %v3332
      %v4113 = vsel %vm361, %v3009, %v3334
      %v4114 = vsel %vm361, %v3010, %v3336
      %v4115 = vsel %vm361, %v3011, %v3338
      %v4116 = vsel %vm361, %v3012, %v3340
      %v4117 = vsel %vm361, %v3013, %v3342
      %v4118 = vsel %vm361, %v3014, %v3344
      %v4119 = vsel %vm361, %v3015, %v3346
      %v4120 = vsel %vm361, %v3016, %v3348
      %v4121 = vsel %vm2535, %v4089, %v3414
      %v4122 = vsel %vm2535, %v4090, %v3416
      %v4123 = vsel %vm2535, %v4091, %v3418
      %v4124 = vsel %vm2535, %v4092, %v3420
      %v4125 = vsel %vm2535, %v4093, %v3422
      %v4126 = vsel %vm2535, %v4094, %v3424
      %v4127 = vsel %vm2535, %v4095, %v3426
      %v4128 = vsel %vm2535, %v4096, %v3428
      %v4129 = vsel %vm2535, %v4097, %v3430
      %v4130 = vsel %vm2535, %v4098, %v3432
      %v4131 = vsel %vm2535, %v4099, %v3434
      %v4132 = vsel %vm2535, %v4100, %v3436
      %v4133 = vsel %vm2535, %v4101, %v3438
      %v4134 = vsel %vm2535, %v4102, %v3440
      %v4135 = vsel %vm2535, %v4103, %v3442
      %v4136 = vsel %vm2535, %v4104, %v3444
      %v4137 = vsel %vm2535, %v4105, %v3446
      %v4138 = vsel %vm2535, %v4106, %v3448
      %v4139 = vsel %vm2535, %v4107, %v3450
      %v4140 = vsel %vm2535, %v4108, %v3452
      %v4141 = vsel %vm2535, %v4109, %v3454
      %v4142 = vsel %vm2535, %v4110, %v3456
      %v4143 = vsel %vm2535, %v4111, %v3458
      %v4144 = vsel %vm2535, %v4112, %v3460
      %v4145 = vsel %vm2535, %v4113, %v3462
      %v4146 = vsel %vm2535, %v4114, %v3464
      %v4147 = vsel %vm2535, %v4115, %v3466
      %v4148 = vsel %vm2535, %v4116, %v3468
      %v4149 = vsel %vm2535, %v4117, %v3470
      %v4150 = vsel %vm2535, %v4118, %v3472
      %v4151 = vsel %vm2535, %v4119, %v3474
      %v4152 = vsel %vm2535, %v4120, %v3476
      %vm4153 = vcmask 392192
      %v4154 = vsel %vm4153, %v4121, %v3542
      %v4155 = vsel %vm4153, %v4122, %v3544
      %v4156 = vsel %vm4153, %v4123, %v3546
      %v4157 = vsel %vm4153, %v4124, %v3548
      %v4158 = vsel %vm4153, %v4125, %v3550
      %v4159 = vsel %vm4153, %v4126, %v3552
      %v4160 = vsel %vm4153, %v4127, %v3554
      %v4161 = vsel %vm4153, %v4128, %v3556
      %v4162 = vsel %vm4153, %v4129, %v3558
      %v4163 = vsel %vm4153, %v4130, %v3560
      %v4164 = vsel %vm4153, %v4131, %v3562
      %v4165 = vsel %vm4153, %v4132, %v3564
      %v4166 = vsel %vm4153, %v4133, %v3566
      %v4167 = vsel %vm4153, %v4134, %v3568
      %v4168 = vsel %vm4153, %v4135, %v3570
      %v4169 = vsel %vm4153, %v4136, %v3572
      %v4170 = vsel %vm4153, %v4137, %v3574
      %v4171 = vsel %vm4153, %v4138, %v3576
      %v4172 = vsel %vm4153, %v4139, %v3578
      %v4173 = vsel %vm4153, %v4140, %v3580
      %v4174 = vsel %vm4153, %v4141, %v3582
      %v4175 = vsel %vm4153, %v4142, %v3584
      %v4176 = vsel %vm4153, %v4143, %v3586
      %v4177 = vsel %vm4153, %v4144, %v3588
      %v4178 = vsel %vm4153, %v4145, %v3590
      %v4179 = vsel %vm4153, %v4146, %v3592
      %v4180 = vsel %vm4153, %v4147, %v3594
      %v4181 = vsel %vm4153, %v4148, %v3596
      %v4182 = vsel %vm4153, %v4149, %v3598
      %v4183 = vsel %vm4153, %v4150, %v3600
      %v4184 = vsel %vm4153, %v4151, %v3602
      %v4185 = vsel %vm4153, %v4152, %v3604
      %vm4186 = vcmask 523264
      %v4187 = vsel %vm4186, %v4154, %v3640
      %v4188 = vsel %vm4186, %v4155, %v3642
      %v4189 = vsel %vm4186, %v4156, %v3644
      %v4190 = vsel %vm4186, %v4157, %v3646
      %v4191 = vsel %vm4186, %v4158, %v3648
      %v4192 = vsel %vm4186, %v4159, %v3650
      %v4193 = vsel %vm4186, %v4160, %v3652
      %v4194 = vsel %vm4186, %v4161, %v3654
      %v4195 = vsel %vm4186, %v4162, %v3656
      %v4196 = vsel %vm4186, %v4163, %v3658
      %v4197 = vsel %vm4186, %v4164, %v3660
      %v4198 = vsel %vm4186, %v4165, %v3662
      %v4199 = vsel %vm4186, %v4166, %v3664
      %v4200 = vsel %vm4186, %v4167, %v3666
      %v4201 = vsel %vm4186, %v4168, %v3668
      %v4202 = vsel %vm4186, %v4169, %v3670
      %v4203 = vsel %vm4186, %v4170, %v3672
      %v4204 = vsel %vm4186, %v4171, %v3674
      %v4205 = vsel %vm4186, %v4172, %v3676
      %v4206 = vsel %vm4186, %v4173, %v3678
      %v4207 = vsel %vm4186, %v4174, %v3680
      %v4208 = vsel %vm4186, %v4175, %v3682
      %v4209 = vsel %vm4186, %v4176, %v3684
      %v4210 = vsel %vm4186, %v4177, %v3686
      %v4211 = vsel %vm4186, %v4178, %v3688
      %v4212 = vsel %vm4186, %v4179, %v3690
      %v4213 = vsel %vm4186, %v4180, %v3692
      %v4214 = vsel %vm4186, %v4181, %v3694
      %v4215 = vsel %vm4186, %v4182, %v3696
      %v4216 = vsel %vm4186, %v4183, %v3698
      %v4217 = vsel %vm4186, %v4184, %v3700
      %v4218 = vsel %vm4186, %v4185, %v3702
      %vm4219 = vcmask 654336
      %v4220 = vsel %vm4219, %v4187, %v3768
      %v4221 = vsel %vm4219, %v4188, %v3770
      %v4222 = vsel %vm4219, %v4189, %v3772
      %v4223 = vsel %vm4219, %v4190, %v3774
      %v4224 = vsel %vm4219, %v4191, %v3776
      %v4225 = vsel %vm4219, %v4192, %v3778
      %v4226 = vsel %vm4219, %v4193, %v3780
      %v4227 = vsel %vm4219, %v4194, %v3782
      %v4228 = vsel %vm4219, %v4195, %v3784
      %v4229 = vsel %vm4219, %v4196, %v3786
      %v4230 = vsel %vm4219, %v4197, %v3788
      %v4231 = vsel %vm4219, %v4198, %v3790
      %v4232 = vsel %vm4219, %v4199, %v3792
      %v4233 = vsel %vm4219, %v4200, %v3794
      %v4234 = vsel %vm4219, %v4201, %v3796
      %v4235 = vsel %vm4219, %v4202, %v3798
      %v4236 = vsel %vm4219, %v4203, %v3800
      %v4237 = vsel %vm4219, %v4204, %v3802
      %v4238 = vsel %vm4219, %v4205, %v3804
      %v4239 = vsel %vm4219, %v4206, %v3806
      %v4240 = vsel %vm4219, %v4207, %v3808
      %v4241 = vsel %vm4219, %v4208, %v3810
      %v4242 = vsel %vm4219, %v4209, %v3812
      %v4243 = vsel %vm4219, %v4210, %v3814
      %v4244 = vsel %vm4219, %v4211, %v3816
      %v4245 = vsel %vm4219, %v4212, %v3818
      %v4246 = vsel %vm4219, %v4213, %v3820
      %v4247 = vsel %vm4219, %v4214, %v3822
      %v4248 = vsel %vm4219, %v4215, %v3824
      %v4249 = vsel %vm4219, %v4216, %v3826
      %v4250 = vsel %vm4219, %v4217, %v3828
      %v4251 = vsel %vm4219, %v4218, %v3830
      %vm4252 = vcmask 785408
      %v4253 = vsel %vm4252, %v4220, %v3896
      %v4254 = vsel %vm4252, %v4221, %v3898
      %v4255 = vsel %vm4252, %v4222, %v3900
      %v4256 = vsel %vm4252, %v4223, %v3902
      %v4257 = vsel %vm4252, %v4224, %v3904
      %v4258 = vsel %vm4252, %v4225, %v3906
      %v4259 = vsel %vm4252, %v4226, %v3908
      %v4260 = vsel %vm4252, %v4227, %v3910
      %v4261 = vsel %vm4252, %v4228, %v3912
      %v4262 = vsel %vm4252, %v4229, %v3914
      %v4263 = vsel %vm4252, %v4230, %v3916
      %v4264 = vsel %vm4252, %v4231, %v3918
      %v4265 = vsel %vm4252, %v4232, %v3920
      %v4266 = vsel %vm4252, %v4233, %v3922
      %v4267 = vsel %vm4252, %v4234, %v3924
      %v4268 = vsel %vm4252, %v4235, %v3926
      %v4269 = vsel %vm4252, %v4236, %v3928
      %v4270 = vsel %vm4252, %v4237, %v3930
      %v4271 = vsel %vm4252, %v4238, %v3932
      %v4272 = vsel %vm4252, %v4239, %v3934
      %v4273 = vsel %vm4252, %v4240, %v3936
      %v4274 = vsel %vm4252, %v4241, %v3938
      %v4275 = vsel %vm4252, %v4242, %v3940
      %v4276 = vsel %vm4252, %v4243, %v3942
      %v4277 = vsel %vm4252, %v4244, %v3944
      %v4278 = vsel %vm4252, %v4245, %v3946
      %v4279 = vsel %vm4252, %v4246, %v3948
      %v4280 = vsel %vm4252, %v4247, %v3950
      %v4281 = vsel %vm4252, %v4248, %v3952
      %v4282 = vsel %vm4252, %v4249, %v3954
      %v4283 = vsel %vm4252, %v4250, %v3956
      %v4284 = vsel %vm4252, %v4251, %v3958
      %vm4285 = vcmask 916480
      %v4286 = vsel %vm4285, %v4253, %v3994
      %v4287 = vsel %vm4285, %v4254, %v3996
      %v4288 = vsel %vm4285, %v4255, %v3998
      %v4289 = vsel %vm4285, %v4256, %v4000
      %v4290 = vsel %vm4285, %v4257, %v4002
      %v4291 = vsel %vm4285, %v4258, %v4004
      %v4292 = vsel %vm4285, %v4259, %v4006
      %v4293 = vsel %vm4285, %v4260, %v4008
      %v4294 = vsel %vm4285, %v4261, %v4010
      %v4295 = vsel %vm4285, %v4262, %v4012
      %v4296 = vsel %vm4285, %v4263, %v4014
      %v4297 = vsel %vm4285, %v4264, %v4016
      %v4298 = vsel %vm4285, %v4265, %v4018
      %v4299 = vsel %vm4285, %v4266, %v4020
      %v4300 = vsel %vm4285, %v4267, %v4022
      %v4301 = vsel %vm4285, %v4268, %v4024
      %v4302 = vsel %vm4285, %v4269, %v4026
      %v4303 = vsel %vm4285, %v4270, %v4028
      %v4304 = vsel %vm4285, %v4271, %v4030
      %v4305 = vsel %vm4285, %v4272, %v4032
      %v4306 = vsel %vm4285, %v4273, %v4034
      %v4307 = vsel %vm4285, %v4274, %v4036
      %v4308 = vsel %vm4285, %v4275, %v4038
      %v4309 = vsel %vm4285, %v4276, %v4040
      %v4310 = vsel %vm4285, %v4277, %v4042
      %v4311 = vsel %vm4285, %v4278, %v4044
      %v4312 = vsel %vm4285, %v4279, %v4046
      %v4313 = vsel %vm4285, %v4280, %v4048
      %v4314 = vsel %vm4285, %v4281, %v4050
      %v4315 = vsel %vm4285, %v4282, %v4052
      %v4316 = vsel %vm4285, %v4283, %v4054
      %v4317 = vsel %vm4285, %v4284, %v4056
      %v4318 = vpack.c.bf16 %v4287, %v4286
      %v4319 = vpack.c.bf16 %v3222, %v3221
      %v4320 = vpack.c.bf16 %v4289, %v4288
      %v4321 = vpack.c.bf16 %v3224, %v3223
      %v4322 = vpack.c.bf16 %v4291, %v4290
      %v4323 = vpack.c.bf16 %v3226, %v3225
      %v4324 = vpack.c.bf16 %v4293, %v4292
      %v4325 = vpack.c.bf16 %v3228, %v3227
      %v4326 = vpack.c.bf16 %v4295, %v4294
      %v4327 = vpack.c.bf16 %v3230, %v3229
      %v4328 = vpack.c.bf16 %v4297, %v4296
      %v4329 = vpack.c.bf16 %v3232, %v3231
      %v4330 = vpack.c.bf16 %v4299, %v4298
      %v4331 = vpack.c.bf16 %v3234, %v3233
      %v4332 = vpack.c.bf16 %v4301, %v4300
      %v4333 = vpack.c.bf16 %v3236, %v3235
      %v4334 = vpack.c.bf16 %v4303, %v4302
      %v4335 = vpack.c.bf16 %v3238, %v3237
      %v4336 = vpack.c.bf16 %v4305, %v4304
      %v4337 = vpack.c.bf16 %v3240, %v3239
      %v4338 = vpack.c.bf16 %v4307, %v4306
      %v4339 = vpack.c.bf16 %v3242, %v3241
      %v4340 = vpack.c.bf16 %v4309, %v4308
      %v4341 = vpack.c.bf16 %v3244, %v3243
      %v4342 = vpack.c.bf16 %v4311, %v4310
      %v4343 = vpack.c.bf16 %v3246, %v3245
      %v4344 = vpack.c.bf16 %v4313, %v4312
      %v4345 = vpack.c.bf16 %v3248, %v3247
      %v4346 = vpack.c.bf16 %v4315, %v4314
      %v4347 = vpack.c.bf16 %v3250, %v3249
      %v4348 = vpack.c.bf16 %v4317, %v4316
      %v4349 = vpack.c.bf16 %v3252, %v3251
      %v4350 = vld [vmem:[%s3] sm:$0xf]
      %v4351 = vld [vmem:[%s3 + $0x4] sm:$0xf]
      %v4352 = vld [vmem:[%s3 + $0x8] sm:$0xf]
      %v4353 = vld [vmem:[%s3 + $0xc] sm:$0xf]
      %v4354 = vld [vmem:[%s3 + $0x10] sm:$0xf]
      %v4355 = vld [vmem:[%s3 + $0x14] sm:$0xf]
      %v4356 = vld [vmem:[%s3 + $0x18] sm:$0xf]
      %v4357 = vld [vmem:[%s3 + $0x1c] sm:$0xf]
      %v4358 = vld [vmem:[%s3 + $0x20] sm:$0xf]
      %v4359 = vld [vmem:[%s3 + $0x24] sm:$0xf]
      %v4360 = vld [vmem:[%s3 + $0x28] sm:$0xf]
      %v4361 = vld [vmem:[%s3 + $0x2c] sm:$0xf]
      %v4362 = vld [vmem:[%s3 + $0x30] sm:$0xf]
      %v4363 = vld [vmem:[%s3 + $0x34] sm:$0xf]
      %v4364 = vld [vmem:[%s3 + $0x38] sm:$0xf]
      %v4365 = vld [vmem:[%s3 + $0x3c] sm:$0xf]
      %v4366 = vld [vmem:[%s3 + $0x40] sm:$0xf]
      %v4367 = vld [vmem:[%s3 + $0x44] sm:$0xf]
      %v4368 = vld [vmem:[%s4] sm:$0x1]
      %v4370 = vlaneseq
      %v4371 = vshrl.u32 %v4370, 7
      %v4372 = vsub.s32 0, %v4371
      %v4373 = vrot.slane %v4368, %v4372
      %v4393 = vunpack.c.l.b16 %v4350
      %v4394 = vunpack.c.l.b16 %v4351
      %v4395 = vunpack.c.l.b16 %v4352
      %v4396 = vunpack.c.l.b16 %v4353
      %v4397 = vunpack.c.l.b16 %v4354
      %v4398 = vunpack.c.l.b16 %v4355
      %v4399 = vunpack.c.l.b16 %v4356
      %v4400 = vunpack.c.l.b16 %v4357
      %v4401 = vunpack.c.l.b16 %v4358
      %v4402 = vunpack.c.l.b16 %v4359
      %v4403 = vunpack.c.l.b16 %v4360
      %v4404 = vunpack.c.l.b16 %v4361
      %v4405 = vunpack.c.l.b16 %v4362
      %v4406 = vunpack.c.l.b16 %v4363
      %v4407 = vunpack.c.l.b16 %v4364
      %v4408 = vunpack.c.l.b16 %v4365
      %v4409 = vunpack.c.l.b16 %v4366
      %v4410 = vunpack.c.l.b16 %v4367
      %v4411 = vpack.c.b16 %v4394, %v4393
      %v4412 = vpack.c.b16 %v4396, %v4395
      %v4413 = vpack.c.b16 %v4398, %v4397
      %v4414 = vpack.c.b16 %v4400, %v4399
      %v4415 = vpack.c.b16 %v4402, %v4401
      %v4416 = vpack.c.b16 %v4404, %v4403
      %v4417 = vpack.c.b16 %v4406, %v4405
      %v4418 = vpack.c.b16 %v4408, %v4407
      %v4419 = vpack.c.b16 %v4410, %v4409
      %v4430 = vsel %vm361, %v4319, 0
      %v4433 = vsel %vm361, %v4321, 0
      %v4436 = vsel %vm361, %v4323, 0
      %v4439 = vsel %vm361, %v4325, 0
      %v4442 = vsel %vm361, %v4327, 0
      %v4445 = vsel %vm361, %v4329, 0
      %v4448 = vsel %vm361, %v4331, 0
      %v4451 = vsel %vm361, %v4333, 0
      %v4454 = vsel %vm361, %v4335, 0
      %v4457 = vsel %vm361, %v4337, 0
      %v4460 = vsel %vm361, %v4339, 0
      %v4463 = vsel %vm361, %v4341, 0
      %v4466 = vsel %vm361, %v4343, 0
      %v4469 = vsel %vm361, %v4345, 0
      %v4472 = vsel %vm361, %v4347, 0
      %v4475 = vsel %vm361, %v4349, 0
      %4477 = vmatprep.subr.bf16.mxu0 0
      %4478 = vmatpush1.bf16.msra.mxu0 %v4411
      %4479 = vmatprep.subr.bf16.mxu0 0
      %4480 = vmatpush1.bf16.msra.mxu0 %v4412
      %4481 = vmatprep.subr.bf16.mxu0 0
      %4482 = vmatpush1.bf16.msra.mxu0 %v4413
      %4483 = vmatprep.subr.bf16.mxu0 0
      %4484 = vmatpush1.bf16.msra.mxu0 %v4414
      %4485 = vmatprep.subr.bf16.mxu0 0
      %4486 = vmatpush1.bf16.msra.mxu0 %v4415
      %4487 = vmatprep.subr.bf16.mxu0 0
      %4488 = vmatpush1.bf16.msra.mxu0 %v4416
      %4489 = vmatprep.subr.bf16.mxu0 0
      %4490 = vmatpush1.bf16.msra.mxu0 %v4417
      %4491 = vmatprep.subr.bf16.mxu0 0
      %4492 = vmatpush1.bf16.msra.mxu0 %v4418
      %4493 = vmatprep.subr.bf16.mxu0 0
      %4494 = vmatpush1.bf16.msra.mxu0 %v4419
      %4495 = vmatprep.subr.bf16.mxu0 0
      %4496 = vmatpush1.bf16.msra.mxu0 0
      %4497 = vmatprep.subr.bf16.mxu0 0
      %4498 = vmatpush1.bf16.msra.mxu0 0
      %4499 = vmatprep.subr.bf16.mxu0 0
      %4500 = vmatpush1.bf16.msra.mxu0 0
      %4501 = vmatprep.subr.bf16.mxu0 0
      %4502 = vmatpush1.bf16.msra.mxu0 0
      %4503 = vmatprep.subr.bf16.mxu0 0
      %4504 = vmatpush1.bf16.msra.mxu0 0
      %4505 = vmatprep.subr.bf16.mxu0 0
      %4506 = vmatpush1.bf16.msra.mxu0 0
      %4507 = vmatprep.subr.bf16.mxu0 0
      %4508 = vmatpush1.bf16.msra.mxu0 0
      %4509 = vmatprep.mubr.bf16.mxu0 %v4430
      %4510 = vmatmul.mubr.bf16.gmra.mrb[0].mxu0 %v4318
      %v4511 = vpop.f32.mrb[0].mxu0
      %v4512 = vadd.f32 %v4373, %v4511
      %v4513 = vpop.f32.mrb[0].mxu0
      %v4514 = vpop.f32.mrb[0].mxu0
      %v4515 = vadd.f32 %v4373, %v4514
      %v4516 = vpop.f32.mrb[0].mxu0
      %4517 = vmatprep.mubr.bf16.mxu0 %v4433
      %4518 = vmatmul.mubr.bf16.gmra.mrb[0].mxu0 %v4320
      %v4519 = vpop.f32.mrb[0].mxu0
      %v4520 = vadd.f32 %v4373, %v4519
      %v4521 = vpop.f32.mrb[0].mxu0
      %v4522 = vpop.f32.mrb[0].mxu0
      %v4523 = vadd.f32 %v4373, %v4522
      %v4524 = vpop.f32.mrb[0].mxu0
      %4525 = vmatprep.mubr.bf16.mxu0 %v4436
      %4526 = vmatmul.mubr.bf16.gmra.mrb[0].mxu0 %v4322
      %v4527 = vpop.f32.mrb[0].mxu0
      %v4528 = vadd.f32 %v4373, %v4527
      %v4529 = vpop.f32.mrb[0].mxu0
      %v4530 = vpop.f32.mrb[0].mxu0
      %v4531 = vadd.f32 %v4373, %v4530
      %v4532 = vpop.f32.mrb[0].mxu0
      %4533 = vmatprep.mubr.bf16.mxu0 %v4439
      %4534 = vmatmul.mubr.bf16.gmra.mrb[0].mxu0 %v4324
      %v4535 = vpop.f32.mrb[0].mxu0
      %v4536 = vadd.f32 %v4373, %v4535
      %v4537 = vpop.f32.mrb[0].mxu0
      %v4538 = vpop.f32.mrb[0].mxu0
      %v4539 = vadd.f32 %v4373, %v4538
      %v4540 = vpop.f32.mrb[0].mxu0
      %4541 = vmatprep.mubr.bf16.mxu0 %v4442
      %4542 = vmatmul.mubr.bf16.gmra.mrb[0].mxu0 %v4326
      %v4543 = vpop.f32.mrb[0].mxu0
      %v4544 = vadd.f32 %v4373, %v4543
      %v4545 = vpop.f32.mrb[0].mxu0
      %v4546 = vpop.f32.mrb[0].mxu0
      %v4547 = vadd.f32 %v4373, %v4546
      %v4548 = vpop.f32.mrb[0].mxu0
      %4549 = vmatprep.mubr.bf16.mxu0 %v4445
      %4550 = vmatmul.mubr.bf16.gmra.mrb[0].mxu0 %v4328
      %v4551 = vpop.f32.mrb[0].mxu0
      %v4552 = vadd.f32 %v4373, %v4551
      %v4553 = vpop.f32.mrb[0].mxu0
      %v4554 = vpop.f32.mrb[0].mxu0
      %v4555 = vadd.f32 %v4373, %v4554
      %v4556 = vpop.f32.mrb[0].mxu0
      %4557 = vmatprep.mubr.bf16.mxu0 %v4448
      %4558 = vmatmul.mubr.bf16.gmra.mrb[0].mxu0 %v4330
      %v4559 = vpop.f32.mrb[0].mxu0
      %v4560 = vadd.f32 %v4373, %v4559
      %v4561 = vpop.f32.mrb[0].mxu0
      %v4562 = vpop.f32.mrb[0].mxu0
      %v4563 = vadd.f32 %v4373, %v4562
      %v4564 = vpop.f32.mrb[0].mxu0
      %4565 = vmatprep.mubr.bf16.mxu0 %v4451
      %4566 = vmatmul.mubr.bf16.gmra.mrb[0].mxu0 %v4332
      %v4567 = vpop.f32.mrb[0].mxu0
      %v4568 = vadd.f32 %v4373, %v4567
      %v4569 = vpop.f32.mrb[0].mxu0
      %v4570 = vpop.f32.mrb[0].mxu0
      %v4571 = vadd.f32 %v4373, %v4570
      %v4572 = vpop.f32.mrb[0].mxu0
      %4573 = vmatprep.mubr.bf16.mxu0 %v4454
      %4574 = vmatmul.mubr.bf16.gmra.mrb[0].mxu0 %v4334
      %v4575 = vpop.f32.mrb[0].mxu0
      %v4576 = vadd.f32 %v4373, %v4575
      %v4577 = vpop.f32.mrb[0].mxu0
      %v4578 = vpop.f32.mrb[0].mxu0
      %v4579 = vadd.f32 %v4373, %v4578
      %v4580 = vpop.f32.mrb[0].mxu0
      %4581 = vmatprep.mubr.bf16.mxu0 %v4457
      %4582 = vmatmul.mubr.bf16.gmra.mrb[0].mxu0 %v4336
      %v4583 = vpop.f32.mrb[0].mxu0
      %v4584 = vadd.f32 %v4373, %v4583
      %v4585 = vpop.f32.mrb[0].mxu0
      %v4586 = vpop.f32.mrb[0].mxu0
      %v4587 = vadd.f32 %v4373, %v4586
      %v4588 = vpop.f32.mrb[0].mxu0
      %4589 = vmatprep.mubr.bf16.mxu0 %v4460
      %4590 = vmatmul.mubr.bf16.gmra.mrb[0].mxu0 %v4338
      %v4591 = vpop.f32.mrb[0].mxu0
      %v4592 = vadd.f32 %v4373, %v4591
      %v4593 = vpop.f32.mrb[0].mxu0
      %v4594 = vpop.f32.mrb[0].mxu0
      %v4595 = vadd.f32 %v4373, %v4594
      %v4596 = vpop.f32.mrb[0].mxu0
      %4597 = vmatprep.mubr.bf16.mxu0 %v4463
      %4598 = vmatmul.mubr.bf16.gmra.mrb[0].mxu0 %v4340
      %v4599 = vpop.f32.mrb[0].mxu0
      %v4600 = vadd.f32 %v4373, %v4599
      %v4601 = vpop.f32.mrb[0].mxu0
      %v4602 = vpop.f32.mrb[0].mxu0
      %v4603 = vadd.f32 %v4373, %v4602
      %v4604 = vpop.f32.mrb[0].mxu0
      %4605 = vmatprep.mubr.bf16.mxu0 %v4466
      %4606 = vmatmul.mubr.bf16.gmra.mrb[0].mxu0 %v4342
      %v4607 = vpop.f32.mrb[0].mxu0
      %v4608 = vadd.f32 %v4373, %v4607
      %v4609 = vpop.f32.mrb[0].mxu0
      %v4610 = vpop.f32.mrb[0].mxu0
      %v4611 = vadd.f32 %v4373, %v4610
      %v4612 = vpop.f32.mrb[0].mxu0
      %4613 = vmatprep.mubr.bf16.mxu0 %v4469
      %4614 = vmatmul.mubr.bf16.gmra.mrb[0].mxu0 %v4344
      %v4615 = vpop.f32.mrb[0].mxu0
      %v4616 = vadd.f32 %v4373, %v4615
      %v4617 = vpop.f32.mrb[0].mxu0
      %v4618 = vpop.f32.mrb[0].mxu0
      %v4619 = vadd.f32 %v4373, %v4618
      %v4620 = vpop.f32.mrb[0].mxu0
      %4621 = vmatprep.mubr.bf16.mxu0 %v4472
      %4622 = vmatmul.mubr.bf16.gmra.mrb[0].mxu0 %v4346
      %v4623 = vpop.f32.mrb[0].mxu0
      %v4624 = vadd.f32 %v4373, %v4623
      %v4625 = vpop.f32.mrb[0].mxu0
      %v4626 = vpop.f32.mrb[0].mxu0
      %v4627 = vadd.f32 %v4373, %v4626
      %v4628 = vpop.f32.mrb[0].mxu0
      %4629 = vmatprep.mubr.bf16.mxu0 %v4475
      %4630 = vmatmul.mubr.bf16.gmra.mrb[0].mxu0 %v4348
      %v4631 = vpop.f32.mrb[0].mxu0
      %v4632 = vadd.f32 %v4373, %v4631
      %v4633 = vpop.f32.mrb[0].mxu0
      %v4634 = vpop.f32.mrb[0].mxu0
      %v4635 = vadd.f32 %v4373, %v4634
      %v4636 = vpop.f32.mrb[0].mxu0
      %4637 = vdwg.mxu0
      %vm4638 = vcmp.gt.f32.partialorder %v4512, 0.0
      %vm4639 = vcmp.gt.f32.partialorder %v4515, 0.0
      %vm4640 = vcmp.gt.f32.partialorder %v4520, 0.0
      %vm4641 = vcmp.gt.f32.partialorder %v4523, 0.0
      %vm4642 = vcmp.gt.f32.partialorder %v4528, 0.0
      %vm4643 = vcmp.gt.f32.partialorder %v4531, 0.0
      %vm4644 = vcmp.gt.f32.partialorder %v4536, 0.0
      %vm4645 = vcmp.gt.f32.partialorder %v4539, 0.0
      %vm4646 = vcmp.gt.f32.partialorder %v4544, 0.0
      %vm4647 = vcmp.gt.f32.partialorder %v4547, 0.0
      %vm4648 = vcmp.gt.f32.partialorder %v4552, 0.0
      %vm4649 = vcmp.gt.f32.partialorder %v4555, 0.0
      %vm4650 = vcmp.gt.f32.partialorder %v4560, 0.0
      %vm4651 = vcmp.gt.f32.partialorder %v4563, 0.0
      %vm4652 = vcmp.gt.f32.partialorder %v4568, 0.0
      %vm4653 = vcmp.gt.f32.partialorder %v4571, 0.0
      %vm4654 = vcmp.gt.f32.partialorder %v4576, 0.0
      %vm4655 = vcmp.gt.f32.partialorder %v4579, 0.0
      %vm4656 = vcmp.gt.f32.partialorder %v4584, 0.0
      %vm4657 = vcmp.gt.f32.partialorder %v4587, 0.0
      %vm4658 = vcmp.gt.f32.partialorder %v4592, 0.0
      %vm4659 = vcmp.gt.f32.partialorder %v4595, 0.0
      %vm4660 = vcmp.gt.f32.partialorder %v4600, 0.0
      %vm4661 = vcmp.gt.f32.partialorder %v4603, 0.0
      %vm4662 = vcmp.gt.f32.partialorder %v4608, 0.0
      %vm4663 = vcmp.gt.f32.partialorder %v4611, 0.0
      %vm4664 = vcmp.gt.f32.partialorder %v4616, 0.0
      %vm4665 = vcmp.gt.f32.partialorder %v4619, 0.0
      %vm4666 = vcmp.gt.f32.partialorder %v4624, 0.0
      %vm4667 = vcmp.gt.f32.partialorder %v4627, 0.0
      %vm4668 = vcmp.gt.f32.partialorder %v4632, 0.0
      %vm4669 = vcmp.gt.f32.partialorder %v4635, 0.0
      %v4670 = vmul.f32 %v4512, 0.1
      %v4671 = vmul.f32 %v4515, 0.1
      %v4672 = vmul.f32 %v4520, 0.1
      %v4673 = vmul.f32 %v4523, 0.1
      %v4674 = vmul.f32 %v4528, 0.1
      %v4675 = vmul.f32 %v4531, 0.1
      %v4676 = vmul.f32 %v4536, 0.1
      %v4677 = vmul.f32 %v4539, 0.1
      %v4678 = vmul.f32 %v4544, 0.1
      %v4679 = vmul.f32 %v4547, 0.1
      %v4680 = vmul.f32 %v4552, 0.1
      %v4681 = vmul.f32 %v4555, 0.1
      %v4682 = vmul.f32 %v4560, 0.1
      %v4683 = vmul.f32 %v4563, 0.1
      %v4684 = vmul.f32 %v4568, 0.1
      %v4685 = vmul.f32 %v4571, 0.1
      %v4686 = vmul.f32 %v4576, 0.1
      %v4687 = vmul.f32 %v4579, 0.1
      %v4688 = vmul.f32 %v4584, 0.1
      %v4689 = vmul.f32 %v4587, 0.1
      %v4690 = vmul.f32 %v4592, 0.1
      %v4691 = vmul.f32 %v4595, 0.1
      %v4692 = vmul.f32 %v4600, 0.1
      %v4693 = vmul.f32 %v4603, 0.1
      %v4694 = vmul.f32 %v4608, 0.1
      %v4695 = vmul.f32 %v4611, 0.1
      %v4696 = vmul.f32 %v4616, 0.1
      %v4697 = vmul.f32 %v4619, 0.1
      %v4698 = vmul.f32 %v4624, 0.1
      %v4699 = vmul.f32 %v4627, 0.1
      %v4700 = vmul.f32 %v4632, 0.1
      %v4701 = vmul.f32 %v4635, 0.1
      %v4702 = vsel %vm4638, %v4512, %v4670
      %v4703 = vsel %vm4639, %v4515, %v4671
      %v4704 = vsel %vm4640, %v4520, %v4672
      %v4705 = vsel %vm4641, %v4523, %v4673
      %v4706 = vsel %vm4642, %v4528, %v4674
      %v4707 = vsel %vm4643, %v4531, %v4675
      %v4708 = vsel %vm4644, %v4536, %v4676
      %v4709 = vsel %vm4645, %v4539, %v4677
      %v4710 = vsel %vm4646, %v4544, %v4678
      %v4711 = vsel %vm4647, %v4547, %v4679
      %v4712 = vsel %vm4648, %v4552, %v4680
      %v4713 = vsel %vm4649, %v4555, %v4681
      %v4714 = vsel %vm4650, %v4560, %v4682
      %v4715 = vsel %vm4651, %v4563, %v4683
      %v4716 = vsel %vm4652, %v4568, %v4684
      %v4717 = vsel %vm4653, %v4571, %v4685
      %v4718 = vsel %vm4654, %v4576, %v4686
      %v4719 = vsel %vm4655, %v4579, %v4687
      %v4720 = vsel %vm4656, %v4584, %v4688
      %v4721 = vsel %vm4657, %v4587, %v4689
      %v4722 = vsel %vm4658, %v4592, %v4690
      %v4723 = vsel %vm4659, %v4595, %v4691
      %v4724 = vsel %vm4660, %v4600, %v4692
      %v4725 = vsel %vm4661, %v4603, %v4693
      %v4726 = vsel %vm4662, %v4608, %v4694
      %v4727 = vsel %vm4663, %v4611, %v4695
      %v4728 = vsel %vm4664, %v4616, %v4696
      %v4729 = vsel %vm4665, %v4619, %v4697
      %v4730 = vsel %vm4666, %v4624, %v4698
      %v4731 = vsel %vm4667, %v4627, %v4699
      %v4732 = vsel %vm4668, %v4632, %v4700
      %v4733 = vsel %vm4669, %v4635, %v4701
      %4766 = vrot.lane.b32.xlu0 %v2699, 112
      %v4767 = vpop.permute.xlu0 %4766
      %4768 = vrot.lane.b32.xlu0 %v2702, 112
      %v4769 = vpop.permute.xlu0 %4768
      %4770 = vrot.lane.b32.xlu0 %v2707, 112
      %v4771 = vpop.permute.xlu0 %4770
      %4772 = vrot.lane.b32.xlu0 %v2710, 112
      %v4773 = vpop.permute.xlu0 %4772
      %4774 = vrot.lane.b32.xlu0 %v2715, 112
      %v4775 = vpop.permute.xlu0 %4774
      %4776 = vrot.lane.b32.xlu0 %v2718, 112
      %v4777 = vpop.permute.xlu0 %4776
      %4778 = vrot.lane.b32.xlu0 %v2723, 112
      %v4779 = vpop.permute.xlu0 %4778
      %4780 = vrot.lane.b32.xlu0 %v2726, 112
      %v4781 = vpop.permute.xlu0 %4780
      %4782 = vrot.lane.b32.xlu0 %v2731, 112
      %v4783 = vpop.permute.xlu0 %4782
      %4784 = vrot.lane.b32.xlu0 %v2734, 112
      %v4785 = vpop.permute.xlu0 %4784
      %4786 = vrot.lane.b32.xlu0 %v2739, 112
      %v4787 = vpop.permute.xlu0 %4786
      %4788 = vrot.lane.b32.xlu0 %v2742, 112
      %v4789 = vpop.permute.xlu0 %4788
      %4790 = vrot.lane.b32.xlu0 %v2747, 112
      %v4791 = vpop.permute.xlu0 %4790
      %4792 = vrot.lane.b32.xlu0 %v2750, 112
      %v4793 = vpop.permute.xlu0 %4792
      %4794 = vrot.lane.b32.xlu0 %v2755, 112
      %v4795 = vpop.permute.xlu0 %4794
      %4796 = vrot.lane.b32.xlu0 %v2758, 112
      %v4797 = vpop.permute.xlu0 %4796
      %4798 = vrot.lane.b32.xlu0 %v2763, 112
      %v4799 = vpop.permute.xlu0 %4798
      %4800 = vrot.lane.b32.xlu0 %v2766, 112
      %v4801 = vpop.permute.xlu0 %4800
      %4802 = vrot.lane.b32.xlu0 %v2771, 112
      %v4803 = vpop.permute.xlu0 %4802
      %4804 = vrot.lane.b32.xlu0 %v2774, 112
      %v4805 = vpop.permute.xlu0 %4804
      %4806 = vrot.lane.b32.xlu0 %v2779, 112
      %v4807 = vpop.permute.xlu0 %4806
      %4808 = vrot.lane.b32.xlu0 %v2782, 112
      %v4809 = vpop.permute.xlu0 %4808
      %4810 = vrot.lane.b32.xlu0 %v2787, 112
      %v4811 = vpop.permute.xlu0 %4810
      %4812 = vrot.lane.b32.xlu0 %v2790, 112
      %v4813 = vpop.permute.xlu0 %4812
      %4814 = vrot.lane.b32.xlu0 %v2795, 112
      %v4815 = vpop.permute.xlu0 %4814
      %4816 = vrot.lane.b32.xlu0 %v2798, 112
      %v4817 = vpop.permute.xlu0 %4816
      %4818 = vrot.lane.b32.xlu0 %v2803, 112
      %v4819 = vpop.permute.xlu0 %4818
      %4820 = vrot.lane.b32.xlu0 %v2806, 112
      %v4821 = vpop.permute.xlu0 %4820
      %4822 = vrot.lane.b32.xlu0 %v2811, 112
      %v4823 = vpop.permute.xlu0 %4822
      %4824 = vrot.lane.b32.xlu0 %v2814, 112
      %v4825 = vpop.permute.xlu0 %4824
      %4826 = vrot.lane.b32.xlu0 %v2819, 112
      %v4827 = vpop.permute.xlu0 %4826
      %4828 = vrot.lane.b32.xlu0 %v2822, 112
      %v4829 = vpop.permute.xlu0 %4828
      %v4862 = vadd.f32 %v4702, %v4767
      %v4863 = vadd.f32 %v4703, %v4769
      %v4864 = vadd.f32 %v4704, %v4771
      %v4865 = vadd.f32 %v4705, %v4773
      %v4866 = vadd.f32 %v4706, %v4775
      %v4867 = vadd.f32 %v4707, %v4777
      %v4868 = vadd.f32 %v4708, %v4779
      %v4869 = vadd.f32 %v4709, %v4781
      %v4870 = vadd.f32 %v4710, %v4783
      %v4871 = vadd.f32 %v4711, %v4785
      %v4872 = vadd.f32 %v4712, %v4787
      %v4873 = vadd.f32 %v4713, %v4789
      %v4874 = vadd.f32 %v4714, %v4791
      %v4875 = vadd.f32 %v4715, %v4793
      %v4876 = vadd.f32 %v4716, %v4795
      %v4877 = vadd.f32 %v4717, %v4797
      %v4878 = vadd.f32 %v4718, %v4799
      %v4879 = vadd.f32 %v4719, %v4801
      %v4880 = vadd.f32 %v4720, %v4803
      %v4881 = vadd.f32 %v4721, %v4805
      %v4882 = vadd.f32 %v4722, %v4807
      %v4883 = vadd.f32 %v4723, %v4809
      %v4884 = vadd.f32 %v4724, %v4811
      %v4885 = vadd.f32 %v4725, %v4813
      %v4886 = vadd.f32 %v4726, %v4815
      %v4887 = vadd.f32 %v4727, %v4817
      %v4888 = vadd.f32 %v4728, %v4819
      %v4889 = vadd.f32 %v4729, %v4821
      %v4890 = vadd.f32 %v4730, %v4823
      %v4891 = vadd.f32 %v4731, %v4825
      %v4892 = vadd.f32 %v4732, %v4827
      %v4893 = vadd.f32 %v4733, %v4829
      %vm4894 = vcmp.gt.f32.partialorder %v4862, 0.0
      %vm4895 = vcmp.gt.f32.partialorder %v4863, 0.0
      %vm4896 = vcmp.gt.f32.partialorder %v4864, 0.0
      %vm4897 = vcmp.gt.f32.partialorder %v4865, 0.0
      %vm4898 = vcmp.gt.f32.partialorder %v4866, 0.0
      %vm4899 = vcmp.gt.f32.partialorder %v4867, 0.0
      %vm4900 = vcmp.gt.f32.partialorder %v4868, 0.0
      %vm4901 = vcmp.gt.f32.partialorder %v4869, 0.0
      %vm4902 = vcmp.gt.f32.partialorder %v4870, 0.0
      %vm4903 = vcmp.gt.f32.partialorder %v4871, 0.0
      %vm4904 = vcmp.gt.f32.partialorder %v4872, 0.0
      %vm4905 = vcmp.gt.f32.partialorder %v4873, 0.0
      %vm4906 = vcmp.gt.f32.partialorder %v4874, 0.0
      %vm4907 = vcmp.gt.f32.partialorder %v4875, 0.0
      %vm4908 = vcmp.gt.f32.partialorder %v4876, 0.0
      %vm4909 = vcmp.gt.f32.partialorder %v4877, 0.0
      %vm4910 = vcmp.gt.f32.partialorder %v4878, 0.0
      %vm4911 = vcmp.gt.f32.partialorder %v4879, 0.0
      %vm4912 = vcmp.gt.f32.partialorder %v4880, 0.0
      %vm4913 = vcmp.gt.f32.partialorder %v4881, 0.0
      %vm4914 = vcmp.gt.f32.partialorder %v4882, 0.0
      %vm4915 = vcmp.gt.f32.partialorder %v4883, 0.0
      %vm4916 = vcmp.gt.f32.partialorder %v4884, 0.0
      %vm4917 = vcmp.gt.f32.partialorder %v4885, 0.0
      %vm4918 = vcmp.gt.f32.partialorder %v4886, 0.0
      %vm4919 = vcmp.gt.f32.partialorder %v4887, 0.0
      %vm4920 = vcmp.gt.f32.partialorder %v4888, 0.0
      %vm4921 = vcmp.gt.f32.partialorder %v4889, 0.0
      %vm4922 = vcmp.gt.f32.partialorder %v4890, 0.0
      %vm4923 = vcmp.gt.f32.partialorder %v4891, 0.0
      %vm4924 = vcmp.gt.f32.partialorder %v4892, 0.0
      %vm4925 = vcmp.gt.f32.partialorder %v4893, 0.0
      %v4926 = vmul.f32 %v4862, 0.2
      %v4927 = vmul.f32 %v4863, 0.2
      %v4928 = vmul.f32 %v4864, 0.2
      %v4929 = vmul.f32 %v4865, 0.2
      %v4930 = vmul.f32 %v4866, 0.2
      %v4931 = vmul.f32 %v4867, 0.2
      %v4932 = vmul.f32 %v4868, 0.2
      %v4933 = vmul.f32 %v4869, 0.2
      %v4934 = vmul.f32 %v4870, 0.2
      %v4935 = vmul.f32 %v4871, 0.2
      %v4936 = vmul.f32 %v4872, 0.2
      %v4937 = vmul.f32 %v4873, 0.2
      %v4938 = vmul.f32 %v4874, 0.2
      %v4939 = vmul.f32 %v4875, 0.2
      %v4940 = vmul.f32 %v4876, 0.2
      %v4941 = vmul.f32 %v4877, 0.2
      %v4942 = vmul.f32 %v4878, 0.2
      %v4943 = vmul.f32 %v4879, 0.2
      %v4944 = vmul.f32 %v4880, 0.2
      %v4945 = vmul.f32 %v4881, 0.2
      %v4946 = vmul.f32 %v4882, 0.2
      %v4947 = vmul.f32 %v4883, 0.2
      %v4948 = vmul.f32 %v4884, 0.2
      %v4949 = vmul.f32 %v4885, 0.2
      %v4950 = vmul.f32 %v4886, 0.2
      %v4951 = vmul.f32 %v4887, 0.2
      %v4952 = vmul.f32 %v4888, 0.2
      %v4953 = vmul.f32 %v4889, 0.2
      %v4954 = vmul.f32 %v4890, 0.2
      %v4955 = vmul.f32 %v4891, 0.2
      %v4956 = vmul.f32 %v4892, 0.2
      %v4957 = vmul.f32 %v4893, 0.2
      %v4958 = vsel %vm4894, %v4862, %v4926
      %v4959 = vsel %vm4895, %v4863, %v4927
      %v4960 = vsel %vm4896, %v4864, %v4928
      %v4961 = vsel %vm4897, %v4865, %v4929
      %v4962 = vsel %vm4898, %v4866, %v4930
      %v4963 = vsel %vm4899, %v4867, %v4931
      %v4964 = vsel %vm4900, %v4868, %v4932
      %v4965 = vsel %vm4901, %v4869, %v4933
      %v4966 = vsel %vm4902, %v4870, %v4934
      %v4967 = vsel %vm4903, %v4871, %v4935
      %v4968 = vsel %vm4904, %v4872, %v4936
      %v4969 = vsel %vm4905, %v4873, %v4937
      %v4970 = vsel %vm4906, %v4874, %v4938
      %v4971 = vsel %vm4907, %v4875, %v4939
      %v4972 = vsel %vm4908, %v4876, %v4940
      %v4973 = vsel %vm4909, %v4877, %v4941
      %v4974 = vsel %vm4910, %v4878, %v4942
      %v4975 = vsel %vm4911, %v4879, %v4943
      %v4976 = vsel %vm4912, %v4880, %v4944
      %v4977 = vsel %vm4913, %v4881, %v4945
      %v4978 = vsel %vm4914, %v4882, %v4946
      %v4979 = vsel %vm4915, %v4883, %v4947
      %v4980 = vsel %vm4916, %v4884, %v4948
      %v4981 = vsel %vm4917, %v4885, %v4949
      %v4982 = vsel %vm4918, %v4886, %v4950
      %v4983 = vsel %vm4919, %v4887, %v4951
      %v4984 = vsel %vm4920, %v4888, %v4952
      %v4985 = vsel %vm4921, %v4889, %v4953
      %v4986 = vsel %vm4922, %v4890, %v4954
      %v4987 = vsel %vm4923, %v4891, %v4955
      %v4988 = vsel %vm4924, %v4892, %v4956
      %v4989 = vsel %vm4925, %v4893, %v4957
      %4990 = vst.msk [vmem:[#allocation2 + $0x18] sm:$0xff] %vm361, %v4958
      %4991 = vst.msk [vmem:[#allocation2 + $0x20] sm:$0xff] %vm361, %v4959
      %4992 = vst.msk [vmem:[#allocation2 + $0x28] sm:$0xff] %vm361, %v4960
      %4993 = vst.msk [vmem:[#allocation2 + $0x30] sm:$0xff] %vm361, %v4961
      %4994 = vst.msk [vmem:[#allocation2 + $0x38] sm:$0xff] %vm361, %v4962
      %4995 = vst.msk [vmem:[#allocation2 + $0x40] sm:$0xff] %vm361, %v4963
      %4996 = vst.msk [vmem:[#allocation2 + $0x48] sm:$0xff] %vm361, %v4964
      %4997 = vst.msk [vmem:[#allocation2 + $0x50] sm:$0xff] %vm361, %v4965
      %4998 = vst.msk [vmem:[#allocation2 + $0x58] sm:$0xff] %vm361, %v4966
      %4999 = vst.msk [vmem:[#allocation2 + $0x60] sm:$0xff] %vm361, %v4967
      %5000 = vst.msk [vmem:[#allocation2 + $0x68] sm:$0xff] %vm361, %v4968
      %5001 = vst.msk [vmem:[#allocation2 + $0x70] sm:$0xff] %vm361, %v4969
      %5002 = vst.msk [vmem:[#allocation2 + $0x78] sm:$0xff] %vm361, %v4970
      %5003 = vst.msk [vmem:[#allocation2 + $0x80] sm:$0xff] %vm361, %v4971
      %5004 = vst.msk [vmem:[#allocation2 + $0x88] sm:$0xff] %vm361, %v4972
      %5005 = vst.msk [vmem:[#allocation2 + $0x90] sm:$0xff] %vm361, %v4973
      %5006 = vst.msk [vmem:[#allocation2 + $0x98] sm:$0xff] %vm361, %v4974
      %5007 = vst.msk [vmem:[#allocation2 + $0xa0] sm:$0xff] %vm361, %v4975
      %5008 = vst.msk [vmem:[#allocation2 + $0xa8] sm:$0xff] %vm361, %v4976
      %5009 = vst.msk [vmem:[#allocation2 + $0xb0] sm:$0xff] %vm361, %v4977
      %5010 = vst.msk [vmem:[#allocation2 + $0xb8] sm:$0xff] %vm361, %v4978
      %5011 = vst.msk [vmem:[#allocation2 + $0xc0] sm:$0xff] %vm361, %v4979
      %5012 = vst.msk [vmem:[#allocation2 + $0xc8] sm:$0xff] %vm361, %v4980
      %5013 = vst.msk [vmem:[#allocation2 + $0xd0] sm:$0xff] %vm361, %v4981
      %5014 = vst.msk [vmem:[#allocation2 + $0xd8] sm:$0xff] %vm361, %v4982
      %5015 = vst.msk [vmem:[#allocation2 + $0xe0] sm:$0xff] %vm361, %v4983
      %5016 = vst.msk [vmem:[#allocation2 + $0xe8] sm:$0xff] %vm361, %v4984
      %5017 = vst.msk [vmem:[#allocation2 + $0xf0] sm:$0xff] %vm361, %v4985
      %5018 = vst.msk [vmem:[#allocation2 + $0xf8] sm:$0xff] %vm361, %v4986
      %5019 = vst.msk [vmem:[#allocation2 + $0x100] sm:$0xff] %vm361, %v4987
      %5020 = vst.msk [vmem:[#allocation2 + $0x108] sm:$0xff] %vm361, %v4988
      %5021 = vst.msk [vmem:[#allocation2 + $0x110] sm:$0xff] %vm361, %v4989
      %v5022 = vld [vmem:[#allocation2 + $0x7] sm:$0xff]
      %v5023 = vld [vmem:[#allocation2 + $0xf] sm:$0xff]
      %v5024 = vld [vmem:[#allocation2 + $0x17] sm:$0xff]
      %v5025 = vld [vmem:[#allocation2 + $0x1f] sm:$0xff]
      %v5026 = vld [vmem:[#allocation2 + $0x27] sm:$0xff]
      %v5027 = vld [vmem:[#allocation2 + $0x2f] sm:$0xff]
      %v5028 = vld [vmem:[#allocation2 + $0x37] sm:$0xff]
      %v5029 = vld [vmem:[#allocation2 + $0x3f] sm:$0xff]
      %v5030 = vld [vmem:[#allocation2 + $0x47] sm:$0xff]
      %v5031 = vld [vmem:[#allocation2 + $0x4f] sm:$0xff]
      %v5032 = vld [vmem:[#allocation2 + $0x57] sm:$0xff]
      %v5033 = vld [vmem:[#allocation2 + $0x5f] sm:$0xff]
      %v5034 = vld [vmem:[#allocation2 + $0x67] sm:$0xff]
      %v5035 = vld [vmem:[#allocation2 + $0x6f] sm:$0xff]
      %v5036 = vld [vmem:[#allocation2 + $0x77] sm:$0xff]
      %v5037 = vld [vmem:[#allocation2 + $0x7f] sm:$0xff]
      %v5038 = vld [vmem:[#allocation2 + $0x87] sm:$0xff]
      %v5039 = vld [vmem:[#allocation2 + $0x8f] sm:$0xff]
      %v5040 = vld [vmem:[#allocation2 + $0x97] sm:$0xff]
      %v5041 = vld [vmem:[#allocation2 + $0x9f] sm:$0xff]
      %v5042 = vld [vmem:[#allocation2 + $0xa7] sm:$0xff]
      %v5043 = vld [vmem:[#allocation2 + $0xaf] sm:$0xff]
      %v5044 = vld [vmem:[#allocation2 + $0xb7] sm:$0xff]
      %v5045 = vld [vmem:[#allocation2 + $0xbf] sm:$0xff]
      %v5046 = vld [vmem:[#allocation2 + $0xc7] sm:$0xff]
      %v5047 = vld [vmem:[#allocation2 + $0xcf] sm:$0xff]
      %v5048 = vld [vmem:[#allocation2 + $0xd7] sm:$0xff]
      %v5049 = vld [vmem:[#allocation2 + $0xdf] sm:$0xff]
      %v5050 = vld [vmem:[#allocation2 + $0xe7] sm:$0xff]
      %v5051 = vld [vmem:[#allocation2 + $0xef] sm:$0xff]
      %v5052 = vld [vmem:[#allocation2 + $0xf7] sm:$0xff]
      %v5053 = vld [vmem:[#allocation2 + $0xff] sm:$0xff]
      %v5054 = vmul.f32 %v5022, %v849
      %v5055 = vmul.f32 %v5023, %v850
      %v5056 = vmul.f32 %v5024, %v851
      %v5057 = vmul.f32 %v5025, %v852
      %v5058 = vmul.f32 %v5026, %v853
      %v5059 = vmul.f32 %v5027, %v854
      %v5060 = vmul.f32 %v5028, %v855
      %v5061 = vmul.f32 %v5029, %v856
      %v5062 = vmul.f32 %v5030, %v857
      %v5063 = vmul.f32 %v5031, %v858
      %v5064 = vmul.f32 %v5032, %v859
      %v5065 = vmul.f32 %v5033, %v860
      %v5066 = vmul.f32 %v5034, %v861
      %v5067 = vmul.f32 %v5035, %v862
      %v5068 = vmul.f32 %v5036, %v863
      %v5069 = vmul.f32 %v5037, %v864
      %v5070 = vmul.f32 %v5038, %v865
      %v5071 = vmul.f32 %v5039, %v866
      %v5072 = vmul.f32 %v5040, %v867
      %v5073 = vmul.f32 %v5041, %v868
      %v5074 = vmul.f32 %v5042, %v869
      %v5075 = vmul.f32 %v5043, %v870
      %v5076 = vmul.f32 %v5044, %v871
      %v5077 = vmul.f32 %v5045, %v872
      %v5078 = vmul.f32 %v5046, %v873
      %v5079 = vmul.f32 %v5047, %v874
      %v5080 = vmul.f32 %v5048, %v875
      %v5081 = vmul.f32 %v5049, %v876
      %v5082 = vmul.f32 %v5050, %v877
      %v5083 = vmul.f32 %v5051, %v878
      %v5084 = vmul.f32 %v5052, %v879
      %v5085 = vmul.f32 %v5053, %v880
      %v5086 = vld [vmem:[#allocation2 + $0x8] sm:$0xff]
      %v5087 = vld [vmem:[#allocation2 + $0x10] sm:$0xff]
      %v5088 = vld [vmem:[#allocation2 + $0x18] sm:$0xff]
      %v5089 = vld [vmem:[#allocation2 + $0x20] sm:$0xff]
      %v5090 = vld [vmem:[#allocation2 + $0x28] sm:$0xff]
      %v5091 = vld [vmem:[#allocation2 + $0x30] sm:$0xff]
      %v5092 = vld [vmem:[#allocation2 + $0x38] sm:$0xff]
      %v5093 = vld [vmem:[#allocation2 + $0x40] sm:$0xff]
      %v5094 = vld [vmem:[#allocation2 + $0x48] sm:$0xff]
      %v5095 = vld [vmem:[#allocation2 + $0x50] sm:$0xff]
      %v5096 = vld [vmem:[#allocation2 + $0x58] sm:$0xff]
      %v5097 = vld [vmem:[#allocation2 + $0x60] sm:$0xff]
      %v5098 = vld [vmem:[#allocation2 + $0x68] sm:$0xff]
      %v5099 = vld [vmem:[#allocation2 + $0x70] sm:$0xff]
      %v5100 = vld [vmem:[#allocation2 + $0x78] sm:$0xff]
      %v5101 = vld [vmem:[#allocation2 + $0x80] sm:$0xff]
      %v5102 = vld [vmem:[#allocation2 + $0x88] sm:$0xff]
      %v5103 = vld [vmem:[#allocation2 + $0x90] sm:$0xff]
      %v5104 = vld [vmem:[#allocation2 + $0x98] sm:$0xff]
      %v5105 = vld [vmem:[#allocation2 + $0xa0] sm:$0xff]
      %v5106 = vld [vmem:[#allocation2 + $0xa8] sm:$0xff]
      %v5107 = vld [vmem:[#allocation2 + $0xb0] sm:$0xff]
      %v5108 = vld [vmem:[#allocation2 + $0xb8] sm:$0xff]
      %v5109 = vld [vmem:[#allocation2 + $0xc0] sm:$0xff]
      %v5110 = vld [vmem:[#allocation2 + $0xc8] sm:$0xff]
      %v5111 = vld [vmem:[#allocation2 + $0xd0] sm:$0xff]
      %v5112 = vld [vmem:[#allocation2 + $0xd8] sm:$0xff]
      %v5113 = vld [vmem:[#allocation2 + $0xe0] sm:$0xff]
      %v5114 = vld [vmem:[#allocation2 + $0xe8] sm:$0xff]
      %v5115 = vld [vmem:[#allocation2 + $0xf0] sm:$0xff]
      %v5116 = vld [vmem:[#allocation2 + $0xf8] sm:$0xff]
      %v5117 = vld [vmem:[#allocation2 + $0x100] sm:$0xff]
      %v5118 = vld [vmem:[#allocation2 + $0x9] sm:$0xff]
      %v5119 = vld [vmem:[#allocation2 + $0x11] sm:$0xff]
      %v5120 = vld [vmem:[#allocation2 + $0x19] sm:$0xff]
      %v5121 = vld [vmem:[#allocation2 + $0x21] sm:$0xff]
      %v5122 = vld [vmem:[#allocation2 + $0x29] sm:$0xff]
      %v5123 = vld [vmem:[#allocation2 + $0x31] sm:$0xff]
      %v5124 = vld [vmem:[#allocation2 + $0x39] sm:$0xff]
      %v5125 = vld [vmem:[#allocation2 + $0x41] sm:$0xff]
      %v5126 = vld [vmem:[#allocation2 + $0x49] sm:$0xff]
      %v5127 = vld [vmem:[#allocation2 + $0x51] sm:$0xff]
      %v5128 = vld [vmem:[#allocation2 + $0x59] sm:$0xff]
      %v5129 = vld [vmem:[#allocation2 + $0x61] sm:$0xff]
      %v5130 = vld [vmem:[#allocation2 + $0x69] sm:$0xff]
      %v5131 = vld [vmem:[#allocation2 + $0x71] sm:$0xff]
      %v5132 = vld [vmem:[#allocation2 + $0x79] sm:$0xff]
      %v5133 = vld [vmem:[#allocation2 + $0x81] sm:$0xff]
      %v5134 = vld [vmem:[#allocation2 + $0x89] sm:$0xff]
      %v5135 = vld [vmem:[#allocation2 + $0x91] sm:$0xff]
      %v5136 = vld [vmem:[#allocation2 + $0x99] sm:$0xff]
      %v5137 = vld [vmem:[#allocation2 + $0xa1] sm:$0xff]
      %v5138 = vld [vmem:[#allocation2 + $0xa9] sm:$0xff]
      %v5139 = vld [vmem:[#allocation2 + $0xb1] sm:$0xff]
      %v5140 = vld [vmem:[#allocation2 + $0xb9] sm:$0xff]
      %v5141 = vld [vmem:[#allocation2 + $0xc1] sm:$0xff]
      %v5142 = vld [vmem:[#allocation2 + $0xc9] sm:$0xff]
      %v5143 = vld [vmem:[#allocation2 + $0xd1] sm:$0xff]
      %v5144 = vld [vmem:[#allocation2 + $0xd9] sm:$0xff]
      %v5145 = vld [vmem:[#allocation2 + $0xe1] sm:$0xff]
      %v5146 = vld [vmem:[#allocation2 + $0xe9] sm:$0xff]
      %v5147 = vld [vmem:[#allocation2 + $0xf1] sm:$0xff]
      %v5148 = vld [vmem:[#allocation2 + $0xf9] sm:$0xff]
      %v5149 = vld [vmem:[#allocation2 + $0x101] sm:$0xff]
      %v5150 = vmul.f32 %v5118, %v945
      %v5151 = vmul.f32 %v5119, %v946
      %v5152 = vmul.f32 %v5120, %v947
      %v5153 = vmul.f32 %v5121, %v948
      %v5154 = vmul.f32 %v5122, %v949
      %v5155 = vmul.f32 %v5123, %v950
      %v5156 = vmul.f32 %v5124, %v951
      %v5157 = vmul.f32 %v5125, %v952
      %v5158 = vmul.f32 %v5126, %v953
      %v5159 = vmul.f32 %v5127, %v954
      %v5160 = vmul.f32 %v5128, %v955
      %v5161 = vmul.f32 %v5129, %v956
      %v5162 = vmul.f32 %v5130, %v957
      %v5163 = vmul.f32 %v5131, %v958
      %v5164 = vmul.f32 %v5132, %v959
      %v5165 = vmul.f32 %v5133, %v960
      %v5166 = vmul.f32 %v5134, %v961
      %v5167 = vmul.f32 %v5135, %v962
      %v5168 = vmul.f32 %v5136, %v963
      %v5169 = vmul.f32 %v5137, %v964
      %v5170 = vmul.f32 %v5138, %v965
      %v5171 = vmul.f32 %v5139, %v966
      %v5172 = vmul.f32 %v5140, %v967
      %v5173 = vmul.f32 %v5141, %v968
      %v5174 = vmul.f32 %v5142, %v969
      %v5175 = vmul.f32 %v5143, %v970
      %v5176 = vmul.f32 %v5144, %v971
      %v5177 = vmul.f32 %v5145, %v972
      %v5178 = vmul.f32 %v5146, %v973
      %v5179 = vmul.f32 %v5147, %v974
      %v5180 = vmul.f32 %v5148, %v975
      %v5181 = vmul.f32 %v5149, %v976
      %v5182 = vld [vmem:[#allocation2 + $0x107] sm:$0xff]
      %v5183 = vld [vmem:[#allocation2 + $0x10f] sm:$0xff]
      %v5184 = vmul.f32 %v5024, %v849
      %v5185 = vmul.f32 %v5025, %v850
      %v5186 = vmul.f32 %v5026, %v851
      %v5187 = vmul.f32 %v5027, %v852
      %v5188 = vmul.f32 %v5028, %v853
      %v5189 = vmul.f32 %v5029, %v854
      %v5190 = vmul.f32 %v5030, %v855
      %v5191 = vmul.f32 %v5031, %v856
      %v5192 = vmul.f32 %v5032, %v857
      %v5193 = vmul.f32 %v5033, %v858
      %v5194 = vmul.f32 %v5034, %v859
      %v5195 = vmul.f32 %v5035, %v860
      %v5196 = vmul.f32 %v5036, %v861
      %v5197 = vmul.f32 %v5037, %v862
      %v5198 = vmul.f32 %v5038, %v863
      %v5199 = vmul.f32 %v5039, %v864
      %v5200 = vmul.f32 %v5040, %v865
      %v5201 = vmul.f32 %v5041, %v866
      %v5202 = vmul.f32 %v5042, %v867
      %v5203 = vmul.f32 %v5043, %v868
      %v5204 = vmul.f32 %v5044, %v869
      %v5205 = vmul.f32 %v5045, %v870
      %v5206 = vmul.f32 %v5046, %v871
      %v5207 = vmul.f32 %v5047, %v872
      %v5208 = vmul.f32 %v5048, %v873
      %v5209 = vmul.f32 %v5049, %v874
      %v5210 = vmul.f32 %v5050, %v875
      %v5211 = vmul.f32 %v5051, %v876
      %v5212 = vmul.f32 %v5052, %v877
      %v5213 = vmul.f32 %v5053, %v878
      %v5214 = vmul.f32 %v5182, %v879
      %v5215 = vmul.f32 %v5183, %v880
      %v5216 = vld [vmem:[#allocation2 + $0x108] sm:$0xff]
      %v5217 = vld [vmem:[#allocation2 + $0x110] sm:$0xff]
      %v5218 = vld [vmem:[#allocation2 + $0x109] sm:$0xff]
      %v5219 = vld [vmem:[#allocation2 + $0x111] sm:$0xff]
      %v5220 = vmul.f32 %v5120, %v945
      %v5221 = vmul.f32 %v5121, %v946
      %v5222 = vmul.f32 %v5122, %v947
      %v5223 = vmul.f32 %v5123, %v948
      %v5224 = vmul.f32 %v5124, %v949
      %v5225 = vmul.f32 %v5125, %v950
      %v5226 = vmul.f32 %v5126, %v951
      %v5227 = vmul.f32 %v5127, %v952
      %v5228 = vmul.f32 %v5128, %v953
      %v5229 = vmul.f32 %v5129, %v954
      %v5230 = vmul.f32 %v5130, %v955
      %v5231 = vmul.f32 %v5131, %v956
      %v5232 = vmul.f32 %v5132, %v957
      %v5233 = vmul.f32 %v5133, %v958
      %v5234 = vmul.f32 %v5134, %v959
      %v5235 = vmul.f32 %v5135, %v960
      %v5236 = vmul.f32 %v5136, %v961
      %v5237 = vmul.f32 %v5137, %v962
      %v5238 = vmul.f32 %v5138, %v963
      %v5239 = vmul.f32 %v5139, %v964
      %v5240 = vmul.f32 %v5140, %v965
      %v5241 = vmul.f32 %v5141, %v966
      %v5242 = vmul.f32 %v5142, %v967
      %v5243 = vmul.f32 %v5143, %v968
      %v5244 = vmul.f32 %v5144, %v969
      %v5245 = vmul.f32 %v5145, %v970
      %v5246 = vmul.f32 %v5146, %v971
      %v5247 = vmul.f32 %v5147, %v972
      %v5248 = vmul.f32 %v5148, %v973
      %v5249 = vmul.f32 %v5149, %v974
      %v5250 = vmul.f32 %v5218, %v975
      %v5251 = vmul.f32 %v5219, %v976
      %v5252 = vld [vmem:[#allocation2 + $0x117] sm:$0xff]
      %v5253 = vld [vmem:[#allocation2 + $0x11f] sm:$0xff]
      %v5254 = vmul.f32 %v5026, %v849
      %v5255 = vmul.f32 %v5027, %v850
      %v5256 = vmul.f32 %v5028, %v851
      %v5257 = vmul.f32 %v5029, %v852
      %v5258 = vmul.f32 %v5030, %v853
      %v5259 = vmul.f32 %v5031, %v854
      %v5260 = vmul.f32 %v5032, %v855
      %v5261 = vmul.f32 %v5033, %v856
      %v5262 = vmul.f32 %v5034, %v857
      %v5263 = vmul.f32 %v5035, %v858
      %v5264 = vmul.f32 %v5036, %v859
      %v5265 = vmul.f32 %v5037, %v860
      %v5266 = vmul.f32 %v5038, %v861
      %v5267 = vmul.f32 %v5039, %v862
      %v5268 = vmul.f32 %v5040, %v863
      %v5269 = vmul.f32 %v5041, %v864
      %v5270 = vmul.f32 %v5042, %v865
      %v5271 = vmul.f32 %v5043, %v866
      %v5272 = vmul.f32 %v5044, %v867
      %v5273 = vmul.f32 %v5045, %v868
      %v5274 = vmul.f32 %v5046, %v869
      %v5275 = vmul.f32 %v5047, %v870
      %v5276 = vmul.f32 %v5048, %v871
      %v5277 = vmul.f32 %v5049, %v872
      %v5278 = vmul.f32 %v5050, %v873
      %v5279 = vmul.f32 %v5051, %v874
      %v5280 = vmul.f32 %v5052, %v875
      %v5281 = vmul.f32 %v5053, %v876
      %v5282 = vmul.f32 %v5182, %v877
      %v5283 = vmul.f32 %v5183, %v878
      %v5284 = vmul.f32 %v5252, %v879
      %v5285 = vmul.f32 %v5253, %v880
      %v5286 = vld [vmem:[#allocation2 + $0x118] sm:$0xff]
      %v5287 = vld [vmem:[#allocation2 + $0x120] sm:$0xff]
      %v5288 = vld [vmem:[#allocation2 + $0x119] sm:$0xff]
      %v5289 = vld [vmem:[#allocation2 + $0x121] sm:$0xff]
      %v5290 = vmul.f32 %v5122, %v945
      %v5291 = vmul.f32 %v5123, %v946
      %v5292 = vmul.f32 %v5124, %v947
      %v5293 = vmul.f32 %v5125, %v948
      %v5294 = vmul.f32 %v5126, %v949
      %v5295 = vmul.f32 %v5127, %v950
      %v5296 = vmul.f32 %v5128, %v951
      %v5297 = vmul.f32 %v5129, %v952
      %v5298 = vmul.f32 %v5130, %v953
      %v5299 = vmul.f32 %v5131, %v954
      %v5300 = vmul.f32 %v5132, %v955
      %v5301 = vmul.f32 %v5133, %v956
      %v5302 = vmul.f32 %v5134, %v957
      %v5303 = vmul.f32 %v5135, %v958
      %v5304 = vmul.f32 %v5136, %v959
      %v5305 = vmul.f32 %v5137, %v960
      %v5306 = vmul.f32 %v5138, %v961
      %v5307 = vmul.f32 %v5139, %v962
      %v5308 = vmul.f32 %v5140, %v963
      %v5309 = vmul.f32 %v5141, %v964
      %v5310 = vmul.f32 %v5142, %v965
      %v5311 = vmul.f32 %v5143, %v966
      %v5312 = vmul.f32 %v5144, %v967
      %v5313 = vmul.f32 %v5145, %v968
      %v5314 = vmul.f32 %v5146, %v969
      %v5315 = vmul.f32 %v5147, %v970
      %v5316 = vmul.f32 %v5148, %v971
      %v5317 = vmul.f32 %v5149, %v972
      %v5318 = vmul.f32 %v5218, %v973
      %v5319 = vmul.f32 %v5219, %v974
      %v5320 = vmul.f32 %v5288, %v975
      %v5321 = vmul.f32 %v5289, %v976
      %5354 = vrot.lane.b32.xlu0 %v5086, 16
      %v5355 = vpop.permute.xlu0 %5354
      %5356 = vrot.lane.b32.xlu0 %v5087, 16
      %v5357 = vpop.permute.xlu0 %5356
      %5358 = vrot.lane.b32.xlu0 %v5088, 16
      %v5359 = vpop.permute.xlu0 %5358
      %5360 = vrot.lane.b32.xlu0 %v5089, 16
      %v5361 = vpop.permute.xlu0 %5360
      %5362 = vrot.lane.b32.xlu0 %v5090, 16
      %v5363 = vpop.permute.xlu0 %5362
      %5364 = vrot.lane.b32.xlu0 %v5091, 16
      %v5365 = vpop.permute.xlu0 %5364
      %5366 = vrot.lane.b32.xlu0 %v5092, 16
      %v5367 = vpop.permute.xlu0 %5366
      %5368 = vrot.lane.b32.xlu0 %v5093, 16
      %v5369 = vpop.permute.xlu0 %5368
      %5370 = vrot.lane.b32.xlu0 %v5094, 16
      %v5371 = vpop.permute.xlu0 %5370
      %5372 = vrot.lane.b32.xlu0 %v5095, 16
      %v5373 = vpop.permute.xlu0 %5372
      %5374 = vrot.lane.b32.xlu0 %v5096, 16
      %v5375 = vpop.permute.xlu0 %5374
      %5376 = vrot.lane.b32.xlu0 %v5097, 16
      %v5377 = vpop.permute.xlu0 %5376
      %5378 = vrot.lane.b32.xlu0 %v5098, 16
      %v5379 = vpop.permute.xlu0 %5378
      %5380 = vrot.lane.b32.xlu0 %v5099, 16
      %v5381 = vpop.permute.xlu0 %5380
      %5382 = vrot.lane.b32.xlu0 %v5100, 16
      %v5383 = vpop.permute.xlu0 %5382
      %5384 = vrot.lane.b32.xlu0 %v5101, 16
      %v5385 = vpop.permute.xlu0 %5384
      %5386 = vrot.lane.b32.xlu0 %v5102, 16
      %v5387 = vpop.permute.xlu0 %5386
      %5388 = vrot.lane.b32.xlu0 %v5103, 16
      %v5389 = vpop.permute.xlu0 %5388
      %5390 = vrot.lane.b32.xlu0 %v5104, 16
      %v5391 = vpop.permute.xlu0 %5390
      %5392 = vrot.lane.b32.xlu0 %v5105, 16
      %v5393 = vpop.permute.xlu0 %5392
      %5394 = vrot.lane.b32.xlu0 %v5106, 16
      %v5395 = vpop.permute.xlu0 %5394
      %5396 = vrot.lane.b32.xlu0 %v5107, 16
      %v5397 = vpop.permute.xlu0 %5396
      %5398 = vrot.lane.b32.xlu0 %v5108, 16
      %v5399 = vpop.permute.xlu0 %5398
      %5400 = vrot.lane.b32.xlu0 %v5109, 16
      %v5401 = vpop.permute.xlu0 %5400
      %5402 = vrot.lane.b32.xlu0 %v5110, 16
      %v5403 = vpop.permute.xlu0 %5402
      %5404 = vrot.lane.b32.xlu0 %v5111, 16
      %v5405 = vpop.permute.xlu0 %5404
      %5406 = vrot.lane.b32.xlu0 %v5112, 16
      %v5407 = vpop.permute.xlu0 %5406
      %5408 = vrot.lane.b32.xlu0 %v5113, 16
      %v5409 = vpop.permute.xlu0 %5408
      %5410 = vrot.lane.b32.xlu0 %v5114, 16
      %v5411 = vpop.permute.xlu0 %5410
      %5412 = vrot.lane.b32.xlu0 %v5115, 16
      %v5413 = vpop.permute.xlu0 %5412
      %5414 = vrot.lane.b32.xlu0 %v5116, 16
      %v5415 = vpop.permute.xlu0 %5414
      %5416 = vrot.lane.b32.xlu0 %v5117, 16
      %v5417 = vpop.permute.xlu0 %5416
      %5482 = vrot.lane.b32.xlu0 %v5150, 32
      %v5483 = vpop.permute.xlu0 %5482
      %5484 = vrot.lane.b32.xlu0 %v5151, 32
      %v5485 = vpop.permute.xlu0 %5484
      %5486 = vrot.lane.b32.xlu0 %v5152, 32
      %v5487 = vpop.permute.xlu0 %5486
      %5488 = vrot.lane.b32.xlu0 %v5153, 32
      %v5489 = vpop.permute.xlu0 %5488
      %5490 = vrot.lane.b32.xlu0 %v5154, 32
      %v5491 = vpop.permute.xlu0 %5490
      %5492 = vrot.lane.b32.xlu0 %v5155, 32
      %v5493 = vpop.permute.xlu0 %5492
      %5494 = vrot.lane.b32.xlu0 %v5156, 32
      %v5495 = vpop.permute.xlu0 %5494
      %5496 = vrot.lane.b32.xlu0 %v5157, 32
      %v5497 = vpop.permute.xlu0 %5496
      %5498 = vrot.lane.b32.xlu0 %v5158, 32
      %v5499 = vpop.permute.xlu0 %5498
      %5500 = vrot.lane.b32.xlu0 %v5159, 32
      %v5501 = vpop.permute.xlu0 %5500
      %5502 = vrot.lane.b32.xlu0 %v5160, 32
      %v5503 = vpop.permute.xlu0 %5502
      %5504 = vrot.lane.b32.xlu0 %v5161, 32
      %v5505 = vpop.permute.xlu0 %5504
      %5506 = vrot.lane.b32.xlu0 %v5162, 32
      %v5507 = vpop.permute.xlu0 %5506
      %5508 = vrot.lane.b32.xlu0 %v5163, 32
      %v5509 = vpop.permute.xlu0 %5508
      %5510 = vrot.lane.b32.xlu0 %v5164, 32
      %v5511 = vpop.permute.xlu0 %5510
      %5512 = vrot.lane.b32.xlu0 %v5165, 32
      %v5513 = vpop.permute.xlu0 %5512
      %5514 = vrot.lane.b32.xlu0 %v5166, 32
      %v5515 = vpop.permute.xlu0 %5514
      %5516 = vrot.lane.b32.xlu0 %v5167, 32
      %v5517 = vpop.permute.xlu0 %5516
      %5518 = vrot.lane.b32.xlu0 %v5168, 32
      %v5519 = vpop.permute.xlu0 %5518
      %5520 = vrot.lane.b32.xlu0 %v5169, 32
      %v5521 = vpop.permute.xlu0 %5520
      %5522 = vrot.lane.b32.xlu0 %v5170, 32
      %v5523 = vpop.permute.xlu0 %5522
      %5524 = vrot.lane.b32.xlu0 %v5171, 32
      %v5525 = vpop.permute.xlu0 %5524
      %5526 = vrot.lane.b32.xlu0 %v5172, 32
      %v5527 = vpop.permute.xlu0 %5526
      %5528 = vrot.lane.b32.xlu0 %v5173, 32
      %v5529 = vpop.permute.xlu0 %5528
      %5530 = vrot.lane.b32.xlu0 %v5174, 32
      %v5531 = vpop.permute.xlu0 %5530
      %5532 = vrot.lane.b32.xlu0 %v5175, 32
      %v5533 = vpop.permute.xlu0 %5532
      %5534 = vrot.lane.b32.xlu0 %v5176, 32
      %v5535 = vpop.permute.xlu0 %5534
      %5536 = vrot.lane.b32.xlu0 %v5177, 32
      %v5537 = vpop.permute.xlu0 %5536
      %5538 = vrot.lane.b32.xlu0 %v5178, 32
      %v5539 = vpop.permute.xlu0 %5538
      %5540 = vrot.lane.b32.xlu0 %v5179, 32
      %v5541 = vpop.permute.xlu0 %5540
      %5542 = vrot.lane.b32.xlu0 %v5180, 32
      %v5543 = vpop.permute.xlu0 %5542
      %5544 = vrot.lane.b32.xlu0 %v5181, 32
      %v5545 = vpop.permute.xlu0 %5544
      %5610 = vrot.lane.b32.xlu0 %v5184, 48
      %v5611 = vpop.permute.xlu0 %5610
      %5612 = vrot.lane.b32.xlu0 %v5185, 48
      %v5613 = vpop.permute.xlu0 %5612
      %5614 = vrot.lane.b32.xlu0 %v5186, 48
      %v5615 = vpop.permute.xlu0 %5614
      %5616 = vrot.lane.b32.xlu0 %v5187, 48
      %v5617 = vpop.permute.xlu0 %5616
      %5618 = vrot.lane.b32.xlu0 %v5188, 48
      %v5619 = vpop.permute.xlu0 %5618
      %5620 = vrot.lane.b32.xlu0 %v5189, 48
      %v5621 = vpop.permute.xlu0 %5620
      %5622 = vrot.lane.b32.xlu0 %v5190, 48
      %v5623 = vpop.permute.xlu0 %5622
      %5624 = vrot.lane.b32.xlu0 %v5191, 48
      %v5625 = vpop.permute.xlu0 %5624
      %5626 = vrot.lane.b32.xlu0 %v5192, 48
      %v5627 = vpop.permute.xlu0 %5626
      %5628 = vrot.lane.b32.xlu0 %v5193, 48
      %v5629 = vpop.permute.xlu0 %5628
      %5630 = vrot.lane.b32.xlu0 %v5194, 48
      %v5631 = vpop.permute.xlu0 %5630
      %5632 = vrot.lane.b32.xlu0 %v5195, 48
      %v5633 = vpop.permute.xlu0 %5632
      %5634 = vrot.lane.b32.xlu0 %v5196, 48
      %v5635 = vpop.permute.xlu0 %5634
      %5636 = vrot.lane.b32.xlu0 %v5197, 48
      %v5637 = vpop.permute.xlu0 %5636
      %5638 = vrot.lane.b32.xlu0 %v5198, 48
      %v5639 = vpop.permute.xlu0 %5638
      %5640 = vrot.lane.b32.xlu0 %v5199, 48
      %v5641 = vpop.permute.xlu0 %5640
      %5642 = vrot.lane.b32.xlu0 %v5200, 48
      %v5643 = vpop.permute.xlu0 %5642
      %5644 = vrot.lane.b32.xlu0 %v5201, 48
      %v5645 = vpop.permute.xlu0 %5644
      %5646 = vrot.lane.b32.xlu0 %v5202, 48
      %v5647 = vpop.permute.xlu0 %5646
      %5648 = vrot.lane.b32.xlu0 %v5203, 48
      %v5649 = vpop.permute.xlu0 %5648
      %5650 = vrot.lane.b32.xlu0 %v5204, 48
      %v5651 = vpop.permute.xlu0 %5650
      %5652 = vrot.lane.b32.xlu0 %v5205, 48
      %v5653 = vpop.permute.xlu0 %5652
      %5654 = vrot.lane.b32.xlu0 %v5206, 48
      %v5655 = vpop.permute.xlu0 %5654
      %5656 = vrot.lane.b32.xlu0 %v5207, 48
      %v5657 = vpop.permute.xlu0 %5656
      %5658 = vrot.lane.b32.xlu0 %v5208, 48
      %v5659 = vpop.permute.xlu0 %5658
      %5660 = vrot.lane.b32.xlu0 %v5209, 48
      %v5661 = vpop.permute.xlu0 %5660
      %5662 = vrot.lane.b32.xlu0 %v5210, 48
      %v5663 = vpop.permute.xlu0 %5662
      %5664 = vrot.lane.b32.xlu0 %v5211, 48
      %v5665 = vpop.permute.xlu0 %5664
      %5666 = vrot.lane.b32.xlu0 %v5212, 48
      %v5667 = vpop.permute.xlu0 %5666
      %5668 = vrot.lane.b32.xlu0 %v5213, 48
      %v5669 = vpop.permute.xlu0 %5668
      %5670 = vrot.lane.b32.xlu0 %v5214, 48
      %v5671 = vpop.permute.xlu0 %5670
      %5672 = vrot.lane.b32.xlu0 %v5215, 48
      %v5673 = vpop.permute.xlu0 %5672
      %5708 = vrot.lane.b32.xlu0 %v5088, 64
      %v5709 = vpop.permute.xlu0 %5708
      %5710 = vrot.lane.b32.xlu0 %v5089, 64
      %v5711 = vpop.permute.xlu0 %5710
      %5712 = vrot.lane.b32.xlu0 %v5090, 64
      %v5713 = vpop.permute.xlu0 %5712
      %5714 = vrot.lane.b32.xlu0 %v5091, 64
      %v5715 = vpop.permute.xlu0 %5714
      %5716 = vrot.lane.b32.xlu0 %v5092, 64
      %v5717 = vpop.permute.xlu0 %5716
      %5718 = vrot.lane.b32.xlu0 %v5093, 64
      %v5719 = vpop.permute.xlu0 %5718
      %5720 = vrot.lane.b32.xlu0 %v5094, 64
      %v5721 = vpop.permute.xlu0 %5720
      %5722 = vrot.lane.b32.xlu0 %v5095, 64
      %v5723 = vpop.permute.xlu0 %5722
      %5724 = vrot.lane.b32.xlu0 %v5096, 64
      %v5725 = vpop.permute.xlu0 %5724
      %5726 = vrot.lane.b32.xlu0 %v5097, 64
      %v5727 = vpop.permute.xlu0 %5726
      %5728 = vrot.lane.b32.xlu0 %v5098, 64
      %v5729 = vpop.permute.xlu0 %5728
      %5730 = vrot.lane.b32.xlu0 %v5099, 64
      %v5731 = vpop.permute.xlu0 %5730
      %5732 = vrot.lane.b32.xlu0 %v5100, 64
      %v5733 = vpop.permute.xlu0 %5732
      %5734 = vrot.lane.b32.xlu0 %v5101, 64
      %v5735 = vpop.permute.xlu0 %5734
      %5736 = vrot.lane.b32.xlu0 %v5102, 64
      %v5737 = vpop.permute.xlu0 %5736
      %5738 = vrot.lane.b32.xlu0 %v5103, 64
      %v5739 = vpop.permute.xlu0 %5738
      %5740 = vrot.lane.b32.xlu0 %v5104, 64
      %v5741 = vpop.permute.xlu0 %5740
      %5742 = vrot.lane.b32.xlu0 %v5105, 64
      %v5743 = vpop.permute.xlu0 %5742
      %5744 = vrot.lane.b32.xlu0 %v5106, 64
      %v5745 = vpop.permute.xlu0 %5744
      %5746 = vrot.lane.b32.xlu0 %v5107, 64
      %v5747 = vpop.permute.xlu0 %5746
      %5748 = vrot.lane.b32.xlu0 %v5108, 64
      %v5749 = vpop.permute.xlu0 %5748
      %5750 = vrot.lane.b32.xlu0 %v5109, 64
      %v5751 = vpop.permute.xlu0 %5750
      %5752 = vrot.lane.b32.xlu0 %v5110, 64
      %v5753 = vpop.permute.xlu0 %5752
      %5754 = vrot.lane.b32.xlu0 %v5111, 64
      %v5755 = vpop.permute.xlu0 %5754
      %5756 = vrot.lane.b32.xlu0 %v5112, 64
      %v5757 = vpop.permute.xlu0 %5756
      %5758 = vrot.lane.b32.xlu0 %v5113, 64
      %v5759 = vpop.permute.xlu0 %5758
      %5760 = vrot.lane.b32.xlu0 %v5114, 64
      %v5761 = vpop.permute.xlu0 %5760
      %5762 = vrot.lane.b32.xlu0 %v5115, 64
      %v5763 = vpop.permute.xlu0 %5762
      %5764 = vrot.lane.b32.xlu0 %v5116, 64
      %v5765 = vpop.permute.xlu0 %5764
      %5766 = vrot.lane.b32.xlu0 %v5117, 64
      %v5767 = vpop.permute.xlu0 %5766
      %5768 = vrot.lane.b32.xlu0 %v5216, 64
      %v5769 = vpop.permute.xlu0 %5768
      %5770 = vrot.lane.b32.xlu0 %v5217, 64
      %v5771 = vpop.permute.xlu0 %5770
      %5836 = vrot.lane.b32.xlu0 %v5220, 80
      %v5837 = vpop.permute.xlu0 %5836
      %5838 = vrot.lane.b32.xlu0 %v5221, 80
      %v5839 = vpop.permute.xlu0 %5838
      %5840 = vrot.lane.b32.xlu0 %v5222, 80
      %v5841 = vpop.permute.xlu0 %5840
      %5842 = vrot.lane.b32.xlu0 %v5223, 80
      %v5843 = vpop.permute.xlu0 %5842
      %5844 = vrot.lane.b32.xlu0 %v5224, 80
      %v5845 = vpop.permute.xlu0 %5844
      %5846 = vrot.lane.b32.xlu0 %v5225, 80
      %v5847 = vpop.permute.xlu0 %5846
      %5848 = vrot.lane.b32.xlu0 %v5226, 80
      %v5849 = vpop.permute.xlu0 %5848
      %5850 = vrot.lane.b32.xlu0 %v5227, 80
      %v5851 = vpop.permute.xlu0 %5850
      %5852 = vrot.lane.b32.xlu0 %v5228, 80
      %v5853 = vpop.permute.xlu0 %5852
      %5854 = vrot.lane.b32.xlu0 %v5229, 80
      %v5855 = vpop.permute.xlu0 %5854
      %5856 = vrot.lane.b32.xlu0 %v5230, 80
      %v5857 = vpop.permute.xlu0 %5856
      %5858 = vrot.lane.b32.xlu0 %v5231, 80
      %v5859 = vpop.permute.xlu0 %5858
      %5860 = vrot.lane.b32.xlu0 %v5232, 80
      %v5861 = vpop.permute.xlu0 %5860
      %5862 = vrot.lane.b32.xlu0 %v5233, 80
      %v5863 = vpop.permute.xlu0 %5862
      %5864 = vrot.lane.b32.xlu0 %v5234, 80
      %v5865 = vpop.permute.xlu0 %5864
      %5866 = vrot.lane.b32.xlu0 %v5235, 80
      %v5867 = vpop.permute.xlu0 %5866
      %5868 = vrot.lane.b32.xlu0 %v5236, 80
      %v5869 = vpop.permute.xlu0 %5868
      %5870 = vrot.lane.b32.xlu0 %v5237, 80
      %v5871 = vpop.permute.xlu0 %5870
      %5872 = vrot.lane.b32.xlu0 %v5238, 80
      %v5873 = vpop.permute.xlu0 %5872
      %5874 = vrot.lane.b32.xlu0 %v5239, 80
      %v5875 = vpop.permute.xlu0 %5874
      %5876 = vrot.lane.b32.xlu0 %v5240, 80
      %v5877 = vpop.permute.xlu0 %5876
      %5878 = vrot.lane.b32.xlu0 %v5241, 80
      %v5879 = vpop.permute.xlu0 %5878
      %5880 = vrot.lane.b32.xlu0 %v5242, 80
      %v5881 = vpop.permute.xlu0 %5880
      %5882 = vrot.lane.b32.xlu0 %v5243, 80
      %v5883 = vpop.permute.xlu0 %5882
      %5884 = vrot.lane.b32.xlu0 %v5244, 80
      %v5885 = vpop.permute.xlu0 %5884
      %5886 = vrot.lane.b32.xlu0 %v5245, 80
      %v5887 = vpop.permute.xlu0 %5886
      %5888 = vrot.lane.b32.xlu0 %v5246, 80
      %v5889 = vpop.permute.xlu0 %5888
      %5890 = vrot.lane.b32.xlu0 %v5247, 80
      %v5891 = vpop.permute.xlu0 %5890
      %5892 = vrot.lane.b32.xlu0 %v5248, 80
      %v5893 = vpop.permute.xlu0 %5892
      %5894 = vrot.lane.b32.xlu0 %v5249, 80
      %v5895 = vpop.permute.xlu0 %5894
      %5896 = vrot.lane.b32.xlu0 %v5250, 80
      %v5897 = vpop.permute.xlu0 %5896
      %5898 = vrot.lane.b32.xlu0 %v5251, 80
      %v5899 = vpop.permute.xlu0 %5898
      %5964 = vrot.lane.b32.xlu0 %v5254, 96
      %v5965 = vpop.permute.xlu0 %5964
      %5966 = vrot.lane.b32.xlu0 %v5255, 96
      %v5967 = vpop.permute.xlu0 %5966
      %5968 = vrot.lane.b32.xlu0 %v5256, 96
      %v5969 = vpop.permute.xlu0 %5968
      %5970 = vrot.lane.b32.xlu0 %v5257, 96
      %v5971 = vpop.permute.xlu0 %5970
      %5972 = vrot.lane.b32.xlu0 %v5258, 96
      %v5973 = vpop.permute.xlu0 %5972
      %5974 = vrot.lane.b32.xlu0 %v5259, 96
      %v5975 = vpop.permute.xlu0 %5974
      %5976 = vrot.lane.b32.xlu0 %v5260, 96
      %v5977 = vpop.permute.xlu0 %5976
      %5978 = vrot.lane.b32.xlu0 %v5261, 96
      %v5979 = vpop.permute.xlu0 %5978
      %5980 = vrot.lane.b32.xlu0 %v5262, 96
      %v5981 = vpop.permute.xlu0 %5980
      %5982 = vrot.lane.b32.xlu0 %v5263, 96
      %v5983 = vpop.permute.xlu0 %5982
      %5984 = vrot.lane.b32.xlu0 %v5264, 96
      %v5985 = vpop.permute.xlu0 %5984
      %5986 = vrot.lane.b32.xlu0 %v5265, 96
      %v5987 = vpop.permute.xlu0 %5986
      %5988 = vrot.lane.b32.xlu0 %v5266, 96
      %v5989 = vpop.permute.xlu0 %5988
      %5990 = vrot.lane.b32.xlu0 %v5267, 96
      %v5991 = vpop.permute.xlu0 %5990
      %5992 = vrot.lane.b32.xlu0 %v5268, 96
      %v5993 = vpop.permute.xlu0 %5992
      %5994 = vrot.lane.b32.xlu0 %v5269, 96
      %v5995 = vpop.permute.xlu0 %5994
      %5996 = vrot.lane.b32.xlu0 %v5270, 96
      %v5997 = vpop.permute.xlu0 %5996
      %5998 = vrot.lane.b32.xlu0 %v5271, 96
      %v5999 = vpop.permute.xlu0 %5998
      %6000 = vrot.lane.b32.xlu0 %v5272, 96
      %v6001 = vpop.permute.xlu0 %6000
      %6002 = vrot.lane.b32.xlu0 %v5273, 96
      %v6003 = vpop.permute.xlu0 %6002
      %6004 = vrot.lane.b32.xlu0 %v5274, 96
      %v6005 = vpop.permute.xlu0 %6004
      %6006 = vrot.lane.b32.xlu0 %v5275, 96
      %v6007 = vpop.permute.xlu0 %6006
      %6008 = vrot.lane.b32.xlu0 %v5276, 96
      %v6009 = vpop.permute.xlu0 %6008
      %6010 = vrot.lane.b32.xlu0 %v5277, 96
      %v6011 = vpop.permute.xlu0 %6010
      %6012 = vrot.lane.b32.xlu0 %v5278, 96
      %v6013 = vpop.permute.xlu0 %6012
      %6014 = vrot.lane.b32.xlu0 %v5279, 96
      %v6015 = vpop.permute.xlu0 %6014
      %6016 = vrot.lane.b32.xlu0 %v5280, 96
      %v6017 = vpop.permute.xlu0 %6016
      %6018 = vrot.lane.b32.xlu0 %v5281, 96
      %v6019 = vpop.permute.xlu0 %6018
      %6020 = vrot.lane.b32.xlu0 %v5282, 96
      %v6021 = vpop.permute.xlu0 %6020
      %6022 = vrot.lane.b32.xlu0 %v5283, 96
      %v6023 = vpop.permute.xlu0 %6022
      %6024 = vrot.lane.b32.xlu0 %v5284, 96
      %v6025 = vpop.permute.xlu0 %6024
      %6026 = vrot.lane.b32.xlu0 %v5285, 96
      %v6027 = vpop.permute.xlu0 %6026
      %6062 = vrot.lane.b32.xlu0 %v5090, 112
      %v6063 = vpop.permute.xlu0 %6062
      %6064 = vrot.lane.b32.xlu0 %v5091, 112
      %v6065 = vpop.permute.xlu0 %6064
      %6066 = vrot.lane.b32.xlu0 %v5092, 112
      %v6067 = vpop.permute.xlu0 %6066
      %6068 = vrot.lane.b32.xlu0 %v5093, 112
      %v6069 = vpop.permute.xlu0 %6068
      %6070 = vrot.lane.b32.xlu0 %v5094, 112
      %v6071 = vpop.permute.xlu0 %6070
      %6072 = vrot.lane.b32.xlu0 %v5095, 112
      %v6073 = vpop.permute.xlu0 %6072
      %6074 = vrot.lane.b32.xlu0 %v5096, 112
      %v6075 = vpop.permute.xlu0 %6074
      %6076 = vrot.lane.b32.xlu0 %v5097, 112
      %v6077 = vpop.permute.xlu0 %6076
      %6078 = vrot.lane.b32.xlu0 %v5098, 112
      %v6079 = vpop.permute.xlu0 %6078
      %6080 = vrot.lane.b32.xlu0 %v5099, 112
      %v6081 = vpop.permute.xlu0 %6080
      %6082 = vrot.lane.b32.xlu0 %v5100, 112
      %v6083 = vpop.permute.xlu0 %6082
      %6084 = vrot.lane.b32.xlu0 %v5101, 112
      %v6085 = vpop.permute.xlu0 %6084
      %6086 = vrot.lane.b32.xlu0 %v5102, 112
      %v6087 = vpop.permute.xlu0 %6086
      %6088 = vrot.lane.b32.xlu0 %v5103, 112
      %v6089 = vpop.permute.xlu0 %6088
      %6090 = vrot.lane.b32.xlu0 %v5104, 112
      %v6091 = vpop.permute.xlu0 %6090
      %6092 = vrot.lane.b32.xlu0 %v5105, 112
      %v6093 = vpop.permute.xlu0 %6092
      %6094 = vrot.lane.b32.xlu0 %v5106, 112
      %v6095 = vpop.permute.xlu0 %6094
      %6096 = vrot.lane.b32.xlu0 %v5107, 112
      %v6097 = vpop.permute.xlu0 %6096
      %6098 = vrot.lane.b32.xlu0 %v5108, 112
      %v6099 = vpop.permute.xlu0 %6098
      %6100 = vrot.lane.b32.xlu0 %v5109, 112
      %v6101 = vpop.permute.xlu0 %6100
      %6102 = vrot.lane.b32.xlu0 %v5110, 112
      %v6103 = vpop.permute.xlu0 %6102
      %6104 = vrot.lane.b32.xlu0 %v5111, 112
      %v6105 = vpop.permute.xlu0 %6104
      %6106 = vrot.lane.b32.xlu0 %v5112, 112
      %v6107 = vpop.permute.xlu0 %6106
      %6108 = vrot.lane.b32.xlu0 %v5113, 112
      %v6109 = vpop.permute.xlu0 %6108
      %6110 = vrot.lane.b32.xlu0 %v5114, 112
      %v6111 = vpop.permute.xlu0 %6110
      %6112 = vrot.lane.b32.xlu0 %v5115, 112
      %v6113 = vpop.permute.xlu0 %6112
      %6114 = vrot.lane.b32.xlu0 %v5116, 112
      %v6115 = vpop.permute.xlu0 %6114
      %6116 = vrot.lane.b32.xlu0 %v5117, 112
      %v6117 = vpop.permute.xlu0 %6116
      %6118 = vrot.lane.b32.xlu0 %v5216, 112
      %v6119 = vpop.permute.xlu0 %6118
      %6120 = vrot.lane.b32.xlu0 %v5217, 112
      %v6121 = vpop.permute.xlu0 %6120
      %6122 = vrot.lane.b32.xlu0 %v5286, 112
      %v6123 = vpop.permute.xlu0 %6122
      %6124 = vrot.lane.b32.xlu0 %v5287, 112
      %v6125 = vpop.permute.xlu0 %6124
      %v6158 = vsel %vm361, %v5054, %v5355
      %v6159 = vsel %vm361, %v5055, %v5357
      %v6160 = vsel %vm361, %v5056, %v5359
      %v6161 = vsel %vm361, %v5057, %v5361
      %v6162 = vsel %vm361, %v5058, %v5363
      %v6163 = vsel %vm361, %v5059, %v5365
      %v6164 = vsel %vm361, %v5060, %v5367
      %v6165 = vsel %vm361, %v5061, %v5369
      %v6166 = vsel %vm361, %v5062, %v5371
      %v6167 = vsel %vm361, %v5063, %v5373
      %v6168 = vsel %vm361, %v5064, %v5375
      %v6169 = vsel %vm361, %v5065, %v5377
      %v6170 = vsel %vm361, %v5066, %v5379
      %v6171 = vsel %vm361, %v5067, %v5381
      %v6172 = vsel %vm361, %v5068, %v5383
      %v6173 = vsel %vm361, %v5069, %v5385
      %v6174 = vsel %vm361, %v5070, %v5387
      %v6175 = vsel %vm361, %v5071, %v5389
      %v6176 = vsel %vm361, %v5072, %v5391
      %v6177 = vsel %vm361, %v5073, %v5393
      %v6178 = vsel %vm361, %v5074, %v5395
      %v6179 = vsel %vm361, %v5075, %v5397
      %v6180 = vsel %vm361, %v5076, %v5399
      %v6181 = vsel %vm361, %v5077, %v5401
      %v6182 = vsel %vm361, %v5078, %v5403
      %v6183 = vsel %vm361, %v5079, %v5405
      %v6184 = vsel %vm361, %v5080, %v5407
      %v6185 = vsel %vm361, %v5081, %v5409
      %v6186 = vsel %vm361, %v5082, %v5411
      %v6187 = vsel %vm361, %v5083, %v5413
      %v6188 = vsel %vm361, %v5084, %v5415
      %v6189 = vsel %vm361, %v5085, %v5417
      %v6190 = vsel %vm2535, %v6158, %v5483
      %v6191 = vsel %vm2535, %v6159, %v5485
      %v6192 = vsel %vm2535, %v6160, %v5487
      %v6193 = vsel %vm2535, %v6161, %v5489
      %v6194 = vsel %vm2535, %v6162, %v5491
      %v6195 = vsel %vm2535, %v6163, %v5493
      %v6196 = vsel %vm2535, %v6164, %v5495
      %v6197 = vsel %vm2535, %v6165, %v5497
      %v6198 = vsel %vm2535, %v6166, %v5499
      %v6199 = vsel %vm2535, %v6167, %v5501
      %v6200 = vsel %vm2535, %v6168, %v5503
      %v6201 = vsel %vm2535, %v6169, %v5505
      %v6202 = vsel %vm2535, %v6170, %v5507
      %v6203 = vsel %vm2535, %v6171, %v5509
      %v6204 = vsel %vm2535, %v6172, %v5511
      %v6205 = vsel %vm2535, %v6173, %v5513
      %v6206 = vsel %vm2535, %v6174, %v5515
      %v6207 = vsel %vm2535, %v6175, %v5517
      %v6208 = vsel %vm2535, %v6176, %v5519
      %v6209 = vsel %vm2535, %v6177, %v5521
      %v6210 = vsel %vm2535, %v6178, %v5523
      %v6211 = vsel %vm2535, %v6179, %v5525
      %v6212 = vsel %vm2535, %v6180, %v5527
      %v6213 = vsel %vm2535, %v6181, %v5529
      %v6214 = vsel %vm2535, %v6182, %v5531
      %v6215 = vsel %vm2535, %v6183, %v5533
      %v6216 = vsel %vm2535, %v6184, %v5535
      %v6217 = vsel %vm2535, %v6185, %v5537
      %v6218 = vsel %vm2535, %v6186, %v5539
      %v6219 = vsel %vm2535, %v6187, %v5541
      %v6220 = vsel %vm2535, %v6188, %v5543
      %v6221 = vsel %vm2535, %v6189, %v5545
      %v6222 = vsel %vm4153, %v6190, %v5611
      %v6223 = vsel %vm4153, %v6191, %v5613
      %v6224 = vsel %vm4153, %v6192, %v5615
      %v6225 = vsel %vm4153, %v6193, %v5617
      %v6226 = vsel %vm4153, %v6194, %v5619
      %v6227 = vsel %vm4153, %v6195, %v5621
      %v6228 = vsel %vm4153, %v6196, %v5623
      %v6229 = vsel %vm4153, %v6197, %v5625
      %v6230 = vsel %vm4153, %v6198, %v5627
      %v6231 = vsel %vm4153, %v6199, %v5629
      %v6232 = vsel %vm4153, %v6200, %v5631
      %v6233 = vsel %vm4153, %v6201, %v5633
      %v6234 = vsel %vm4153, %v6202, %v5635
      %v6235 = vsel %vm4153, %v6203, %v5637
      %v6236 = vsel %vm4153, %v6204, %v5639
      %v6237 = vsel %vm4153, %v6205, %v5641
      %v6238 = vsel %vm4153, %v6206, %v5643
      %v6239 = vsel %vm4153, %v6207, %v5645
      %v6240 = vsel %vm4153, %v6208, %v5647
      %v6241 = vsel %vm4153, %v6209, %v5649
      %v6242 = vsel %vm4153, %v6210, %v5651
      %v6243 = vsel %vm4153, %v6211, %v5653
      %v6244 = vsel %vm4153, %v6212, %v5655
      %v6245 = vsel %vm4153, %v6213, %v5657
      %v6246 = vsel %vm4153, %v6214, %v5659
      %v6247 = vsel %vm4153, %v6215, %v5661
      %v6248 = vsel %vm4153, %v6216, %v5663
      %v6249 = vsel %vm4153, %v6217, %v5665
      %v6250 = vsel %vm4153, %v6218, %v5667
      %v6251 = vsel %vm4153, %v6219, %v5669
      %v6252 = vsel %vm4153, %v6220, %v5671
      %v6253 = vsel %vm4153, %v6221, %v5673
      %v6254 = vsel %vm4186, %v6222, %v5709
      %v6255 = vsel %vm4186, %v6223, %v5711
      %v6256 = vsel %vm4186, %v6224, %v5713
      %v6257 = vsel %vm4186, %v6225, %v5715
      %v6258 = vsel %vm4186, %v6226, %v5717
      %v6259 = vsel %vm4186, %v6227, %v5719
      %v6260 = vsel %vm4186, %v6228, %v5721
      %v6261 = vsel %vm4186, %v6229, %v5723
      %v6262 = vsel %vm4186, %v6230, %v5725
      %v6263 = vsel %vm4186, %v6231, %v5727
      %v6264 = vsel %vm4186, %v6232, %v5729
      %v6265 = vsel %vm4186, %v6233, %v5731
      %v6266 = vsel %vm4186, %v6234, %v5733
      %v6267 = vsel %vm4186, %v6235, %v5735
      %v6268 = vsel %vm4186, %v6236, %v5737
      %v6269 = vsel %vm4186, %v6237, %v5739
      %v6270 = vsel %vm4186, %v6238, %v5741
      %v6271 = vsel %vm4186, %v6239, %v5743
      %v6272 = vsel %vm4186, %v6240, %v5745
      %v6273 = vsel %vm4186, %v6241, %v5747
      %v6274 = vsel %vm4186, %v6242, %v5749
      %v6275 = vsel %vm4186, %v6243, %v5751
      %v6276 = vsel %vm4186, %v6244, %v5753
      %v6277 = vsel %vm4186, %v6245, %v5755
      %v6278 = vsel %vm4186, %v6246, %v5757
      %v6279 = vsel %vm4186, %v6247, %v5759
      %v6280 = vsel %vm4186, %v6248, %v5761
      %v6281 = vsel %vm4186, %v6249, %v5763
      %v6282 = vsel %vm4186, %v6250, %v5765
      %v6283 = vsel %vm4186, %v6251, %v5767
      %v6284 = vsel %vm4186, %v6252, %v5769
      %v6285 = vsel %vm4186, %v6253, %v5771
      %v6286 = vsel %vm4219, %v6254, %v5837
      %v6287 = vsel %vm4219, %v6255, %v5839
      %v6288 = vsel %vm4219, %v6256, %v5841
      %v6289 = vsel %vm4219, %v6257, %v5843
      %v6290 = vsel %vm4219, %v6258, %v5845
      %v6291 = vsel %vm4219, %v6259, %v5847
      %v6292 = vsel %vm4219, %v6260, %v5849
      %v6293 = vsel %vm4219, %v6261, %v5851
      %v6294 = vsel %vm4219, %v6262, %v5853
      %v6295 = vsel %vm4219, %v6263, %v5855
      %v6296 = vsel %vm4219, %v6264, %v5857
      %v6297 = vsel %vm4219, %v6265, %v5859
      %v6298 = vsel %vm4219, %v6266, %v5861
      %v6299 = vsel %vm4219, %v6267, %v5863
      %v6300 = vsel %vm4219, %v6268, %v5865
      %v6301 = vsel %vm4219, %v6269, %v5867
      %v6302 = vsel %vm4219, %v6270, %v5869
      %v6303 = vsel %vm4219, %v6271, %v5871
      %v6304 = vsel %vm4219, %v6272, %v5873
      %v6305 = vsel %vm4219, %v6273, %v5875
      %v6306 = vsel %vm4219, %v6274, %v5877
      %v6307 = vsel %vm4219, %v6275, %v5879
      %v6308 = vsel %vm4219, %v6276, %v5881
      %v6309 = vsel %vm4219, %v6277, %v5883
      %v6310 = vsel %vm4219, %v6278, %v5885
      %v6311 = vsel %vm4219, %v6279, %v5887
      %v6312 = vsel %vm4219, %v6280, %v5889
      %v6313 = vsel %vm4219, %v6281, %v5891
      %v6314 = vsel %vm4219, %v6282, %v5893
      %v6315 = vsel %vm4219, %v6283, %v5895
      %v6316 = vsel %vm4219, %v6284, %v5897
      %v6317 = vsel %vm4219, %v6285, %v5899
      %v6318 = vsel %vm4252, %v6286, %v5965
      %v6319 = vsel %vm4252, %v6287, %v5967
      %v6320 = vsel %vm4252, %v6288, %v5969
      %v6321 = vsel %vm4252, %v6289, %v5971
      %v6322 = vsel %vm4252, %v6290, %v5973
      %v6323 = vsel %vm4252, %v6291, %v5975
      %v6324 = vsel %vm4252, %v6292, %v5977
      %v6325 = vsel %vm4252, %v6293, %v5979
      %v6326 = vsel %vm4252, %v6294, %v5981
      %v6327 = vsel %vm4252, %v6295, %v5983
      %v6328 = vsel %vm4252, %v6296, %v5985
      %v6329 = vsel %vm4252, %v6297, %v5987
      %v6330 = vsel %vm4252, %v6298, %v5989
      %v6331 = vsel %vm4252, %v6299, %v5991
      %v6332 = vsel %vm4252, %v6300, %v5993
      %v6333 = vsel %vm4252, %v6301, %v5995
      %v6334 = vsel %vm4252, %v6302, %v5997
      %v6335 = vsel %vm4252, %v6303, %v5999
      %v6336 = vsel %vm4252, %v6304, %v6001
      %v6337 = vsel %vm4252, %v6305, %v6003
      %v6338 = vsel %vm4252, %v6306, %v6005
      %v6339 = vsel %vm4252, %v6307, %v6007
      %v6340 = vsel %vm4252, %v6308, %v6009
      %v6341 = vsel %vm4252, %v6309, %v6011
      %v6342 = vsel %vm4252, %v6310, %v6013
      %v6343 = vsel %vm4252, %v6311, %v6015
      %v6344 = vsel %vm4252, %v6312, %v6017
      %v6345 = vsel %vm4252, %v6313, %v6019
      %v6346 = vsel %vm4252, %v6314, %v6021
      %v6347 = vsel %vm4252, %v6315, %v6023
      %v6348 = vsel %vm4252, %v6316, %v6025
      %v6349 = vsel %vm4252, %v6317, %v6027
      %v6350 = vsel %vm4285, %v6318, %v6063
      %v6351 = vsel %vm4285, %v6319, %v6065
      %v6352 = vsel %vm4285, %v6320, %v6067
      %v6353 = vsel %vm4285, %v6321, %v6069
      %v6354 = vsel %vm4285, %v6322, %v6071
      %v6355 = vsel %vm4285, %v6323, %v6073
      %v6356 = vsel %vm4285, %v6324, %v6075
      %v6357 = vsel %vm4285, %v6325, %v6077
      %v6358 = vsel %vm4285, %v6326, %v6079
      %v6359 = vsel %vm4285, %v6327, %v6081
      %v6360 = vsel %vm4285, %v6328, %v6083
      %v6361 = vsel %vm4285, %v6329, %v6085
      %v6362 = vsel %vm4285, %v6330, %v6087
      %v6363 = vsel %vm4285, %v6331, %v6089
      %v6364 = vsel %vm4285, %v6332, %v6091
      %v6365 = vsel %vm4285, %v6333, %v6093
      %v6366 = vsel %vm4285, %v6334, %v6095
      %v6367 = vsel %vm4285, %v6335, %v6097
      %v6368 = vsel %vm4285, %v6336, %v6099
      %v6369 = vsel %vm4285, %v6337, %v6101
      %v6370 = vsel %vm4285, %v6338, %v6103
      %v6371 = vsel %vm4285, %v6339, %v6105
      %v6372 = vsel %vm4285, %v6340, %v6107
      %v6373 = vsel %vm4285, %v6341, %v6109
      %v6374 = vsel %vm4285, %v6342, %v6111
      %v6375 = vsel %vm4285, %v6343, %v6113
      %v6376 = vsel %vm4285, %v6344, %v6115
      %v6377 = vsel %vm4285, %v6345, %v6117
      %v6378 = vsel %vm4285, %v6346, %v6119
      %v6379 = vsel %vm4285, %v6347, %v6121
      %v6380 = vsel %vm4285, %v6348, %v6123
      %v6381 = vsel %vm4285, %v6349, %v6125
      %v6382 = vpack.c.bf16 %v6351, %v6350
      %v6383 = vpack.c.bf16 %v5291, %v5290
      %v6384 = vpack.c.bf16 %v6353, %v6352
      %v6385 = vpack.c.bf16 %v5293, %v5292
      %v6386 = vpack.c.bf16 %v6355, %v6354
      %v6387 = vpack.c.bf16 %v5295, %v5294
      %v6388 = vpack.c.bf16 %v6357, %v6356
      %v6389 = vpack.c.bf16 %v5297, %v5296
      %v6390 = vpack.c.bf16 %v6359, %v6358
      %v6391 = vpack.c.bf16 %v5299, %v5298
      %v6392 = vpack.c.bf16 %v6361, %v6360
      %v6393 = vpack.c.bf16 %v5301, %v5300
      %v6394 = vpack.c.bf16 %v6363, %v6362
      %v6395 = vpack.c.bf16 %v5303, %v5302
      %v6396 = vpack.c.bf16 %v6365, %v6364
      %v6397 = vpack.c.bf16 %v5305, %v5304
      %v6398 = vpack.c.bf16 %v6367, %v6366
      %v6399 = vpack.c.bf16 %v5307, %v5306
      %v6400 = vpack.c.bf16 %v6369, %v6368
      %v6401 = vpack.c.bf16 %v5309, %v5308
      %v6402 = vpack.c.bf16 %v6371, %v6370
      %v6403 = vpack.c.bf16 %v5311, %v5310
      %v6404 = vpack.c.bf16 %v6373, %v6372
      %v6405 = vpack.c.bf16 %v5313, %v5312
      %v6406 = vpack.c.bf16 %v6375, %v6374
      %v6407 = vpack.c.bf16 %v5315, %v5314
      %v6408 = vpack.c.bf16 %v6377, %v6376
      %v6409 = vpack.c.bf16 %v5317, %v5316
      %v6410 = vpack.c.bf16 %v6379, %v6378
      %v6411 = vpack.c.bf16 %v5319, %v5318
      %v6412 = vpack.c.bf16 %v6381, %v6380
      %v6413 = vpack.c.bf16 %v5321, %v5320
      %v6414 = vld [vmem:[%s5] sm:$0xf]
      %v6415 = vld [vmem:[%s5 + $0x4] sm:$0xf]
      %v6416 = vld [vmem:[%s5 + $0x8] sm:$0xf]
      %v6417 = vld [vmem:[%s5 + $0xc] sm:$0xf]
      %v6418 = vld [vmem:[%s5 + $0x10] sm:$0xf]
      %v6419 = vld [vmem:[%s5 + $0x14] sm:$0xf]
      %v6420 = vld [vmem:[%s5 + $0x18] sm:$0xf]
      %v6421 = vld [vmem:[%s5 + $0x1c] sm:$0xf]
      %v6422 = vld [vmem:[%s5 + $0x20] sm:$0xf]
      %v6423 = vld [vmem:[%s5 + $0x24] sm:$0xf]
      %v6424 = vld [vmem:[%s5 + $0x28] sm:$0xf]
      %v6425 = vld [vmem:[%s5 + $0x2c] sm:$0xf]
      %v6426 = vld [vmem:[%s5 + $0x30] sm:$0xf]
      %v6427 = vld [vmem:[%s5 + $0x34] sm:$0xf]
      %v6428 = vld [vmem:[%s5 + $0x38] sm:$0xf]
      %v6429 = vld [vmem:[%s5 + $0x3c] sm:$0xf]
      %v6430 = vld [vmem:[%s5 + $0x40] sm:$0xf]
      %v6431 = vld [vmem:[%s5 + $0x44] sm:$0xf]
      %v6432 = vld [vmem:[%s6] sm:$0x1]
      %v6434 = vlaneseq
      %v6435 = vshrl.u32 %v6434, 7
      %v6436 = vsub.s32 0, %v6435
      %v6437 = vrot.slane %v6432, %v6436
      %v6457 = vunpack.c.l.b16 %v6414
      %v6458 = vunpack.c.l.b16 %v6415
      %v6459 = vunpack.c.l.b16 %v6416
      %v6460 = vunpack.c.l.b16 %v6417
      %v6461 = vunpack.c.l.b16 %v6418
      %v6462 = vunpack.c.l.b16 %v6419
      %v6463 = vunpack.c.l.b16 %v6420
      %v6464 = vunpack.c.l.b16 %v6421
      %v6465 = vunpack.c.l.b16 %v6422
      %v6466 = vunpack.c.l.b16 %v6423
      %v6467 = vunpack.c.l.b16 %v6424
      %v6468 = vunpack.c.l.b16 %v6425
      %v6469 = vunpack.c.l.b16 %v6426
      %v6470 = vunpack.c.l.b16 %v6427
      %v6471 = vunpack.c.l.b16 %v6428
      %v6472 = vunpack.c.l.b16 %v6429
      %v6473 = vunpack.c.l.b16 %v6430
      %v6474 = vunpack.c.l.b16 %v6431
      %v6475 = vpack.c.b16 %v6458, %v6457
      %v6476 = vpack.c.b16 %v6460, %v6459
      %v6477 = vpack.c.b16 %v6462, %v6461
      %v6478 = vpack.c.b16 %v6464, %v6463
      %v6479 = vpack.c.b16 %v6466, %v6465
      %v6480 = vpack.c.b16 %v6468, %v6467
      %v6481 = vpack.c.b16 %v6470, %v6469
      %v6482 = vpack.c.b16 %v6472, %v6471
      %v6483 = vpack.c.b16 %v6474, %v6473
      %v6494 = vsel %vm361, %v6383, 0
      %v6497 = vsel %vm361, %v6385, 0
      %v6500 = vsel %vm361, %v6387, 0
      %v6503 = vsel %vm361, %v6389, 0
      %v6506 = vsel %vm361, %v6391, 0
      %v6509 = vsel %vm361, %v6393, 0
      %v6512 = vsel %vm361, %v6395, 0
      %v6515 = vsel %vm361, %v6397, 0
      %v6518 = vsel %vm361, %v6399, 0
      %v6521 = vsel %vm361, %v6401, 0
      %v6524 = vsel %vm361, %v6403, 0
      %v6527 = vsel %vm361, %v6405, 0
      %v6530 = vsel %vm361, %v6407, 0
      %v6533 = vsel %vm361, %v6409, 0
      %v6536 = vsel %vm361, %v6411, 0
      %v6539 = vsel %vm361, %v6413, 0
      %6541 = vmatprep.subr.bf16.mxu0 0
      %6542 = vmatpush1.bf16.msra.mxu0 %v6475
      %6543 = vmatprep.subr.bf16.mxu0 0
      %6544 = vmatpush1.bf16.msra.mxu0 %v6476
      %6545 = vmatprep.subr.bf16.mxu0 0
      %6546 = vmatpush1.bf16.msra.mxu0 %v6477
      %6547 = vmatprep.subr.bf16.mxu0 0
      %6548 = vmatpush1.bf16.msra.mxu0 %v6478
      %6549 = vmatprep.subr.bf16.mxu0 0
      %6550 = vmatpush1.bf16.msra.mxu0 %v6479
      %6551 = vmatprep.subr.bf16.mxu0 0
      %6552 = vmatpush1.bf16.msra.mxu0 %v6480
      %6553 = vmatprep.subr.bf16.mxu0 0
      %6554 = vmatpush1.bf16.msra.mxu0 %v6481
      %6555 = vmatprep.subr.bf16.mxu0 0
      %6556 = vmatpush1.bf16.msra.mxu0 %v6482
      %6557 = vmatprep.subr.bf16.mxu0 0
      %6558 = vmatpush1.bf16.msra.mxu0 %v6483
      %6559 = vmatprep.subr.bf16.mxu0 0
      %6560 = vmatpush1.bf16.msra.mxu0 0
      %6561 = vmatprep.subr.bf16.mxu0 0
      %6562 = vmatpush1.bf16.msra.mxu0 0
      %6563 = vmatprep.subr.bf16.mxu0 0
      %6564 = vmatpush1.bf16.msra.mxu0 0
      %6565 = vmatprep.subr.bf16.mxu0 0
      %6566 = vmatpush1.bf16.msra.mxu0 0
      %6567 = vmatprep.subr.bf16.mxu0 0
      %6568 = vmatpush1.bf16.msra.mxu0 0
      %6569 = vmatprep.subr.bf16.mxu0 0
      %6570 = vmatpush1.bf16.msra.mxu0 0
      %6571 = vmatprep.subr.bf16.mxu0 0
      %6572 = vmatpush1.bf16.msra.mxu0 0
      %6573 = vmatprep.mubr.bf16.mxu0 %v6494
      %6574 = vmatmul.mubr.bf16.gmra.mrb[0].mxu0 %v6382
      %v6575 = vpop.f32.mrb[0].mxu0
      %v6576 = vadd.f32 %v6437, %v6575
      %v6577 = vpop.f32.mrb[0].mxu0
      %v6578 = vpop.f32.mrb[0].mxu0
      %v6579 = vadd.f32 %v6437, %v6578
      %v6580 = vpop.f32.mrb[0].mxu0
      %6581 = vmatprep.mubr.bf16.mxu0 %v6497
      %6582 = vmatmul.mubr.bf16.gmra.mrb[0].mxu0 %v6384
      %v6583 = vpop.f32.mrb[0].mxu0
      %v6584 = vadd.f32 %v6437, %v6583
      %v6585 = vpop.f32.mrb[0].mxu0
      %v6586 = vpop.f32.mrb[0].mxu0
      %v6587 = vadd.f32 %v6437, %v6586
      %v6588 = vpop.f32.mrb[0].mxu0
      %6589 = vmatprep.mubr.bf16.mxu0 %v6500
      %6590 = vmatmul.mubr.bf16.gmra.mrb[0].mxu0 %v6386
      %v6591 = vpop.f32.mrb[0].mxu0
      %v6592 = vadd.f32 %v6437, %v6591
      %v6593 = vpop.f32.mrb[0].mxu0
      %v6594 = vpop.f32.mrb[0].mxu0
      %v6595 = vadd.f32 %v6437, %v6594
      %v6596 = vpop.f32.mrb[0].mxu0
      %6597 = vmatprep.mubr.bf16.mxu0 %v6503
      %6598 = vmatmul.mubr.bf16.gmra.mrb[0].mxu0 %v6388
      %v6599 = vpop.f32.mrb[0].mxu0
      %v6600 = vadd.f32 %v6437, %v6599
      %v6601 = vpop.f32.mrb[0].mxu0
      %v6602 = vpop.f32.mrb[0].mxu0
      %v6603 = vadd.f32 %v6437, %v6602
      %v6604 = vpop.f32.mrb[0].mxu0
      %6605 = vmatprep.mubr.bf16.mxu0 %v6506
      %6606 = vmatmul.mubr.bf16.gmra.mrb[0].mxu0 %v6390
      %v6607 = vpop.f32.mrb[0].mxu0
      %v6608 = vadd.f32 %v6437, %v6607
      %v6609 = vpop.f32.mrb[0].mxu0
      %v6610 = vpop.f32.mrb[0].mxu0
      %v6611 = vadd.f32 %v6437, %v6610
      %v6612 = vpop.f32.mrb[0].mxu0
      %6613 = vmatprep.mubr.bf16.mxu0 %v6509
      %6614 = vmatmul.mubr.bf16.gmra.mrb[0].mxu0 %v6392
      %v6615 = vpop.f32.mrb[0].mxu0
      %v6616 = vadd.f32 %v6437, %v6615
      %v6617 = vpop.f32.mrb[0].mxu0
      %v6618 = vpop.f32.mrb[0].mxu0
      %v6619 = vadd.f32 %v6437, %v6618
      %v6620 = vpop.f32.mrb[0].mxu0
      %6621 = vmatprep.mubr.bf16.mxu0 %v6512
      %6622 = vmatmul.mubr.bf16.gmra.mrb[0].mxu0 %v6394
      %v6623 = vpop.f32.mrb[0].mxu0
      %v6624 = vadd.f32 %v6437, %v6623
      %v6625 = vpop.f32.mrb[0].mxu0
      %v6626 = vpop.f32.mrb[0].mxu0
      %v6627 = vadd.f32 %v6437, %v6626
      %v6628 = vpop.f32.mrb[0].mxu0
      %6629 = vmatprep.mubr.bf16.mxu0 %v6515
      %6630 = vmatmul.mubr.bf16.gmra.mrb[0].mxu0 %v6396
      %v6631 = vpop.f32.mrb[0].mxu0
      %v6632 = vadd.f32 %v6437, %v6631
      %v6633 = vpop.f32.mrb[0].mxu0
      %v6634 = vpop.f32.mrb[0].mxu0
      %v6635 = vadd.f32 %v6437, %v6634
      %v6636 = vpop.f32.mrb[0].mxu0
      %6637 = vmatprep.mubr.bf16.mxu0 %v6518
      %6638 = vmatmul.mubr.bf16.gmra.mrb[0].mxu0 %v6398
      %v6639 = vpop.f32.mrb[0].mxu0
      %v6640 = vadd.f32 %v6437, %v6639
      %v6641 = vpop.f32.mrb[0].mxu0
      %v6642 = vpop.f32.mrb[0].mxu0
      %v6643 = vadd.f32 %v6437, %v6642
      %v6644 = vpop.f32.mrb[0].mxu0
      %6645 = vmatprep.mubr.bf16.mxu0 %v6521
      %6646 = vmatmul.mubr.bf16.gmra.mrb[0].mxu0 %v6400
      %v6647 = vpop.f32.mrb[0].mxu0
      %v6648 = vadd.f32 %v6437, %v6647
      %v6649 = vpop.f32.mrb[0].mxu0
      %v6650 = vpop.f32.mrb[0].mxu0
      %v6651 = vadd.f32 %v6437, %v6650
      %v6652 = vpop.f32.mrb[0].mxu0
      %6653 = vmatprep.mubr.bf16.mxu0 %v6524
      %6654 = vmatmul.mubr.bf16.gmra.mrb[0].mxu0 %v6402
      %v6655 = vpop.f32.mrb[0].mxu0
      %v6656 = vadd.f32 %v6437, %v6655
      %v6657 = vpop.f32.mrb[0].mxu0
      %v6658 = vpop.f32.mrb[0].mxu0
      %v6659 = vadd.f32 %v6437, %v6658
      %v6660 = vpop.f32.mrb[0].mxu0
      %6661 = vmatprep.mubr.bf16.mxu0 %v6527
      %6662 = vmatmul.mubr.bf16.gmra.mrb[0].mxu0 %v6404
      %v6663 = vpop.f32.mrb[0].mxu0
      %v6664 = vadd.f32 %v6437, %v6663
      %v6665 = vpop.f32.mrb[0].mxu0
      %v6666 = vpop.f32.mrb[0].mxu0
      %v6667 = vadd.f32 %v6437, %v6666
      %v6668 = vpop.f32.mrb[0].mxu0
      %6669 = vmatprep.mubr.bf16.mxu0 %v6530
      %6670 = vmatmul.mubr.bf16.gmra.mrb[0].mxu0 %v6406
      %v6671 = vpop.f32.mrb[0].mxu0
      %v6672 = vadd.f32 %v6437, %v6671
      %v6673 = vpop.f32.mrb[0].mxu0
      %v6674 = vpop.f32.mrb[0].mxu0
      %v6675 = vadd.f32 %v6437, %v6674
      %v6676 = vpop.f32.mrb[0].mxu0
      %6677 = vmatprep.mubr.bf16.mxu0 %v6533
      %6678 = vmatmul.mubr.bf16.gmra.mrb[0].mxu0 %v6408
      %v6679 = vpop.f32.mrb[0].mxu0
      %v6680 = vadd.f32 %v6437, %v6679
      %v6681 = vpop.f32.mrb[0].mxu0
      %v6682 = vpop.f32.mrb[0].mxu0
      %v6683 = vadd.f32 %v6437, %v6682
      %v6684 = vpop.f32.mrb[0].mxu0
      %6685 = vmatprep.mubr.bf16.mxu0 %v6536
      %6686 = vmatmul.mubr.bf16.gmra.mrb[0].mxu0 %v6410
      %v6687 = vpop.f32.mrb[0].mxu0
      %v6688 = vadd.f32 %v6437, %v6687
      %v6689 = vpop.f32.mrb[0].mxu0
      %v6690 = vpop.f32.mrb[0].mxu0
      %v6691 = vadd.f32 %v6437, %v6690
      %v6692 = vpop.f32.mrb[0].mxu0
      %6693 = vmatprep.mubr.bf16.mxu0 %v6539
      %6694 = vmatmul.mubr.bf16.gmra.mrb[0].mxu0 %v6412
      %v6695 = vpop.f32.mrb[0].mxu0
      %v6696 = vadd.f32 %v6437, %v6695
      %v6697 = vpop.f32.mrb[0].mxu0
      %v6698 = vpop.f32.mrb[0].mxu0
      %v6699 = vadd.f32 %v6437, %v6698
      %v6700 = vpop.f32.mrb[0].mxu0
      %6701 = vdwg.mxu0
      %vm6702 = vcmp.gt.f32.partialorder %v6576, 0.0
      %vm6703 = vcmp.gt.f32.partialorder %v6579, 0.0
      %vm6704 = vcmp.gt.f32.partialorder %v6584, 0.0
      %vm6705 = vcmp.gt.f32.partialorder %v6587, 0.0
      %vm6706 = vcmp.gt.f32.partialorder %v6592, 0.0
      %vm6707 = vcmp.gt.f32.partialorder %v6595, 0.0
      %vm6708 = vcmp.gt.f32.partialorder %v6600, 0.0
      %vm6709 = vcmp.gt.f32.partialorder %v6603, 0.0
      %vm6710 = vcmp.gt.f32.partialorder %v6608, 0.0
      %vm6711 = vcmp.gt.f32.partialorder %v6611, 0.0
      %vm6712 = vcmp.gt.f32.partialorder %v6616, 0.0
      %vm6713 = vcmp.gt.f32.partialorder %v6619, 0.0
      %vm6714 = vcmp.gt.f32.partialorder %v6624, 0.0
      %vm6715 = vcmp.gt.f32.partialorder %v6627, 0.0
      %vm6716 = vcmp.gt.f32.partialorder %v6632, 0.0
      %vm6717 = vcmp.gt.f32.partialorder %v6635, 0.0
      %vm6718 = vcmp.gt.f32.partialorder %v6640, 0.0
      %vm6719 = vcmp.gt.f32.partialorder %v6643, 0.0
      %vm6720 = vcmp.gt.f32.partialorder %v6648, 0.0
      %vm6721 = vcmp.gt.f32.partialorder %v6651, 0.0
      %vm6722 = vcmp.gt.f32.partialorder %v6656, 0.0
      %vm6723 = vcmp.gt.f32.partialorder %v6659, 0.0
      %vm6724 = vcmp.gt.f32.partialorder %v6664, 0.0
      %vm6725 = vcmp.gt.f32.partialorder %v6667, 0.0
      %vm6726 = vcmp.gt.f32.partialorder %v6672, 0.0
      %vm6727 = vcmp.gt.f32.partialorder %v6675, 0.0
      %vm6728 = vcmp.gt.f32.partialorder %v6680, 0.0
      %vm6729 = vcmp.gt.f32.partialorder %v6683, 0.0
      %vm6730 = vcmp.gt.f32.partialorder %v6688, 0.0
      %vm6731 = vcmp.gt.f32.partialorder %v6691, 0.0
      %vm6732 = vcmp.gt.f32.partialorder %v6696, 0.0
      %vm6733 = vcmp.gt.f32.partialorder %v6699, 0.0
      %v6734 = vmul.f32 %v6576, 0.1
      %v6735 = vmul.f32 %v6579, 0.1
      %v6736 = vmul.f32 %v6584, 0.1
      %v6737 = vmul.f32 %v6587, 0.1
      %v6738 = vmul.f32 %v6592, 0.1
      %v6739 = vmul.f32 %v6595, 0.1
      %v6740 = vmul.f32 %v6600, 0.1
      %v6741 = vmul.f32 %v6603, 0.1
      %v6742 = vmul.f32 %v6608, 0.1
      %v6743 = vmul.f32 %v6611, 0.1
      %v6744 = vmul.f32 %v6616, 0.1
      %v6745 = vmul.f32 %v6619, 0.1
      %v6746 = vmul.f32 %v6624, 0.1
      %v6747 = vmul.f32 %v6627, 0.1
      %v6748 = vmul.f32 %v6632, 0.1
      %v6749 = vmul.f32 %v6635, 0.1
      %v6750 = vmul.f32 %v6640, 0.1
      %v6751 = vmul.f32 %v6643, 0.1
      %v6752 = vmul.f32 %v6648, 0.1
      %v6753 = vmul.f32 %v6651, 0.1
      %v6754 = vmul.f32 %v6656, 0.1
      %v6755 = vmul.f32 %v6659, 0.1
      %v6756 = vmul.f32 %v6664, 0.1
      %v6757 = vmul.f32 %v6667, 0.1
      %v6758 = vmul.f32 %v6672, 0.1
      %v6759 = vmul.f32 %v6675, 0.1
      %v6760 = vmul.f32 %v6680, 0.1
      %v6761 = vmul.f32 %v6683, 0.1
      %v6762 = vmul.f32 %v6688, 0.1
      %v6763 = vmul.f32 %v6691, 0.1
      %v6764 = vmul.f32 %v6696, 0.1
      %v6765 = vmul.f32 %v6699, 0.1
      %v6766 = vsel %vm6702, %v6576, %v6734
      %v6767 = vsel %vm6703, %v6579, %v6735
      %v6768 = vsel %vm6704, %v6584, %v6736
      %v6769 = vsel %vm6705, %v6587, %v6737
      %v6770 = vsel %vm6706, %v6592, %v6738
      %v6771 = vsel %vm6707, %v6595, %v6739
      %v6772 = vsel %vm6708, %v6600, %v6740
      %v6773 = vsel %vm6709, %v6603, %v6741
      %v6774 = vsel %vm6710, %v6608, %v6742
      %v6775 = vsel %vm6711, %v6611, %v6743
      %v6776 = vsel %vm6712, %v6616, %v6744
      %v6777 = vsel %vm6713, %v6619, %v6745
      %v6778 = vsel %vm6714, %v6624, %v6746
      %v6779 = vsel %vm6715, %v6627, %v6747
      %v6780 = vsel %vm6716, %v6632, %v6748
      %v6781 = vsel %vm6717, %v6635, %v6749
      %v6782 = vsel %vm6718, %v6640, %v6750
      %v6783 = vsel %vm6719, %v6643, %v6751
      %v6784 = vsel %vm6720, %v6648, %v6752
      %v6785 = vsel %vm6721, %v6651, %v6753
      %v6786 = vsel %vm6722, %v6656, %v6754
      %v6787 = vsel %vm6723, %v6659, %v6755
      %v6788 = vsel %vm6724, %v6664, %v6756
      %v6789 = vsel %vm6725, %v6667, %v6757
      %v6790 = vsel %vm6726, %v6672, %v6758
      %v6791 = vsel %vm6727, %v6675, %v6759
      %v6792 = vsel %vm6728, %v6680, %v6760
      %v6793 = vsel %vm6729, %v6683, %v6761
      %v6794 = vsel %vm6730, %v6688, %v6762
      %v6795 = vsel %vm6731, %v6691, %v6763
      %v6796 = vsel %vm6732, %v6696, %v6764
      %v6797 = vsel %vm6733, %v6699, %v6765
      %6798 = vst.msk [vmem:[#allocation2 + $0x18] sm:$0xff] %vm361, %v6766
      %6799 = vst.msk [vmem:[#allocation2 + $0x20] sm:$0xff] %vm361, %v6767
      %6800 = vst.msk [vmem:[#allocation2 + $0x28] sm:$0xff] %vm361, %v6768
      %6801 = vst.msk [vmem:[#allocation2 + $0x30] sm:$0xff] %vm361, %v6769
      %6802 = vst.msk [vmem:[#allocation2 + $0x38] sm:$0xff] %vm361, %v6770
      %6803 = vst.msk [vmem:[#allocation2 + $0x40] sm:$0xff] %vm361, %v6771
      %6804 = vst.msk [vmem:[#allocation2 + $0x48] sm:$0xff] %vm361, %v6772
      %6805 = vst.msk [vmem:[#allocation2 + $0x50] sm:$0xff] %vm361, %v6773
      %6806 = vst.msk [vmem:[#allocation2 + $0x58] sm:$0xff] %vm361, %v6774
      %6807 = vst.msk [vmem:[#allocation2 + $0x60] sm:$0xff] %vm361, %v6775
      %6808 = vst.msk [vmem:[#allocation2 + $0x68] sm:$0xff] %vm361, %v6776
      %6809 = vst.msk [vmem:[#allocation2 + $0x70] sm:$0xff] %vm361, %v6777
      %6810 = vst.msk [vmem:[#allocation2 + $0x78] sm:$0xff] %vm361, %v6778
      %6811 = vst.msk [vmem:[#allocation2 + $0x80] sm:$0xff] %vm361, %v6779
      %6812 = vst.msk [vmem:[#allocation2 + $0x88] sm:$0xff] %vm361, %v6780
      %6813 = vst.msk [vmem:[#allocation2 + $0x90] sm:$0xff] %vm361, %v6781
      %6814 = vst.msk [vmem:[#allocation2 + $0x98] sm:$0xff] %vm361, %v6782
      %6815 = vst.msk [vmem:[#allocation2 + $0xa0] sm:$0xff] %vm361, %v6783
      %6816 = vst.msk [vmem:[#allocation2 + $0xa8] sm:$0xff] %vm361, %v6784
      %6817 = vst.msk [vmem:[#allocation2 + $0xb0] sm:$0xff] %vm361, %v6785
      %6818 = vst.msk [vmem:[#allocation2 + $0xb8] sm:$0xff] %vm361, %v6786
      %6819 = vst.msk [vmem:[#allocation2 + $0xc0] sm:$0xff] %vm361, %v6787
      %6820 = vst.msk [vmem:[#allocation2 + $0xc8] sm:$0xff] %vm361, %v6788
      %6821 = vst.msk [vmem:[#allocation2 + $0xd0] sm:$0xff] %vm361, %v6789
      %6822 = vst.msk [vmem:[#allocation2 + $0xd8] sm:$0xff] %vm361, %v6790
      %6823 = vst.msk [vmem:[#allocation2 + $0xe0] sm:$0xff] %vm361, %v6791
      %6824 = vst.msk [vmem:[#allocation2 + $0xe8] sm:$0xff] %vm361, %v6792
      %6825 = vst.msk [vmem:[#allocation2 + $0xf0] sm:$0xff] %vm361, %v6793
      %6826 = vst.msk [vmem:[#allocation2 + $0xf8] sm:$0xff] %vm361, %v6794
      %6827 = vst.msk [vmem:[#allocation2 + $0x100] sm:$0xff] %vm361, %v6795
      %6828 = vst.msk [vmem:[#allocation2 + $0x108] sm:$0xff] %vm361, %v6796
      %6829 = vst.msk [vmem:[#allocation2 + $0x110] sm:$0xff] %vm361, %v6797
      %v6830 = vld [vmem:[#allocation2 + $0x7] sm:$0xff]
      %v6831 = vld [vmem:[#allocation2 + $0xf] sm:$0xff]
      %v6832 = vld [vmem:[#allocation2 + $0x17] sm:$0xff]
      %v6833 = vld [vmem:[#allocation2 + $0x1f] sm:$0xff]
      %v6834 = vld [vmem:[#allocation2 + $0x27] sm:$0xff]
      %v6835 = vld [vmem:[#allocation2 + $0x2f] sm:$0xff]
      %v6836 = vld [vmem:[#allocation2 + $0x37] sm:$0xff]
      %v6837 = vld [vmem:[#allocation2 + $0x3f] sm:$0xff]
      %v6838 = vld [vmem:[#allocation2 + $0x47] sm:$0xff]
      %v6839 = vld [vmem:[#allocation2 + $0x4f] sm:$0xff]
      %v6840 = vld [vmem:[#allocation2 + $0x57] sm:$0xff]
      %v6841 = vld [vmem:[#allocation2 + $0x5f] sm:$0xff]
      %v6842 = vld [vmem:[#allocation2 + $0x67] sm:$0xff]
      %v6843 = vld [vmem:[#allocation2 + $0x6f] sm:$0xff]
      %v6844 = vld [vmem:[#allocation2 + $0x77] sm:$0xff]
      %v6845 = vld [vmem:[#allocation2 + $0x7f] sm:$0xff]
      %v6846 = vld [vmem:[#allocation2 + $0x87] sm:$0xff]
      %v6847 = vld [vmem:[#allocation2 + $0x8f] sm:$0xff]
      %v6848 = vld [vmem:[#allocation2 + $0x97] sm:$0xff]
      %v6849 = vld [vmem:[#allocation2 + $0x9f] sm:$0xff]
      %v6850 = vld [vmem:[#allocation2 + $0xa7] sm:$0xff]
      %v6851 = vld [vmem:[#allocation2 + $0xaf] sm:$0xff]
      %v6852 = vld [vmem:[#allocation2 + $0xb7] sm:$0xff]
      %v6853 = vld [vmem:[#allocation2 + $0xbf] sm:$0xff]
      %v6854 = vld [vmem:[#allocation2 + $0xc7] sm:$0xff]
      %v6855 = vld [vmem:[#allocation2 + $0xcf] sm:$0xff]
      %v6856 = vld [vmem:[#allocation2 + $0xd7] sm:$0xff]
      %v6857 = vld [vmem:[#allocation2 + $0xdf] sm:$0xff]
      %v6858 = vld [vmem:[#allocation2 + $0xe7] sm:$0xff]
      %v6859 = vld [vmem:[#allocation2 + $0xef] sm:$0xff]
      %v6860 = vld [vmem:[#allocation2 + $0xf7] sm:$0xff]
      %v6861 = vld [vmem:[#allocation2 + $0xff] sm:$0xff]
      %v6862 = vmul.f32 %v6830, %v849
      %v6863 = vmul.f32 %v6831, %v850
      %v6864 = vmul.f32 %v6832, %v851
      %v6865 = vmul.f32 %v6833, %v852
      %v6866 = vmul.f32 %v6834, %v853
      %v6867 = vmul.f32 %v6835, %v854
      %v6868 = vmul.f32 %v6836, %v855
      %v6869 = vmul.f32 %v6837, %v856
      %v6870 = vmul.f32 %v6838, %v857
      %v6871 = vmul.f32 %v6839, %v858
      %v6872 = vmul.f32 %v6840, %v859
      %v6873 = vmul.f32 %v6841, %v860
      %v6874 = vmul.f32 %v6842, %v861
      %v6875 = vmul.f32 %v6843, %v862
      %v6876 = vmul.f32 %v6844, %v863
      %v6877 = vmul.f32 %v6845, %v864
      %v6878 = vmul.f32 %v6846, %v865
      %v6879 = vmul.f32 %v6847, %v866
      %v6880 = vmul.f32 %v6848, %v867
      %v6881 = vmul.f32 %v6849, %v868
      %v6882 = vmul.f32 %v6850, %v869
      %v6883 = vmul.f32 %v6851, %v870
      %v6884 = vmul.f32 %v6852, %v871
      %v6885 = vmul.f32 %v6853, %v872
      %v6886 = vmul.f32 %v6854, %v873
      %v6887 = vmul.f32 %v6855, %v874
      %v6888 = vmul.f32 %v6856, %v875
      %v6889 = vmul.f32 %v6857, %v876
      %v6890 = vmul.f32 %v6858, %v877
      %v6891 = vmul.f32 %v6859, %v878
      %v6892 = vmul.f32 %v6860, %v879
      %v6893 = vmul.f32 %v6861, %v880
      %v6894 = vld [vmem:[#allocation2 + $0x8] sm:$0xff]
      %v6895 = vld [vmem:[#allocation2 + $0x10] sm:$0xff]
      %v6896 = vld [vmem:[#allocation2 + $0x18] sm:$0xff]
      %v6897 = vld [vmem:[#allocation2 + $0x20] sm:$0xff]
      %v6898 = vld [vmem:[#allocation2 + $0x28] sm:$0xff]
      %v6899 = vld [vmem:[#allocation2 + $0x30] sm:$0xff]
      %v6900 = vld [vmem:[#allocation2 + $0x38] sm:$0xff]
      %v6901 = vld [vmem:[#allocation2 + $0x40] sm:$0xff]
      %v6902 = vld [vmem:[#allocation2 + $0x48] sm:$0xff]
      %v6903 = vld [vmem:[#allocation2 + $0x50] sm:$0xff]
      %v6904 = vld [vmem:[#allocation2 + $0x58] sm:$0xff]
      %v6905 = vld [vmem:[#allocation2 + $0x60] sm:$0xff]
      %v6906 = vld [vmem:[#allocation2 + $0x68] sm:$0xff]
      %v6907 = vld [vmem:[#allocation2 + $0x70] sm:$0xff]
      %v6908 = vld [vmem:[#allocation2 + $0x78] sm:$0xff]
      %v6909 = vld [vmem:[#allocation2 + $0x80] sm:$0xff]
      %v6910 = vld [vmem:[#allocation2 + $0x88] sm:$0xff]
      %v6911 = vld [vmem:[#allocation2 + $0x90] sm:$0xff]
      %v6912 = vld [vmem:[#allocation2 + $0x98] sm:$0xff]
      %v6913 = vld [vmem:[#allocation2 + $0xa0] sm:$0xff]
      %v6914 = vld [vmem:[#allocation2 + $0xa8] sm:$0xff]
      %v6915 = vld [vmem:[#allocation2 + $0xb0] sm:$0xff]
      %v6916 = vld [vmem:[#allocation2 + $0xb8] sm:$0xff]
      %v6917 = vld [vmem:[#allocation2 + $0xc0] sm:$0xff]
      %v6918 = vld [vmem:[#allocation2 + $0xc8] sm:$0xff]
      %v6919 = vld [vmem:[#allocation2 + $0xd0] sm:$0xff]
      %v6920 = vld [vmem:[#allocation2 + $0xd8] sm:$0xff]
      %v6921 = vld [vmem:[#allocation2 + $0xe0] sm:$0xff]
      %v6922 = vld [vmem:[#allocation2 + $0xe8] sm:$0xff]
      %v6923 = vld [vmem:[#allocation2 + $0xf0] sm:$0xff]
      %v6924 = vld [vmem:[#allocation2 + $0xf8] sm:$0xff]
      %v6925 = vld [vmem:[#allocation2 + $0x100] sm:$0xff]
      %v6926 = vld [vmem:[#allocation2 + $0x9] sm:$0xff]
      %v6927 = vld [vmem:[#allocation2 + $0x11] sm:$0xff]
      %v6928 = vld [vmem:[#allocation2 + $0x19] sm:$0xff]
      %v6929 = vld [vmem:[#allocation2 + $0x21] sm:$0xff]
      %v6930 = vld [vmem:[#allocation2 + $0x29] sm:$0xff]
      %v6931 = vld [vmem:[#allocation2 + $0x31] sm:$0xff]
      %v6932 = vld [vmem:[#allocation2 + $0x39] sm:$0xff]
      %v6933 = vld [vmem:[#allocation2 + $0x41] sm:$0xff]
      %v6934 = vld [vmem:[#allocation2 + $0x49] sm:$0xff]
      %v6935 = vld [vmem:[#allocation2 + $0x51] sm:$0xff]
      %v6936 = vld [vmem:[#allocation2 + $0x59] sm:$0xff]
      %v6937 = vld [vmem:[#allocation2 + $0x61] sm:$0xff]
      %v6938 = vld [vmem:[#allocation2 + $0x69] sm:$0xff]
      %v6939 = vld [vmem:[#allocation2 + $0x71] sm:$0xff]
      %v6940 = vld [vmem:[#allocation2 + $0x79] sm:$0xff]
      %v6941 = vld [vmem:[#allocation2 + $0x81] sm:$0xff]
      %v6942 = vld [vmem:[#allocation2 + $0x89] sm:$0xff]
      %v6943 = vld [vmem:[#allocation2 + $0x91] sm:$0xff]
      %v6944 = vld [vmem:[#allocation2 + $0x99] sm:$0xff]
      %v6945 = vld [vmem:[#allocation2 + $0xa1] sm:$0xff]
      %v6946 = vld [vmem:[#allocation2 + $0xa9] sm:$0xff]
      %v6947 = vld [vmem:[#allocation2 + $0xb1] sm:$0xff]
      %v6948 = vld [vmem:[#allocation2 + $0xb9] sm:$0xff]
      %v6949 = vld [vmem:[#allocation2 + $0xc1] sm:$0xff]
      %v6950 = vld [vmem:[#allocation2 + $0xc9] sm:$0xff]
      %v6951 = vld [vmem:[#allocation2 + $0xd1] sm:$0xff]
      %v6952 = vld [vmem:[#allocation2 + $0xd9] sm:$0xff]
      %v6953 = vld [vmem:[#allocation2 + $0xe1] sm:$0xff]
      %v6954 = vld [vmem:[#allocation2 + $0xe9] sm:$0xff]
      %v6955 = vld [vmem:[#allocation2 + $0xf1] sm:$0xff]
      %v6956 = vld [vmem:[#allocation2 + $0xf9] sm:$0xff]
      %v6957 = vld [vmem:[#allocation2 + $0x101] sm:$0xff]
      %v6958 = vmul.f32 %v6926, %v945
      %v6959 = vmul.f32 %v6927, %v946
      %v6960 = vmul.f32 %v6928, %v947
      %v6961 = vmul.f32 %v6929, %v948
      %v6962 = vmul.f32 %v6930, %v949
      %v6963 = vmul.f32 %v6931, %v950
      %v6964 = vmul.f32 %v6932, %v951
      %v6965 = vmul.f32 %v6933, %v952
      %v6966 = vmul.f32 %v6934, %v953
      %v6967 = vmul.f32 %v6935, %v954
      %v6968 = vmul.f32 %v6936, %v955
      %v6969 = vmul.f32 %v6937, %v956
      %v6970 = vmul.f32 %v6938, %v957
      %v6971 = vmul.f32 %v6939, %v958
      %v6972 = vmul.f32 %v6940, %v959
      %v6973 = vmul.f32 %v6941, %v960
      %v6974 = vmul.f32 %v6942, %v961
      %v6975 = vmul.f32 %v6943, %v962
      %v6976 = vmul.f32 %v6944, %v963
      %v6977 = vmul.f32 %v6945, %v964
      %v6978 = vmul.f32 %v6946, %v965
      %v6979 = vmul.f32 %v6947, %v966
      %v6980 = vmul.f32 %v6948, %v967
      %v6981 = vmul.f32 %v6949, %v968
      %v6982 = vmul.f32 %v6950, %v969
      %v6983 = vmul.f32 %v6951, %v970
      %v6984 = vmul.f32 %v6952, %v971
      %v6985 = vmul.f32 %v6953, %v972
      %v6986 = vmul.f32 %v6954, %v973
      %v6987 = vmul.f32 %v6955, %v974
      %v6988 = vmul.f32 %v6956, %v975
      %v6989 = vmul.f32 %v6957, %v976
      %v6990 = vld [vmem:[#allocation2 + $0x107] sm:$0xff]
      %v6991 = vld [vmem:[#allocation2 + $0x10f] sm:$0xff]
      %v6992 = vmul.f32 %v6832, %v849
      %v6993 = vmul.f32 %v6833, %v850
      %v6994 = vmul.f32 %v6834, %v851
      %v6995 = vmul.f32 %v6835, %v852
      %v6996 = vmul.f32 %v6836, %v853
      %v6997 = vmul.f32 %v6837, %v854
      %v6998 = vmul.f32 %v6838, %v855
      %v6999 = vmul.f32 %v6839, %v856
      %v7000 = vmul.f32 %v6840, %v857
      %v7001 = vmul.f32 %v6841, %v858
      %v7002 = vmul.f32 %v6842, %v859
      %v7003 = vmul.f32 %v6843, %v860
      %v7004 = vmul.f32 %v6844, %v861
      %v7005 = vmul.f32 %v6845, %v862
      %v7006 = vmul.f32 %v6846, %v863
      %v7007 = vmul.f32 %v6847, %v864
      %v7008 = vmul.f32 %v6848, %v865
      %v7009 = vmul.f32 %v6849, %v866
      %v7010 = vmul.f32 %v6850, %v867
      %v7011 = vmul.f32 %v6851, %v868
      %v7012 = vmul.f32 %v6852, %v869
      %v7013 = vmul.f32 %v6853, %v870
      %v7014 = vmul.f32 %v6854, %v871
      %v7015 = vmul.f32 %v6855, %v872
      %v7016 = vmul.f32 %v6856, %v873
      %v7017 = vmul.f32 %v6857, %v874
      %v7018 = vmul.f32 %v6858, %v875
      %v7019 = vmul.f32 %v6859, %v876
      %v7020 = vmul.f32 %v6860, %v877
      %v7021 = vmul.f32 %v6861, %v878
      %v7022 = vmul.f32 %v6990, %v879
      %v7023 = vmul.f32 %v6991, %v880
      %v7024 = vld [vmem:[#allocation2 + $0x108] sm:$0xff]
      %v7025 = vld [vmem:[#allocation2 + $0x110] sm:$0xff]
      %v7026 = vld [vmem:[#allocation2 + $0x109] sm:$0xff]
      %v7027 = vld [vmem:[#allocation2 + $0x111] sm:$0xff]
      %v7028 = vmul.f32 %v6928, %v945
      %v7029 = vmul.f32 %v6929, %v946
      %v7030 = vmul.f32 %v6930, %v947
      %v7031 = vmul.f32 %v6931, %v948
      %v7032 = vmul.f32 %v6932, %v949
      %v7033 = vmul.f32 %v6933, %v950
      %v7034 = vmul.f32 %v6934, %v951
      %v7035 = vmul.f32 %v6935, %v952
      %v7036 = vmul.f32 %v6936, %v953
      %v7037 = vmul.f32 %v6937, %v954
      %v7038 = vmul.f32 %v6938, %v955
      %v7039 = vmul.f32 %v6939, %v956
      %v7040 = vmul.f32 %v6940, %v957
      %v7041 = vmul.f32 %v6941, %v958
      %v7042 = vmul.f32 %v6942, %v959
      %v7043 = vmul.f32 %v6943, %v960
      %v7044 = vmul.f32 %v6944, %v961
      %v7045 = vmul.f32 %v6945, %v962
      %v7046 = vmul.f32 %v6946, %v963
      %v7047 = vmul.f32 %v6947, %v964
      %v7048 = vmul.f32 %v6948, %v965
      %v7049 = vmul.f32 %v6949, %v966
      %v7050 = vmul.f32 %v6950, %v967
      %v7051 = vmul.f32 %v6951, %v968
      %v7052 = vmul.f32 %v6952, %v969
      %v7053 = vmul.f32 %v6953, %v970
      %v7054 = vmul.f32 %v6954, %v971
      %v7055 = vmul.f32 %v6955, %v972
      %v7056 = vmul.f32 %v6956, %v973
      %v7057 = vmul.f32 %v6957, %v974
      %v7058 = vmul.f32 %v7026, %v975
      %v7059 = vmul.f32 %v7027, %v976
      %v7060 = vld [vmem:[#allocation2 + $0x117] sm:$0xff]
      %v7061 = vld [vmem:[#allocation2 + $0x11f] sm:$0xff]
      %v7062 = vmul.f32 %v6834, %v849
      %v7063 = vmul.f32 %v6835, %v850
      %v7064 = vmul.f32 %v6836, %v851
      %v7065 = vmul.f32 %v6837, %v852
      %v7066 = vmul.f32 %v6838, %v853
      %v7067 = vmul.f32 %v6839, %v854
      %v7068 = vmul.f32 %v6840, %v855
      %v7069 = vmul.f32 %v6841, %v856
      %v7070 = vmul.f32 %v6842, %v857
      %v7071 = vmul.f32 %v6843, %v858
      %v7072 = vmul.f32 %v6844, %v859
      %v7073 = vmul.f32 %v6845, %v860
      %v7074 = vmul.f32 %v6846, %v861
      %v7075 = vmul.f32 %v6847, %v862
      %v7076 = vmul.f32 %v6848, %v863
      %v7077 = vmul.f32 %v6849, %v864
      %v7078 = vmul.f32 %v6850, %v865
      %v7079 = vmul.f32 %v6851, %v866
      %v7080 = vmul.f32 %v6852, %v867
      %v7081 = vmul.f32 %v6853, %v868
      %v7082 = vmul.f32 %v6854, %v869
      %v7083 = vmul.f32 %v6855, %v870
      %v7084 = vmul.f32 %v6856, %v871
      %v7085 = vmul.f32 %v6857, %v872
      %v7086 = vmul.f32 %v6858, %v873
      %v7087 = vmul.f32 %v6859, %v874
      %v7088 = vmul.f32 %v6860, %v875
      %v7089 = vmul.f32 %v6861, %v876
      %v7090 = vmul.f32 %v6990, %v877
      %v7091 = vmul.f32 %v6991, %v878
      %v7092 = vmul.f32 %v7060, %v879
      %v7093 = vmul.f32 %v7061, %v880
      %v7094 = vld [vmem:[#allocation2 + $0x118] sm:$0xff]
      %v7095 = vld [vmem:[#allocation2 + $0x120] sm:$0xff]
      %v7096 = vld [vmem:[#allocation2 + $0x119] sm:$0xff]
      %v7097 = vld [vmem:[#allocation2 + $0x121] sm:$0xff]
      %v7098 = vmul.f32 %v6930, %v945
      %v7099 = vmul.f32 %v6931, %v946
      %v7100 = vmul.f32 %v6932, %v947
      %v7101 = vmul.f32 %v6933, %v948
      %v7102 = vmul.f32 %v6934, %v949
      %v7103 = vmul.f32 %v6935, %v950
      %v7104 = vmul.f32 %v6936, %v951
      %v7105 = vmul.f32 %v6937, %v952
      %v7106 = vmul.f32 %v6938, %v953
      %v7107 = vmul.f32 %v6939, %v954
      %v7108 = vmul.f32 %v6940, %v955
      %v7109 = vmul.f32 %v6941, %v956
      %v7110 = vmul.f32 %v6942, %v957
      %v7111 = vmul.f32 %v6943, %v958
      %v7112 = vmul.f32 %v6944, %v959
      %v7113 = vmul.f32 %v6945, %v960
      %v7114 = vmul.f32 %v6946, %v961
      %v7115 = vmul.f32 %v6947, %v962
      %v7116 = vmul.f32 %v6948, %v963
      %v7117 = vmul.f32 %v6949, %v964
      %v7118 = vmul.f32 %v6950, %v965
      %v7119 = vmul.f32 %v6951, %v966
      %v7120 = vmul.f32 %v6952, %v967
      %v7121 = vmul.f32 %v6953, %v968
      %v7122 = vmul.f32 %v6954, %v969
      %v7123 = vmul.f32 %v6955, %v970
      %v7124 = vmul.f32 %v6956, %v971
      %v7125 = vmul.f32 %v6957, %v972
      %v7126 = vmul.f32 %v7026, %v973
      %v7127 = vmul.f32 %v7027, %v974
      %v7128 = vmul.f32 %v7096, %v975
      %v7129 = vmul.f32 %v7097, %v976
      %7162 = vrot.lane.b32.xlu0 %v6894, 16
      %v7163 = vpop.permute.xlu0 %7162
      %7164 = vrot.lane.b32.xlu0 %v6895, 16
      %v7165 = vpop.permute.xlu0 %7164
      %7166 = vrot.lane.b32.xlu0 %v6896, 16
      %v7167 = vpop.permute.xlu0 %7166
      %7168 = vrot.lane.b32.xlu0 %v6897, 16
      %v7169 = vpop.permute.xlu0 %7168
      %7170 = vrot.lane.b32.xlu0 %v6898, 16
      %v7171 = vpop.permute.xlu0 %7170
      %7172 = vrot.lane.b32.xlu0 %v6899, 16
      %v7173 = vpop.permute.xlu0 %7172
      %7174 = vrot.lane.b32.xlu0 %v6900, 16
      %v7175 = vpop.permute.xlu0 %7174
      %7176 = vrot.lane.b32.xlu0 %v6901, 16
      %v7177 = vpop.permute.xlu0 %7176
      %7178 = vrot.lane.b32.xlu0 %v6902, 16
      %v7179 = vpop.permute.xlu0 %7178
      %7180 = vrot.lane.b32.xlu0 %v6903, 16
      %v7181 = vpop.permute.xlu0 %7180
      %7182 = vrot.lane.b32.xlu0 %v6904, 16
      %v7183 = vpop.permute.xlu0 %7182
      %7184 = vrot.lane.b32.xlu0 %v6905, 16
      %v7185 = vpop.permute.xlu0 %7184
      %7186 = vrot.lane.b32.xlu0 %v6906, 16
      %v7187 = vpop.permute.xlu0 %7186
      %7188 = vrot.lane.b32.xlu0 %v6907, 16
      %v7189 = vpop.permute.xlu0 %7188
      %7190 = vrot.lane.b32.xlu0 %v6908, 16
      %v7191 = vpop.permute.xlu0 %7190
      %7192 = vrot.lane.b32.xlu0 %v6909, 16
      %v7193 = vpop.permute.xlu0 %7192
      %7194 = vrot.lane.b32.xlu0 %v6910, 16
      %v7195 = vpop.permute.xlu0 %7194
      %7196 = vrot.lane.b32.xlu0 %v6911, 16
      %v7197 = vpop.permute.xlu0 %7196
      %7198 = vrot.lane.b32.xlu0 %v6912, 16
      %v7199 = vpop.permute.xlu0 %7198
      %7200 = vrot.lane.b32.xlu0 %v6913, 16
      %v7201 = vpop.permute.xlu0 %7200
      %7202 = vrot.lane.b32.xlu0 %v6914, 16
      %v7203 = vpop.permute.xlu0 %7202
      %7204 = vrot.lane.b32.xlu0 %v6915, 16
      %v7205 = vpop.permute.xlu0 %7204
      %7206 = vrot.lane.b32.xlu0 %v6916, 16
      %v7207 = vpop.permute.xlu0 %7206
      %7208 = vrot.lane.b32.xlu0 %v6917, 16
      %v7209 = vpop.permute.xlu0 %7208
      %7210 = vrot.lane.b32.xlu0 %v6918, 16
      %v7211 = vpop.permute.xlu0 %7210
      %7212 = vrot.lane.b32.xlu0 %v6919, 16
      %v7213 = vpop.permute.xlu0 %7212
      %7214 = vrot.lane.b32.xlu0 %v6920, 16
      %v7215 = vpop.permute.xlu0 %7214
      %7216 = vrot.lane.b32.xlu0 %v6921, 16
      %v7217 = vpop.permute.xlu0 %7216
      %7218 = vrot.lane.b32.xlu0 %v6922, 16
      %v7219 = vpop.permute.xlu0 %7218
      %7220 = vrot.lane.b32.xlu0 %v6923, 16
      %v7221 = vpop.permute.xlu0 %7220
      %7222 = vrot.lane.b32.xlu0 %v6924, 16
      %v7223 = vpop.permute.xlu0 %7222
      %7224 = vrot.lane.b32.xlu0 %v6925, 16
      %v7225 = vpop.permute.xlu0 %7224
      %7290 = vrot.lane.b32.xlu0 %v6958, 32
      %v7291 = vpop.permute.xlu0 %7290
      %7292 = vrot.lane.b32.xlu0 %v6959, 32
      %v7293 = vpop.permute.xlu0 %7292
      %7294 = vrot.lane.b32.xlu0 %v6960, 32
      %v7295 = vpop.permute.xlu0 %7294
      %7296 = vrot.lane.b32.xlu0 %v6961, 32
      %v7297 = vpop.permute.xlu0 %7296
      %7298 = vrot.lane.b32.xlu0 %v6962, 32
      %v7299 = vpop.permute.xlu0 %7298
      %7300 = vrot.lane.b32.xlu0 %v6963, 32
      %v7301 = vpop.permute.xlu0 %7300
      %7302 = vrot.lane.b32.xlu0 %v6964, 32
      %v7303 = vpop.permute.xlu0 %7302
      %7304 = vrot.lane.b32.xlu0 %v6965, 32
      %v7305 = vpop.permute.xlu0 %7304
      %7306 = vrot.lane.b32.xlu0 %v6966, 32
      %v7307 = vpop.permute.xlu0 %7306
      %7308 = vrot.lane.b32.xlu0 %v6967, 32
      %v7309 = vpop.permute.xlu0 %7308
      %7310 = vrot.lane.b32.xlu0 %v6968, 32
      %v7311 = vpop.permute.xlu0 %7310
      %7312 = vrot.lane.b32.xlu0 %v6969, 32
      %v7313 = vpop.permute.xlu0 %7312
      %7314 = vrot.lane.b32.xlu0 %v6970, 32
      %v7315 = vpop.permute.xlu0 %7314
      %7316 = vrot.lane.b32.xlu0 %v6971, 32
      %v7317 = vpop.permute.xlu0 %7316
      %7318 = vrot.lane.b32.xlu0 %v6972, 32
      %v7319 = vpop.permute.xlu0 %7318
      %7320 = vrot.lane.b32.xlu0 %v6973, 32
      %v7321 = vpop.permute.xlu0 %7320
      %7322 = vrot.lane.b32.xlu0 %v6974, 32
      %v7323 = vpop.permute.xlu0 %7322
      %7324 = vrot.lane.b32.xlu0 %v6975, 32
      %v7325 = vpop.permute.xlu0 %7324
      %7326 = vrot.lane.b32.xlu0 %v6976, 32
      %v7327 = vpop.permute.xlu0 %7326
      %7328 = vrot.lane.b32.xlu0 %v6977, 32
      %v7329 = vpop.permute.xlu0 %7328
      %7330 = vrot.lane.b32.xlu0 %v6978, 32
      %v7331 = vpop.permute.xlu0 %7330
      %7332 = vrot.lane.b32.xlu0 %v6979, 32
      %v7333 = vpop.permute.xlu0 %7332
      %7334 = vrot.lane.b32.xlu0 %v6980, 32
      %v7335 = vpop.permute.xlu0 %7334
      %7336 = vrot.lane.b32.xlu0 %v6981, 32
      %v7337 = vpop.permute.xlu0 %7336
      %7338 = vrot.lane.b32.xlu0 %v6982, 32
      %v7339 = vpop.permute.xlu0 %7338
      %7340 = vrot.lane.b32.xlu0 %v6983, 32
      %v7341 = vpop.permute.xlu0 %7340
      %7342 = vrot.lane.b32.xlu0 %v6984, 32
      %v7343 = vpop.permute.xlu0 %7342
      %7344 = vrot.lane.b32.xlu0 %v6985, 32
      %v7345 = vpop.permute.xlu0 %7344
      %7346 = vrot.lane.b32.xlu0 %v6986, 32
      %v7347 = vpop.permute.xlu0 %7346
      %7348 = vrot.lane.b32.xlu0 %v6987, 32
      %v7349 = vpop.permute.xlu0 %7348
      %7350 = vrot.lane.b32.xlu0 %v6988, 32
      %v7351 = vpop.permute.xlu0 %7350
      %7352 = vrot.lane.b32.xlu0 %v6989, 32
      %v7353 = vpop.permute.xlu0 %7352
      %7418 = vrot.lane.b32.xlu0 %v6992, 48
      %v7419 = vpop.permute.xlu0 %7418
      %7420 = vrot.lane.b32.xlu0 %v6993, 48
      %v7421 = vpop.permute.xlu0 %7420
      %7422 = vrot.lane.b32.xlu0 %v6994, 48
      %v7423 = vpop.permute.xlu0 %7422
      %7424 = vrot.lane.b32.xlu0 %v6995, 48
      %v7425 = vpop.permute.xlu0 %7424
      %7426 = vrot.lane.b32.xlu0 %v6996, 48
      %v7427 = vpop.permute.xlu0 %7426
      %7428 = vrot.lane.b32.xlu0 %v6997, 48
      %v7429 = vpop.permute.xlu0 %7428
      %7430 = vrot.lane.b32.xlu0 %v6998, 48
      %v7431 = vpop.permute.xlu0 %7430
      %7432 = vrot.lane.b32.xlu0 %v6999, 48
      %v7433 = vpop.permute.xlu0 %7432
      %7434 = vrot.lane.b32.xlu0 %v7000, 48
      %v7435 = vpop.permute.xlu0 %7434
      %7436 = vrot.lane.b32.xlu0 %v7001, 48
      %v7437 = vpop.permute.xlu0 %7436
      %7438 = vrot.lane.b32.xlu0 %v7002, 48
      %v7439 = vpop.permute.xlu0 %7438
      %7440 = vrot.lane.b32.xlu0 %v7003, 48
      %v7441 = vpop.permute.xlu0 %7440
      %7442 = vrot.lane.b32.xlu0 %v7004, 48
      %v7443 = vpop.permute.xlu0 %7442
      %7444 = vrot.lane.b32.xlu0 %v7005, 48
      %v7445 = vpop.permute.xlu0 %7444
      %7446 = vrot.lane.b32.xlu0 %v7006, 48
      %v7447 = vpop.permute.xlu0 %7446
      %7448 = vrot.lane.b32.xlu0 %v7007, 48
      %v7449 = vpop.permute.xlu0 %7448
      %7450 = vrot.lane.b32.xlu0 %v7008, 48
      %v7451 = vpop.permute.xlu0 %7450
      %7452 = vrot.lane.b32.xlu0 %v7009, 48
      %v7453 = vpop.permute.xlu0 %7452
      %7454 = vrot.lane.b32.xlu0 %v7010, 48
      %v7455 = vpop.permute.xlu0 %7454
      %7456 = vrot.lane.b32.xlu0 %v7011, 48
      %v7457 = vpop.permute.xlu0 %7456
      %7458 = vrot.lane.b32.xlu0 %v7012, 48
      %v7459 = vpop.permute.xlu0 %7458
      %7460 = vrot.lane.b32.xlu0 %v7013, 48
      %v7461 = vpop.permute.xlu0 %7460
      %7462 = vrot.lane.b32.xlu0 %v7014, 48
      %v7463 = vpop.permute.xlu0 %7462
      %7464 = vrot.lane.b32.xlu0 %v7015, 48
      %v7465 = vpop.permute.xlu0 %7464
      %7466 = vrot.lane.b32.xlu0 %v7016, 48
      %v7467 = vpop.permute.xlu0 %7466
      %7468 = vrot.lane.b32.xlu0 %v7017, 48
      %v7469 = vpop.permute.xlu0 %7468
      %7470 = vrot.lane.b32.xlu0 %v7018, 48
      %v7471 = vpop.permute.xlu0 %7470
      %7472 = vrot.lane.b32.xlu0 %v7019, 48
      %v7473 = vpop.permute.xlu0 %7472
      %7474 = vrot.lane.b32.xlu0 %v7020, 48
      %v7475 = vpop.permute.xlu0 %7474
      %7476 = vrot.lane.b32.xlu0 %v7021, 48
      %v7477 = vpop.permute.xlu0 %7476
      %7478 = vrot.lane.b32.xlu0 %v7022, 48
      %v7479 = vpop.permute.xlu0 %7478
      %7480 = vrot.lane.b32.xlu0 %v7023, 48
      %v7481 = vpop.permute.xlu0 %7480
      %7516 = vrot.lane.b32.xlu0 %v6896, 64
      %v7517 = vpop.permute.xlu0 %7516
      %7518 = vrot.lane.b32.xlu0 %v6897, 64
      %v7519 = vpop.permute.xlu0 %7518
      %7520 = vrot.lane.b32.xlu0 %v6898, 64
      %v7521 = vpop.permute.xlu0 %7520
      %7522 = vrot.lane.b32.xlu0 %v6899, 64
      %v7523 = vpop.permute.xlu0 %7522
      %7524 = vrot.lane.b32.xlu0 %v6900, 64
      %v7525 = vpop.permute.xlu0 %7524
      %7526 = vrot.lane.b32.xlu0 %v6901, 64
      %v7527 = vpop.permute.xlu0 %7526
      %7528 = vrot.lane.b32.xlu0 %v6902, 64
      %v7529 = vpop.permute.xlu0 %7528
      %7530 = vrot.lane.b32.xlu0 %v6903, 64
      %v7531 = vpop.permute.xlu0 %7530
      %7532 = vrot.lane.b32.xlu0 %v6904, 64
      %v7533 = vpop.permute.xlu0 %7532
      %7534 = vrot.lane.b32.xlu0 %v6905, 64
      %v7535 = vpop.permute.xlu0 %7534
      %7536 = vrot.lane.b32.xlu0 %v6906, 64
      %v7537 = vpop.permute.xlu0 %7536
      %7538 = vrot.lane.b32.xlu0 %v6907, 64
      %v7539 = vpop.permute.xlu0 %7538
      %7540 = vrot.lane.b32.xlu0 %v6908, 64
      %v7541 = vpop.permute.xlu0 %7540
      %7542 = vrot.lane.b32.xlu0 %v6909, 64
      %v7543 = vpop.permute.xlu0 %7542
      %7544 = vrot.lane.b32.xlu0 %v6910, 64
      %v7545 = vpop.permute.xlu0 %7544
      %7546 = vrot.lane.b32.xlu0 %v6911, 64
      %v7547 = vpop.permute.xlu0 %7546
      %7548 = vrot.lane.b32.xlu0 %v6912, 64
      %v7549 = vpop.permute.xlu0 %7548
      %7550 = vrot.lane.b32.xlu0 %v6913, 64
      %v7551 = vpop.permute.xlu0 %7550
      %7552 = vrot.lane.b32.xlu0 %v6914, 64
      %v7553 = vpop.permute.xlu0 %7552
      %7554 = vrot.lane.b32.xlu0 %v6915, 64
      %v7555 = vpop.permute.xlu0 %7554
      %7556 = vrot.lane.b32.xlu0 %v6916, 64
      %v7557 = vpop.permute.xlu0 %7556
      %7558 = vrot.lane.b32.xlu0 %v6917, 64
      %v7559 = vpop.permute.xlu0 %7558
      %7560 = vrot.lane.b32.xlu0 %v6918, 64
      %v7561 = vpop.permute.xlu0 %7560
      %7562 = vrot.lane.b32.xlu0 %v6919, 64
      %v7563 = vpop.permute.xlu0 %7562
      %7564 = vrot.lane.b32.xlu0 %v6920, 64
      %v7565 = vpop.permute.xlu0 %7564
      %7566 = vrot.lane.b32.xlu0 %v6921, 64
      %v7567 = vpop.permute.xlu0 %7566
      %7568 = vrot.lane.b32.xlu0 %v6922, 64
      %v7569 = vpop.permute.xlu0 %7568
      %7570 = vrot.lane.b32.xlu0 %v6923, 64
      %v7571 = vpop.permute.xlu0 %7570
      %7572 = vrot.lane.b32.xlu0 %v6924, 64
      %v7573 = vpop.permute.xlu0 %7572
      %7574 = vrot.lane.b32.xlu0 %v6925, 64
      %v7575 = vpop.permute.xlu0 %7574
      %7576 = vrot.lane.b32.xlu0 %v7024, 64
      %v7577 = vpop.permute.xlu0 %7576
      %7578 = vrot.lane.b32.xlu0 %v7025, 64
      %v7579 = vpop.permute.xlu0 %7578
      %7644 = vrot.lane.b32.xlu0 %v7028, 80
      %v7645 = vpop.permute.xlu0 %7644
      %7646 = vrot.lane.b32.xlu0 %v7029, 80
      %v7647 = vpop.permute.xlu0 %7646
      %7648 = vrot.lane.b32.xlu0 %v7030, 80
      %v7649 = vpop.permute.xlu0 %7648
      %7650 = vrot.lane.b32.xlu0 %v7031, 80
      %v7651 = vpop.permute.xlu0 %7650
      %7652 = vrot.lane.b32.xlu0 %v7032, 80
      %v7653 = vpop.permute.xlu0 %7652
      %7654 = vrot.lane.b32.xlu0 %v7033, 80
      %v7655 = vpop.permute.xlu0 %7654
      %7656 = vrot.lane.b32.xlu0 %v7034, 80
      %v7657 = vpop.permute.xlu0 %7656
      %7658 = vrot.lane.b32.xlu0 %v7035, 80
      %v7659 = vpop.permute.xlu0 %7658
      %7660 = vrot.lane.b32.xlu0 %v7036, 80
      %v7661 = vpop.permute.xlu0 %7660
      %7662 = vrot.lane.b32.xlu0 %v7037, 80
      %v7663 = vpop.permute.xlu0 %7662
      %7664 = vrot.lane.b32.xlu0 %v7038, 80
      %v7665 = vpop.permute.xlu0 %7664
      %7666 = vrot.lane.b32.xlu0 %v7039, 80
      %v7667 = vpop.permute.xlu0 %7666
      %7668 = vrot.lane.b32.xlu0 %v7040, 80
      %v7669 = vpop.permute.xlu0 %7668
      %7670 = vrot.lane.b32.xlu0 %v7041, 80
      %v7671 = vpop.permute.xlu0 %7670
      %7672 = vrot.lane.b32.xlu0 %v7042, 80
      %v7673 = vpop.permute.xlu0 %7672
      %7674 = vrot.lane.b32.xlu0 %v7043, 80
      %v7675 = vpop.permute.xlu0 %7674
      %7676 = vrot.lane.b32.xlu0 %v7044, 80
      %v7677 = vpop.permute.xlu0 %7676
      %7678 = vrot.lane.b32.xlu0 %v7045, 80
      %v7679 = vpop.permute.xlu0 %7678
      %7680 = vrot.lane.b32.xlu0 %v7046, 80
      %v7681 = vpop.permute.xlu0 %7680
      %7682 = vrot.lane.b32.xlu0 %v7047, 80
      %v7683 = vpop.permute.xlu0 %7682
      %7684 = vrot.lane.b32.xlu0 %v7048, 80
      %v7685 = vpop.permute.xlu0 %7684
      %7686 = vrot.lane.b32.xlu0 %v7049, 80
      %v7687 = vpop.permute.xlu0 %7686
      %7688 = vrot.lane.b32.xlu0 %v7050, 80
      %v7689 = vpop.permute.xlu0 %7688
      %7690 = vrot.lane.b32.xlu0 %v7051, 80
      %v7691 = vpop.permute.xlu0 %7690
      %7692 = vrot.lane.b32.xlu0 %v7052, 80
      %v7693 = vpop.permute.xlu0 %7692
      %7694 = vrot.lane.b32.xlu0 %v7053, 80
      %v7695 = vpop.permute.xlu0 %7694
      %7696 = vrot.lane.b32.xlu0 %v7054, 80
      %v7697 = vpop.permute.xlu0 %7696
      %7698 = vrot.lane.b32.xlu0 %v7055, 80
      %v7699 = vpop.permute.xlu0 %7698
      %7700 = vrot.lane.b32.xlu0 %v7056, 80
      %v7701 = vpop.permute.xlu0 %7700
      %7702 = vrot.lane.b32.xlu0 %v7057, 80
      %v7703 = vpop.permute.xlu0 %7702
      %7704 = vrot.lane.b32.xlu0 %v7058, 80
      %v7705 = vpop.permute.xlu0 %7704
      %7706 = vrot.lane.b32.xlu0 %v7059, 80
      %v7707 = vpop.permute.xlu0 %7706
      %7772 = vrot.lane.b32.xlu0 %v7062, 96
      %v7773 = vpop.permute.xlu0 %7772
      %7774 = vrot.lane.b32.xlu0 %v7063, 96
      %v7775 = vpop.permute.xlu0 %7774
      %7776 = vrot.lane.b32.xlu0 %v7064, 96
      %v7777 = vpop.permute.xlu0 %7776
      %7778 = vrot.lane.b32.xlu0 %v7065, 96
      %v7779 = vpop.permute.xlu0 %7778
      %7780 = vrot.lane.b32.xlu0 %v7066, 96
      %v7781 = vpop.permute.xlu0 %7780
      %7782 = vrot.lane.b32.xlu0 %v7067, 96
      %v7783 = vpop.permute.xlu0 %7782
      %7784 = vrot.lane.b32.xlu0 %v7068, 96
      %v7785 = vpop.permute.xlu0 %7784
      %7786 = vrot.lane.b32.xlu0 %v7069, 96
      %v7787 = vpop.permute.xlu0 %7786
      %7788 = vrot.lane.b32.xlu0 %v7070, 96
      %v7789 = vpop.permute.xlu0 %7788
      %7790 = vrot.lane.b32.xlu0 %v7071, 96
      %v7791 = vpop.permute.xlu0 %7790
      %7792 = vrot.lane.b32.xlu0 %v7072, 96
      %v7793 = vpop.permute.xlu0 %7792
      %7794 = vrot.lane.b32.xlu0 %v7073, 96
      %v7795 = vpop.permute.xlu0 %7794
      %7796 = vrot.lane.b32.xlu0 %v7074, 96
      %v7797 = vpop.permute.xlu0 %7796
      %7798 = vrot.lane.b32.xlu0 %v7075, 96
      %v7799 = vpop.permute.xlu0 %7798
      %7800 = vrot.lane.b32.xlu0 %v7076, 96
      %v7801 = vpop.permute.xlu0 %7800
      %7802 = vrot.lane.b32.xlu0 %v7077, 96
      %v7803 = vpop.permute.xlu0 %7802
      %7804 = vrot.lane.b32.xlu0 %v7078, 96
      %v7805 = vpop.permute.xlu0 %7804
      %7806 = vrot.lane.b32.xlu0 %v7079, 96
      %v7807 = vpop.permute.xlu0 %7806
      %7808 = vrot.lane.b32.xlu0 %v7080, 96
      %v7809 = vpop.permute.xlu0 %7808
      %7810 = vrot.lane.b32.xlu0 %v7081, 96
      %v7811 = vpop.permute.xlu0 %7810
      %7812 = vrot.lane.b32.xlu0 %v7082, 96
      %v7813 = vpop.permute.xlu0 %7812
      %7814 = vrot.lane.b32.xlu0 %v7083, 96
      %v7815 = vpop.permute.xlu0 %7814
      %7816 = vrot.lane.b32.xlu0 %v7084, 96
      %v7817 = vpop.permute.xlu0 %7816
      %7818 = vrot.lane.b32.xlu0 %v7085, 96
      %v7819 = vpop.permute.xlu0 %7818
      %7820 = vrot.lane.b32.xlu0 %v7086, 96
      %v7821 = vpop.permute.xlu0 %7820
      %7822 = vrot.lane.b32.xlu0 %v7087, 96
      %v7823 = vpop.permute.xlu0 %7822
      %7824 = vrot.lane.b32.xlu0 %v7088, 96
      %v7825 = vpop.permute.xlu0 %7824
      %7826 = vrot.lane.b32.xlu0 %v7089, 96
      %v7827 = vpop.permute.xlu0 %7826
      %7828 = vrot.lane.b32.xlu0 %v7090, 96
      %v7829 = vpop.permute.xlu0 %7828
      %7830 = vrot.lane.b32.xlu0 %v7091, 96
      %v7831 = vpop.permute.xlu0 %7830
      %7832 = vrot.lane.b32.xlu0 %v7092, 96
      %v7833 = vpop.permute.xlu0 %7832
      %7834 = vrot.lane.b32.xlu0 %v7093, 96
      %v7835 = vpop.permute.xlu0 %7834
      %7870 = vrot.lane.b32.xlu0 %v6898, 112
      %v7871 = vpop.permute.xlu0 %7870
      %7872 = vrot.lane.b32.xlu0 %v6899, 112
      %v7873 = vpop.permute.xlu0 %7872
      %7874 = vrot.lane.b32.xlu0 %v6900, 112
      %v7875 = vpop.permute.xlu0 %7874
      %7876 = vrot.lane.b32.xlu0 %v6901, 112
      %v7877 = vpop.permute.xlu0 %7876
      %7878 = vrot.lane.b32.xlu0 %v6902, 112
      %v7879 = vpop.permute.xlu0 %7878
      %7880 = vrot.lane.b32.xlu0 %v6903, 112
      %v7881 = vpop.permute.xlu0 %7880
      %7882 = vrot.lane.b32.xlu0 %v6904, 112
      %v7883 = vpop.permute.xlu0 %7882
      %7884 = vrot.lane.b32.xlu0 %v6905, 112
      %v7885 = vpop.permute.xlu0 %7884
      %7886 = vrot.lane.b32.xlu0 %v6906, 112
      %v7887 = vpop.permute.xlu0 %7886
      %7888 = vrot.lane.b32.xlu0 %v6907, 112
      %v7889 = vpop.permute.xlu0 %7888
      %7890 = vrot.lane.b32.xlu0 %v6908, 112
      %v7891 = vpop.permute.xlu0 %7890
      %7892 = vrot.lane.b32.xlu0 %v6909, 112
      %v7893 = vpop.permute.xlu0 %7892
      %7894 = vrot.lane.b32.xlu0 %v6910, 112
      %v7895 = vpop.permute.xlu0 %7894
      %7896 = vrot.lane.b32.xlu0 %v6911, 112
      %v7897 = vpop.permute.xlu0 %7896
      %7898 = vrot.lane.b32.xlu0 %v6912, 112
      %v7899 = vpop.permute.xlu0 %7898
      %7900 = vrot.lane.b32.xlu0 %v6913, 112
      %v7901 = vpop.permute.xlu0 %7900
      %7902 = vrot.lane.b32.xlu0 %v6914, 112
      %v7903 = vpop.permute.xlu0 %7902
      %7904 = vrot.lane.b32.xlu0 %v6915, 112
      %v7905 = vpop.permute.xlu0 %7904
      %7906 = vrot.lane.b32.xlu0 %v6916, 112
      %v7907 = vpop.permute.xlu0 %7906
      %7908 = vrot.lane.b32.xlu0 %v6917, 112
      %v7909 = vpop.permute.xlu0 %7908
      %7910 = vrot.lane.b32.xlu0 %v6918, 112
      %v7911 = vpop.permute.xlu0 %7910
      %7912 = vrot.lane.b32.xlu0 %v6919, 112
      %v7913 = vpop.permute.xlu0 %7912
      %7914 = vrot.lane.b32.xlu0 %v6920, 112
      %v7915 = vpop.permute.xlu0 %7914
      %7916 = vrot.lane.b32.xlu0 %v6921, 112
      %v7917 = vpop.permute.xlu0 %7916
      %7918 = vrot.lane.b32.xlu0 %v6922, 112
      %v7919 = vpop.permute.xlu0 %7918
      %7920 = vrot.lane.b32.xlu0 %v6923, 112
      %v7921 = vpop.permute.xlu0 %7920
      %7922 = vrot.lane.b32.xlu0 %v6924, 112
      %v7923 = vpop.permute.xlu0 %7922
      %7924 = vrot.lane.b32.xlu0 %v6925, 112
      %v7925 = vpop.permute.xlu0 %7924
      %7926 = vrot.lane.b32.xlu0 %v7024, 112
      %v7927 = vpop.permute.xlu0 %7926
      %7928 = vrot.lane.b32.xlu0 %v7025, 112
      %v7929 = vpop.permute.xlu0 %7928
      %7930 = vrot.lane.b32.xlu0 %v7094, 112
      %v7931 = vpop.permute.xlu0 %7930
      %7932 = vrot.lane.b32.xlu0 %v7095, 112
      %v7933 = vpop.permute.xlu0 %7932
      %v7966 = vsel %vm361, %v6862, %v7163
      %v7967 = vsel %vm361, %v6863, %v7165
      %v7968 = vsel %vm361, %v6864, %v7167
      %v7969 = vsel %vm361, %v6865, %v7169
      %v7970 = vsel %vm361, %v6866, %v7171
      %v7971 = vsel %vm361, %v6867, %v7173
      %v7972 = vsel %vm361, %v6868, %v7175
      %v7973 = vsel %vm361, %v6869, %v7177
      %v7974 = vsel %vm361, %v6870, %v7179
      %v7975 = vsel %vm361, %v6871, %v7181
      %v7976 = vsel %vm361, %v6872, %v7183
      %v7977 = vsel %vm361, %v6873, %v7185
      %v7978 = vsel %vm361, %v6874, %v7187
      %v7979 = vsel %vm361, %v6875, %v7189
      %v7980 = vsel %vm361, %v6876, %v7191
      %v7981 = vsel %vm361, %v6877, %v7193
      %v7982 = vsel %vm361, %v6878, %v7195
      %v7983 = vsel %vm361, %v6879, %v7197
      %v7984 = vsel %vm361, %v6880, %v7199
      %v7985 = vsel %vm361, %v6881, %v7201
      %v7986 = vsel %vm361, %v6882, %v7203
      %v7987 = vsel %vm361, %v6883, %v7205
      %v7988 = vsel %vm361, %v6884, %v7207
      %v7989 = vsel %vm361, %v6885, %v7209
      %v7990 = vsel %vm361, %v6886, %v7211
      %v7991 = vsel %vm361, %v6887, %v7213
      %v7992 = vsel %vm361, %v6888, %v7215
      %v7993 = vsel %vm361, %v6889, %v7217
      %v7994 = vsel %vm361, %v6890, %v7219
      %v7995 = vsel %vm361, %v6891, %v7221
      %v7996 = vsel %vm361, %v6892, %v7223
      %v7997 = vsel %vm361, %v6893, %v7225
      %v7998 = vsel %vm2535, %v7966, %v7291
      %v7999 = vsel %vm2535, %v7967, %v7293
      %v8000 = vsel %vm2535, %v7968, %v7295
      %v8001 = vsel %vm2535, %v7969, %v7297
      %v8002 = vsel %vm2535, %v7970, %v7299
      %v8003 = vsel %vm2535, %v7971, %v7301
      %v8004 = vsel %vm2535, %v7972, %v7303
      %v8005 = vsel %vm2535, %v7973, %v7305
      %v8006 = vsel %vm2535, %v7974, %v7307
      %v8007 = vsel %vm2535, %v7975, %v7309
      %v8008 = vsel %vm2535, %v7976, %v7311
      %v8009 = vsel %vm2535, %v7977, %v7313
      %v8010 = vsel %vm2535, %v7978, %v7315
      %v8011 = vsel %vm2535, %v7979, %v7317
      %v8012 = vsel %vm2535, %v7980, %v7319
      %v8013 = vsel %vm2535, %v7981, %v7321
      %v8014 = vsel %vm2535, %v7982, %v7323
      %v8015 = vsel %vm2535, %v7983, %v7325
      %v8016 = vsel %vm2535, %v7984, %v7327
      %v8017 = vsel %vm2535, %v7985, %v7329
      %v8018 = vsel %vm2535, %v7986, %v7331
      %v8019 = vsel %vm2535, %v7987, %v7333
      %v8020 = vsel %vm2535, %v7988, %v7335
      %v8021 = vsel %vm2535, %v7989, %v7337
      %v8022 = vsel %vm2535, %v7990, %v7339
      %v8023 = vsel %vm2535, %v7991, %v7341
      %v8024 = vsel %vm2535, %v7992, %v7343
      %v8025 = vsel %vm2535, %v7993, %v7345
      %v8026 = vsel %vm2535, %v7994, %v7347
      %v8027 = vsel %vm2535, %v7995, %v7349
      %v8028 = vsel %vm2535, %v7996, %v7351
      %v8029 = vsel %vm2535, %v7997, %v7353
      %v8030 = vsel %vm4153, %v7998, %v7419
      %v8031 = vsel %vm4153, %v7999, %v7421
      %v8032 = vsel %vm4153, %v8000, %v7423
      %v8033 = vsel %vm4153, %v8001, %v7425
      %v8034 = vsel %vm4153, %v8002, %v7427
      %v8035 = vsel %vm4153, %v8003, %v7429
      %v8036 = vsel %vm4153, %v8004, %v7431
      %v8037 = vsel %vm4153, %v8005, %v7433
      %v8038 = vsel %vm4153, %v8006, %v7435
      %v8039 = vsel %vm4153, %v8007, %v7437
      %v8040 = vsel %vm4153, %v8008, %v7439
      %v8041 = vsel %vm4153, %v8009, %v7441
      %v8042 = vsel %vm4153, %v8010, %v7443
      %v8043 = vsel %vm4153, %v8011, %v7445
      %v8044 = vsel %vm4153, %v8012, %v7447
      %v8045 = vsel %vm4153, %v8013, %v7449
      %v8046 = vsel %vm4153, %v8014, %v7451
      %v8047 = vsel %vm4153, %v8015, %v7453
      %v8048 = vsel %vm4153, %v8016, %v7455
      %v8049 = vsel %vm4153, %v8017, %v7457
      %v8050 = vsel %vm4153, %v8018, %v7459
      %v8051 = vsel %vm4153, %v8019, %v7461
      %v8052 = vsel %vm4153, %v8020, %v7463
      %v8053 = vsel %vm4153, %v8021, %v7465
      %v8054 = vsel %vm4153, %v8022, %v7467
      %v8055 = vsel %vm4153, %v8023, %v7469
      %v8056 = vsel %vm4153, %v8024, %v7471
      %v8057 = vsel %vm4153, %v8025, %v7473
      %v8058 = vsel %vm4153, %v8026, %v7475
      %v8059 = vsel %vm4153, %v8027, %v7477
      %v8060 = vsel %vm4153, %v8028, %v7479
      %v8061 = vsel %vm4153, %v8029, %v7481
      %v8062 = vsel %vm4186, %v8030, %v7517
      %v8063 = vsel %vm4186, %v8031, %v7519
      %v8064 = vsel %vm4186, %v8032, %v7521
      %v8065 = vsel %vm4186, %v8033, %v7523
      %v8066 = vsel %vm4186, %v8034, %v7525
      %v8067 = vsel %vm4186, %v8035, %v7527
      %v8068 = vsel %vm4186, %v8036, %v7529
      %v8069 = vsel %vm4186, %v8037, %v7531
      %v8070 = vsel %vm4186, %v8038, %v7533
      %v8071 = vsel %vm4186, %v8039, %v7535
      %v8072 = vsel %vm4186, %v8040, %v7537
      %v8073 = vsel %vm4186, %v8041, %v7539
      %v8074 = vsel %vm4186, %v8042, %v7541
      %v8075 = vsel %vm4186, %v8043, %v7543
      %v8076 = vsel %vm4186, %v8044, %v7545
      %v8077 = vsel %vm4186, %v8045, %v7547
      %v8078 = vsel %vm4186, %v8046, %v7549
      %v8079 = vsel %vm4186, %v8047, %v7551
      %v8080 = vsel %vm4186, %v8048, %v7553
      %v8081 = vsel %vm4186, %v8049, %v7555
      %v8082 = vsel %vm4186, %v8050, %v7557
      %v8083 = vsel %vm4186, %v8051, %v7559
      %v8084 = vsel %vm4186, %v8052, %v7561
      %v8085 = vsel %vm4186, %v8053, %v7563
      %v8086 = vsel %vm4186, %v8054, %v7565
      %v8087 = vsel %vm4186, %v8055, %v7567
      %v8088 = vsel %vm4186, %v8056, %v7569
      %v8089 = vsel %vm4186, %v8057, %v7571
      %v8090 = vsel %vm4186, %v8058, %v7573
      %v8091 = vsel %vm4186, %v8059, %v7575
      %v8092 = vsel %vm4186, %v8060, %v7577
      %v8093 = vsel %vm4186, %v8061, %v7579
      %v8094 = vsel %vm4219, %v8062, %v7645
      %v8095 = vsel %vm4219, %v8063, %v7647
      %v8096 = vsel %vm4219, %v8064, %v7649
      %v8097 = vsel %vm4219, %v8065, %v7651
      %v8098 = vsel %vm4219, %v8066, %v7653
      %v8099 = vsel %vm4219, %v8067, %v7655
      %v8100 = vsel %vm4219, %v8068, %v7657
      %v8101 = vsel %vm4219, %v8069, %v7659
      %v8102 = vsel %vm4219, %v8070, %v7661
      %v8103 = vsel %vm4219, %v8071, %v7663
      %v8104 = vsel %vm4219, %v8072, %v7665
      %v8105 = vsel %vm4219, %v8073, %v7667
      %v8106 = vsel %vm4219, %v8074, %v7669
      %v8107 = vsel %vm4219, %v8075, %v7671
      %v8108 = vsel %vm4219, %v8076, %v7673
      %v8109 = vsel %vm4219, %v8077, %v7675
      %v8110 = vsel %vm4219, %v8078, %v7677
      %v8111 = vsel %vm4219, %v8079, %v7679
      %v8112 = vsel %vm4219, %v8080, %v7681
      %v8113 = vsel %vm4219, %v8081, %v7683
      %v8114 = vsel %vm4219, %v8082, %v7685
      %v8115 = vsel %vm4219, %v8083, %v7687
      %v8116 = vsel %vm4219, %v8084, %v7689
      %v8117 = vsel %vm4219, %v8085, %v7691
      %v8118 = vsel %vm4219, %v8086, %v7693
      %v8119 = vsel %vm4219, %v8087, %v7695
      %v8120 = vsel %vm4219, %v8088, %v7697
      %v8121 = vsel %vm4219, %v8089, %v7699
      %v8122 = vsel %vm4219, %v8090, %v7701
      %v8123 = vsel %vm4219, %v8091, %v7703
      %v8124 = vsel %vm4219, %v8092, %v7705
      %v8125 = vsel %vm4219, %v8093, %v7707
      %v8126 = vsel %vm4252, %v8094, %v7773
      %v8127 = vsel %vm4252, %v8095, %v7775
      %v8128 = vsel %vm4252, %v8096, %v7777
      %v8129 = vsel %vm4252, %v8097, %v7779
      %v8130 = vsel %vm4252, %v8098, %v7781
      %v8131 = vsel %vm4252, %v8099, %v7783
      %v8132 = vsel %vm4252, %v8100, %v7785
      %v8133 = vsel %vm4252, %v8101, %v7787
      %v8134 = vsel %vm4252, %v8102, %v7789
      %v8135 = vsel %vm4252, %v8103, %v7791
      %v8136 = vsel %vm4252, %v8104, %v7793
      %v8137 = vsel %vm4252, %v8105, %v7795
      %v8138 = vsel %vm4252, %v8106, %v7797
      %v8139 = vsel %vm4252, %v8107, %v7799
      %v8140 = vsel %vm4252, %v8108, %v7801
      %v8141 = vsel %vm4252, %v8109, %v7803
      %v8142 = vsel %vm4252, %v8110, %v7805
      %v8143 = vsel %vm4252, %v8111, %v7807
      %v8144 = vsel %vm4252, %v8112, %v7809
      %v8145 = vsel %vm4252, %v8113, %v7811
      %v8146 = vsel %vm4252, %v8114, %v7813
      %v8147 = vsel %vm4252, %v8115, %v7815
      %v8148 = vsel %vm4252, %v8116, %v7817
      %v8149 = vsel %vm4252, %v8117, %v7819
      %v8150 = vsel %vm4252, %v8118, %v7821
      %v8151 = vsel %vm4252, %v8119, %v7823
      %v8152 = vsel %vm4252, %v8120, %v7825
      %v8153 = vsel %vm4252, %v8121, %v7827
      %v8154 = vsel %vm4252, %v8122, %v7829
      %v8155 = vsel %vm4252, %v8123, %v7831
      %v8156 = vsel %vm4252, %v8124, %v7833
      %v8157 = vsel %vm4252, %v8125, %v7835
      %v8158 = vsel %vm4285, %v8126, %v7871
      %v8159 = vsel %vm4285, %v8127, %v7873
      %v8160 = vsel %vm4285, %v8128, %v7875
      %v8161 = vsel %vm4285, %v8129, %v7877
      %v8162 = vsel %vm4285, %v8130, %v7879
      %v8163 = vsel %vm4285, %v8131, %v7881
      %v8164 = vsel %vm4285, %v8132, %v7883
      %v8165 = vsel %vm4285, %v8133, %v7885
      %v8166 = vsel %vm4285, %v8134, %v7887
      %v8167 = vsel %vm4285, %v8135, %v7889
      %v8168 = vsel %vm4285, %v8136, %v7891
      %v8169 = vsel %vm4285, %v8137, %v7893
      %v8170 = vsel %vm4285, %v8138, %v7895
      %v8171 = vsel %vm4285, %v8139, %v7897
      %v8172 = vsel %vm4285, %v8140, %v7899
      %v8173 = vsel %vm4285, %v8141, %v7901
      %v8174 = vsel %vm4285, %v8142, %v7903
      %v8175 = vsel %vm4285, %v8143, %v7905
      %v8176 = vsel %vm4285, %v8144, %v7907
      %v8177 = vsel %vm4285, %v8145, %v7909
      %v8178 = vsel %vm4285, %v8146, %v7911
      %v8179 = vsel %vm4285, %v8147, %v7913
      %v8180 = vsel %vm4285, %v8148, %v7915
      %v8181 = vsel %vm4285, %v8149, %v7917
      %v8182 = vsel %vm4285, %v8150, %v7919
      %v8183 = vsel %vm4285, %v8151, %v7921
      %v8184 = vsel %vm4285, %v8152, %v7923
      %v8185 = vsel %vm4285, %v8153, %v7925
      %v8186 = vsel %vm4285, %v8154, %v7927
      %v8187 = vsel %vm4285, %v8155, %v7929
      %v8188 = vsel %vm4285, %v8156, %v7931
      %v8189 = vsel %vm4285, %v8157, %v7933
      %v8190 = vpack.c.bf16 %v8159, %v8158
      %v8191 = vpack.c.bf16 %v7099, %v7098
      %v8192 = vpack.c.bf16 %v8161, %v8160
      %v8193 = vpack.c.bf16 %v7101, %v7100
      %v8194 = vpack.c.bf16 %v8163, %v8162
      %v8195 = vpack.c.bf16 %v7103, %v7102
      %v8196 = vpack.c.bf16 %v8165, %v8164
      %v8197 = vpack.c.bf16 %v7105, %v7104
      %v8198 = vpack.c.bf16 %v8167, %v8166
      %v8199 = vpack.c.bf16 %v7107, %v7106
      %v8200 = vpack.c.bf16 %v8169, %v8168
      %v8201 = vpack.c.bf16 %v7109, %v7108
      %v8202 = vpack.c.bf16 %v8171, %v8170
      %v8203 = vpack.c.bf16 %v7111, %v7110
      %v8204 = vpack.c.bf16 %v8173, %v8172
      %v8205 = vpack.c.bf16 %v7113, %v7112
      %v8206 = vpack.c.bf16 %v8175, %v8174
      %v8207 = vpack.c.bf16 %v7115, %v7114
      %v8208 = vpack.c.bf16 %v8177, %v8176
      %v8209 = vpack.c.bf16 %v7117, %v7116
      %v8210 = vpack.c.bf16 %v8179, %v8178
      %v8211 = vpack.c.bf16 %v7119, %v7118
      %v8212 = vpack.c.bf16 %v8181, %v8180
      %v8213 = vpack.c.bf16 %v7121, %v7120
      %v8214 = vpack.c.bf16 %v8183, %v8182
      %v8215 = vpack.c.bf16 %v7123, %v7122
      %v8216 = vpack.c.bf16 %v8185, %v8184
      %v8217 = vpack.c.bf16 %v7125, %v7124
      %v8218 = vpack.c.bf16 %v8187, %v8186
      %v8219 = vpack.c.bf16 %v7127, %v7126
      %v8220 = vpack.c.bf16 %v8189, %v8188
      %v8221 = vpack.c.bf16 %v7129, %v7128
      %v8222 = vld [vmem:[%s7] sm:$0xf]
      %v8223 = vld [vmem:[%s7 + $0x4] sm:$0xf]
      %v8224 = vld [vmem:[%s7 + $0x8] sm:$0xf]
      %v8225 = vld [vmem:[%s7 + $0xc] sm:$0xf]
      %v8226 = vld [vmem:[%s7 + $0x10] sm:$0xf]
      %v8227 = vld [vmem:[%s7 + $0x14] sm:$0xf]
      %v8228 = vld [vmem:[%s7 + $0x18] sm:$0xf]
      %v8229 = vld [vmem:[%s7 + $0x1c] sm:$0xf]
      %v8230 = vld [vmem:[%s7 + $0x20] sm:$0xf]
      %v8231 = vld [vmem:[%s7 + $0x24] sm:$0xf]
      %v8232 = vld [vmem:[%s7 + $0x28] sm:$0xf]
      %v8233 = vld [vmem:[%s7 + $0x2c] sm:$0xf]
      %v8234 = vld [vmem:[%s7 + $0x30] sm:$0xf]
      %v8235 = vld [vmem:[%s7 + $0x34] sm:$0xf]
      %v8236 = vld [vmem:[%s7 + $0x38] sm:$0xf]
      %v8237 = vld [vmem:[%s7 + $0x3c] sm:$0xf]
      %v8238 = vld [vmem:[%s7 + $0x40] sm:$0xf]
      %v8239 = vld [vmem:[%s7 + $0x44] sm:$0xf]
      %v8240 = vld [vmem:[%s8] sm:$0x1]
      %v8242 = vlaneseq
      %v8243 = vshrl.u32 %v8242, 7
      %v8244 = vsub.s32 0, %v8243
      %v8245 = vrot.slane %v8240, %v8244
      %v8265 = vunpack.c.l.b16 %v8222
      %v8266 = vunpack.c.l.b16 %v8223
      %v8267 = vunpack.c.l.b16 %v8224
      %v8268 = vunpack.c.l.b16 %v8225
      %v8269 = vunpack.c.l.b16 %v8226
      %v8270 = vunpack.c.l.b16 %v8227
      %v8271 = vunpack.c.l.b16 %v8228
      %v8272 = vunpack.c.l.b16 %v8229
      %v8273 = vunpack.c.l.b16 %v8230
      %v8274 = vunpack.c.l.b16 %v8231
      %v8275 = vunpack.c.l.b16 %v8232
      %v8276 = vunpack.c.l.b16 %v8233
      %v8277 = vunpack.c.l.b16 %v8234
      %v8278 = vunpack.c.l.b16 %v8235
      %v8279 = vunpack.c.l.b16 %v8236
      %v8280 = vunpack.c.l.b16 %v8237
      %v8281 = vunpack.c.l.b16 %v8238
      %v8282 = vunpack.c.l.b16 %v8239
      %v8283 = vpack.c.b16 %v8266, %v8265
      %v8284 = vpack.c.b16 %v8268, %v8267
      %v8285 = vpack.c.b16 %v8270, %v8269
      %v8286 = vpack.c.b16 %v8272, %v8271
      %v8287 = vpack.c.b16 %v8274, %v8273
      %v8288 = vpack.c.b16 %v8276, %v8275
      %v8289 = vpack.c.b16 %v8278, %v8277
      %v8290 = vpack.c.b16 %v8280, %v8279
      %v8291 = vpack.c.b16 %v8282, %v8281
      %v8302 = vsel %vm361, %v8191, 0
      %v8305 = vsel %vm361, %v8193, 0
      %v8308 = vsel %vm361, %v8195, 0
      %v8311 = vsel %vm361, %v8197, 0
      %v8314 = vsel %vm361, %v8199, 0
      %v8317 = vsel %vm361, %v8201, 0
      %v8320 = vsel %vm361, %v8203, 0
      %v8323 = vsel %vm361, %v8205, 0
      %v8326 = vsel %vm361, %v8207, 0
      %v8329 = vsel %vm361, %v8209, 0
      %v8332 = vsel %vm361, %v8211, 0
      %v8335 = vsel %vm361, %v8213, 0
      %v8338 = vsel %vm361, %v8215, 0
      %v8341 = vsel %vm361, %v8217, 0
      %v8344 = vsel %vm361, %v8219, 0
      %v8347 = vsel %vm361, %v8221, 0
      %8349 = vmatprep.subr.bf16.mxu0 0
      %8350 = vmatpush1.bf16.msra.mxu0 %v8283
      %8351 = vmatprep.subr.bf16.mxu0 0
      %8352 = vmatpush1.bf16.msra.mxu0 %v8284
      %8353 = vmatprep.subr.bf16.mxu0 0
      %8354 = vmatpush1.bf16.msra.mxu0 %v8285
      %8355 = vmatprep.subr.bf16.mxu0 0
      %8356 = vmatpush1.bf16.msra.mxu0 %v8286
      %8357 = vmatprep.subr.bf16.mxu0 0
      %8358 = vmatpush1.bf16.msra.mxu0 %v8287
      %8359 = vmatprep.subr.bf16.mxu0 0
      %8360 = vmatpush1.bf16.msra.mxu0 %v8288
      %8361 = vmatprep.subr.bf16.mxu0 0
      %8362 = vmatpush1.bf16.msra.mxu0 %v8289
      %8363 = vmatprep.subr.bf16.mxu0 0
      %8364 = vmatpush1.bf16.msra.mxu0 %v8290
      %8365 = vmatprep.subr.bf16.mxu0 0
      %8366 = vmatpush1.bf16.msra.mxu0 %v8291
      %8367 = vmatprep.subr.bf16.mxu0 0
      %8368 = vmatpush1.bf16.msra.mxu0 0
      %8369 = vmatprep.subr.bf16.mxu0 0
      %8370 = vmatpush1.bf16.msra.mxu0 0
      %8371 = vmatprep.subr.bf16.mxu0 0
      %8372 = vmatpush1.bf16.msra.mxu0 0
      %8373 = vmatprep.subr.bf16.mxu0 0
      %8374 = vmatpush1.bf16.msra.mxu0 0
      %8375 = vmatprep.subr.bf16.mxu0 0
      %8376 = vmatpush1.bf16.msra.mxu0 0
      %8377 = vmatprep.subr.bf16.mxu0 0
      %8378 = vmatpush1.bf16.msra.mxu0 0
      %8379 = vmatprep.subr.bf16.mxu0 0
      %8380 = vmatpush1.bf16.msra.mxu0 0
      %8381 = vmatprep.mubr.bf16.mxu0 %v8302
      %8382 = vmatmul.mubr.bf16.gmra.mrb[0].mxu0 %v8190
      %v8383 = vpop.f32.mrb[0].mxu0
      %v8384 = vadd.f32 %v8245, %v8383
      %v8385 = vpop.f32.mrb[0].mxu0
      %v8386 = vpop.f32.mrb[0].mxu0
      %v8387 = vadd.f32 %v8245, %v8386
      %v8388 = vpop.f32.mrb[0].mxu0
      %8389 = vmatprep.mubr.bf16.mxu0 %v8305
      %8390 = vmatmul.mubr.bf16.gmra.mrb[0].mxu0 %v8192
      %v8391 = vpop.f32.mrb[0].mxu0
      %v8392 = vadd.f32 %v8245, %v8391
      %v8393 = vpop.f32.mrb[0].mxu0
      %v8394 = vpop.f32.mrb[0].mxu0
      %v8395 = vadd.f32 %v8245, %v8394
      %v8396 = vpop.f32.mrb[0].mxu0
      %8397 = vmatprep.mubr.bf16.mxu0 %v8308
      %8398 = vmatmul.mubr.bf16.gmra.mrb[0].mxu0 %v8194
      %v8399 = vpop.f32.mrb[0].mxu0
      %v8400 = vadd.f32 %v8245, %v8399
      %v8401 = vpop.f32.mrb[0].mxu0
      %v8402 = vpop.f32.mrb[0].mxu0
      %v8403 = vadd.f32 %v8245, %v8402
      %v8404 = vpop.f32.mrb[0].mxu0
      %8405 = vmatprep.mubr.bf16.mxu0 %v8311
      %8406 = vmatmul.mubr.bf16.gmra.mrb[0].mxu0 %v8196
      %v8407 = vpop.f32.mrb[0].mxu0
      %v8408 = vadd.f32 %v8245, %v8407
      %v8409 = vpop.f32.mrb[0].mxu0
      %v8410 = vpop.f32.mrb[0].mxu0
      %v8411 = vadd.f32 %v8245, %v8410
      %v8412 = vpop.f32.mrb[0].mxu0
      %8413 = vmatprep.mubr.bf16.mxu0 %v8314
      %8414 = vmatmul.mubr.bf16.gmra.mrb[0].mxu0 %v8198
      %v8415 = vpop.f32.mrb[0].mxu0
      %v8416 = vadd.f32 %v8245, %v8415
      %v8417 = vpop.f32.mrb[0].mxu0
      %v8418 = vpop.f32.mrb[0].mxu0
      %v8419 = vadd.f32 %v8245, %v8418
      %v8420 = vpop.f32.mrb[0].mxu0
      %8421 = vmatprep.mubr.bf16.mxu0 %v8317
      %8422 = vmatmul.mubr.bf16.gmra.mrb[0].mxu0 %v8200
      %v8423 = vpop.f32.mrb[0].mxu0
      %v8424 = vadd.f32 %v8245, %v8423
      %v8425 = vpop.f32.mrb[0].mxu0
      %v8426 = vpop.f32.mrb[0].mxu0
      %v8427 = vadd.f32 %v8245, %v8426
      %v8428 = vpop.f32.mrb[0].mxu0
      %8429 = vmatprep.mubr.bf16.mxu0 %v8320
      %8430 = vmatmul.mubr.bf16.gmra.mrb[0].mxu0 %v8202
      %v8431 = vpop.f32.mrb[0].mxu0
      %v8432 = vadd.f32 %v8245, %v8431
      %v8433 = vpop.f32.mrb[0].mxu0
      %v8434 = vpop.f32.mrb[0].mxu0
      %v8435 = vadd.f32 %v8245, %v8434
      %v8436 = vpop.f32.mrb[0].mxu0
      %8437 = vmatprep.mubr.bf16.mxu0 %v8323
      %8438 = vmatmul.mubr.bf16.gmra.mrb[0].mxu0 %v8204
      %v8439 = vpop.f32.mrb[0].mxu0
      %v8440 = vadd.f32 %v8245, %v8439
      %v8441 = vpop.f32.mrb[0].mxu0
      %v8442 = vpop.f32.mrb[0].mxu0
      %v8443 = vadd.f32 %v8245, %v8442
      %v8444 = vpop.f32.mrb[0].mxu0
      %8445 = vmatprep.mubr.bf16.mxu0 %v8326
      %8446 = vmatmul.mubr.bf16.gmra.mrb[0].mxu0 %v8206
      %v8447 = vpop.f32.mrb[0].mxu0
      %v8448 = vadd.f32 %v8245, %v8447
      %v8449 = vpop.f32.mrb[0].mxu0
      %v8450 = vpop.f32.mrb[0].mxu0
      %v8451 = vadd.f32 %v8245, %v8450
      %v8452 = vpop.f32.mrb[0].mxu0
      %8453 = vmatprep.mubr.bf16.mxu0 %v8329
      %8454 = vmatmul.mubr.bf16.gmra.mrb[0].mxu0 %v8208
      %v8455 = vpop.f32.mrb[0].mxu0
      %v8456 = vadd.f32 %v8245, %v8455
      %v8457 = vpop.f32.mrb[0].mxu0
      %v8458 = vpop.f32.mrb[0].mxu0
      %v8459 = vadd.f32 %v8245, %v8458
      %v8460 = vpop.f32.mrb[0].mxu0
      %8461 = vmatprep.mubr.bf16.mxu0 %v8332
      %8462 = vmatmul.mubr.bf16.gmra.mrb[0].mxu0 %v8210
      %v8463 = vpop.f32.mrb[0].mxu0
      %v8464 = vadd.f32 %v8245, %v8463
      %v8465 = vpop.f32.mrb[0].mxu0
      %v8466 = vpop.f32.mrb[0].mxu0
      %v8467 = vadd.f32 %v8245, %v8466
      %v8468 = vpop.f32.mrb[0].mxu0
      %8469 = vmatprep.mubr.bf16.mxu0 %v8335
      %8470 = vmatmul.mubr.bf16.gmra.mrb[0].mxu0 %v8212
      %v8471 = vpop.f32.mrb[0].mxu0
      %v8472 = vadd.f32 %v8245, %v8471
      %v8473 = vpop.f32.mrb[0].mxu0
      %v8474 = vpop.f32.mrb[0].mxu0
      %v8475 = vadd.f32 %v8245, %v8474
      %v8476 = vpop.f32.mrb[0].mxu0
      %8477 = vmatprep.mubr.bf16.mxu0 %v8338
      %8478 = vmatmul.mubr.bf16.gmra.mrb[0].mxu0 %v8214
      %v8479 = vpop.f32.mrb[0].mxu0
      %v8480 = vadd.f32 %v8245, %v8479
      %v8481 = vpop.f32.mrb[0].mxu0
      %v8482 = vpop.f32.mrb[0].mxu0
      %v8483 = vadd.f32 %v8245, %v8482
      %v8484 = vpop.f32.mrb[0].mxu0
      %8485 = vmatprep.mubr.bf16.mxu0 %v8341
      %8486 = vmatmul.mubr.bf16.gmra.mrb[0].mxu0 %v8216
      %v8487 = vpop.f32.mrb[0].mxu0
      %v8488 = vadd.f32 %v8245, %v8487
      %v8489 = vpop.f32.mrb[0].mxu0
      %v8490 = vpop.f32.mrb[0].mxu0
      %v8491 = vadd.f32 %v8245, %v8490
      %v8492 = vpop.f32.mrb[0].mxu0
      %8493 = vmatprep.mubr.bf16.mxu0 %v8344
      %8494 = vmatmul.mubr.bf16.gmra.mrb[0].mxu0 %v8218
      %v8495 = vpop.f32.mrb[0].mxu0
      %v8496 = vadd.f32 %v8245, %v8495
      %v8497 = vpop.f32.mrb[0].mxu0
      %v8498 = vpop.f32.mrb[0].mxu0
      %v8499 = vadd.f32 %v8245, %v8498
      %v8500 = vpop.f32.mrb[0].mxu0
      %8501 = vmatprep.mubr.bf16.mxu0 %v8347
      %8502 = vmatmul.mubr.bf16.gmra.mrb[0].mxu0 %v8220
      %v8503 = vpop.f32.mrb[0].mxu0
      %v8504 = vadd.f32 %v8245, %v8503
      %v8505 = vpop.f32.mrb[0].mxu0
      %v8506 = vpop.f32.mrb[0].mxu0
      %v8507 = vadd.f32 %v8245, %v8506
      %v8508 = vpop.f32.mrb[0].mxu0
      %8509 = vdwg.mxu0
      %vm8510 = vcmp.gt.f32.partialorder %v8384, 0.0
      %vm8511 = vcmp.gt.f32.partialorder %v8387, 0.0
      %vm8512 = vcmp.gt.f32.partialorder %v8392, 0.0
      %vm8513 = vcmp.gt.f32.partialorder %v8395, 0.0
      %vm8514 = vcmp.gt.f32.partialorder %v8400, 0.0
      %vm8515 = vcmp.gt.f32.partialorder %v8403, 0.0
      %vm8516 = vcmp.gt.f32.partialorder %v8408, 0.0
      %vm8517 = vcmp.gt.f32.partialorder %v8411, 0.0
      %vm8518 = vcmp.gt.f32.partialorder %v8416, 0.0
      %vm8519 = vcmp.gt.f32.partialorder %v8419, 0.0
      %vm8520 = vcmp.gt.f32.partialorder %v8424, 0.0
      %vm8521 = vcmp.gt.f32.partialorder %v8427, 0.0
      %vm8522 = vcmp.gt.f32.partialorder %v8432, 0.0
      %vm8523 = vcmp.gt.f32.partialorder %v8435, 0.0
      %vm8524 = vcmp.gt.f32.partialorder %v8440, 0.0
      %vm8525 = vcmp.gt.f32.partialorder %v8443, 0.0
      %vm8526 = vcmp.gt.f32.partialorder %v8448, 0.0
      %vm8527 = vcmp.gt.f32.partialorder %v8451, 0.0
      %vm8528 = vcmp.gt.f32.partialorder %v8456, 0.0
      %vm8529 = vcmp.gt.f32.partialorder %v8459, 0.0
      %vm8530 = vcmp.gt.f32.partialorder %v8464, 0.0
      %vm8531 = vcmp.gt.f32.partialorder %v8467, 0.0
      %vm8532 = vcmp.gt.f32.partialorder %v8472, 0.0
      %vm8533 = vcmp.gt.f32.partialorder %v8475, 0.0
      %vm8534 = vcmp.gt.f32.partialorder %v8480, 0.0
      %vm8535 = vcmp.gt.f32.partialorder %v8483, 0.0
      %vm8536 = vcmp.gt.f32.partialorder %v8488, 0.0
      %vm8537 = vcmp.gt.f32.partialorder %v8491, 0.0
      %vm8538 = vcmp.gt.f32.partialorder %v8496, 0.0
      %vm8539 = vcmp.gt.f32.partialorder %v8499, 0.0
      %vm8540 = vcmp.gt.f32.partialorder %v8504, 0.0
      %vm8541 = vcmp.gt.f32.partialorder %v8507, 0.0
      %v8542 = vmul.f32 %v8384, 0.1
      %v8543 = vmul.f32 %v8387, 0.1
      %v8544 = vmul.f32 %v8392, 0.1
      %v8545 = vmul.f32 %v8395, 0.1
      %v8546 = vmul.f32 %v8400, 0.1
      %v8547 = vmul.f32 %v8403, 0.1
      %v8548 = vmul.f32 %v8408, 0.1
      %v8549 = vmul.f32 %v8411, 0.1
      %v8550 = vmul.f32 %v8416, 0.1
      %v8551 = vmul.f32 %v8419, 0.1
      %v8552 = vmul.f32 %v8424, 0.1
      %v8553 = vmul.f32 %v8427, 0.1
      %v8554 = vmul.f32 %v8432, 0.1
      %v8555 = vmul.f32 %v8435, 0.1
      %v8556 = vmul.f32 %v8440, 0.1
      %v8557 = vmul.f32 %v8443, 0.1
      %v8558 = vmul.f32 %v8448, 0.1
      %v8559 = vmul.f32 %v8451, 0.1
      %v8560 = vmul.f32 %v8456, 0.1
      %v8561 = vmul.f32 %v8459, 0.1
      %v8562 = vmul.f32 %v8464, 0.1
      %v8563 = vmul.f32 %v8467, 0.1
      %v8564 = vmul.f32 %v8472, 0.1
      %v8565 = vmul.f32 %v8475, 0.1
      %v8566 = vmul.f32 %v8480, 0.1
      %v8567 = vmul.f32 %v8483, 0.1
      %v8568 = vmul.f32 %v8488, 0.1
      %v8569 = vmul.f32 %v8491, 0.1
      %v8570 = vmul.f32 %v8496, 0.1
      %v8571 = vmul.f32 %v8499, 0.1
      %v8572 = vmul.f32 %v8504, 0.1
      %v8573 = vmul.f32 %v8507, 0.1
      %v8574 = vsel %vm8510, %v8384, %v8542
      %v8575 = vsel %vm8511, %v8387, %v8543
      %v8576 = vsel %vm8512, %v8392, %v8544
      %v8577 = vsel %vm8513, %v8395, %v8545
      %v8578 = vsel %vm8514, %v8400, %v8546
      %v8579 = vsel %vm8515, %v8403, %v8547
      %v8580 = vsel %vm8516, %v8408, %v8548
      %v8581 = vsel %vm8517, %v8411, %v8549
      %v8582 = vsel %vm8518, %v8416, %v8550
      %v8583 = vsel %vm8519, %v8419, %v8551
      %v8584 = vsel %vm8520, %v8424, %v8552
      %v8585 = vsel %vm8521, %v8427, %v8553
      %v8586 = vsel %vm8522, %v8432, %v8554
      %v8587 = vsel %vm8523, %v8435, %v8555
      %v8588 = vsel %vm8524, %v8440, %v8556
      %v8589 = vsel %vm8525, %v8443, %v8557
      %v8590 = vsel %vm8526, %v8448, %v8558
      %v8591 = vsel %vm8527, %v8451, %v8559
      %v8592 = vsel %vm8528, %v8456, %v8560
      %v8593 = vsel %vm8529, %v8459, %v8561
      %v8594 = vsel %vm8530, %v8464, %v8562
      %v8595 = vsel %vm8531, %v8467, %v8563
      %v8596 = vsel %vm8532, %v8472, %v8564
      %v8597 = vsel %vm8533, %v8475, %v8565
      %v8598 = vsel %vm8534, %v8480, %v8566
      %v8599 = vsel %vm8535, %v8483, %v8567
      %v8600 = vsel %vm8536, %v8488, %v8568
      %v8601 = vsel %vm8537, %v8491, %v8569
      %v8602 = vsel %vm8538, %v8496, %v8570
      %v8603 = vsel %vm8539, %v8499, %v8571
      %v8604 = vsel %vm8540, %v8504, %v8572
      %v8605 = vsel %vm8541, %v8507, %v8573
      %8638 = vrot.lane.b32.xlu0 %v6576, 112
      %v8639 = vpop.permute.xlu0 %8638
      %8640 = vrot.lane.b32.xlu0 %v6579, 112
      %v8641 = vpop.permute.xlu0 %8640
      %8642 = vrot.lane.b32.xlu0 %v6584, 112
      %v8643 = vpop.permute.xlu0 %8642
      %8644 = vrot.lane.b32.xlu0 %v6587, 112
      %v8645 = vpop.permute.xlu0 %8644
      %8646 = vrot.lane.b32.xlu0 %v6592, 112
      %v8647 = vpop.permute.xlu0 %8646
      %8648 = vrot.lane.b32.xlu0 %v6595, 112
      %v8649 = vpop.permute.xlu0 %8648
      %8650 = vrot.lane.b32.xlu0 %v6600, 112
      %v8651 = vpop.permute.xlu0 %8650
      %8652 = vrot.lane.b32.xlu0 %v6603, 112
      %v8653 = vpop.permute.xlu0 %8652
      %8654 = vrot.lane.b32.xlu0 %v6608, 112
      %v8655 = vpop.permute.xlu0 %8654
      %8656 = vrot.lane.b32.xlu0 %v6611, 112
      %v8657 = vpop.permute.xlu0 %8656
      %8658 = vrot.lane.b32.xlu0 %v6616, 112
      %v8659 = vpop.permute.xlu0 %8658
      %8660 = vrot.lane.b32.xlu0 %v6619, 112
      %v8661 = vpop.permute.xlu0 %8660
      %8662 = vrot.lane.b32.xlu0 %v6624, 112
      %v8663 = vpop.permute.xlu0 %8662
      %8664 = vrot.lane.b32.xlu0 %v6627, 112
      %v8665 = vpop.permute.xlu0 %8664
      %8666 = vrot.lane.b32.xlu0 %v6632, 112
      %v8667 = vpop.permute.xlu0 %8666
      %8668 = vrot.lane.b32.xlu0 %v6635, 112
      %v8669 = vpop.permute.xlu0 %8668
      %8670 = vrot.lane.b32.xlu0 %v6640, 112
      %v8671 = vpop.permute.xlu0 %8670
      %8672 = vrot.lane.b32.xlu0 %v6643, 112
      %v8673 = vpop.permute.xlu0 %8672
      %8674 = vrot.lane.b32.xlu0 %v6648, 112
      %v8675 = vpop.permute.xlu0 %8674
      %8676 = vrot.lane.b32.xlu0 %v6651, 112
      %v8677 = vpop.permute.xlu0 %8676
      %8678 = vrot.lane.b32.xlu0 %v6656, 112
      %v8679 = vpop.permute.xlu0 %8678
      %8680 = vrot.lane.b32.xlu0 %v6659, 112
      %v8681 = vpop.permute.xlu0 %8680
      %8682 = vrot.lane.b32.xlu0 %v6664, 112
      %v8683 = vpop.permute.xlu0 %8682
      %8684 = vrot.lane.b32.xlu0 %v6667, 112
      %v8685 = vpop.permute.xlu0 %8684
      %8686 = vrot.lane.b32.xlu0 %v6672, 112
      %v8687 = vpop.permute.xlu0 %8686
      %8688 = vrot.lane.b32.xlu0 %v6675, 112
      %v8689 = vpop.permute.xlu0 %8688
      %8690 = vrot.lane.b32.xlu0 %v6680, 112
      %v8691 = vpop.permute.xlu0 %8690
      %8692 = vrot.lane.b32.xlu0 %v6683, 112
      %v8693 = vpop.permute.xlu0 %8692
      %8694 = vrot.lane.b32.xlu0 %v6688, 112
      %v8695 = vpop.permute.xlu0 %8694
      %8696 = vrot.lane.b32.xlu0 %v6691, 112
      %v8697 = vpop.permute.xlu0 %8696
      %8698 = vrot.lane.b32.xlu0 %v6696, 112
      %v8699 = vpop.permute.xlu0 %8698
      %8700 = vrot.lane.b32.xlu0 %v6699, 112
      %v8701 = vpop.permute.xlu0 %8700
      %v8734 = vadd.f32 %v8574, %v8639
      %v8735 = vadd.f32 %v8575, %v8641
      %v8736 = vadd.f32 %v8576, %v8643
      %v8737 = vadd.f32 %v8577, %v8645
      %v8738 = vadd.f32 %v8578, %v8647
      %v8739 = vadd.f32 %v8579, %v8649
      %v8740 = vadd.f32 %v8580, %v8651
      %v8741 = vadd.f32 %v8581, %v8653
      %v8742 = vadd.f32 %v8582, %v8655
      %v8743 = vadd.f32 %v8583, %v8657
      %v8744 = vadd.f32 %v8584, %v8659
      %v8745 = vadd.f32 %v8585, %v8661
      %v8746 = vadd.f32 %v8586, %v8663
      %v8747 = vadd.f32 %v8587, %v8665
      %v8748 = vadd.f32 %v8588, %v8667
      %v8749 = vadd.f32 %v8589, %v8669
      %v8750 = vadd.f32 %v8590, %v8671
      %v8751 = vadd.f32 %v8591, %v8673
      %v8752 = vadd.f32 %v8592, %v8675
      %v8753 = vadd.f32 %v8593, %v8677
      %v8754 = vadd.f32 %v8594, %v8679
      %v8755 = vadd.f32 %v8595, %v8681
      %v8756 = vadd.f32 %v8596, %v8683
      %v8757 = vadd.f32 %v8597, %v8685
      %v8758 = vadd.f32 %v8598, %v8687
      %v8759 = vadd.f32 %v8599, %v8689
      %v8760 = vadd.f32 %v8600, %v8691
      %v8761 = vadd.f32 %v8601, %v8693
      %v8762 = vadd.f32 %v8602, %v8695
      %v8763 = vadd.f32 %v8603, %v8697
      %v8764 = vadd.f32 %v8604, %v8699
      %v8765 = vadd.f32 %v8605, %v8701
      %vm8766 = vcmp.gt.f32.partialorder %v8734, 0.0
      %vm8767 = vcmp.gt.f32.partialorder %v8735, 0.0
      %vm8768 = vcmp.gt.f32.partialorder %v8736, 0.0
      %vm8769 = vcmp.gt.f32.partialorder %v8737, 0.0
      %vm8770 = vcmp.gt.f32.partialorder %v8738, 0.0
      %vm8771 = vcmp.gt.f32.partialorder %v8739, 0.0
      %vm8772 = vcmp.gt.f32.partialorder %v8740, 0.0
      %vm8773 = vcmp.gt.f32.partialorder %v8741, 0.0
      %vm8774 = vcmp.gt.f32.partialorder %v8742, 0.0
      %vm8775 = vcmp.gt.f32.partialorder %v8743, 0.0
      %vm8776 = vcmp.gt.f32.partialorder %v8744, 0.0
      %vm8777 = vcmp.gt.f32.partialorder %v8745, 0.0
      %vm8778 = vcmp.gt.f32.partialorder %v8746, 0.0
      %vm8779 = vcmp.gt.f32.partialorder %v8747, 0.0
      %vm8780 = vcmp.gt.f32.partialorder %v8748, 0.0
      %vm8781 = vcmp.gt.f32.partialorder %v8749, 0.0
      %vm8782 = vcmp.gt.f32.partialorder %v8750, 0.0
      %vm8783 = vcmp.gt.f32.partialorder %v8751, 0.0
      %vm8784 = vcmp.gt.f32.partialorder %v8752, 0.0
      %vm8785 = vcmp.gt.f32.partialorder %v8753, 0.0
      %vm8786 = vcmp.gt.f32.partialorder %v8754, 0.0
      %vm8787 = vcmp.gt.f32.partialorder %v8755, 0.0
      %vm8788 = vcmp.gt.f32.partialorder %v8756, 0.0
      %vm8789 = vcmp.gt.f32.partialorder %v8757, 0.0
      %vm8790 = vcmp.gt.f32.partialorder %v8758, 0.0
      %vm8791 = vcmp.gt.f32.partialorder %v8759, 0.0
      %vm8792 = vcmp.gt.f32.partialorder %v8760, 0.0
      %vm8793 = vcmp.gt.f32.partialorder %v8761, 0.0
      %vm8794 = vcmp.gt.f32.partialorder %v8762, 0.0
      %vm8795 = vcmp.gt.f32.partialorder %v8763, 0.0
      %vm8796 = vcmp.gt.f32.partialorder %v8764, 0.0
      %vm8797 = vcmp.gt.f32.partialorder %v8765, 0.0
      %v8798 = vmul.f32 %v8734, 0.2
      %v8799 = vmul.f32 %v8735, 0.2
      %v8800 = vmul.f32 %v8736, 0.2
      %v8801 = vmul.f32 %v8737, 0.2
      %v8802 = vmul.f32 %v8738, 0.2
      %v8803 = vmul.f32 %v8739, 0.2
      %v8804 = vmul.f32 %v8740, 0.2
      %v8805 = vmul.f32 %v8741, 0.2
      %v8806 = vmul.f32 %v8742, 0.2
      %v8807 = vmul.f32 %v8743, 0.2
      %v8808 = vmul.f32 %v8744, 0.2
      %v8809 = vmul.f32 %v8745, 0.2
      %v8810 = vmul.f32 %v8746, 0.2
      %v8811 = vmul.f32 %v8747, 0.2
      %v8812 = vmul.f32 %v8748, 0.2
      %v8813 = vmul.f32 %v8749, 0.2
      %v8814 = vmul.f32 %v8750, 0.2
      %v8815 = vmul.f32 %v8751, 0.2
      %v8816 = vmul.f32 %v8752, 0.2
      %v8817 = vmul.f32 %v8753, 0.2
      %v8818 = vmul.f32 %v8754, 0.2
      %v8819 = vmul.f32 %v8755, 0.2
      %v8820 = vmul.f32 %v8756, 0.2
      %v8821 = vmul.f32 %v8757, 0.2
      %v8822 = vmul.f32 %v8758, 0.2
      %v8823 = vmul.f32 %v8759, 0.2
      %v8824 = vmul.f32 %v8760, 0.2
      %v8825 = vmul.f32 %v8761, 0.2
      %v8826 = vmul.f32 %v8762, 0.2
      %v8827 = vmul.f32 %v8763, 0.2
      %v8828 = vmul.f32 %v8764, 0.2
      %v8829 = vmul.f32 %v8765, 0.2
      %v8830 = vsel %vm8766, %v8734, %v8798
      %v8831 = vsel %vm8767, %v8735, %v8799
      %v8832 = vsel %vm8768, %v8736, %v8800
      %v8833 = vsel %vm8769, %v8737, %v8801
      %v8834 = vsel %vm8770, %v8738, %v8802
      %v8835 = vsel %vm8771, %v8739, %v8803
      %v8836 = vsel %vm8772, %v8740, %v8804
      %v8837 = vsel %vm8773, %v8741, %v8805
      %v8838 = vsel %vm8774, %v8742, %v8806
      %v8839 = vsel %vm8775, %v8743, %v8807
      %v8840 = vsel %vm8776, %v8744, %v8808
      %v8841 = vsel %vm8777, %v8745, %v8809
      %v8842 = vsel %vm8778, %v8746, %v8810
      %v8843 = vsel %vm8779, %v8747, %v8811
      %v8844 = vsel %vm8780, %v8748, %v8812
      %v8845 = vsel %vm8781, %v8749, %v8813
      %v8846 = vsel %vm8782, %v8750, %v8814
      %v8847 = vsel %vm8783, %v8751, %v8815
      %v8848 = vsel %vm8784, %v8752, %v8816
      %v8849 = vsel %vm8785, %v8753, %v8817
      %v8850 = vsel %vm8786, %v8754, %v8818
      %v8851 = vsel %vm8787, %v8755, %v8819
      %v8852 = vsel %vm8788, %v8756, %v8820
      %v8853 = vsel %vm8789, %v8757, %v8821
      %v8854 = vsel %vm8790, %v8758, %v8822
      %v8855 = vsel %vm8791, %v8759, %v8823
      %v8856 = vsel %vm8792, %v8760, %v8824
      %v8857 = vsel %vm8793, %v8761, %v8825
      %v8858 = vsel %vm8794, %v8762, %v8826
      %v8859 = vsel %vm8795, %v8763, %v8827
      %v8860 = vsel %vm8796, %v8764, %v8828
      %v8861 = vsel %vm8797, %v8765, %v8829
      %8894 = vrot.lane.b32.xlu0 %v4958, 4
      %v8895 = vpop.permute.xlu0 %8894
      %8896 = vrot.lane.b32.xlu0 %v4959, 4
      %v8897 = vpop.permute.xlu0 %8896
      %8898 = vrot.lane.b32.xlu0 %v4960, 4
      %v8899 = vpop.permute.xlu0 %8898
      %8900 = vrot.lane.b32.xlu0 %v4961, 4
      %v8901 = vpop.permute.xlu0 %8900
      %8902 = vrot.lane.b32.xlu0 %v4962, 4
      %v8903 = vpop.permute.xlu0 %8902
      %8904 = vrot.lane.b32.xlu0 %v4963, 4
      %v8905 = vpop.permute.xlu0 %8904
      %8906 = vrot.lane.b32.xlu0 %v4964, 4
      %v8907 = vpop.permute.xlu0 %8906
      %8908 = vrot.lane.b32.xlu0 %v4965, 4
      %v8909 = vpop.permute.xlu0 %8908
      %8910 = vrot.lane.b32.xlu0 %v4966, 4
      %v8911 = vpop.permute.xlu0 %8910
      %8912 = vrot.lane.b32.xlu0 %v4967, 4
      %v8913 = vpop.permute.xlu0 %8912
      %8914 = vrot.lane.b32.xlu0 %v4968, 4
      %v8915 = vpop.permute.xlu0 %8914
      %8916 = vrot.lane.b32.xlu0 %v4969, 4
      %v8917 = vpop.permute.xlu0 %8916
      %8918 = vrot.lane.b32.xlu0 %v4970, 4
      %v8919 = vpop.permute.xlu0 %8918
      %8920 = vrot.lane.b32.xlu0 %v4971, 4
      %v8921 = vpop.permute.xlu0 %8920
      %8922 = vrot.lane.b32.xlu0 %v4972, 4
      %v8923 = vpop.permute.xlu0 %8922
      %8924 = vrot.lane.b32.xlu0 %v4973, 4
      %v8925 = vpop.permute.xlu0 %8924
      %8926 = vrot.lane.b32.xlu0 %v4974, 4
      %v8927 = vpop.permute.xlu0 %8926
      %8928 = vrot.lane.b32.xlu0 %v4975, 4
      %v8929 = vpop.permute.xlu0 %8928
      %8930 = vrot.lane.b32.xlu0 %v4976, 4
      %v8931 = vpop.permute.xlu0 %8930
      %8932 = vrot.lane.b32.xlu0 %v4977, 4
      %v8933 = vpop.permute.xlu0 %8932
      %8934 = vrot.lane.b32.xlu0 %v4978, 4
      %v8935 = vpop.permute.xlu0 %8934
      %8936 = vrot.lane.b32.xlu0 %v4979, 4
      %v8937 = vpop.permute.xlu0 %8936
      %8938 = vrot.lane.b32.xlu0 %v4980, 4
      %v8939 = vpop.permute.xlu0 %8938
      %8940 = vrot.lane.b32.xlu0 %v4981, 4
      %v8941 = vpop.permute.xlu0 %8940
      %8942 = vrot.lane.b32.xlu0 %v4982, 4
      %v8943 = vpop.permute.xlu0 %8942
      %8944 = vrot.lane.b32.xlu0 %v4983, 4
      %v8945 = vpop.permute.xlu0 %8944
      %8946 = vrot.lane.b32.xlu0 %v4984, 4
      %v8947 = vpop.permute.xlu0 %8946
      %8948 = vrot.lane.b32.xlu0 %v4985, 4
      %v8949 = vpop.permute.xlu0 %8948
      %8950 = vrot.lane.b32.xlu0 %v4986, 4
      %v8951 = vpop.permute.xlu0 %8950
      %8952 = vrot.lane.b32.xlu0 %v4987, 4
      %v8953 = vpop.permute.xlu0 %8952
      %8954 = vrot.lane.b32.xlu0 %v4988, 4
      %v8955 = vpop.permute.xlu0 %8954
      %8956 = vrot.lane.b32.xlu0 %v4989, 4
      %v8957 = vpop.permute.xlu0 %8956
      %9022 = vrot.lane.b32.xlu0 %v8830, 20
      %v9023 = vpop.permute.xlu0 %9022
      %9024 = vrot.lane.b32.xlu0 %v8831, 20
      %v9025 = vpop.permute.xlu0 %9024
      %9026 = vrot.lane.b32.xlu0 %v8832, 20
      %v9027 = vpop.permute.xlu0 %9026
      %9028 = vrot.lane.b32.xlu0 %v8833, 20
      %v9029 = vpop.permute.xlu0 %9028
      %9030 = vrot.lane.b32.xlu0 %v8834, 20
      %v9031 = vpop.permute.xlu0 %9030
      %9032 = vrot.lane.b32.xlu0 %v8835, 20
      %v9033 = vpop.permute.xlu0 %9032
      %9034 = vrot.lane.b32.xlu0 %v8836, 20
      %v9035 = vpop.permute.xlu0 %9034
      %9036 = vrot.lane.b32.xlu0 %v8837, 20
      %v9037 = vpop.permute.xlu0 %9036
      %9038 = vrot.lane.b32.xlu0 %v8838, 20
      %v9039 = vpop.permute.xlu0 %9038
      %9040 = vrot.lane.b32.xlu0 %v8839, 20
      %v9041 = vpop.permute.xlu0 %9040
      %9042 = vrot.lane.b32.xlu0 %v8840, 20
      %v9043 = vpop.permute.xlu0 %9042
      %9044 = vrot.lane.b32.xlu0 %v8841, 20
      %v9045 = vpop.permute.xlu0 %9044
      %9046 = vrot.lane.b32.xlu0 %v8842, 20
      %v9047 = vpop.permute.xlu0 %9046
      %9048 = vrot.lane.b32.xlu0 %v8843, 20
      %v9049 = vpop.permute.xlu0 %9048
      %9050 = vrot.lane.b32.xlu0 %v8844, 20
      %v9051 = vpop.permute.xlu0 %9050
      %9052 = vrot.lane.b32.xlu0 %v8845, 20
      %v9053 = vpop.permute.xlu0 %9052
      %9054 = vrot.lane.b32.xlu0 %v8846, 20
      %v9055 = vpop.permute.xlu0 %9054
      %9056 = vrot.lane.b32.xlu0 %v8847, 20
      %v9057 = vpop.permute.xlu0 %9056
      %9058 = vrot.lane.b32.xlu0 %v8848, 20
      %v9059 = vpop.permute.xlu0 %9058
      %9060 = vrot.lane.b32.xlu0 %v8849, 20
      %v9061 = vpop.permute.xlu0 %9060
      %9062 = vrot.lane.b32.xlu0 %v8850, 20
      %v9063 = vpop.permute.xlu0 %9062
      %9064 = vrot.lane.b32.xlu0 %v8851, 20
      %v9065 = vpop.permute.xlu0 %9064
      %9066 = vrot.lane.b32.xlu0 %v8852, 20
      %v9067 = vpop.permute.xlu0 %9066
      %9068 = vrot.lane.b32.xlu0 %v8853, 20
      %v9069 = vpop.permute.xlu0 %9068
      %9070 = vrot.lane.b32.xlu0 %v8854, 20
      %v9071 = vpop.permute.xlu0 %9070
      %9072 = vrot.lane.b32.xlu0 %v8855, 20
      %v9073 = vpop.permute.xlu0 %9072
      %9074 = vrot.lane.b32.xlu0 %v8856, 20
      %v9075 = vpop.permute.xlu0 %9074
      %9076 = vrot.lane.b32.xlu0 %v8857, 20
      %v9077 = vpop.permute.xlu0 %9076
      %9078 = vrot.lane.b32.xlu0 %v8858, 20
      %v9079 = vpop.permute.xlu0 %9078
      %9080 = vrot.lane.b32.xlu0 %v8859, 20
      %v9081 = vpop.permute.xlu0 %9080
      %9082 = vrot.lane.b32.xlu0 %v8860, 20
      %v9083 = vpop.permute.xlu0 %9082
      %9084 = vrot.lane.b32.xlu0 %v8861, 20
      %v9085 = vpop.permute.xlu0 %9084
      %v9118 = vsel %vm1009, %v977, %v8895
      %v9119 = vsel %vm1009, %v978, %v8897
      %v9120 = vsel %vm1009, %v979, %v8899
      %v9121 = vsel %vm1009, %v980, %v8901
      %v9122 = vsel %vm1009, %v981, %v8903
      %v9123 = vsel %vm1009, %v982, %v8905
      %v9124 = vsel %vm1009, %v983, %v8907
      %v9125 = vsel %vm1009, %v984, %v8909
      %v9126 = vsel %vm1009, %v985, %v8911
      %v9127 = vsel %vm1009, %v986, %v8913
      %v9128 = vsel %vm1009, %v987, %v8915
      %v9129 = vsel %vm1009, %v988, %v8917
      %v9130 = vsel %vm1009, %v989, %v8919
      %v9131 = vsel %vm1009, %v990, %v8921
      %v9132 = vsel %vm1009, %v991, %v8923
      %v9133 = vsel %vm1009, %v992, %v8925
      %v9134 = vsel %vm1009, %v993, %v8927
      %v9135 = vsel %vm1009, %v994, %v8929
      %v9136 = vsel %vm1009, %v995, %v8931
      %v9137 = vsel %vm1009, %v996, %v8933
      %v9138 = vsel %vm1009, %v997, %v8935
      %v9139 = vsel %vm1009, %v998, %v8937
      %v9140 = vsel %vm1009, %v999, %v8939
      %v9141 = vsel %vm1009, %v1000, %v8941
      %v9142 = vsel %vm1009, %v1001, %v8943
      %v9143 = vsel %vm1009, %v1002, %v8945
      %v9144 = vsel %vm1009, %v1003, %v8947
      %v9145 = vsel %vm1009, %v1004, %v8949
      %v9146 = vsel %vm1009, %v1005, %v8951
      %v9147 = vsel %vm1009, %v1006, %v8953
      %v9148 = vsel %vm1009, %v1007, %v8955
      %v9149 = vsel %vm1009, %v1008, %v8957
      %v9150 = vsel %vm2436, %v9118, %v9023
      %v9151 = vsel %vm2436, %v9119, %v9025
      %v9152 = vsel %vm2436, %v9120, %v9027
      %v9153 = vsel %vm2436, %v9121, %v9029
      %v9154 = vsel %vm2436, %v9122, %v9031
      %v9155 = vsel %vm2436, %v9123, %v9033
      %v9156 = vsel %vm2436, %v9124, %v9035
      %v9157 = vsel %vm2436, %v9125, %v9037
      %v9158 = vsel %vm2436, %v9126, %v9039
      %v9159 = vsel %vm2436, %v9127, %v9041
      %v9160 = vsel %vm2436, %v9128, %v9043
      %v9161 = vsel %vm2436, %v9129, %v9045
      %v9162 = vsel %vm2436, %v9130, %v9047
      %v9163 = vsel %vm2436, %v9131, %v9049
      %v9164 = vsel %vm2436, %v9132, %v9051
      %v9165 = vsel %vm2436, %v9133, %v9053
      %v9166 = vsel %vm2436, %v9134, %v9055
      %v9167 = vsel %vm2436, %v9135, %v9057
      %v9168 = vsel %vm2436, %v9136, %v9059
      %v9169 = vsel %vm2436, %v9137, %v9061
      %v9170 = vsel %vm2436, %v9138, %v9063
      %v9171 = vsel %vm2436, %v9139, %v9065
      %v9172 = vsel %vm2436, %v9140, %v9067
      %v9173 = vsel %vm2436, %v9141, %v9069
      %v9174 = vsel %vm2436, %v9142, %v9071
      %v9175 = vsel %vm2436, %v9143, %v9073
      %v9176 = vsel %vm2436, %v9144, %v9075
      %v9177 = vsel %vm2436, %v9145, %v9077
      %v9178 = vsel %vm2436, %v9146, %v9079
      %v9179 = vsel %vm2436, %v9147, %v9081
      %v9180 = vsel %vm2436, %v9148, %v9083
      %v9181 = vsel %vm2436, %v9149, %v9085
      %v9182 = vpack.c.bf16 %v9151, %v9150
      %v9183 = vpack.c.bf16 %v9153, %v9152
      %v9184 = vpack.c.bf16 %v9155, %v9154
      %v9185 = vpack.c.bf16 %v9157, %v9156
      %v9186 = vpack.c.bf16 %v9159, %v9158
      %v9187 = vpack.c.bf16 %v9161, %v9160
      %v9188 = vpack.c.bf16 %v9163, %v9162
      %v9189 = vpack.c.bf16 %v9165, %v9164
      %v9190 = vpack.c.bf16 %v9167, %v9166
      %v9191 = vpack.c.bf16 %v9169, %v9168
      %v9192 = vpack.c.bf16 %v9171, %v9170
      %v9193 = vpack.c.bf16 %v9173, %v9172
      %v9194 = vpack.c.bf16 %v9175, %v9174
      %v9195 = vpack.c.bf16 %v9177, %v9176
      %v9196 = vpack.c.bf16 %v9179, %v9178
      %v9197 = vpack.c.bf16 %v9181, %v9180
      %v9198 = vld [vmem:[%s9] sm:$0xf]
      %v9199 = vld [vmem:[%s9 + $0x4] sm:$0xf]
      %v9200 = vld [vmem:[%s9 + $0x8] sm:$0xf]
      %v9201 = vld [vmem:[%s9 + $0xc] sm:$0xf]
      %v9202 = vld [vmem:[%s9 + $0x10] sm:$0x3]
      %v9208 = vunpack.c.l.b16 %v9198
      %v9209 = vunpack.c.l.b16 %v9199
      %v9210 = vunpack.c.l.b16 %v9200
      %v9211 = vunpack.c.l.b16 %v9201
      %v9212 = vunpack.c.l.b16 %v9202
      %v9213 = vpack.c.b16 %v9209, %v9208
      %v9214 = vpack.c.b16 %v9211, %v9210
      %v9215 = vpack.c.b16 %v9212, %v9212
      %v9219 = vsel %vm2611, %v9182, 0
      %v9222 = vsel %vm2611, %v9183, 0
      %v9225 = vsel %vm2611, %v9184, 0
      %v9228 = vsel %vm2611, %v9185, 0
      %v9231 = vsel %vm2611, %v9186, 0
      %v9234 = vsel %vm2611, %v9187, 0
      %v9237 = vsel %vm2611, %v9188, 0
      %v9240 = vsel %vm2611, %v9189, 0
      %v9243 = vsel %vm2611, %v9190, 0
      %v9246 = vsel %vm2611, %v9191, 0
      %v9249 = vsel %vm2611, %v9192, 0
      %v9252 = vsel %vm2611, %v9193, 0
      %v9255 = vsel %vm2611, %v9194, 0
      %v9258 = vsel %vm2611, %v9195, 0
      %v9261 = vsel %vm2611, %v9196, 0
      %v9264 = vsel %vm2611, %v9197, 0
      %v9267 = vsel %vm2660, %v9215, 0
      %9269 = vmatprep.subr.bf16.mxu0 0
      %9270 = vmatpush1.bf16.msra.mxu0 %v9213
      %9271 = vmatprep.subr.bf16.mxu0 0
      %9272 = vmatpush1.bf16.msra.mxu0 %v9214
      %9273 = vmatprep.subr.bf16.mxu0 0
      %9274 = vmatpush1.bf16.msra.mxu0 %v9267
      %9275 = vmatprep.subr.bf16.mxu0 0
      %9276 = vmatpush1.bf16.msra.mxu0 0
      %9277 = vmatprep.subr.bf16.mxu0 0
      %9278 = vmatpush1.bf16.msra.mxu0 0
      %9279 = vmatprep.subr.bf16.mxu0 0
      %9280 = vmatpush1.bf16.msra.mxu0 0
      %9281 = vmatprep.subr.bf16.mxu0 0
      %9282 = vmatpush1.bf16.msra.mxu0 0
      %9283 = vmatprep.subr.bf16.mxu0 0
      %9284 = vmatpush1.bf16.msra.mxu0 0
      %9285 = vmatprep.subr.bf16.mxu0 0
      %9286 = vmatpush1.bf16.msra.mxu0 0
      %9287 = vmatprep.subr.bf16.mxu0 0
      %9288 = vmatpush1.bf16.msra.mxu0 0
      %9289 = vmatprep.subr.bf16.mxu0 0
      %9290 = vmatpush1.bf16.msra.mxu0 0
      %9291 = vmatprep.subr.bf16.mxu0 0
      %9292 = vmatpush1.bf16.msra.mxu0 0
      %9293 = vmatprep.subr.bf16.mxu0 0
      %9294 = vmatpush1.bf16.msra.mxu0 0
      %9295 = vmatprep.subr.bf16.mxu0 0
      %9296 = vmatpush1.bf16.msra.mxu0 0
      %9297 = vmatprep.subr.bf16.mxu0 0
      %9298 = vmatpush1.bf16.msra.mxu0 0
      %9299 = vmatprep.subr.bf16.mxu0 0
      %9300 = vmatpush1.bf16.msra.mxu0 0
      %9301 = vmatprep.mubr.bf16.mxu0 0
      %9302 = vmatmul.mubr.bf16.gmra.mrb[0].mxu0 %v9219
      %v9303 = vpop.f32.mrb[0].mxu0
      %v9304 = vadd.f32 0.0, %v9303
      %v9305 = vpop.f32.mrb[0].mxu0
      %v9306 = vpop.f32.mrb[0].mxu0
      %v9307 = vadd.f32 0.0, %v9306
      %v9308 = vpop.f32.mrb[0].mxu0
      %9309 = vmatprep.mubr.bf16.mxu0 0
      %9310 = vmatmul.mubr.bf16.gmra.mrb[0].mxu0 %v9222
      %v9311 = vpop.f32.mrb[0].mxu0
      %v9312 = vadd.f32 0.0, %v9311
      %v9313 = vpop.f32.mrb[0].mxu0
      %v9314 = vpop.f32.mrb[0].mxu0
      %v9315 = vadd.f32 0.0, %v9314
      %v9316 = vpop.f32.mrb[0].mxu0
      %9317 = vmatprep.mubr.bf16.mxu0 0
      %9318 = vmatmul.mubr.bf16.gmra.mrb[0].mxu0 %v9225
      %v9319 = vpop.f32.mrb[0].mxu0
      %v9320 = vadd.f32 0.0, %v9319
      %v9321 = vpop.f32.mrb[0].mxu0
      %v9322 = vpop.f32.mrb[0].mxu0
      %v9323 = vadd.f32 0.0, %v9322
      %v9324 = vpop.f32.mrb[0].mxu0
      %9325 = vmatprep.mubr.bf16.mxu0 0
      %9326 = vmatmul.mubr.bf16.gmra.mrb[0].mxu0 %v9228
      %v9327 = vpop.f32.mrb[0].mxu0
      %v9328 = vadd.f32 0.0, %v9327
      %v9329 = vpop.f32.mrb[0].mxu0
      %v9330 = vpop.f32.mrb[0].mxu0
      %v9331 = vadd.f32 0.0, %v9330
      %v9332 = vpop.f32.mrb[0].mxu0
      %9333 = vmatprep.mubr.bf16.mxu0 0
      %9334 = vmatmul.mubr.bf16.gmra.mrb[0].mxu0 %v9231
      %v9335 = vpop.f32.mrb[0].mxu0
      %v9336 = vadd.f32 0.0, %v9335
      %v9337 = vpop.f32.mrb[0].mxu0
      %v9338 = vpop.f32.mrb[0].mxu0
      %v9339 = vadd.f32 0.0, %v9338
      %v9340 = vpop.f32.mrb[0].mxu0
      %9341 = vmatprep.mubr.bf16.mxu0 0
      %9342 = vmatmul.mubr.bf16.gmra.mrb[0].mxu0 %v9234
      %v9343 = vpop.f32.mrb[0].mxu0
      %v9344 = vadd.f32 0.0, %v9343
      %v9345 = vpop.f32.mrb[0].mxu0
      %v9346 = vpop.f32.mrb[0].mxu0
      %v9347 = vadd.f32 0.0, %v9346
      %v9348 = vpop.f32.mrb[0].mxu0
      %9349 = vmatprep.mubr.bf16.mxu0 0
      %9350 = vmatmul.mubr.bf16.gmra.mrb[0].mxu0 %v9237
      %v9351 = vpop.f32.mrb[0].mxu0
      %v9352 = vadd.f32 0.0, %v9351
      %v9353 = vpop.f32.mrb[0].mxu0
      %v9354 = vpop.f32.mrb[0].mxu0
      %v9355 = vadd.f32 0.0, %v9354
      %v9356 = vpop.f32.mrb[0].mxu0
      %9357 = vmatprep.mubr.bf16.mxu0 0
      %9358 = vmatmul.mubr.bf16.gmra.mrb[0].mxu0 %v9240
      %v9359 = vpop.f32.mrb[0].mxu0
      %v9360 = vadd.f32 0.0, %v9359
      %v9361 = vpop.f32.mrb[0].mxu0
      %v9362 = vpop.f32.mrb[0].mxu0
      %v9363 = vadd.f32 0.0, %v9362
      %v9364 = vpop.f32.mrb[0].mxu0
      %9365 = vmatprep.mubr.bf16.mxu0 0
      %9366 = vmatmul.mubr.bf16.gmra.mrb[0].mxu0 %v9243
      %v9367 = vpop.f32.mrb[0].mxu0
      %v9368 = vadd.f32 0.0, %v9367
      %v9369 = vpop.f32.mrb[0].mxu0
      %v9370 = vpop.f32.mrb[0].mxu0
      %v9371 = vadd.f32 0.0, %v9370
      %v9372 = vpop.f32.mrb[0].mxu0
      %9373 = vmatprep.mubr.bf16.mxu0 0
      %9374 = vmatmul.mubr.bf16.gmra.mrb[0].mxu0 %v9246
      %v9375 = vpop.f32.mrb[0].mxu0
      %v9376 = vadd.f32 0.0, %v9375
      %v9377 = vpop.f32.mrb[0].mxu0
      %v9378 = vpop.f32.mrb[0].mxu0
      %v9379 = vadd.f32 0.0, %v9378
      %v9380 = vpop.f32.mrb[0].mxu0
      %9381 = vmatprep.mubr.bf16.mxu0 0
      %9382 = vmatmul.mubr.bf16.gmra.mrb[0].mxu0 %v9249
      %v9383 = vpop.f32.mrb[0].mxu0
      %v9384 = vadd.f32 0.0, %v9383
      %v9385 = vpop.f32.mrb[0].mxu0
      %v9386 = vpop.f32.mrb[0].mxu0
      %v9387 = vadd.f32 0.0, %v9386
      %v9388 = vpop.f32.mrb[0].mxu0
      %9389 = vmatprep.mubr.bf16.mxu0 0
      %9390 = vmatmul.mubr.bf16.gmra.mrb[0].mxu0 %v9252
      %v9391 = vpop.f32.mrb[0].mxu0
      %v9392 = vadd.f32 0.0, %v9391
      %v9393 = vpop.f32.mrb[0].mxu0
      %v9394 = vpop.f32.mrb[0].mxu0
      %v9395 = vadd.f32 0.0, %v9394
      %v9396 = vpop.f32.mrb[0].mxu0
      %9397 = vmatprep.mubr.bf16.mxu0 0
      %9398 = vmatmul.mubr.bf16.gmra.mrb[0].mxu0 %v9255
      %v9399 = vpop.f32.mrb[0].mxu0
      %v9400 = vadd.f32 0.0, %v9399
      %v9401 = vpop.f32.mrb[0].mxu0
      %v9402 = vpop.f32.mrb[0].mxu0
      %v9403 = vadd.f32 0.0, %v9402
      %v9404 = vpop.f32.mrb[0].mxu0
      %9405 = vmatprep.mubr.bf16.mxu0 0
      %9406 = vmatmul.mubr.bf16.gmra.mrb[0].mxu0 %v9258
      %v9407 = vpop.f32.mrb[0].mxu0
      %v9408 = vadd.f32 0.0, %v9407
      %v9409 = vpop.f32.mrb[0].mxu0
      %v9410 = vpop.f32.mrb[0].mxu0
      %v9411 = vadd.f32 0.0, %v9410
      %v9412 = vpop.f32.mrb[0].mxu0
      %9413 = vmatprep.mubr.bf16.mxu0 0
      %9414 = vmatmul.mubr.bf16.gmra.mrb[0].mxu0 %v9261
      %v9415 = vpop.f32.mrb[0].mxu0
      %v9416 = vadd.f32 0.0, %v9415
      %v9417 = vpop.f32.mrb[0].mxu0
      %v9418 = vpop.f32.mrb[0].mxu0
      %v9419 = vadd.f32 0.0, %v9418
      %v9420 = vpop.f32.mrb[0].mxu0
      %9421 = vmatprep.mubr.bf16.mxu0 0
      %9422 = vmatmul.mubr.bf16.gmra.mrb[0].mxu0 %v9264
      %v9423 = vpop.f32.mrb[0].mxu0
      %v9424 = vadd.f32 0.0, %v9423
      %v9425 = vpop.f32.mrb[0].mxu0
      %v9426 = vpop.f32.mrb[0].mxu0
      %v9427 = vadd.f32 0.0, %v9426
      %v9428 = vpop.f32.mrb[0].mxu0
      %9429 = vdwg.mxu0
      %vm9430 = vcmp.gt.f32.partialorder %v9304, 0.0
      %vm9431 = vcmp.gt.f32.partialorder %v9307, 0.0
      %vm9432 = vcmp.gt.f32.partialorder %v9312, 0.0
      %vm9433 = vcmp.gt.f32.partialorder %v9315, 0.0
      %vm9434 = vcmp.gt.f32.partialorder %v9320, 0.0
      %vm9435 = vcmp.gt.f32.partialorder %v9323, 0.0
      %vm9436 = vcmp.gt.f32.partialorder %v9328, 0.0
      %vm9437 = vcmp.gt.f32.partialorder %v9331, 0.0
      %vm9438 = vcmp.gt.f32.partialorder %v9336, 0.0
      %vm9439 = vcmp.gt.f32.partialorder %v9339, 0.0
      %vm9440 = vcmp.gt.f32.partialorder %v9344, 0.0
      %vm9441 = vcmp.gt.f32.partialorder %v9347, 0.0
      %vm9442 = vcmp.gt.f32.partialorder %v9352, 0.0
      %vm9443 = vcmp.gt.f32.partialorder %v9355, 0.0
      %vm9444 = vcmp.gt.f32.partialorder %v9360, 0.0
      %vm9445 = vcmp.gt.f32.partialorder %v9363, 0.0
      %vm9446 = vcmp.gt.f32.partialorder %v9368, 0.0
      %vm9447 = vcmp.gt.f32.partialorder %v9371, 0.0
      %vm9448 = vcmp.gt.f32.partialorder %v9376, 0.0
      %vm9449 = vcmp.gt.f32.partialorder %v9379, 0.0
      %vm9450 = vcmp.gt.f32.partialorder %v9384, 0.0
      %vm9451 = vcmp.gt.f32.partialorder %v9387, 0.0
      %vm9452 = vcmp.gt.f32.partialorder %v9392, 0.0
      %vm9453 = vcmp.gt.f32.partialorder %v9395, 0.0
      %vm9454 = vcmp.gt.f32.partialorder %v9400, 0.0
      %vm9455 = vcmp.gt.f32.partialorder %v9403, 0.0
      %vm9456 = vcmp.gt.f32.partialorder %v9408, 0.0
      %vm9457 = vcmp.gt.f32.partialorder %v9411, 0.0
      %vm9458 = vcmp.gt.f32.partialorder %v9416, 0.0
      %vm9459 = vcmp.gt.f32.partialorder %v9419, 0.0
      %vm9460 = vcmp.gt.f32.partialorder %v9424, 0.0
      %vm9461 = vcmp.gt.f32.partialorder %v9427, 0.0
      %v9462 = vmul.f32 %v9304, 0.2
      %v9463 = vmul.f32 %v9307, 0.2
      %v9464 = vmul.f32 %v9312, 0.2
      %v9465 = vmul.f32 %v9315, 0.2
      %v9466 = vmul.f32 %v9320, 0.2
      %v9467 = vmul.f32 %v9323, 0.2
      %v9468 = vmul.f32 %v9328, 0.2
      %v9469 = vmul.f32 %v9331, 0.2
      %v9470 = vmul.f32 %v9336, 0.2
      %v9471 = vmul.f32 %v9339, 0.2
      %v9472 = vmul.f32 %v9344, 0.2
      %v9473 = vmul.f32 %v9347, 0.2
      %v9474 = vmul.f32 %v9352, 0.2
      %v9475 = vmul.f32 %v9355, 0.2
      %v9476 = vmul.f32 %v9360, 0.2
      %v9477 = vmul.f32 %v9363, 0.2
      %v9478 = vmul.f32 %v9368, 0.2
      %v9479 = vmul.f32 %v9371, 0.2
      %v9480 = vmul.f32 %v9376, 0.2
      %v9481 = vmul.f32 %v9379, 0.2
      %v9482 = vmul.f32 %v9384, 0.2
      %v9483 = vmul.f32 %v9387, 0.2
      %v9484 = vmul.f32 %v9392, 0.2
      %v9485 = vmul.f32 %v9395, 0.2
      %v9486 = vmul.f32 %v9400, 0.2
      %v9487 = vmul.f32 %v9403, 0.2
      %v9488 = vmul.f32 %v9408, 0.2
      %v9489 = vmul.f32 %v9411, 0.2
      %v9490 = vmul.f32 %v9416, 0.2
      %v9491 = vmul.f32 %v9419, 0.2
      %v9492 = vmul.f32 %v9424, 0.2
      %v9493 = vmul.f32 %v9427, 0.2
      %v9494 = vsel %vm9430, %v9304, %v9462
      %v9495 = vsel %vm9431, %v9307, %v9463
      %v9496 = vsel %vm9432, %v9312, %v9464
      %v9497 = vsel %vm9433, %v9315, %v9465
      %v9498 = vsel %vm9434, %v9320, %v9466
      %v9499 = vsel %vm9435, %v9323, %v9467
      %v9500 = vsel %vm9436, %v9328, %v9468
      %v9501 = vsel %vm9437, %v9331, %v9469
      %v9502 = vsel %vm9438, %v9336, %v9470
      %v9503 = vsel %vm9439, %v9339, %v9471
      %v9504 = vsel %vm9440, %v9344, %v9472
      %v9505 = vsel %vm9441, %v9347, %v9473
      %v9506 = vsel %vm9442, %v9352, %v9474
      %v9507 = vsel %vm9443, %v9355, %v9475
      %v9508 = vsel %vm9444, %v9360, %v9476
      %v9509 = vsel %vm9445, %v9363, %v9477
      %v9510 = vsel %vm9446, %v9368, %v9478
      %v9511 = vsel %vm9447, %v9371, %v9479
      %v9512 = vsel %vm9448, %v9376, %v9480
      %v9513 = vsel %vm9449, %v9379, %v9481
      %v9514 = vsel %vm9450, %v9384, %v9482
      %v9515 = vsel %vm9451, %v9387, %v9483
      %v9516 = vsel %vm9452, %v9392, %v9484
      %v9517 = vsel %vm9453, %v9395, %v9485
      %v9518 = vsel %vm9454, %v9400, %v9486
      %v9519 = vsel %vm9455, %v9403, %v9487
      %v9520 = vsel %vm9456, %v9408, %v9488
      %v9521 = vsel %vm9457, %v9411, %v9489
      %v9522 = vsel %vm9458, %v9416, %v9490
      %v9523 = vsel %vm9459, %v9419, %v9491
      %v9524 = vsel %vm9460, %v9424, %v9492
      %v9525 = vsel %vm9461, %v9427, %v9493
      %9526 = vst.msk [vmem:[%s359] sm:$0xff] %vm2338, %v9494
      %9527 = vst.msk [vmem:[%s359 + $0x8] sm:$0xff] %vm2338, %v9495
      %9528 = vst.msk [vmem:[%s359 + $0x10] sm:$0xff] %vm2338, %v9496
      %9529 = vst.msk [vmem:[%s359 + $0x18] sm:$0xff] %vm2338, %v9497
      %9530 = vst.msk [vmem:[%s359 + $0x20] sm:$0xff] %vm2338, %v9498
      %9531 = vst.msk [vmem:[%s359 + $0x28] sm:$0xff] %vm2338, %v9499
      %9532 = vst.msk [vmem:[%s359 + $0x30] sm:$0xff] %vm2338, %v9500
      %9533 = vst.msk [vmem:[%s359 + $0x38] sm:$0xff] %vm2338, %v9501
      %9534 = vst.msk [vmem:[%s359 + $0x40] sm:$0xff] %vm2338, %v9502
      %9535 = vst.msk [vmem:[%s359 + $0x48] sm:$0xff] %vm2338, %v9503
      %9536 = vst.msk [vmem:[%s359 + $0x50] sm:$0xff] %vm2338, %v9504
      %9537 = vst.msk [vmem:[%s359 + $0x58] sm:$0xff] %vm2338, %v9505
      %9538 = vst.msk [vmem:[%s359 + $0x60] sm:$0xff] %vm2338, %v9506
      %9539 = vst.msk [vmem:[%s359 + $0x68] sm:$0xff] %vm2338, %v9507
      %9540 = vst.msk [vmem:[%s359 + $0x70] sm:$0xff] %vm2338, %v9508
      %9541 = vst.msk [vmem:[%s359 + $0x78] sm:$0xff] %vm2338, %v9509
      %9542 = vst.msk [vmem:[%s359 + $0x80] sm:$0xff] %vm2338, %v9510
      %9543 = vst.msk [vmem:[%s359 + $0x88] sm:$0xff] %vm2338, %v9511
      %9544 = vst.msk [vmem:[%s359 + $0x90] sm:$0xff] %vm2338, %v9512
      %9545 = vst.msk [vmem:[%s359 + $0x98] sm:$0xff] %vm2338, %v9513
      %9546 = vst.msk [vmem:[%s359 + $0xa0] sm:$0xff] %vm2338, %v9514
      %9547 = vst.msk [vmem:[%s359 + $0xa8] sm:$0xff] %vm2338, %v9515
      %9548 = vst.msk [vmem:[%s359 + $0xb0] sm:$0xff] %vm2338, %v9516
      %9549 = vst.msk [vmem:[%s359 + $0xb8] sm:$0xff] %vm2338, %v9517
      %9550 = vst.msk [vmem:[%s359 + $0xc0] sm:$0xff] %vm2338, %v9518
      %9551 = vst.msk [vmem:[%s359 + $0xc8] sm:$0xff] %vm2338, %v9519
      %9552 = vst.msk [vmem:[%s359 + $0xd0] sm:$0xff] %vm2338, %v9520
      %9553 = vst.msk [vmem:[%s359 + $0xd8] sm:$0xff] %vm2338, %v9521
      %9554 = vst.msk [vmem:[%s359 + $0xe0] sm:$0xff] %vm2338, %v9522
      %9555 = vst.msk [vmem:[%s359 + $0xe8] sm:$0xff] %vm2338, %v9523
      %9556 = vst.msk [vmem:[%s359 + $0xf0] sm:$0xff] %vm2338, %v9524
      %9557 = vst.msk [vmem:[%s359 + $0xf8] sm:$0xff] %vm2338, %v9525
      %p9558 = scmp.lt.s32.totalorder %s21, 1
      %s9559 = scalar_select %p9558, %s21, 1
      %s9560 = smul.addr %s9559, 32
      %s9561 = smul.addr %s9560, 8
      %s9562 = scalar_lea.vmem %s10, %s9561
      // Predicated region
      $region61: #{dense_block_pallas.1} parent=59 // pred_check
        %p9563 = pneg %p254
      $region62: #{dense_block_pallas.1} parent=59 // pred_check_branch
        %9565 = sbr.rel (%p9563) target = $region64
      $region63: #{dense_block_pallas.1} parent=59 // pred_region
        _
      $region64: #{dense_block_pallas.1} parent=59 // pred_fallthru
        _
    $region60: #{dense_block_pallas.1} parent=5 // pred_fallthru
      _
    %p9566 = scmp.le.s32.totalorder 2, %s16
    // Predicated region
    $region65: #{dense_block_pallas.1} parent=5 // pred_check
      %p9567 = pneg %p9566
    $region66: #{dense_block_pallas.1} parent=5 // pred_check_branch
      %9569 = sbr.rel (%p9567) target = $region68
    $region67: #{dense_block_pallas.1} parent=5 // pred_region
      %s9570 = ssub.s32 %s16, 2
      // Predicated region
      $region69: #{dense_block_pallas.1} parent=67 // pred_check
        %p9571 = pneg %p260
      $region70: #{dense_block_pallas.1} parent=67 // pred_check_branch
        %9573 = sbr.rel (%p9571) target = $region72
      $region71: #{dense_block_pallas.1} parent=67 // pred_region
        %p9574 = scmp.lt.s32.totalorder %s22, 1
        %s9575 = scalar_select %p9574, %s22, 1
        %s9576 = smul.addr %s9575, 32
        %s9577 = smul.addr %s9576, 8
        %s9578 = scalar_lea.vmem %s10, %s9577
      $region72: #{dense_block_pallas.1} parent=67 // pred_fallthru
        _
    $region68: #{dense_block_pallas.1} parent=5 // pred_fallthru
      _
  $region6: #{dense_block_pallas.1} parent=0 // loop_footer
    %s20 = sadd.s32 1, %s16
  $region7: #{dense_block_pallas.1} parent=0 // loop_footer_branch
    %15 = sbr.rel target = $region3
  $region8: #{dense_block_pallas.1} parent=0 // loop_exit
    _

</llo_original>
